<compile_context>
chip_gen: v6e
topology: v6e:2x2x1
jax: 0.10.0
libtpu: 0.0.40
codegen_flags: <defaults>
</compile_context>

<pallas_src>
import math

import jax
import jax.numpy as jnp
from jax.experimental import pallas as pl
from jax.experimental.pallas import tpu as pltpu

# ----------------------------- configuration ---------------------------------
B = 2                       # batch
N = 64                      # number of gaussian points
IC = 32                     # intermediate_ch
D = 32                      # d_model (== intermediate_ch in the module)
N_FFT = 32
HOP = 8
WIN = 32
T_AUDIO = 64
FREQ = N_FFT // 2 + 1       # 17  (freq_num)
TIME = 1 + T_AUDIO // HOP   # 9   (time_num == number of STFT frames)
MAX_NORM = 25.0
SH_DIM = 150                # feature dim fed to pcd_av_proj (basic_project2(150, IC))
NUM_PE_FREQS = 10
EMB = 3 * (1 + 2 * NUM_PE_FREQS)   # 63
C0 = 0.28209479177387814
C1 = 0.4886025119029199
CONV_CH = 16                # hidden conv channels
KMAX = CONV_CH * TIME       # 144: widest lane extent in the conv stack
BM = max(IC, D)             # packed-bias row width (robust if IC != D)

# conv slab geometry: 4 images stacked along sublanes, every data block starts
# at a multiple-of-8 row and is surrounded by >=3 zero halo rows.
NIMG = 2 * B                # 4 images (B x {left, right})
SLAB0 = 8                   # scratch row where slab row 0 lives (head-room for tap slices)
SEG = 32                    # per-image segment: 8 top halo + 17 data + 7 bottom halo
SEG_TOP = 8
DATA0 = SLAB0 + SEG_TOP     # 16: first data row in the scratch (aligned)
SLAB = NIMG * SEG           # 128 rows fed to every conv GEMM
PADROWS = SLAB0 + SLAB + 8  # 144 scratch rows


# ------------------------------ Pallas kernel ---------------------------------
def avcloud_fused_kernel(
    shs_ref, semb_ref, dirs_ref, tfw_ref, refmag_ref,
    w1_ref, w2_ref, w3_ref, w4_ref, bvec_ref,
    freqw_ref, amw_ref, timew_ref, ac_ref, diffw_ref,
    cbias_ref, m1_hbm, m2_hbm, m3_hbm, scal_ref,
    out_ref,
    pad_ref, m1_v, m2_v, m3_v, dsem):
  """Whole AVCloudDir hot path in one invocation (grid=(1,))."""
  f32 = jnp.float32
  bf16 = jnp.bfloat16
  inv_sqrt_d = 1.0 / math.sqrt(D)
  inv_sqrt_n = 1.0 / math.sqrt(N)
  inv_sqrt_f = 1.0 / math.sqrt(FREQ)

  # conv banded weights (bulk of the input bytes) fetched manually so the HBM
  # traffic overlaps the MLP / attention phase (most useful on v5e).
  cp1 = pltpu.make_async_copy(m1_hbm, m1_v, dsem.at[0])
  cp2 = pltpu.make_async_copy(m2_hbm, m2_v, dsem.at[1])
  cp3 = pltpu.make_async_copy(m3_hbm, m3_v, dsem.at[2])
  cp1.start()
  cp2.start()
  cp3.start()

  # shared padded conv scratch, zeroed ONCE.  Halo rows are never written again
  # (write-backs touch data rows only), so every layer sees clean zero padding.
  pad_ref[...] = jnp.zeros((PADROWS, KMAX), f32)

  # scalars in SMEM: [a1 (PReLU), a3 (PReLU), mix_bias, diff_bias]
  a1 = scal_ref[0]
  a3 = scal_ref[1]
  mix_bias = scal_ref[2]
  diff_bias = scal_ref[3]

  def prelu(x, a):
    return jnp.maximum(x, 0.0) + a * jnp.minimum(x, 0.0)

  # ---- point MLPs (bf16 MXU operands, f32 accumulate) --------------------------
  # pcd_av_proj is batch-invariant -> computed once; vec_proj folds B into rows.
  h1 = prelu(jnp.dot(shs_ref[...], w1_ref[...], preferred_element_type=f32)
             + bvec_ref[0:1, 0:IC], a1)
  scene = (jnp.dot(h1.astype(bf16), w2_ref[...], preferred_element_type=f32)
           + bvec_ref[1:2, 0:D])                                           # (N, D)
  h2 = prelu(jnp.dot(semb_ref[...], w3_ref[...], preferred_element_type=f32)
             + bvec_ref[2:3, 0:IC], a3)
  ori_all = (jnp.dot(h2.astype(bf16), w4_ref[...], preferred_element_type=f32)
             + bvec_ref[3:4, 0:D])                                         # (B*N, D)

  # ---- frequency attention: both batches in ONE GEMM (shared freq_weights LHS) --
  s_all = (ori_all + jnp.concatenate([scene, scene], axis=0)).astype(bf16)  # (B*N, D)
  attn_all = jax.lax.dot_general(freqw_ref[...], s_all, (((1,), (1,)), ((), ())),
                                 preferred_element_type=f32) * inv_sqrt_d   # (F, B*N)
  # mix_prj(mix_feat) / diff_prj(hs) folded: attn @ [audio_f@mix_w | ori@diff_w]
  odw = jnp.dot(ori_all.astype(bf16), diffw_ref[...],
                preferred_element_type=f32)                                 # (B*N, 1)

  # eval_sh(deg=1) + time attention, batched over b (tfw pre-tiled on the host)
  dirs = dirs_ref[...]                                                      # (B*N, 3)
  xs = dirs[:, 0:1]
  ys = dirs[:, 1:2]
  zs = dirs[:, 2:3]
  sh_attn = (C0 * tfw_ref[0] - C1 * ys * tfw_ref[1]
             + C1 * zs * tfw_ref[2] - C1 * xs * tfw_ref[3])                 # (B*N, F)
  time_attn = jnp.dot(sh_attn.astype(bf16), timew_ref[...],
                      preferred_element_type=f32) * inv_sqrt_f              # (B*N, T)

  ac = ac_ref[...]                        # (N, 2T) bf16: [acoustic_t | acoustic_f]
  amw = amw_ref[...]                      # (N, 1) f32: audio_features_f @ mix_w

  for b in range(B):                      # static unroll (B = 2)
    r0 = b * N
    attn_b = attn_all[:, r0:r0 + N].astype(bf16)                            # (F, N)
    rhs2 = jnp.concatenate([amw, odw[r0:r0 + N, :]], axis=1).astype(bf16)   # (N, 2)
    md = jnp.dot(attn_b, rhs2, preferred_element_type=f32) * inv_sqrt_n     # (F, 2)
    mag_mask = md[:, 0:1] + mix_bias                                        # (F, 1)
    diff = 2.0 * jax.nn.sigmoid(md[:, 1:2] + diff_bias) - 1.0               # (F, 1)

    # time-mixing weight (T,T) and bias (F,T) fused into one N-contraction GEMM
    wb_lhs = jnp.concatenate([time_attn[r0:r0 + N, :], sh_attn[r0:r0 + N, :]],
                             axis=1).astype(bf16)                           # (N, T+F)
    wb = jax.lax.dot_general(wb_lhs, ac, (((0,), (0,)), ((), ())),
                             preferred_element_type=f32) * inv_sqrt_n       # (T+F, 2T)
    wmat = wb[0:TIME, 0:TIME]                                               # (T, T)
    bmat = wb[TIME:TIME + FREQ, TIME:2 * TIME]                              # (F, T)

    xmag = refmag_ref[b]                                                    # (F, T)
    mmx = mag_mask * xmag
    # mix_mag = (mag_mask * x) @ weight^T + bias
    mix_mag = jax.lax.dot_general(mmx.astype(bf16), wmat.astype(bf16),
                                  (((1,), (1,)), ((), ())),
                                  preferred_element_type=f32) + bmat        # (F, T)
    mm_bc = jnp.broadcast_to(mag_mask, (FREQ, TIME))

    for side in range(2):                      # 0: left (1-diff), 1: right (1+diff)
      sign = -1.0 if side == 0 else 1.0
      img = 2 * b + side
      resid = (1.0 + sign * diff) * mmx                                     # (F, T)
      row0 = DATA0 + img * SEG                 # 8-aligned data-row start
      # lane-sliced stores of the 4 conv input channels straight into the slab
      pad_ref[row0:row0 + FREQ, 0:TIME] = mix_mag
      pad_ref[row0:row0 + FREQ, TIME:2 * TIME] = resid
      pad_ref[row0:row0 + FREQ, 2 * TIME:3 * TIME] = mm_bc
      pad_ref[row0:row0 + FREQ, 3 * TIME:4 * TIME] = jnp.broadcast_to(
          sign * diff, (FREQ, TIME))
      # residual stashed in the output slab, re-read for the final +resid ReLU
      out_ref[:, img * TIME:(img + 1) * TIME] = resid

  # ---- output conv stack: all 4 images in one 128-row slab, ONE bf16 GEMM per
  # layer with the KH frequency taps folded into the contraction dimension. -----
  cp1.wait()
  cp2.wait()
  cp3.wait()

  def conv_lhs(cin_t, khs):
    ph = khs // 2
    parts = [pad_ref[SLAB0 - ph + kh:SLAB0 - ph + kh + SLAB, 0:cin_t].astype(bf16)
             for kh in range(khs)]
    return jnp.concatenate(parts, axis=1)                  # (SLAB, khs*cin_t)

  def write_back(h):
    # only data rows go back into the slab; halo rows stay zero
    for img in range(NIMG):
      src = SEG_TOP + img * SEG
      dst = DATA0 + img * SEG
      pad_ref[dst:dst + FREQ, 0:KMAX] = h[src:src + FREQ, :]

  h = jnp.dot(conv_lhs(4 * TIME, 7), m1_v[...], preferred_element_type=f32)
  write_back(jnp.maximum(h + cbias_ref[0:1, :], 0.0))

  h = jnp.dot(conv_lhs(KMAX, 3), m2_v[...], preferred_element_type=f32)
  write_back(jnp.maximum(h + cbias_ref[1:2, :], 0.0))

  h = (jnp.dot(conv_lhs(KMAX, 3), m3_v[...], preferred_element_type=f32)
       + cbias_ref[2:3, 0:TIME])                                            # (SLAB, T)
  for img in range(NIMG):
    src = SEG_TOP + img * SEG
    lo = img * TIME
    out_ref[:, lo:lo + TIME] = jnp.maximum(
        out_ref[:, lo:lo + TIME] + h[src:src + FREQ, :], 0.0)


# ------------------------------ kernel wrapper ---------------------------------
def build_conv_matrix(w):
  """(KH, KW, Cin, Cout) conv weights -> (KH*Cin*T, Cout*T) bf16 banded matrix.

  M[kh*Cin*T + ci*T + s, co*T + t] = w[kh, s - t + pw, ci, co] when valid, so
  that for a channel-major (freq x chan*time) activation slab the GEMM
  [shift_-ph | ... | shift_+ph] @ M reproduces a 'same' zero-padded conv.
  """
  kh, kw, cin, cout = w.shape
  pw = kw // 2
  s = jnp.arange(TIME)[:, None]
  t = jnp.arange(TIME)[None, :]
  k_idx = s - t + pw
  valid = ((k_idx >= 0) & (k_idx < kw)).astype(w.dtype)
  band = w[:, jnp.clip(k_idx, 0, kw - 1)]                    # (KH, T, T, Cin, Cout)
  band = band * valid[None, :, :, None, None]
  band = jnp.transpose(band, (0, 3, 1, 4, 2))                # (KH, Cin, T_in, Cout, T_out)
  return band.reshape(kh * cin * TIME, cout * TIME).astype(jnp.bfloat16)


def run_fused_model(shs, semb, dirs, tfw, ref_mag, p):
  assert IC == D  # d_model == intermediate_ch structurally in the module
  bf16 = jnp.bfloat16

  def pad_row(v):
    return jnp.pad(v, ((0, 0), (0, BM - v.shape[1])))

  bvec = jnp.concatenate([pad_row(p["b1"]), pad_row(p["b2"]),
                          pad_row(p["b3"]), pad_row(p["b4"])], axis=0)       # (4, BM)
  scal = jnp.stack([p["a1"], p["a3"], p["mix_b"], p["diff_b"]]).astype(jnp.float32)
  amw = jnp.dot(p["audio_f"], p["mix_w"])                                    # (N, 1)
  m1 = build_conv_matrix(p["cw1"])                                           # (252, 144)
  m2 = build_conv_matrix(p["cw2"])                                           # (432, 144)
  m3 = build_conv_matrix(p["cw3"])                                           # (432, 9)
  cbias = jnp.stack([
      jnp.repeat(p["cb1"], TIME),
      jnp.repeat(p["cb2"], TIME),
      jnp.pad(jnp.repeat(p["cb3"], TIME), (0, KMAX - TIME)),
  ]).astype(jnp.float32)                                                     # (3, 144)
  tfwt = jnp.tile(tfw, (1, B, 1)).astype(jnp.float32)                        # (4, B*N, F)

  def full(shape):
    return pl.BlockSpec(shape, lambda i: (0,) * len(shape))

  out = pl.pallas_call(
      avcloud_fused_kernel,
      grid=(1,),
      in_specs=[
          full((N, SH_DIM)), full((B * N, EMB)), full((B * N, 3)),
          full((4, B * N, FREQ)), full((B, FREQ, TIME)),
          full((SH_DIM, IC)), full((IC, D)), full((EMB, IC)), full((IC, D)),
          full((4, BM)),
          full((FREQ, D)), full((N, 1)), full((FREQ, TIME)), full((N, 2 * TIME)),
          full((D, 1)),
          full((3, KMAX)),
          pl.BlockSpec(memory_space=pl.ANY),
          pl.BlockSpec(memory_space=pl.ANY),
          pl.BlockSpec(memory_space=pl.ANY),
          pl.BlockSpec(memory_space=pltpu.MemorySpace.SMEM),
      ],
      out_specs=pl.BlockSpec((FREQ, NIMG * TIME), lambda i: (0, 0)),
      out_shape=jax.ShapeDtypeStruct((FREQ, NIMG * TIME), jnp.float32),
      scratch_shapes=[
          pltpu.VMEM((PADROWS, KMAX), jnp.float32),
          pltpu.VMEM((7 * 4 * TIME, KMAX), jnp.bfloat16),
          pltpu.VMEM((3 * KMAX, KMAX), jnp.bfloat16),
          pltpu.VMEM((3 * KMAX, TIME), jnp.bfloat16),
          pltpu.SemaphoreType.DMA((3,)),
      ],
      compiler_params=pltpu.CompilerParams(dimension_semantics=("arbitrary",)),
  )(shs.astype(bf16), semb.astype(bf16), dirs, tfwt, ref_mag,
    p["w1"].astype(bf16), p["w2"].astype(bf16), p["w3"].astype(bf16),
    p["w4"].astype(bf16), bvec,
    p["freq_w"].astype(bf16), amw, p["time_w"].astype(bf16),
    p["acoustic"].astype(bf16), p["diff_w"].astype(bf16),
    cbias, m1, m2, m3, scal)

  # (F, NIMG*T) lane-packed -> (NIMG, F, T), order [b0_left, b0_right, b1_left, b1_right]
  return jnp.transpose(out.reshape(FREQ, NIMG, TIME), (1, 0, 2))


# ------------------------------ plain-JAX glue ---------------------------------
def hann_window(n):
  return 0.5 * (1.0 - jnp.cos(2.0 * jnp.pi * jnp.arange(n, dtype=jnp.float32) / n))


def stft_mag_phase(x, n_fft, hop, window):
  # TODO(synk): torch.stft (FFT) has no clean Pallas equivalent; kept in plain JAX.
  pad = n_fft // 2
  xp = jnp.pad(x, ((0, 0), (pad, pad)), mode="reflect")
  n_frames = 1 + (xp.shape[1] - n_fft) // hop
  frames = jnp.stack([xp[:, t * hop:t * hop + n_fft] for t in range(n_frames)], axis=-1)
  frames = frames * window[None, :, None]
  spec = jnp.fft.rfft(frames, axis=1)              # (B, F, T)
  return jnp.abs(spec).astype(jnp.float32), jnp.angle(spec).astype(jnp.float32)


def istft(spec, n_fft, hop, window):
  # TODO(synk): torch.istft (FFT + overlap-add) kept in plain JAX.
  m, _, t = spec.shape
  frames = jnp.fft.irfft(spec, n=n_fft, axis=1) * window[None, :, None]
  out_len = n_fft + hop * (t - 1)
  y = jnp.zeros((m, out_len), jnp.float32)
  env = jnp.zeros((out_len,), jnp.float32)
  w2 = window * window
  for k in range(t):
    y = y.at[:, k * hop:k * hop + n_fft].add(frames[:, :, k])
    env = env.at[k * hop:k * hop + n_fft].add(w2)
  y = y / jnp.maximum(env[None, :], 1e-11)
  pad = n_fft // 2
  return y[:, pad:out_len - pad]


def embed_log(v):
  """embedding_module_log(num_freqs=10): [x, sin(2^k x)_k, cos(2^k x)_k]."""
  outs = [v]
  for fn in (jnp.sin, jnp.cos):
    for k in range(NUM_PE_FREQS):
      outs.append(fn((2.0 ** k) * v))
  return jnp.concatenate(outs, axis=-1)


def avcloud_dir_forward(params, cam_pose, source_gt_audio, input_bboxes, intri):
  window = hann_window(WIN)
  mono = jnp.mean(source_gt_audio, axis=1)                          # (B, T_audio)
  ref_mag, phase = stft_mag_phase(mono, N_FFT, HOP, window)         # (B, F, TIME)

  xyz = params["xyz"]                                               # (N, 3)
  camera_center = cam_pose[:, :3]
  camera_r = cam_pose[:, 3:].reshape(B, 3, 3)
  dir_pp = xyz[None, :, :] - camera_center[:, None, :]              # (B, N, 3)
  dir_pp_normalized = dir_pp / jnp.linalg.norm(dir_pp, axis=-1, keepdims=True)
  source_proj = jnp.einsum("bnd,bed->bne", dir_pp, camera_r) / MAX_NORM
  semb = embed_log(source_proj.reshape(-1, 3))                      # (B*N, EMB)
  dirs = dir_pp_normalized.reshape(B * N, 3)                        # (B*N, 3)

  # Active-speaker ray from bbox + intrinsics (feeds only the dead source_emb branch).
  input_center = (input_bboxes[:, :2] + input_bboxes[:, 2:]) / 2.0
  point_view = jnp.concatenate([input_center, jnp.ones((B, 1), jnp.float32)], axis=-1)
  pv_cam = jnp.einsum("bij,bj->bi", jnp.linalg.inv(intri), point_view)
  ori_dir = jnp.einsum("bij,bj->bi", camera_r, pv_cam)
  ori_dir = ori_dir / jnp.linalg.norm(ori_dir, axis=-1, keepdims=True)
  del ori_dir
  # TODO(synk): sound_source_vec / vec_proj1 / source_emb are dead code in the
  # reference forward (never consumed) and are skipped here.

  # Single fused Pallas call: point MLPs + attention + spec mix + conv stack
  # + residual/ReLU, returning the final magnitudes only.
  mags = run_fused_model(params["shs_view"], semb, dirs, params["tfw"],
                         ref_mag, params)                           # (2B, F, T)

  phase_rep = jnp.repeat(phase, 2, axis=0)                          # (2B, F, T)
  rec = mags * jnp.exp(1j * phase_rep)
  wav = istft(rec, N_FFT, HOP, window).reshape(B, 2, -1)
  return wav


# ------------------------------ parameter init ---------------------------------
def init_params(key):
  ks = jax.random.split(key, 24)

  def nrm(k, shape, scale=0.1):
    return (scale * jax.random.normal(k, shape)).astype(jnp.float32)

  p = {}
  p["xyz"] = nrm(ks[0], (N, 3), 1.0)                       # gaussian_model.get_xyz
  p["shs_view"] = nrm(ks[1], (N, SH_DIM), 0.5)             # SH colour features (150-d)
  # pcd_av_proj: basic_project2(150, IC), PReLU, basic_project2(IC, D)
  p["w1"] = nrm(ks[2], (SH_DIM, IC)); p["b1"] = nrm(ks[3], (1, IC))
  p["a1"] = jnp.asarray(0.25, jnp.float32)
  p["w2"] = nrm(ks[4], (IC, D)); p["b2"] = nrm(ks[5], (1, D))
  # vec_proj: basic_project2(63, IC), PReLU, basic_project2(IC, D)
  p["w3"] = nrm(ks[6], (EMB, IC)); p["b3"] = nrm(ks[7], (1, IC))
  p["a3"] = jnp.asarray(0.25, jnp.float32)
  p["w4"] = nrm(ks[8], (IC, D)); p["b4"] = nrm(ks[9], (1, D))
  # simple-sh parameters
  p["freq_w"] = nrm(ks[10], (FREQ, D), 1.0)                         # freq_weights
  p["audio_f"] = jnp.full((N, IC), 0.25, jnp.float32)               # _audio_features_f
  tfw = nrm(ks[11], (N, FREQ, 4), 1.0)                              # time_freq_weights
  p["tfw"] = jnp.transpose(tfw, (2, 0, 1))                          # (4, N, FREQ)
  p["time_w"] = nrm(ks[12], (FREQ, TIME), 1.0)                      # time_weights
  p["acoustic"] = nrm(ks[13], (N, 2 * TIME), 1.0)                   # _acoustic_features_t
  # mix / diff projections (biases are scalars -> packed into SMEM)
  p["mix_w"] = nrm(ks[14], (D, 1)); p["mix_b"] = nrm(ks[15], ())
  p["diff_w"] = nrm(ks[16], (D, 1)); p["diff_b"] = nrm(ks[17], ())
  # output conv stack (KH, KW, Cin, Cout)
  p["cw1"] = nrm(ks[18], (7, 7, 4, 16)); p["cb1"] = nrm(ks[19], (16,))
  p["cw2"] = nrm(ks[20], (3, 3, 16, 16)); p["cb2"] = nrm(ks[21], (16,))
  p["cw3"] = nrm(ks[22], (3, 3, 16, 1)); p["cb3"] = nrm(ks[23], (1,))
  return p


if __name__ == "__main__":
  key = jax.random.PRNGKey(0)
  kp, ka = jax.random.split(key, 2)
  params = init_params(kp)

  source_gt_audio = jax.random.normal(ka, (B, 2, T_AUDIO), jnp.float32)
  centers = jnp.array([[4.0, 4.0, 4.0], [-4.0, 3.0, 5.0]], jnp.float32)
  rots = jnp.stack([jnp.eye(3, dtype=jnp.float32)] * B).reshape(B, 9)
  cam_pose = jnp.concatenate([centers, rots], axis=-1)                # (B, 12)
  input_bboxes = jnp.array([[10., 20., 50., 60.], [5., 5., 40., 45.]], jnp.float32)
  intri = jnp.tile(jnp.array([[[50., 0., 16.], [0., 50., 16.], [0., 0., 1.]]],
                             jnp.float32), (B, 1, 1))

  fwd = jax.jit(avcloud_dir_forward)
  out_pred_wav = fwd(params, cam_pose, source_gt_audio, input_bboxes, intri)
  jax.block_until_ready(out_pred_wav)
  assert out_pred_wav.shape == (B, 2, HOP * (TIME - 1))
  print("KERNEL_OK")
</pallas_src>

<mosaic_0001>
module attributes {stable_mosaic.version = 11 : i64} {
  func.func @avcloud_fused_kernel(%arg0: i32, %arg1: memref<64x150xbf16, #tpu.memory_space<vmem>>, %arg2: memref<128x63xbf16, #tpu.memory_space<vmem>>, %arg3: memref<128x3xf32, #tpu.memory_space<vmem>>, %arg4: memref<4x128x17xf32, #tpu.memory_space<vmem>>, %arg5: memref<2x17x9xf32, #tpu.memory_space<vmem>>, %arg6: memref<150x32xbf16, #tpu.memory_space<vmem>>, %arg7: memref<32x32xbf16, #tpu.memory_space<vmem>>, %arg8: memref<63x32xbf16, #tpu.memory_space<vmem>>, %arg9: memref<32x32xbf16, #tpu.memory_space<vmem>>, %arg10: memref<4x32xf32, #tpu.memory_space<vmem>>, %arg11: memref<17x32xbf16, #tpu.memory_space<vmem>>, %arg12: memref<64x1xf32, #tpu.memory_space<vmem>>, %arg13: memref<17x9xbf16, #tpu.memory_space<vmem>>, %arg14: memref<64x18xbf16, #tpu.memory_space<vmem>>, %arg15: memref<32x1xbf16, #tpu.memory_space<vmem>>, %arg16: memref<3x144xf32, #tpu.memory_space<vmem>>, %arg17: memref<252x144xbf16, #tpu.memory_space<any>>, %arg18: memref<432x144xbf16, #tpu.memory_space<any>>, %arg19: memref<432x9xbf16, #tpu.memory_space<any>>, %arg20: memref<4xf32, #tpu.memory_space<smem>>, %arg21: memref<17x36xf32, #tpu.memory_space<vmem>>, %arg22: memref<144x144xf32, #tpu.memory_space<vmem>>, %arg23: memref<252x144xbf16, #tpu.memory_space<vmem>>, %arg24: memref<432x144xbf16, #tpu.memory_space<vmem>>, %arg25: memref<432x9xbf16, #tpu.memory_space<vmem>>, %arg26: memref<3x!tpu.dma_semaphore, #tpu.memory_space<semaphore_mem>>) attributes {dimension_semantics = [#tpu.dimension_semantics<arbitrary>], iteration_bounds = array<i64: 1>, scalar_prefetch = 0 : i64, scratch_operands = 5 : i64, tpu.core_type = #tpu.core_type<tc>, window_params = [{pipeline_mode = #tpu.pipeline_mode<synchronous>, transform_indices = @transform_0, window_bounds = array<i64: 64, 150>}, {pipeline_mode = #tpu.pipeline_mode<synchronous>, transform_indices = @transform_1, window_bounds = array<i64: 128, 63>}, {pipeline_mode = #tpu.pipeline_mode<synchronous>, transform_indices = @transform_2, window_bounds = array<i64: 128, 3>}, {pipeline_mode = #tpu.pipeline_mode<synchronous>, transform_indices = @transform_3, window_bounds = array<i64: 4, 128, 17>}, {pipeline_mode = #tpu.pipeline_mode<synchronous>, transform_indices = @transform_4, window_bounds = array<i64: 2, 17, 9>}, {pipeline_mode = #tpu.pipeline_mode<synchronous>, transform_indices = @transform_5, window_bounds = array<i64: 150, 32>}, {pipeline_mode = #tpu.pipeline_mode<synchronous>, transform_indices = @transform_6, window_bounds = array<i64: 32, 32>}, {pipeline_mode = #tpu.pipeline_mode<synchronous>, transform_indices = @transform_7, window_bounds = array<i64: 63, 32>}, {pipeline_mode = #tpu.pipeline_mode<synchronous>, transform_indices = @transform_8, window_bounds = array<i64: 32, 32>}, {pipeline_mode = #tpu.pipeline_mode<synchronous>, transform_indices = @transform_9, window_bounds = array<i64: 4, 32>}, {pipeline_mode = #tpu.pipeline_mode<synchronous>, transform_indices = @transform_10, window_bounds = array<i64: 17, 32>}, {pipeline_mode = #tpu.pipeline_mode<synchronous>, transform_indices = @transform_11, window_bounds = array<i64: 64, 1>}, {pipeline_mode = #tpu.pipeline_mode<synchronous>, transform_indices = @transform_12, window_bounds = array<i64: 17, 9>}, {pipeline_mode = #tpu.pipeline_mode<synchronous>, transform_indices = @transform_13, window_bounds = array<i64: 64, 18>}, {pipeline_mode = #tpu.pipeline_mode<synchronous>, transform_indices = @transform_14, window_bounds = array<i64: 32, 1>}, {pipeline_mode = #tpu.pipeline_mode<synchronous>, transform_indices = @transform_15, window_bounds = array<i64: 3, 144>}, {}, {}, {}, {transform_indices = @transform_19, window_bounds = array<i64: 4>}, {pipeline_mode = #tpu.pipeline_mode<synchronous>, transform_indices = @transform_20, window_bounds = array<i64: 17, 36>}]} {
    %c0_i32 = arith.constant 0 : i32
    %0 = tpu.memref_slice %arg26[%c0_i32] : memref<3x!tpu.dma_semaphore, #tpu.memory_space<semaphore_mem>> -> memref<1x!tpu.dma_semaphore, #tpu.memory_space<semaphore_mem>>
    %1 = tpu.memref_squeeze %0 : memref<1x!tpu.dma_semaphore, #tpu.memory_space<semaphore_mem>> -> memref<!tpu.dma_semaphore, #tpu.memory_space<semaphore_mem>>
    tpu.enqueue_dma source(%arg17 : memref<252x144xbf16, #tpu.memory_space<any>>) target(%arg23 : memref<252x144xbf16, #tpu.memory_space<vmem>>) target_semaphore(%1 : memref<!tpu.dma_semaphore, #tpu.memory_space<semaphore_mem>>)
    %c1_i32 = arith.constant 1 : i32
    %2 = tpu.memref_slice %arg26[%c1_i32] : memref<3x!tpu.dma_semaphore, #tpu.memory_space<semaphore_mem>> -> memref<1x!tpu.dma_semaphore, #tpu.memory_space<semaphore_mem>>
    %3 = tpu.memref_squeeze %2 : memref<1x!tpu.dma_semaphore, #tpu.memory_space<semaphore_mem>> -> memref<!tpu.dma_semaphore, #tpu.memory_space<semaphore_mem>>
    tpu.enqueue_dma source(%arg18 : memref<432x144xbf16, #tpu.memory_space<any>>) target(%arg24 : memref<432x144xbf16, #tpu.memory_space<vmem>>) target_semaphore(%3 : memref<!tpu.dma_semaphore, #tpu.memory_space<semaphore_mem>>)
    %c2_i32 = arith.constant 2 : i32
    %4 = tpu.memref_slice %arg26[%c2_i32] : memref<3x!tpu.dma_semaphore, #tpu.memory_space<semaphore_mem>> -> memref<1x!tpu.dma_semaphore, #tpu.memory_space<semaphore_mem>>
    %5 = tpu.memref_squeeze %4 : memref<1x!tpu.dma_semaphore, #tpu.memory_space<semaphore_mem>> -> memref<!tpu.dma_semaphore, #tpu.memory_space<semaphore_mem>>
    tpu.enqueue_dma source(%arg19 : memref<432x9xbf16, #tpu.memory_space<any>>) target(%arg25 : memref<432x9xbf16, #tpu.memory_space<vmem>>) target_semaphore(%5 : memref<!tpu.dma_semaphore, #tpu.memory_space<semaphore_mem>>)
    %cst = arith.constant 0.000000e+00 : f32
    %6 = vector.broadcast %cst : f32 to vector<144x144xf32>
    %c0 = arith.constant 0 : index
    %c0_0 = arith.constant 0 : index
    %7 = vector.load %arg22[%c0, %c0_0] : memref<144x144xf32, #tpu.memory_space<vmem>>, vector<144x144xf32>
    tpu.vector_store %arg22[%c0, %c0_0], %6 {strides = array<i32>} : memref<144x144xf32, #tpu.memory_space<vmem>>, vector<144x144xf32>,
    %c0_1 = arith.constant 0 : index
    %8 = memref.load %arg20[%c0_1] : memref<4xf32, #tpu.memory_space<smem>>
    %c1 = arith.constant 1 : index
    %9 = memref.load %arg20[%c1] : memref<4xf32, #tpu.memory_space<smem>>
    %c2 = arith.constant 2 : index
    %10 = memref.load %arg20[%c2] : memref<4xf32, #tpu.memory_space<smem>>
    %c3 = arith.constant 3 : index
    %11 = memref.load %arg20[%c3] : memref<4xf32, #tpu.memory_space<smem>>
    %c0_2 = arith.constant 0 : index
    %c0_3 = arith.constant 0 : index
    %12 = vector.load %arg1[%c0_2, %c0_3] : memref<64x150xbf16, #tpu.memory_space<vmem>>, vector<64x150xbf16>
    %c0_4 = arith.constant 0 : index
    %c0_5 = arith.constant 0 : index
    %13 = vector.load %arg6[%c0_4, %c0_5] : memref<150x32xbf16, #tpu.memory_space<vmem>>, vector<150x32xbf16>
    %cst_6 = arith.constant dense<0.000000e+00> : vector<64x32xf32>
    %14 = tpu.matmul %12, %13, %cst_6 {dimension_numbers = #tpu.dot_dimension_numbers<[1], [0], [0], [1], [0, 0, 1, 1], [], []>} : vector<64x150xbf16>, vector<150x32xbf16>, vector<64x32xf32> -> vector<64x32xf32>
    %c0_7 = arith.constant 0 : index
    %c0_8 = arith.constant 0 : index
    %15 = vector.load %arg10[%c0_7, %c0_8] : memref<4x32xf32, #tpu.memory_space<vmem>>, vector<1x32xf32>
    %16 = vector.broadcast %15 : vector<1x32xf32> to vector<64x32xf32>
    %17 = arith.addf %14, %16 : vector<64x32xf32>
    %cst_9 = arith.constant 0.000000e+00 : f32
    %18 = vector.broadcast %cst_9 : f32 to vector<64x32xf32>
    %19 = arith.maximumf %17, %18 : vector<64x32xf32>
    %cst_10 = arith.constant 0.000000e+00 : f32
    %20 = vector.broadcast %cst_10 : f32 to vector<64x32xf32>
    %21 = arith.minimumf %17, %20 : vector<64x32xf32>
    %22 = vector.broadcast %8 : f32 to vector<64x32xf32>
    %23 = arith.mulf %22, %21 : vector<64x32xf32>
    %24 = arith.addf %19, %23 : vector<64x32xf32>
    %25 = arith.truncf %24 : vector<64x32xf32> to vector<64x32xbf16>
    %c0_11 = arith.constant 0 : index
    %c0_12 = arith.constant 0 : index
    %26 = vector.load %arg7[%c0_11, %c0_12] : memref<32x32xbf16, #tpu.memory_space<vmem>>, vector<32x32xbf16>
    %cst_13 = arith.constant dense<0.000000e+00> : vector<64x32xf32>
    %27 = tpu.matmul %25, %26, %cst_13 {dimension_numbers = #tpu.dot_dimension_numbers<[1], [0], [0], [1], [0, 0, 1, 1], [], []>} : vector<64x32xbf16>, vector<32x32xbf16>, vector<64x32xf32> -> vector<64x32xf32>
    %c1_14 = arith.constant 1 : index
    %c0_15 = arith.constant 0 : index
    %28 = vector.load %arg10[%c1_14, %c0_15] : memref<4x32xf32, #tpu.memory_space<vmem>>, vector<1x32xf32>
    %29 = vector.broadcast %28 : vector<1x32xf32> to vector<64x32xf32>
    %30 = arith.addf %27, %29 : vector<64x32xf32>
    %c0_16 = arith.constant 0 : index
    %c0_17 = arith.constant 0 : index
    %31 = vector.load %arg2[%c0_16, %c0_17] : memref<128x63xbf16, #tpu.memory_space<vmem>>, vector<128x63xbf16>
    %c0_18 = arith.constant 0 : index
    %c0_19 = arith.constant 0 : index
    %32 = vector.load %arg8[%c0_18, %c0_19] : memref<63x32xbf16, #tpu.memory_space<vmem>>, vector<63x32xbf16>
    %cst_20 = arith.constant dense<0.000000e+00> : vector<128x32xf32>
    %33 = tpu.matmul %31, %32, %cst_20 {dimension_numbers = #tpu.dot_dimension_numbers<[1], [0], [0], [1], [0, 0, 1, 1], [], []>} : vector<128x63xbf16>, vector<63x32xbf16>, vector<128x32xf32> -> vector<128x32xf32>
    %c2_21 = arith.constant 2 : index
    %c0_22 = arith.constant 0 : index
    %34 = vector.load %arg10[%c2_21, %c0_22] : memref<4x32xf32, #tpu.memory_space<vmem>>, vector<1x32xf32>
    %35 = vector.broadcast %34 : vector<1x32xf32> to vector<128x32xf32>
    %36 = arith.addf %33, %35 : vector<128x32xf32>
    %cst_23 = arith.constant 0.000000e+00 : f32
    %37 = vector.broadcast %cst_23 : f32 to vector<128x32xf32>
    %38 = arith.maximumf %36, %37 : vector<128x32xf32>
    %cst_24 = arith.constant 0.000000e+00 : f32
    %39 = vector.broadcast %cst_24 : f32 to vector<128x32xf32>
    %40 = arith.minimumf %36, %39 : vector<128x32xf32>
    %41 = vector.broadcast %9 : f32 to vector<128x32xf32>
    %42 = arith.mulf %41, %40 : vector<128x32xf32>
    %43 = arith.addf %38, %42 : vector<128x32xf32>
    %44 = arith.truncf %43 : vector<128x32xf32> to vector<128x32xbf16>
    %c0_25 = arith.constant 0 : index
    %c0_26 = arith.constant 0 : index
    %45 = vector.load %arg9[%c0_25, %c0_26] : memref<32x32xbf16, #tpu.memory_space<vmem>>, vector<32x32xbf16>
    %cst_27 = arith.constant dense<0.000000e+00> : vector<128x32xf32>
    %46 = tpu.matmul %44, %45, %cst_27 {dimension_numbers = #tpu.dot_dimension_numbers<[1], [0], [0], [1], [0, 0, 1, 1], [], []>} : vector<128x32xbf16>, vector<32x32xbf16>, vector<128x32xf32> -> vector<128x32xf32>
    %c3_28 = arith.constant 3 : index
    %c0_29 = arith.constant 0 : index
    %47 = vector.load %arg10[%c3_28, %c0_29] : memref<4x32xf32, #tpu.memory_space<vmem>>, vector<1x32xf32>
    %48 = vector.broadcast %47 : vector<1x32xf32> to vector<128x32xf32>
    %49 = arith.addf %46, %48 : vector<128x32xf32>
    %50 = tpu.concatenate %30, %30 in 0 : vector<64x32xf32>, vector<64x32xf32> -> vector<128x32xf32>
    %51 = arith.addf %49, %50 : vector<128x32xf32>
    %52 = arith.truncf %51 : vector<128x32xf32> to vector<128x32xbf16>
    %c0_30 = arith.constant 0 : index
    %c0_31 = arith.constant 0 : index
    %53 = vector.load %arg11[%c0_30, %c0_31] : memref<17x32xbf16, #tpu.memory_space<vmem>>, vector<17x32xbf16>
    %cst_32 = arith.constant dense<0.000000e+00> : vector<17x128xf32>
    %54 = tpu.matmul %53, %52, %cst_32 {dimension_numbers = #tpu.dot_dimension_numbers<[1], [1], [0], [0], [0, 0, 1, 0], [], []>} : vector<17x32xbf16>, vector<128x32xbf16>, vector<17x128xf32> -> vector<17x128xf32>
    %cst_33 = arith.constant 0.176776692 : f32
    %55 = vector.broadcast %cst_33 : f32 to vector<17x128xf32>
    %56 = arith.mulf %54, %55 : vector<17x128xf32>
    %57 = arith.truncf %49 : vector<128x32xf32> to vector<128x32xbf16>
    %c0_34 = arith.constant 0 : index
    %c0_35 = arith.constant 0 : index
    %58 = vector.load %arg15[%c0_34, %c0_35] : memref<32x1xbf16, #tpu.memory_space<vmem>>, vector<32x1xbf16>
    %cst_36 = arith.constant dense<0.000000e+00> : vector<128x1xf32>
    %59 = tpu.matmul %57, %58, %cst_36 {dimension_numbers = #tpu.dot_dimension_numbers<[1], [0], [0], [1], [0, 0, 1, 1], [], []>} : vector<128x32xbf16>, vector<32x1xbf16>, vector<128x1xf32> -> vector<128x1xf32>
    %c0_37 = arith.constant 0 : index
    %c0_38 = arith.constant 0 : index
    %60 = vector.load %arg3[%c0_37, %c0_38] : memref<128x3xf32, #tpu.memory_space<vmem>>, vector<128x3xf32>
    %61 = vector.extract_strided_slice %60 {offsets = [0, 0], sizes = [128, 1], strides = [1, 1]} : vector<128x3xf32> to vector<128x1xf32>
    %62 = vector.extract_strided_slice %60 {offsets = [0, 1], sizes = [128, 1], strides = [1, 1]} : vector<128x3xf32> to vector<128x1xf32>
    %63 = vector.extract_strided_slice %60 {offsets = [0, 2], sizes = [128, 1], strides = [1, 1]} : vector<128x3xf32> to vector<128x1xf32>
    %c0_39 = arith.constant 0 : index
    %c0_40 = arith.constant 0 : index
    %c0_41 = arith.constant 0 : index
    %64 = vector.load %arg4[%c0_39, %c0_40, %c0_41] : memref<4x128x17xf32, #tpu.memory_space<vmem>>, vector<1x128x17xf32>
    %65 = vector.shape_cast %64 : vector<1x128x17xf32> to vector<128x17xf32>
    %cst_42 = arith.constant 0.282094806 : f32
    %66 = vector.broadcast %cst_42 : f32 to vector<128x17xf32>
    %67 = arith.mulf %66, %65 : vector<128x17xf32>
    %cst_43 = arith.constant 0.488602519 : f32
    %68 = vector.broadcast %cst_43 : f32 to vector<128x1xf32>
    %69 = arith.mulf %68, %62 : vector<128x1xf32>
    %c1_44 = arith.constant 1 : index
    %c0_45 = arith.constant 0 : index
    %c0_46 = arith.constant 0 : index
    %70 = vector.load %arg4[%c1_44, %c0_45, %c0_46] : memref<4x128x17xf32, #tpu.memory_space<vmem>>, vector<1x128x17xf32>
    %71 = vector.shape_cast %70 : vector<1x128x17xf32> to vector<128x17xf32>
    %72 = vector.broadcast %69 : vector<128x1xf32> to vector<128x17xf32>
    %73 = arith.mulf %72, %71 : vector<128x17xf32>
    %74 = arith.subf %67, %73 : vector<128x17xf32>
    %cst_47 = arith.constant 0.488602519 : f32
    %75 = vector.broadcast %cst_47 : f32 to vector<128x1xf32>
    %76 = arith.mulf %75, %63 : vector<128x1xf32>
    %c2_48 = arith.constant 2 : index
    %c0_49 = arith.constant 0 : index
    %c0_50 = arith.constant 0 : index
    %77 = vector.load %arg4[%c2_48, %c0_49, %c0_50] : memref<4x128x17xf32, #tpu.memory_space<vmem>>, vector<1x128x17xf32>
    %78 = vector.shape_cast %77 : vector<1x128x17xf32> to vector<128x17xf32>
    %79 = vector.broadcast %76 : vector<128x1xf32> to vector<128x17xf32>
    %80 = arith.mulf %79, %78 : vector<128x17xf32>
    %81 = arith.addf %74, %80 : vector<128x17xf32>
    %cst_51 = arith.constant 0.488602519 : f32
    %82 = vector.broadcast %cst_51 : f32 to vector<128x1xf32>
    %83 = arith.mulf %82, %61 : vector<128x1xf32>
    %c3_52 = arith.constant 3 : index
    %c0_53 = arith.constant 0 : index
    %c0_54 = arith.constant 0 : index
    %84 = vector.load %arg4[%c3_52, %c0_53, %c0_54] : memref<4x128x17xf32, #tpu.memory_space<vmem>>, vector<1x128x17xf32>
    %85 = vector.shape_cast %84 : vector<1x128x17xf32> to vector<128x17xf32>
    %86 = vector.broadcast %83 : vector<128x1xf32> to vector<128x17xf32>
    %87 = arith.mulf %86, %85 : vector<128x17xf32>
    %88 = arith.subf %81, %87 : vector<128x17xf32>
    %89 = arith.truncf %88 : vector<128x17xf32> to vector<128x17xbf16>
    %c0_55 = arith.constant 0 : index
    %c0_56 = arith.constant 0 : index
    %90 = vector.load %arg13[%c0_55, %c0_56] : memref<17x9xbf16, #tpu.memory_space<vmem>>, vector<17x9xbf16>
    %cst_57 = arith.constant dense<0.000000e+00> : vector<128x9xf32>
    %91 = tpu.matmul %89, %90, %cst_57 {dimension_numbers = #tpu.dot_dimension_numbers<[1], [0], [0], [1], [0, 0, 1, 1], [], []>} : vector<128x17xbf16>, vector<17x9xbf16>, vector<128x9xf32> -> vector<128x9xf32>
    %cst_58 = arith.constant 0.242535621 : f32
    %92 = vector.broadcast %cst_58 : f32 to vector<128x9xf32>
    %93 = arith.mulf %91, %92 : vector<128x9xf32>
    %c0_59 = arith.constant 0 : index
    %c0_60 = arith.constant 0 : index
    %94 = vector.load %arg14[%c0_59, %c0_60] : memref<64x18xbf16, #tpu.memory_space<vmem>>, vector<64x18xbf16>
    %c0_61 = arith.constant 0 : index
    %c0_62 = arith.constant 0 : index
    %95 = vector.load %arg12[%c0_61, %c0_62] : memref<64x1xf32, #tpu.memory_space<vmem>>, vector<64x1xf32>
    %96 = vector.extract_strided_slice %56 {offsets = [0, 0], sizes = [17, 64], strides = [1, 1]} : vector<17x128xf32> to vector<17x64xf32>
    %97 = arith.truncf %96 : vector<17x64xf32> to vector<17x64xbf16>
    %98 = vector.extract_strided_slice %59 {offsets = [0, 0], sizes = [64, 1], strides = [1, 1]} : vector<128x1xf32> to vector<64x1xf32>
    %99 = tpu.concatenate %95, %98 in 1 : vector<64x1xf32>, vector<64x1xf32> -> vector<64x2xf32>
    %100 = arith.truncf %99 : vector<64x2xf32> to vector<64x2xbf16>
    %cst_63 = arith.constant dense<0.000000e+00> : vector<17x2xf32>
    %101 = tpu.matmul %97, %100, %cst_63 {dimension_numbers = #tpu.dot_dimension_numbers<[1], [0], [0], [1], [0, 0, 1, 1], [], []>} : vector<17x64xbf16>, vector<64x2xbf16>, vector<17x2xf32> -> vector<17x2xf32>
    %cst_64 = arith.constant 1.250000e-01 : f32
    %102 = vector.broadcast %cst_64 : f32 to vector<17x2xf32>
    %103 = arith.mulf %101, %102 : vector<17x2xf32>
    %104 = vector.extract_strided_slice %103 {offsets = [0, 0], sizes = [17, 1], strides = [1, 1]} : vector<17x2xf32> to vector<17x1xf32>
    %105 = vector.broadcast %10 : f32 to vector<17x1xf32>
    %106 = arith.addf %104, %105 : vector<17x1xf32>
    %107 = vector.extract_strided_slice %103 {offsets = [0, 1], sizes = [17, 1], strides = [1, 1]} : vector<17x2xf32> to vector<17x1xf32>
    %108 = vector.broadcast %11 : f32 to vector<17x1xf32>
    %109 = arith.addf %107, %108 : vector<17x1xf32>
    %110 = arith.negf %109 : vector<17x1xf32>
    %111 = math.exp %110 : vector<17x1xf32>
    %cst_65 = arith.constant 1.000000e+00 : f32
    %112 = vector.broadcast %cst_65 : f32 to vector<17x1xf32>
    %113 = arith.addf %112, %111 : vector<17x1xf32>
    %114 = arith.divf %112, %113 : vector<17x1xf32>
    %cst_66 = arith.constant 2.000000e+00 : f32
    %115 = vector.broadcast %cst_66 : f32 to vector<17x1xf32>
    %116 = arith.mulf %115, %114 : vector<17x1xf32>
    %cst_67 = arith.constant 1.000000e+00 : f32
    %117 = vector.broadcast %cst_67 : f32 to vector<17x1xf32>
    %118 = arith.subf %116, %117 : vector<17x1xf32>
    %119 = vector.extract_strided_slice %93 {offsets = [0, 0], sizes = [64, 9], strides = [1, 1]} : vector<128x9xf32> to vector<64x9xf32>
    %120 = vector.extract_strided_slice %88 {offsets = [0, 0], sizes = [64, 17], strides = [1, 1]} : vector<128x17xf32> to vector<64x17xf32>
    %121 = tpu.concatenate %119, %120 in 1 : vector<64x9xf32>, vector<64x17xf32> -> vector<64x26xf32>
    %122 = arith.truncf %121 : vector<64x26xf32> to vector<64x26xbf16>
    %cst_68 = arith.constant dense<0.000000e+00> : vector<26x18xf32>
    %123 = tpu.matmul %122, %94, %cst_68 {dimension_numbers = #tpu.dot_dimension_numbers<[0], [0], [1], [1], [0, 1, 1, 1], [], []>} : vector<64x26xbf16>, vector<64x18xbf16>, vector<26x18xf32> -> vector<26x18xf32>
    %cst_69 = arith.constant 1.250000e-01 : f32
    %124 = vector.broadcast %cst_69 : f32 to vector<26x18xf32>
    %125 = arith.mulf %123, %124 : vector<26x18xf32>
    %126 = vector.extract_strided_slice %125 {offsets = [0, 0], sizes = [9, 9], strides = [1, 1]} : vector<26x18xf32> to vector<9x9xf32>
    %127 = vector.extract_strided_slice %125 {offsets = [9, 9], sizes = [17, 9], strides = [1, 1]} : vector<26x18xf32> to vector<17x9xf32>
    %c0_70 = arith.constant 0 : index
    %c0_71 = arith.constant 0 : index
    %c0_72 = arith.constant 0 : index
    %128 = vector.load %arg5[%c0_70, %c0_71, %c0_72] : memref<2x17x9xf32, #tpu.memory_space<vmem>>, vector<1x17x9xf32>
    %129 = vector.shape_cast %128 : vector<1x17x9xf32> to vector<17x9xf32>
    %130 = vector.broadcast %106 : vector<17x1xf32> to vector<17x9xf32>
    %131 = arith.mulf %130, %129 : vector<17x9xf32>
    %132 = arith.truncf %131 : vector<17x9xf32> to vector<17x9xbf16>
    %133 = arith.truncf %126 : vector<9x9xf32> to vector<9x9xbf16>
    %cst_73 = arith.constant dense<0.000000e+00> : vector<17x9xf32>
    %134 = tpu.matmul %132, %133, %cst_73 {dimension_numbers = #tpu.dot_dimension_numbers<[1], [1], [0], [0], [0, 0, 1, 0], [], []>} : vector<17x9xbf16>, vector<9x9xbf16>, vector<17x9xf32> -> vector<17x9xf32>
    %135 = arith.addf %134, %127 : vector<17x9xf32>
    %136 = vector.shape_cast %106 : vector<17x1xf32> to vector<17x1xf32>
    %137 = vector.broadcast %136 : vector<17x1xf32> to vector<17x9xf32>
    %cst_74 = arith.constant -1.000000e+00 : f32
    %138 = vector.broadcast %cst_74 : f32 to vector<17x1xf32>
    %139 = arith.mulf %138, %118 : vector<17x1xf32>
    %cst_75 = arith.constant 1.000000e+00 : f32
    %140 = vector.broadcast %cst_75 : f32 to vector<17x1xf32>
    %141 = arith.addf %140, %139 : vector<17x1xf32>
    %142 = vector.broadcast %141 : vector<17x1xf32> to vector<17x9xf32>
    %143 = arith.mulf %142, %131 : vector<17x9xf32>
    %c16 = arith.constant 16 : index
    %c0_76 = arith.constant 0 : index
    %144 = vector.load %arg22[%c16, %c0_76] : memref<144x144xf32, #tpu.memory_space<vmem>>, vector<17x9xf32>
    tpu.vector_store %arg22[%c16, %c0_76], %135 {strides = array<i32>} : memref<144x144xf32, #tpu.memory_space<vmem>>, vector<17x9xf32>,
    %c16_77 = arith.constant 16 : index
    %c9 = arith.constant 9 : index
    %145 = vector.load %arg22[%c16_77, %c9] : memref<144x144xf32, #tpu.memory_space<vmem>>, vector<17x9xf32>
    tpu.vector_store %arg22[%c16_77, %c9], %143 {strides = array<i32>} : memref<144x144xf32, #tpu.memory_space<vmem>>, vector<17x9xf32>,
    %c16_78 = arith.constant 16 : index
    %c18 = arith.constant 18 : index
    %146 = vector.load %arg22[%c16_78, %c18] : memref<144x144xf32, #tpu.memory_space<vmem>>, vector<17x9xf32>
    tpu.vector_store %arg22[%c16_78, %c18], %137 {strides = array<i32>} : memref<144x144xf32, #tpu.memory_space<vmem>>, vector<17x9xf32>,
    %cst_79 = arith.constant -1.000000e+00 : f32
    %147 = vector.broadcast %cst_79 : f32 to vector<17x1xf32>
    %148 = arith.mulf %147, %118 : vector<17x1xf32>
    %149 = vector.shape_cast %148 : vector<17x1xf32> to vector<17x1xf32>
    %150 = vector.broadcast %149 : vector<17x1xf32> to vector<17x9xf32>
    %c16_80 = arith.constant 16 : index
    %c27 = arith.constant 27 : index
    %151 = vector.load %arg22[%c16_80, %c27] : memref<144x144xf32, #tpu.memory_space<vmem>>, vector<17x9xf32>
    tpu.vector_store %arg22[%c16_80, %c27], %150 {strides = array<i32>} : memref<144x144xf32, #tpu.memory_space<vmem>>, vector<17x9xf32>,
    %c0_81 = arith.constant 0 : index
    %c0_82 = arith.constant 0 : index
    %152 = vector.load %arg21[%c0_81, %c0_82] : memref<17x36xf32, #tpu.memory_space<vmem>>, vector<17x9xf32>
    tpu.vector_store %arg21[%c0_81, %c0_82], %143 {strides = array<i32>} : memref<17x36xf32, #tpu.memory_space<vmem>>, vector<17x9xf32>,
    %cst_83 = arith.constant 1.000000e+00 : f32
    %153 = vector.broadcast %cst_83 : f32 to vector<17x1xf32>
    %154 = arith.mulf %153, %118 : vector<17x1xf32>
    %cst_84 = arith.constant 1.000000e+00 : f32
    %155 = vector.broadcast %cst_84 : f32 to vector<17x1xf32>
    %156 = arith.addf %155, %154 : vector<17x1xf32>
    %157 = vector.broadcast %156 : vector<17x1xf32> to vector<17x9xf32>
    %158 = arith.mulf %157, %131 : vector<17x9xf32>
    %c48 = arith.constant 48 : index
    %c0_85 = arith.constant 0 : index
    %159 = vector.load %arg22[%c48, %c0_85] : memref<144x144xf32, #tpu.memory_space<vmem>>, vector<17x9xf32>
    tpu.vector_store %arg22[%c48, %c0_85], %135 {strides = array<i32>} : memref<144x144xf32, #tpu.memory_space<vmem>>, vector<17x9xf32>,
    %c48_86 = arith.constant 48 : index
    %c9_87 = arith.constant 9 : index
    %160 = vector.load %arg22[%c48_86, %c9_87] : memref<144x144xf32, #tpu.memory_space<vmem>>, vector<17x9xf32>
    tpu.vector_store %arg22[%c48_86, %c9_87], %158 {strides = array<i32>} : memref<144x144xf32, #tpu.memory_space<vmem>>, vector<17x9xf32>,
    %c48_88 = arith.constant 48 : index
    %c18_89 = arith.constant 18 : index
    %161 = vector.load %arg22[%c48_88, %c18_89] : memref<144x144xf32, #tpu.memory_space<vmem>>, vector<17x9xf32>
    tpu.vector_store %arg22[%c48_88, %c18_89], %137 {strides = array<i32>} : memref<144x144xf32, #tpu.memory_space<vmem>>, vector<17x9xf32>,
    %cst_90 = arith.constant 1.000000e+00 : f32
    %162 = vector.broadcast %cst_90 : f32 to vector<17x1xf32>
    %163 = arith.mulf %162, %118 : vector<17x1xf32>
    %164 = vector.shape_cast %163 : vector<17x1xf32> to vector<17x1xf32>
    %165 = vector.broadcast %164 : vector<17x1xf32> to vector<17x9xf32>
    %c48_91 = arith.constant 48 : index
    %c27_92 = arith.constant 27 : index
    %166 = vector.load %arg22[%c48_91, %c27_92] : memref<144x144xf32, #tpu.memory_space<vmem>>, vector<17x9xf32>
    tpu.vector_store %arg22[%c48_91, %c27_92], %165 {strides = array<i32>} : memref<144x144xf32, #tpu.memory_space<vmem>>, vector<17x9xf32>,
    %c0_93 = arith.constant 0 : index
    %c9_94 = arith.constant 9 : index
    %167 = vector.load %arg21[%c0_93, %c9_94] : memref<17x36xf32, #tpu.memory_space<vmem>>, vector<17x9xf32>
    tpu.vector_store %arg21[%c0_93, %c9_94], %158 {strides = array<i32>} : memref<17x36xf32, #tpu.memory_space<vmem>>, vector<17x9xf32>,
    %168 = vector.extract_strided_slice %56 {offsets = [0, 64], sizes = [17, 64], strides = [1, 1]} : vector<17x128xf32> to vector<17x64xf32>
    %169 = arith.truncf %168 : vector<17x64xf32> to vector<17x64xbf16>
    %170 = vector.extract_strided_slice %59 {offsets = [64, 0], sizes = [64, 1], strides = [1, 1]} : vector<128x1xf32> to vector<64x1xf32>
    %171 = tpu.concatenate %95, %170 in 1 : vector<64x1xf32>, vector<64x1xf32> -> vector<64x2xf32>
    %172 = arith.truncf %171 : vector<64x2xf32> to vector<64x2xbf16>
    %cst_95 = arith.constant dense<0.000000e+00> : vector<17x2xf32>
    %173 = tpu.matmul %169, %172, %cst_95 {dimension_numbers = #tpu.dot_dimension_numbers<[1], [0], [0], [1], [0, 0, 1, 1], [], []>} : vector<17x64xbf16>, vector<64x2xbf16>, vector<17x2xf32> -> vector<17x2xf32>
    %cst_96 = arith.constant 1.250000e-01 : f32
    %174 = vector.broadcast %cst_96 : f32 to vector<17x2xf32>
    %175 = arith.mulf %173, %174 : vector<17x2xf32>
    %176 = vector.extract_strided_slice %175 {offsets = [0, 0], sizes = [17, 1], strides = [1, 1]} : vector<17x2xf32> to vector<17x1xf32>
    %177 = vector.broadcast %10 : f32 to vector<17x1xf32>
    %178 = arith.addf %176, %177 : vector<17x1xf32>
    %179 = vector.extract_strided_slice %175 {offsets = [0, 1], sizes = [17, 1], strides = [1, 1]} : vector<17x2xf32> to vector<17x1xf32>
    %180 = vector.broadcast %11 : f32 to vector<17x1xf32>
    %181 = arith.addf %179, %180 : vector<17x1xf32>
    %182 = arith.negf %181 : vector<17x1xf32>
    %183 = math.exp %182 : vector<17x1xf32>
    %cst_97 = arith.constant 1.000000e+00 : f32
    %184 = vector.broadcast %cst_97 : f32 to vector<17x1xf32>
    %185 = arith.addf %184, %183 : vector<17x1xf32>
    %186 = arith.divf %184, %185 : vector<17x1xf32>
    %cst_98 = arith.constant 2.000000e+00 : f32
    %187 = vector.broadcast %cst_98 : f32 to vector<17x1xf32>
    %188 = arith.mulf %187, %186 : vector<17x1xf32>
    %cst_99 = arith.constant 1.000000e+00 : f32
    %189 = vector.broadcast %cst_99 : f32 to vector<17x1xf32>
    %190 = arith.subf %188, %189 : vector<17x1xf32>
    %191 = vector.extract_strided_slice %93 {offsets = [64, 0], sizes = [64, 9], strides = [1, 1]} : vector<128x9xf32> to vector<64x9xf32>
    %192 = vector.extract_strided_slice %88 {offsets = [64, 0], sizes = [64, 17], strides = [1, 1]} : vector<128x17xf32> to vector<64x17xf32>
    %193 = tpu.concatenate %191, %192 in 1 : vector<64x9xf32>, vector<64x17xf32> -> vector<64x26xf32>
    %194 = arith.truncf %193 : vector<64x26xf32> to vector<64x26xbf16>
    %cst_100 = arith.constant dense<0.000000e+00> : vector<26x18xf32>
    %195 = tpu.matmul %194, %94, %cst_100 {dimension_numbers = #tpu.dot_dimension_numbers<[0], [0], [1], [1], [0, 1, 1, 1], [], []>} : vector<64x26xbf16>, vector<64x18xbf16>, vector<26x18xf32> -> vector<26x18xf32>
    %cst_101 = arith.constant 1.250000e-01 : f32
    %196 = vector.broadcast %cst_101 : f32 to vector<26x18xf32>
    %197 = arith.mulf %195, %196 : vector<26x18xf32>
    %198 = vector.extract_strided_slice %197 {offsets = [0, 0], sizes = [9, 9], strides = [1, 1]} : vector<26x18xf32> to vector<9x9xf32>
    %199 = vector.extract_strided_slice %197 {offsets = [9, 9], sizes = [17, 9], strides = [1, 1]} : vector<26x18xf32> to vector<17x9xf32>
    %c1_102 = arith.constant 1 : index
    %c0_103 = arith.constant 0 : index
    %c0_104 = arith.constant 0 : index
    %200 = vector.load %arg5[%c1_102, %c0_103, %c0_104] : memref<2x17x9xf32, #tpu.memory_space<vmem>>, vector<1x17x9xf32>
    %201 = vector.shape_cast %200 : vector<1x17x9xf32> to vector<17x9xf32>
    %202 = vector.broadcast %178 : vector<17x1xf32> to vector<17x9xf32>
    %203 = arith.mulf %202, %201 : vector<17x9xf32>
    %204 = arith.truncf %203 : vector<17x9xf32> to vector<17x9xbf16>
    %205 = arith.truncf %198 : vector<9x9xf32> to vector<9x9xbf16>
    %cst_105 = arith.constant dense<0.000000e+00> : vector<17x9xf32>
    %206 = tpu.matmul %204, %205, %cst_105 {dimension_numbers = #tpu.dot_dimension_numbers<[1], [1], [0], [0], [0, 0, 1, 0], [], []>} : vector<17x9xbf16>, vector<9x9xbf16>, vector<17x9xf32> -> vector<17x9xf32>
    %207 = arith.addf %206, %199 : vector<17x9xf32>
    %208 = vector.shape_cast %178 : vector<17x1xf32> to vector<17x1xf32>
    %209 = vector.broadcast %208 : vector<17x1xf32> to vector<17x9xf32>
    %cst_106 = arith.constant -1.000000e+00 : f32
    %210 = vector.broadcast %cst_106 : f32 to vector<17x1xf32>
    %211 = arith.mulf %210, %190 : vector<17x1xf32>
    %cst_107 = arith.constant 1.000000e+00 : f32
    %212 = vector.broadcast %cst_107 : f32 to vector<17x1xf32>
    %213 = arith.addf %212, %211 : vector<17x1xf32>
    %214 = vector.broadcast %213 : vector<17x1xf32> to vector<17x9xf32>
    %215 = arith.mulf %214, %203 : vector<17x9xf32>
    %c80 = arith.constant 80 : index
    %c0_108 = arith.constant 0 : index
    %216 = vector.load %arg22[%c80, %c0_108] : memref<144x144xf32, #tpu.memory_space<vmem>>, vector<17x9xf32>
    tpu.vector_store %arg22[%c80, %c0_108], %207 {strides = array<i32>} : memref<144x144xf32, #tpu.memory_space<vmem>>, vector<17x9xf32>,
    %c80_109 = arith.constant 80 : index
    %c9_110 = arith.constant 9 : index
    %217 = vector.load %arg22[%c80_109, %c9_110] : memref<144x144xf32, #tpu.memory_space<vmem>>, vector<17x9xf32>
    tpu.vector_store %arg22[%c80_109, %c9_110], %215 {strides = array<i32>} : memref<144x144xf32, #tpu.memory_space<vmem>>, vector<17x9xf32>,
    %c80_111 = arith.constant 80 : index
    %c18_112 = arith.constant 18 : index
    %218 = vector.load %arg22[%c80_111, %c18_112] : memref<144x144xf32, #tpu.memory_space<vmem>>, vector<17x9xf32>
    tpu.vector_store %arg22[%c80_111, %c18_112], %209 {strides = array<i32>} : memref<144x144xf32, #tpu.memory_space<vmem>>, vector<17x9xf32>,
    %cst_113 = arith.constant -1.000000e+00 : f32
    %219 = vector.broadcast %cst_113 : f32 to vector<17x1xf32>
    %220 = arith.mulf %219, %190 : vector<17x1xf32>
    %221 = vector.shape_cast %220 : vector<17x1xf32> to vector<17x1xf32>
    %222 = vector.broadcast %221 : vector<17x1xf32> to vector<17x9xf32>
    %c80_114 = arith.constant 80 : index
    %c27_115 = arith.constant 27 : index
    %223 = vector.load %arg22[%c80_114, %c27_115] : memref<144x144xf32, #tpu.memory_space<vmem>>, vector<17x9xf32>
    tpu.vector_store %arg22[%c80_114, %c27_115], %222 {strides = array<i32>} : memref<144x144xf32, #tpu.memory_space<vmem>>, vector<17x9xf32>,
    %c0_116 = arith.constant 0 : index
    %c18_117 = arith.constant 18 : index
    %224 = vector.load %arg21[%c0_116, %c18_117] : memref<17x36xf32, #tpu.memory_space<vmem>>, vector<17x9xf32>
    tpu.vector_store %arg21[%c0_116, %c18_117], %215 {strides = array<i32>} : memref<17x36xf32, #tpu.memory_space<vmem>>, vector<17x9xf32>,
    %cst_118 = arith.constant 1.000000e+00 : f32
    %225 = vector.broadcast %cst_118 : f32 to vector<17x1xf32>
    %226 = arith.mulf %225, %190 : vector<17x1xf32>
    %cst_119 = arith.constant 1.000000e+00 : f32
    %227 = vector.broadcast %cst_119 : f32 to vector<17x1xf32>
    %228 = arith.addf %227, %226 : vector<17x1xf32>
    %229 = vector.broadcast %228 : vector<17x1xf32> to vector<17x9xf32>
    %230 = arith.mulf %229, %203 : vector<17x9xf32>
    %c112 = arith.constant 112 : index
    %c0_120 = arith.constant 0 : index
    %231 = vector.load %arg22[%c112, %c0_120] : memref<144x144xf32, #tpu.memory_space<vmem>>, vector<17x9xf32>
    tpu.vector_store %arg22[%c112, %c0_120], %207 {strides = array<i32>} : memref<144x144xf32, #tpu.memory_space<vmem>>, vector<17x9xf32>,
    %c112_121 = arith.constant 112 : index
    %c9_122 = arith.constant 9 : index
    %232 = vector.load %arg22[%c112_121, %c9_122] : memref<144x144xf32, #tpu.memory_space<vmem>>, vector<17x9xf32>
    tpu.vector_store %arg22[%c112_121, %c9_122], %230 {strides = array<i32>} : memref<144x144xf32, #tpu.memory_space<vmem>>, vector<17x9xf32>,
    %c112_123 = arith.constant 112 : index
    %c18_124 = arith.constant 18 : index
    %233 = vector.load %arg22[%c112_123, %c18_124] : memref<144x144xf32, #tpu.memory_space<vmem>>, vector<17x9xf32>
    tpu.vector_store %arg22[%c112_123, %c18_124], %209 {strides = array<i32>} : memref<144x144xf32, #tpu.memory_space<vmem>>, vector<17x9xf32>,
    %cst_125 = arith.constant 1.000000e+00 : f32
    %234 = vector.broadcast %cst_125 : f32 to vector<17x1xf32>
    %235 = arith.mulf %234, %190 : vector<17x1xf32>
    %236 = vector.shape_cast %235 : vector<17x1xf32> to vector<17x1xf32>
    %237 = vector.broadcast %236 : vector<17x1xf32> to vector<17x9xf32>
    %c112_126 = arith.constant 112 : index
    %c27_127 = arith.constant 27 : index
    %238 = vector.load %arg22[%c112_126, %c27_127] : memref<144x144xf32, #tpu.memory_space<vmem>>, vector<17x9xf32>
    tpu.vector_store %arg22[%c112_126, %c27_127], %237 {strides = array<i32>} : memref<144x144xf32, #tpu.memory_space<vmem>>, vector<17x9xf32>,
    %c0_128 = arith.constant 0 : index
    %c27_129 = arith.constant 27 : index
    %239 = vector.load %arg21[%c0_128, %c27_129] : memref<17x36xf32, #tpu.memory_space<vmem>>, vector<17x9xf32>
    tpu.vector_store %arg21[%c0_128, %c27_129], %230 {strides = array<i32>} : memref<17x36xf32, #tpu.memory_space<vmem>>, vector<17x9xf32>,
    %c0_i32_130 = arith.constant 0 : i32
    %240 = tpu.memref_slice %arg26[%c0_i32_130] : memref<3x!tpu.dma_semaphore, #tpu.memory_space<semaphore_mem>> -> memref<1x!tpu.dma_semaphore, #tpu.memory_space<semaphore_mem>>
    %241 = tpu.memref_squeeze %240 : memref<1x!tpu.dma_semaphore, #tpu.memory_space<semaphore_mem>> -> memref<!tpu.dma_semaphore, #tpu.memory_space<semaphore_mem>>
    tpu.wait_dma2 semaphore(%241 : memref<!tpu.dma_semaphore, #tpu.memory_space<semaphore_mem>>) src(%arg17 : memref<252x144xbf16, #tpu.memory_space<any>>) dst(%arg23 : memref<252x144xbf16, #tpu.memory_space<vmem>>)
    %c1_i32_131 = arith.constant 1 : i32
    %242 = tpu.memref_slice %arg26[%c1_i32_131] : memref<3x!tpu.dma_semaphore, #tpu.memory_space<semaphore_mem>> -> memref<1x!tpu.dma_semaphore, #tpu.memory_space<semaphore_mem>>
    %243 = tpu.memref_squeeze %242 : memref<1x!tpu.dma_semaphore, #tpu.memory_space<semaphore_mem>> -> memref<!tpu.dma_semaphore, #tpu.memory_space<semaphore_mem>>
    tpu.wait_dma2 semaphore(%243 : memref<!tpu.dma_semaphore, #tpu.memory_space<semaphore_mem>>) src(%arg18 : memref<432x144xbf16, #tpu.memory_space<any>>) dst(%arg24 : memref<432x144xbf16, #tpu.memory_space<vmem>>)
    %c2_i32_132 = arith.constant 2 : i32
    %244 = tpu.memref_slice %arg26[%c2_i32_132] : memref<3x!tpu.dma_semaphore, #tpu.memory_space<semaphore_mem>> -> memref<1x!tpu.dma_semaphore, #tpu.memory_space<semaphore_mem>>
    %245 = tpu.memref_squeeze %244 : memref<1x!tpu.dma_semaphore, #tpu.memory_space<semaphore_mem>> -> memref<!tpu.dma_semaphore, #tpu.memory_space<semaphore_mem>>
    tpu.wait_dma2 semaphore(%245 : memref<!tpu.dma_semaphore, #tpu.memory_space<semaphore_mem>>) src(%arg19 : memref<432x9xbf16, #tpu.memory_space<any>>) dst(%arg25 : memref<432x9xbf16, #tpu.memory_space<vmem>>)
    %c5 = arith.constant 5 : index
    %c0_133 = arith.constant 0 : index
    %246 = vector.load %arg22[%c5, %c0_133] : memref<144x144xf32, #tpu.memory_space<vmem>>, vector<128x36xf32>
    %247 = arith.truncf %246 : vector<128x36xf32> to vector<128x36xbf16>
    %c6 = arith.constant 6 : index
    %c0_134 = arith.constant 0 : index
    %248 = vector.load %arg22[%c6, %c0_134] : memref<144x144xf32, #tpu.memory_space<vmem>>, vector<128x36xf32>
    %249 = arith.truncf %248 : vector<128x36xf32> to vector<128x36xbf16>
    %c7 = arith.constant 7 : index
    %c0_135 = arith.constant 0 : index
    %250 = vector.load %arg22[%c7, %c0_135] : memref<144x144xf32, #tpu.memory_space<vmem>>, vector<128x36xf32>
    %251 = arith.truncf %250 : vector<128x36xf32> to vector<128x36xbf16>
    %c8 = arith.constant 8 : index
    %c0_136 = arith.constant 0 : index
    %252 = vector.load %arg22[%c8, %c0_136] : memref<144x144xf32, #tpu.memory_space<vmem>>, vector<128x36xf32>
    %253 = arith.truncf %252 : vector<128x36xf32> to vector<128x36xbf16>
    %c9_137 = arith.constant 9 : index
    %c0_138 = arith.constant 0 : index
    %254 = vector.load %arg22[%c9_137, %c0_138] : memref<144x144xf32, #tpu.memory_space<vmem>>, vector<128x36xf32>
    %255 = arith.truncf %254 : vector<128x36xf32> to vector<128x36xbf16>
    %c10 = arith.constant 10 : index
    %c0_139 = arith.constant 0 : index
    %256 = vector.load %arg22[%c10, %c0_139] : memref<144x144xf32, #tpu.memory_space<vmem>>, vector<128x36xf32>
    %257 = arith.truncf %256 : vector<128x36xf32> to vector<128x36xbf16>
    %c11 = arith.constant 11 : index
    %c0_140 = arith.constant 0 : index
    %258 = vector.load %arg22[%c11, %c0_140] : memref<144x144xf32, #tpu.memory_space<vmem>>, vector<128x36xf32>
    %259 = arith.truncf %258 : vector<128x36xf32> to vector<128x36xbf16>
    %260 = tpu.concatenate %247, %249, %251, %253, %255, %257, %259 in 1 : vector<128x36xbf16>, vector<128x36xbf16>, vector<128x36xbf16>, vector<128x36xbf16>, vector<128x36xbf16>, vector<128x36xbf16>, vector<128x36xbf16> -> vector<128x252xbf16>
    %c0_141 = arith.constant 0 : index
    %c0_142 = arith.constant 0 : index
    %261 = vector.load %arg23[%c0_141, %c0_142] : memref<252x144xbf16, #tpu.memory_space<vmem>>, vector<252x144xbf16>
    %cst_143 = arith.constant dense<0.000000e+00> : vector<128x144xf32>
    %262 = tpu.matmul %260, %261, %cst_143 {dimension_numbers = #tpu.dot_dimension_numbers<[1], [0], [0], [1], [0, 0, 1, 1], [], []>} : vector<128x252xbf16>, vector<252x144xbf16>, vector<128x144xf32> -> vector<128x144xf32>
    %c0_144 = arith.constant 0 : index
    %c0_145 = arith.constant 0 : index
    %263 = vector.load %arg16[%c0_144, %c0_145] : memref<3x144xf32, #tpu.memory_space<vmem>>, vector<1x144xf32>
    %264 = vector.broadcast %263 : vector<1x144xf32> to vector<128x144xf32>
    %265 = arith.addf %262, %264 : vector<128x144xf32>
    %cst_146 = arith.constant 0.000000e+00 : f32
    %266 = vector.broadcast %cst_146 : f32 to vector<128x144xf32>
    %267 = arith.maximumf %265, %266 : vector<128x144xf32>
    %268 = vector.extract_strided_slice %267 {offsets = [8, 0], sizes = [17, 144], strides = [1, 1]} : vector<128x144xf32> to vector<17x144xf32>
    %c16_147 = arith.constant 16 : index
    %c0_148 = arith.constant 0 : index
    %269 = vector.load %arg22[%c16_147, %c0_148] : memref<144x144xf32, #tpu.memory_space<vmem>>, vector<17x144xf32>
    tpu.vector_store %arg22[%c16_147, %c0_148], %268 {strides = array<i32>} : memref<144x144xf32, #tpu.memory_space<vmem>>, vector<17x144xf32>,
    %270 = vector.extract_strided_slice %267 {offsets = [40, 0], sizes = [17, 144], strides = [1, 1]} : vector<128x144xf32> to vector<17x144xf32>
    %c48_149 = arith.constant 48 : index
    %c0_150 = arith.constant 0 : index
    %271 = vector.load %arg22[%c48_149, %c0_150] : memref<144x144xf32, #tpu.memory_space<vmem>>, vector<17x144xf32>
    tpu.vector_store %arg22[%c48_149, %c0_150], %270 {strides = array<i32>} : memref<144x144xf32, #tpu.memory_space<vmem>>, vector<17x144xf32>,
    %272 = vector.extract_strided_slice %267 {offsets = [72, 0], sizes = [17, 144], strides = [1, 1]} : vector<128x144xf32> to vector<17x144xf32>
    %c80_151 = arith.constant 80 : index
    %c0_152 = arith.constant 0 : index
    %273 = vector.load %arg22[%c80_151, %c0_152] : memref<144x144xf32, #tpu.memory_space<vmem>>, vector<17x144xf32>
    tpu.vector_store %arg22[%c80_151, %c0_152], %272 {strides = array<i32>} : memref<144x144xf32, #tpu.memory_space<vmem>>, vector<17x144xf32>,
    %274 = vector.extract_strided_slice %267 {offsets = [104, 0], sizes = [17, 144], strides = [1, 1]} : vector<128x144xf32> to vector<17x144xf32>
    %c112_153 = arith.constant 112 : index
    %c0_154 = arith.constant 0 : index
    %275 = vector.load %arg22[%c112_153, %c0_154] : memref<144x144xf32, #tpu.memory_space<vmem>>, vector<17x144xf32>
    tpu.vector_store %arg22[%c112_153, %c0_154], %274 {strides = array<i32>} : memref<144x144xf32, #tpu.memory_space<vmem>>, vector<17x144xf32>,
    %c7_155 = arith.constant 7 : index
    %c0_156 = arith.constant 0 : index
    %276 = vector.load %arg22[%c7_155, %c0_156] : memref<144x144xf32, #tpu.memory_space<vmem>>, vector<128x144xf32>
    %277 = arith.truncf %276 : vector<128x144xf32> to vector<128x144xbf16>
    %c8_157 = arith.constant 8 : index
    %c0_158 = arith.constant 0 : index
    %278 = vector.load %arg22[%c8_157, %c0_158] : memref<144x144xf32, #tpu.memory_space<vmem>>, vector<128x144xf32>
    %279 = arith.truncf %278 : vector<128x144xf32> to vector<128x144xbf16>
    %c9_159 = arith.constant 9 : index
    %c0_160 = arith.constant 0 : index
    %280 = vector.load %arg22[%c9_159, %c0_160] : memref<144x144xf32, #tpu.memory_space<vmem>>, vector<128x144xf32>
    %281 = arith.truncf %280 : vector<128x144xf32> to vector<128x144xbf16>
    %282 = tpu.concatenate %277, %279, %281 in 1 : vector<128x144xbf16>, vector<128x144xbf16>, vector<128x144xbf16> -> vector<128x432xbf16>
    %c0_161 = arith.constant 0 : index
    %c0_162 = arith.constant 0 : index
    %283 = vector.load %arg24[%c0_161, %c0_162] : memref<432x144xbf16, #tpu.memory_space<vmem>>, vector<432x144xbf16>
    %cst_163 = arith.constant dense<0.000000e+00> : vector<128x144xf32>
    %284 = tpu.matmul %282, %283, %cst_163 {dimension_numbers = #tpu.dot_dimension_numbers<[1], [0], [0], [1], [0, 0, 1, 1], [], []>} : vector<128x432xbf16>, vector<432x144xbf16>, vector<128x144xf32> -> vector<128x144xf32>
    %c1_164 = arith.constant 1 : index
    %c0_165 = arith.constant 0 : index
    %285 = vector.load %arg16[%c1_164, %c0_165] : memref<3x144xf32, #tpu.memory_space<vmem>>, vector<1x144xf32>
    %286 = vector.broadcast %285 : vector<1x144xf32> to vector<128x144xf32>
    %287 = arith.addf %284, %286 : vector<128x144xf32>
    %cst_166 = arith.constant 0.000000e+00 : f32
    %288 = vector.broadcast %cst_166 : f32 to vector<128x144xf32>
    %289 = arith.maximumf %287, %288 : vector<128x144xf32>
    %290 = vector.extract_strided_slice %289 {offsets = [8, 0], sizes = [17, 144], strides = [1, 1]} : vector<128x144xf32> to vector<17x144xf32>
    %c16_167 = arith.constant 16 : index
    %c0_168 = arith.constant 0 : index
    %291 = vector.load %arg22[%c16_167, %c0_168] : memref<144x144xf32, #tpu.memory_space<vmem>>, vector<17x144xf32>
    tpu.vector_store %arg22[%c16_167, %c0_168], %290 {strides = array<i32>} : memref<144x144xf32, #tpu.memory_space<vmem>>, vector<17x144xf32>,
    %292 = vector.extract_strided_slice %289 {offsets = [40, 0], sizes = [17, 144], strides = [1, 1]} : vector<128x144xf32> to vector<17x144xf32>
    %c48_169 = arith.constant 48 : index
    %c0_170 = arith.constant 0 : index
    %293 = vector.load %arg22[%c48_169, %c0_170] : memref<144x144xf32, #tpu.memory_space<vmem>>, vector<17x144xf32>
    tpu.vector_store %arg22[%c48_169, %c0_170], %292 {strides = array<i32>} : memref<144x144xf32, #tpu.memory_space<vmem>>, vector<17x144xf32>,
    %294 = vector.extract_strided_slice %289 {offsets = [72, 0], sizes = [17, 144], strides = [1, 1]} : vector<128x144xf32> to vector<17x144xf32>
    %c80_171 = arith.constant 80 : index
    %c0_172 = arith.constant 0 : index
    %295 = vector.load %arg22[%c80_171, %c0_172] : memref<144x144xf32, #tpu.memory_space<vmem>>, vector<17x144xf32>
    tpu.vector_store %arg22[%c80_171, %c0_172], %294 {strides = array<i32>} : memref<144x144xf32, #tpu.memory_space<vmem>>, vector<17x144xf32>,
    %296 = vector.extract_strided_slice %289 {offsets = [104, 0], sizes = [17, 144], strides = [1, 1]} : vector<128x144xf32> to vector<17x144xf32>
    %c112_173 = arith.constant 112 : index
    %c0_174 = arith.constant 0 : index
    %297 = vector.load %arg22[%c112_173, %c0_174] : memref<144x144xf32, #tpu.memory_space<vmem>>, vector<17x144xf32>
    tpu.vector_store %arg22[%c112_173, %c0_174], %296 {strides = array<i32>} : memref<144x144xf32, #tpu.memory_space<vmem>>, vector<17x144xf32>,
    %c7_175 = arith.constant 7 : index
    %c0_176 = arith.constant 0 : index
    %298 = vector.load %arg22[%c7_175, %c0_176] : memref<144x144xf32, #tpu.memory_space<vmem>>, vector<128x144xf32>
    %299 = arith.truncf %298 : vector<128x144xf32> to vector<128x144xbf16>
    %c8_177 = arith.constant 8 : index
    %c0_178 = arith.constant 0 : index
    %300 = vector.load %arg22[%c8_177, %c0_178] : memref<144x144xf32, #tpu.memory_space<vmem>>, vector<128x144xf32>
    %301 = arith.truncf %300 : vector<128x144xf32> to vector<128x144xbf16>
    %c9_179 = arith.constant 9 : index
    %c0_180 = arith.constant 0 : index
    %302 = vector.load %arg22[%c9_179, %c0_180] : memref<144x144xf32, #tpu.memory_space<vmem>>, vector<128x144xf32>
    %303 = arith.truncf %302 : vector<128x144xf32> to vector<128x144xbf16>
    %304 = tpu.concatenate %299, %301, %303 in 1 : vector<128x144xbf16>, vector<128x144xbf16>, vector<128x144xbf16> -> vector<128x432xbf16>
    %c0_181 = arith.constant 0 : index
    %c0_182 = arith.constant 0 : index
    %305 = vector.load %arg25[%c0_181, %c0_182] : memref<432x9xbf16, #tpu.memory_space<vmem>>, vector<432x9xbf16>
    %cst_183 = arith.constant dense<0.000000e+00> : vector<128x9xf32>
    %306 = tpu.matmul %304, %305, %cst_183 {dimension_numbers = #tpu.dot_dimension_numbers<[1], [0], [0], [1], [0, 0, 1, 1], [], []>} : vector<128x432xbf16>, vector<432x9xbf16>, vector<128x9xf32> -> vector<128x9xf32>
    %c2_184 = arith.constant 2 : index
    %c0_185 = arith.constant 0 : index
    %307 = vector.load %arg16[%c2_184, %c0_185] : memref<3x144xf32, #tpu.memory_space<vmem>>, vector<1x9xf32>
    %308 = vector.broadcast %307 : vector<1x9xf32> to vector<128x9xf32>
    %309 = arith.addf %306, %308 : vector<128x9xf32>
    %c0_186 = arith.constant 0 : index
    %c0_187 = arith.constant 0 : index
    %310 = vector.load %arg21[%c0_186, %c0_187] : memref<17x36xf32, #tpu.memory_space<vmem>>, vector<17x9xf32>
    %311 = vector.extract_strided_slice %309 {offsets = [8, 0], sizes = [17, 9], strides = [1, 1]} : vector<128x9xf32> to vector<17x9xf32>
    %312 = arith.addf %310, %311 : vector<17x9xf32>
    %cst_188 = arith.constant 0.000000e+00 : f32
    %313 = vector.broadcast %cst_188 : f32 to vector<17x9xf32>
    %314 = arith.maximumf %312, %313 : vector<17x9xf32>
    %c0_189 = arith.constant 0 : index
    %c0_190 = arith.constant 0 : index
    %315 = vector.load %arg21[%c0_189, %c0_190] : memref<17x36xf32, #tpu.memory_space<vmem>>, vector<17x9xf32>
    tpu.vector_store %arg21[%c0_189, %c0_190], %314 {strides = array<i32>} : memref<17x36xf32, #tpu.memory_space<vmem>>, vector<17x9xf32>,
    %c0_191 = arith.constant 0 : index
    %c9_192 = arith.constant 9 : index
    %316 = vector.load %arg21[%c0_191, %c9_192] : memref<17x36xf32, #tpu.memory_space<vmem>>, vector<17x9xf32>
    %317 = vector.extract_strided_slice %309 {offsets = [40, 0], sizes = [17, 9], strides = [1, 1]} : vector<128x9xf32> to vector<17x9xf32>
    %318 = arith.addf %316, %317 : vector<17x9xf32>
    %cst_193 = arith.constant 0.000000e+00 : f32
    %319 = vector.broadcast %cst_193 : f32 to vector<17x9xf32>
    %320 = arith.maximumf %318, %319 : vector<17x9xf32>
    %c0_194 = arith.constant 0 : index
    %c9_195 = arith.constant 9 : index
    %321 = vector.load %arg21[%c0_194, %c9_195] : memref<17x36xf32, #tpu.memory_space<vmem>>, vector<17x9xf32>
    tpu.vector_store %arg21[%c0_194, %c9_195], %320 {strides = array<i32>} : memref<17x36xf32, #tpu.memory_space<vmem>>, vector<17x9xf32>,
    %c0_196 = arith.constant 0 : index
    %c18_197 = arith.constant 18 : index
    %322 = vector.load %arg21[%c0_196, %c18_197] : memref<17x36xf32, #tpu.memory_space<vmem>>, vector<17x9xf32>
    %323 = vector.extract_strided_slice %309 {offsets = [72, 0], sizes = [17, 9], strides = [1, 1]} : vector<128x9xf32> to vector<17x9xf32>
    %324 = arith.addf %322, %323 : vector<17x9xf32>
    %cst_198 = arith.constant 0.000000e+00 : f32
    %325 = vector.broadcast %cst_198 : f32 to vector<17x9xf32>
    %326 = arith.maximumf %324, %325 : vector<17x9xf32>
    %c0_199 = arith.constant 0 : index
    %c18_200 = arith.constant 18 : index
    %327 = vector.load %arg21[%c0_199, %c18_200] : memref<17x36xf32, #tpu.memory_space<vmem>>, vector<17x9xf32>
    tpu.vector_store %arg21[%c0_199, %c18_200], %326 {strides = array<i32>} : memref<17x36xf32, #tpu.memory_space<vmem>>, vector<17x9xf32>,
    %c0_201 = arith.constant 0 : index
    %c27_202 = arith.constant 27 : index
    %328 = vector.load %arg21[%c0_201, %c27_202] : memref<17x36xf32, #tpu.memory_space<vmem>>, vector<17x9xf32>
    %329 = vector.extract_strided_slice %309 {offsets = [104, 0], sizes = [17, 9], strides = [1, 1]} : vector<128x9xf32> to vector<17x9xf32>
    %330 = arith.addf %328, %329 : vector<17x9xf32>
    %cst_203 = arith.constant 0.000000e+00 : f32
    %331 = vector.broadcast %cst_203 : f32 to vector<17x9xf32>
    %332 = arith.maximumf %330, %331 : vector<17x9xf32>
    %c0_204 = arith.constant 0 : index
    %c27_205 = arith.constant 27 : index
    %333 = vector.load %arg21[%c0_204, %c27_205] : memref<17x36xf32, #tpu.memory_space<vmem>>, vector<17x9xf32>
    tpu.vector_store %arg21[%c0_204, %c27_205], %332 {strides = array<i32>} : memref<17x36xf32, #tpu.memory_space<vmem>>, vector<17x9xf32>,
    return
  }
  func.func @transform_0(%arg0: i32) -> (i32, i32) {
    %c0_i32 = arith.constant 0 : i32
    %c0_i32_0 = arith.constant 0 : i32
    %c0_i32_1 = arith.constant 0 : i32
    return %c0_i32, %c0_i32_0 : i32, i32
  }
  func.func @transform_1(%arg0: i32) -> (i32, i32) {
    %c0_i32 = arith.constant 0 : i32
    %c0_i32_0 = arith.constant 0 : i32
    %c0_i32_1 = arith.constant 0 : i32
    return %c0_i32, %c0_i32_0 : i32, i32
  }
  func.func @transform_2(%arg0: i32) -> (i32, i32) {
    %c0_i32 = arith.constant 0 : i32
    %c0_i32_0 = arith.constant 0 : i32
    %c0_i32_1 = arith.constant 0 : i32
    return %c0_i32, %c0_i32_0 : i32, i32
  }
  func.func @transform_3(%arg0: i32) -> (i32, i32, i32) {
    %c0_i32 = arith.constant 0 : i32
    %c0_i32_0 = arith.constant 0 : i32
    %c0_i32_1 = arith.constant 0 : i32
    %c0_i32_2 = arith.constant 0 : i32
    return %c0_i32, %c0_i32_0, %c0_i32_1 : i32, i32, i32
  }
  func.func @transform_4(%arg0: i32) -> (i32, i32, i32) {
    %c0_i32 = arith.constant 0 : i32
    %c0_i32_0 = arith.constant 0 : i32
    %c0_i32_1 = arith.constant 0 : i32
    %c0_i32_2 = arith.constant 0 : i32
    return %c0_i32, %c0_i32_0, %c0_i32_1 : i32, i32, i32
  }
  func.func @transform_5(%arg0: i32) -> (i32, i32) {
    %c0_i32 = arith.constant 0 : i32
    %c0_i32_0 = arith.constant 0 : i32
    %c0_i32_1 = arith.constant 0 : i32
    return %c0_i32, %c0_i32_0 : i32, i32
  }
  func.func @transform_6(%arg0: i32) -> (i32, i32) {
    %c0_i32 = arith.constant 0 : i32
    %c0_i32_0 = arith.constant 0 : i32
    %c0_i32_1 = arith.constant 0 : i32
    return %c0_i32, %c0_i32_0 : i32, i32
  }
  func.func @transform_7(%arg0: i32) -> (i32, i32) {
    %c0_i32 = arith.constant 0 : i32
    %c0_i32_0 = arith.constant 0 : i32
    %c0_i32_1 = arith.constant 0 : i32
    return %c0_i32, %c0_i32_0 : i32, i32
  }
  func.func @transform_8(%arg0: i32) -> (i32, i32) {
    %c0_i32 = arith.constant 0 : i32
    %c0_i32_0 = arith.constant 0 : i32
    %c0_i32_1 = arith.constant 0 : i32
    return %c0_i32, %c0_i32_0 : i32, i32
  }
  func.func @transform_9(%arg0: i32) -> (i32, i32) {
    %c0_i32 = arith.constant 0 : i32
    %c0_i32_0 = arith.constant 0 : i32
    %c0_i32_1 = arith.constant 0 : i32
    return %c0_i32, %c0_i32_0 : i32, i32
  }
  func.func @transform_10(%arg0: i32) -> (i32, i32) {
    %c0_i32 = arith.constant 0 : i32
    %c0_i32_0 = arith.constant 0 : i32
    %c0_i32_1 = arith.constant 0 : i32
    return %c0_i32, %c0_i32_0 : i32, i32
  }
  func.func @transform_11(%arg0: i32) -> (i32, i32) {
    %c0_i32 = arith.constant 0 : i32
    %c0_i32_0 = arith.constant 0 : i32
    %c0_i32_1 = arith.constant 0 : i32
    return %c0_i32, %c0_i32_0 : i32, i32
  }
  func.func @transform_12(%arg0: i32) -> (i32, i32) {
    %c0_i32 = arith.constant 0 : i32
    %c0_i32_0 = arith.constant 0 : i32
    %c0_i32_1 = arith.constant 0 : i32
    return %c0_i32, %c0_i32_0 : i32, i32
  }
  func.func @transform_13(%arg0: i32) -> (i32, i32) {
    %c0_i32 = arith.constant 0 : i32
    %c0_i32_0 = arith.constant 0 : i32
    %c0_i32_1 = arith.constant 0 : i32
    return %c0_i32, %c0_i32_0 : i32, i32
  }
  func.func @transform_14(%arg0: i32) -> (i32, i32) {
    %c0_i32 = arith.constant 0 : i32
    %c0_i32_0 = arith.constant 0 : i32
    %c0_i32_1 = arith.constant 0 : i32
    return %c0_i32, %c0_i32_0 : i32, i32
  }
  func.func @transform_15(%arg0: i32) -> (i32, i32) {
    %c0_i32 = arith.constant 0 : i32
    %c0_i32_0 = arith.constant 0 : i32
    %c0_i32_1 = arith.constant 0 : i32
    return %c0_i32, %c0_i32_0 : i32, i32
  }
  func.func @transform_19(%arg0: i32) -> i32 {
    %c0_i32 = arith.constant 0 : i32
    %c0_i32_0 = arith.constant 0 : i32
    return %c0_i32 : i32
  }
  func.func @transform_20(%arg0: i32) -> (i32, i32) {
    %c0_i32 = arith.constant 0 : i32
    %c0_i32_0 = arith.constant 0 : i32
    %c0_i32_1 = arith.constant 0 : i32
    return %c0_i32, %c0_i32_0 : i32, i32
  }
}

</mosaic_0001>

<llo_original>
// kernel: reverse.0
$region0: #{reverse.0}
  %s0 = inlined_call_operand.vmem [shape: f32[4,9,15], index: 0, kind: input, shape index: {}]
  %s1 = inlined_call_operand.vmem [shape: f32[4,9,15], index: 1, kind: output, shape index: {}]
  %v2 = vlaneseq
  %v3 = vsub.s32 14, %v2
  %4 = vset.pattern.permute.xlu0 %v3
  $region1: #{reverse.0} parent=0
    #allocation0 [shape = 'u8[32768]{0}', space=vmem, size = 0x8000, scoped, tag = 'operand span for operand 0']
    #allocation1 [shape = 'u8[32768]{0}', space=vmem, size = 0x8000, scoped, tag = 'operand span for operand 1']
    // Predicated region
    $region2: #{reverse.0} parent=1 // pred_check
      _
    $region3: #{reverse.0} parent=1 // pred_check_branch
      %6 = sbr.rel (0) target = $region5
    $region4: #{reverse.0} parent=1 // pred_region
      // Predicated region
      $region6: #{reverse.0} parent=4 // pred_check
        _
      $region7: #{reverse.0} parent=4 // pred_check_branch
        %8 = sbr.rel (0) target = $region9
      $region8: #{reverse.0} parent=4 // pred_region
        // Predicated region
        $region21: #{reverse.0} parent=8 // pred_check
          _
        $region22: #{reverse.0} parent=8 // pred_check_branch
          %38 = sbr.rel (0) target = $region24
        $region23: #{reverse.0} parent=8 // pred_region
          loop: start=0, step=1, limit=1
          $region25: #{reverse.0} parent=23 // loop_pre_header
            _
          $region26: #{reverse.0} parent=23 // loop_header
            %s40 = sphi 0, %s44
            %p41 = scmp.ge.s32.totalorder %s40, 1
            %s45 = sphi %s0, %s0
            %s46 = sphi [#allocation0], [#allocation0]
          $region27: #{reverse.0} parent=23 // loop_header_branch
            %43 = sbr.rel (%p41) target = $region31
          $region28: #{reverse.0} parent=23 // loop_body
            %v47 = vld [vmem:[%s45] sm:$0xff]
            %48 = vst [vmem:[%s46] sm:$0xff] %v47
            %v49 = vld [vmem:[%s45 + $0x8] sm:$0xff]
            %50 = vst [vmem:[%s46 + $0x8] sm:$0xff] %v49
            %v51 = vld [vmem:[%s45 + $0x10] sm:$0xff]
            %52 = vst [vmem:[%s46 + $0x10] sm:$0xff] %v51
            %v53 = vld [vmem:[%s45 + $0x18] sm:$0xff]
            %54 = vst [vmem:[%s46 + $0x18] sm:$0xff] %v53
            %v55 = vld [vmem:[%s45 + $0x20] sm:$0xff]
            %56 = vst [vmem:[%s46 + $0x20] sm:$0xff] %v55
            %v57 = vld [vmem:[%s45 + $0x28] sm:$0xff]
            %58 = vst [vmem:[%s46 + $0x28] sm:$0xff] %v57
            %v59 = vld [vmem:[%s45 + $0x30] sm:$0xff]
            %60 = vst [vmem:[%s46 + $0x30] sm:$0xff] %v59
            %v61 = vld [vmem:[%s45 + $0x38] sm:$0xff]
            %62 = vst [vmem:[%s46 + $0x38] sm:$0xff] %v61
          $region29: #{reverse.0} parent=23 // loop_footer
            %s44 = sadd.s32 1, %s40
          $region30: #{reverse.0} parent=23 // loop_footer_branch
            %39 = sbr.rel target = $region26
          $region31: #{reverse.0} parent=23 // loop_exit
            _
        $region24: #{reverse.0} parent=8 // pred_fallthru
          _
        // Predicated region
        $region32: #{reverse.0} parent=8 // pred_check
          _
        $region33: #{reverse.0} parent=8 // pred_check_branch
          %64 = sbr.rel target = $region35
        $region34: #{reverse.0} parent=8 // pred_region
          _
        $region35: #{reverse.0} parent=8 // pred_fallthru
          _
      $region9: #{reverse.0} parent=4 // pred_fallthru
        _
      // Predicated region
      $region10: #{reverse.0} parent=4 // pred_check
        _
      $region11: #{reverse.0} parent=4 // pred_check_branch
        %10 = sbr.rel target = $region13
      $region12: #{reverse.0} parent=4 // pred_region
        %s12 = ssub.s32 256, 1
        loop: start=0, step=1, limit=1
        $region14: #{reverse.0} parent=12 // loop_pre_header
          _
        $region15: #{reverse.0} parent=12 // loop_header
          %s14 = sphi 0, %s18
          %p15 = scmp.ge.s32.totalorder %s14, 1
          %s19 = sphi %s0, %s0
          %s20 = sphi [#allocation0], [#allocation0]
        $region16: #{reverse.0} parent=12 // loop_header_branch
          %17 = sbr.rel (%p15) target = $region20
        $region17: #{reverse.0} parent=12 // loop_body
          %v21 = vld [vmem:[%s19] sm:%s12]
          %22 = vst [vmem:[%s20] sm:%s12] %v21
          %v23 = vld [vmem:[%s19 + $0x8] sm:%s12]
          %24 = vst [vmem:[%s20 + $0x8] sm:%s12] %v23
          %v25 = vld [vmem:[%s19 + $0x10] sm:%s12]
          %26 = vst [vmem:[%s20 + $0x10] sm:%s12] %v25
          %v27 = vld [vmem:[%s19 + $0x18] sm:%s12]
          %28 = vst [vmem:[%s20 + $0x18] sm:%s12] %v27
          %v29 = vld [vmem:[%s19 + $0x20] sm:%s12]
          %30 = vst [vmem:[%s20 + $0x20] sm:%s12] %v29
          %v31 = vld [vmem:[%s19 + $0x28] sm:%s12]
          %32 = vst [vmem:[%s20 + $0x28] sm:%s12] %v31
          %v33 = vld [vmem:[%s19 + $0x30] sm:%s12]
          %34 = vst [vmem:[%s20 + $0x30] sm:%s12] %v33
          %v35 = vld [vmem:[%s19 + $0x38] sm:%s12]
          %36 = vst [vmem:[%s20 + $0x38] sm:%s12] %v35
        $region18: #{reverse.0} parent=12 // loop_footer
          %s18 = sadd.s32 1, %s14
        $region19: #{reverse.0} parent=12 // loop_footer_branch
          %13 = sbr.rel target = $region15
        $region20: #{reverse.0} parent=12 // loop_exit
          _
      $region13: #{reverse.0} parent=4 // pred_fallthru
        _
    $region5: #{reverse.0} parent=1 // pred_fallthru
      _
    %65 = vnop
    %v66 = vld [vmem:[#allocation0] sm:$0xff]
    %67 = vperm.xlu0 %4, %v66
    %v68 = vpop.permute.xlu0 %67
    %69 = vst [vmem:[#allocation1] sm:$0xff] %v68
    %s70 = scalar_lea.vmem [#allocation1], 8
    %s71 = scalar_lea.vmem [#allocation0], 8
    %v72 = vld [vmem:[%s71] sm:$0xff]
    %73 = vperm.xlu0 %4, %v72
    %v74 = vpop.permute.xlu0 %73
    %75 = vst [vmem:[%s70] sm:$0xff] %v74
    %s76 = scalar_lea.vmem [#allocation1], 16
    %s77 = scalar_lea.vmem [#allocation0], 16
    %v78 = vld [vmem:[%s77] sm:$0xff]
    %79 = vperm.xlu0 %4, %v78
    %v80 = vpop.permute.xlu0 %79
    %81 = vst [vmem:[%s76] sm:$0xff] %v80
    %s82 = scalar_lea.vmem %s76, 8 [#allocation1]
    %s83 = scalar_lea.vmem %s77, 8 [#allocation0]
    %v84 = vld [vmem:[%s83] sm:$0xff]
    %85 = vperm.xlu0 %4, %v84
    %v86 = vpop.permute.xlu0 %85
    %87 = vst [vmem:[%s82] sm:$0xff] %v86
    %s88 = scalar_lea.vmem [#allocation1], 32
    %s89 = scalar_lea.vmem [#allocation0], 32
    %v90 = vld [vmem:[%s89] sm:$0xff]
    %91 = vperm.xlu0 %4, %v90
    %v92 = vpop.permute.xlu0 %91
    %93 = vst [vmem:[%s88] sm:$0xff] %v92
    %s94 = scalar_lea.vmem %s88, 8 [#allocation1]
    %s95 = scalar_lea.vmem %s89, 8 [#allocation0]
    %v96 = vld [vmem:[%s95] sm:$0xff]
    %97 = vperm.xlu0 %4, %v96
    %v98 = vpop.permute.xlu0 %97
    %99 = vst [vmem:[%s94] sm:$0xff] %v98
    %s100 = scalar_lea.vmem [#allocation1], 48
    %s101 = scalar_lea.vmem [#allocation0], 48
    %v102 = vld [vmem:[%s101] sm:$0xff]
    %103 = vperm.xlu0 %4, %v102
    %v104 = vpop.permute.xlu0 %103
    %105 = vst [vmem:[%s100] sm:$0xff] %v104
    %s106 = scalar_lea.vmem %s100, 8 [#allocation1]
    %s107 = scalar_lea.vmem %s101, 8 [#allocation0]
    %v108 = vld [vmem:[%s107] sm:$0xff]
    %109 = vperm.xlu0 %4, %v108
    %v110 = vpop.permute.xlu0 %109
    %111 = vst [vmem:[%s106] sm:$0xff] %v110
    // Predicated region
    $region36: #{reverse.0} parent=1 // pred_check
      _
    $region37: #{reverse.0} parent=1 // pred_check_branch
      %113 = sbr.rel (0) target = $region39
    $region38: #{reverse.0} parent=1 // pred_region
      // Predicated region
      $region40: #{reverse.0} parent=38 // pred_check
        _
      $region41: #{reverse.0} parent=38 // pred_check_branch
        %115 = sbr.rel (0) target = $region43
      $region42: #{reverse.0} parent=38 // pred_region
        // Predicated region
        $region55: #{reverse.0} parent=42 // pred_check
          _
        $region56: #{reverse.0} parent=42 // pred_check_branch
          %145 = sbr.rel (0) target = $region58
        $region57: #{reverse.0} parent=42 // pred_region
          loop: start=0, step=1, limit=1
          $region59: #{reverse.0} parent=57 // loop_pre_header
            _
          $region60: #{reverse.0} parent=57 // loop_header
            %s147 = sphi 0, %s151
            %p148 = scmp.ge.s32.totalorder %s147, 1
            %s152 = sphi [#allocation1], [#allocation1]
            %s153 = sphi %s1, %s1
          $region61: #{reverse.0} parent=57 // loop_header_branch
            %150 = sbr.rel (%p148) target = $region65
          $region62: #{reverse.0} parent=57 // loop_body
            %v154 = vld [vmem:[%s152] sm:$0xff]
            %155 = vst [vmem:[%s153] sm:$0xff] %v154
            %v156 = vld [vmem:[%s152 + $0x8] sm:$0xff]
            %157 = vst [vmem:[%s153 + $0x8] sm:$0xff] %v156
            %v158 = vld [vmem:[%s152 + $0x10] sm:$0xff]
            %159 = vst [vmem:[%s153 + $0x10] sm:$0xff] %v158
            %v160 = vld [vmem:[%s152 + $0x18] sm:$0xff]
            %161 = vst [vmem:[%s153 + $0x18] sm:$0xff] %v160
            %v162 = vld [vmem:[%s152 + $0x20] sm:$0xff]
            %163 = vst [vmem:[%s153 + $0x20] sm:$0xff] %v162
            %v164 = vld [vmem:[%s152 + $0x28] sm:$0xff]
            %165 = vst [vmem:[%s153 + $0x28] sm:$0xff] %v164
            %v166 = vld [vmem:[%s152 + $0x30] sm:$0xff]
            %167 = vst [vmem:[%s153 + $0x30] sm:$0xff] %v166
            %v168 = vld [vmem:[%s152 + $0x38] sm:$0xff]
            %169 = vst [vmem:[%s153 + $0x38] sm:$0xff] %v168
          $region63: #{reverse.0} parent=57 // loop_footer
            %s151 = sadd.s32 1, %s147
          $region64: #{reverse.0} parent=57 // loop_footer_branch
            %146 = sbr.rel target = $region60
          $region65: #{reverse.0} parent=57 // loop_exit
            _
        $region58: #{reverse.0} parent=42 // pred_fallthru
          _
        // Predicated region
        $region66: #{reverse.0} parent=42 // pred_check
          _
        $region67: #{reverse.0} parent=42 // pred_check_branch
          %171 = sbr.rel target = $region69
        $region68: #{reverse.0} parent=42 // pred_region
          _
        $region69: #{reverse.0} parent=42 // pred_fallthru
          _
      $region43: #{reverse.0} parent=38 // pred_fallthru
        _
      // Predicated region
      $region44: #{reverse.0} parent=38 // pred_check
        _
      $region45: #{reverse.0} parent=38 // pred_check_branch
        %117 = sbr.rel target = $region47
      $region46: #{reverse.0} parent=38 // pred_region
        %s119 = ssub.s32 256, 1
        loop: start=0, step=1, limit=1
        $region48: #{reverse.0} parent=46 // loop_pre_header
          _
        $region49: #{reverse.0} parent=46 // loop_header
          %s121 = sphi 0, %s125
          %p122 = scmp.ge.s32.totalorder %s121, 1
          %s126 = sphi [#allocation1], [#allocation1]
          %s127 = sphi %s1, %s1
        $region50: #{reverse.0} parent=46 // loop_header_branch
          %124 = sbr.rel (%p122) target = $region54
        $region51: #{reverse.0} parent=46 // loop_body
          %v128 = vld [vmem:[%s126] sm:%s119]
          %129 = vst [vmem:[%s127] sm:%s119] %v128
          %v130 = vld [vmem:[%s126 + $0x8] sm:%s119]
          %131 = vst [vmem:[%s127 + $0x8] sm:%s119] %v130
          %v132 = vld [vmem:[%s126 + $0x10] sm:%s119]
          %133 = vst [vmem:[%s127 + $0x10] sm:%s119] %v132
          %v134 = vld [vmem:[%s126 + $0x18] sm:%s119]
          %135 = vst [vmem:[%s127 + $0x18] sm:%s119] %v134
          %v136 = vld [vmem:[%s126 + $0x20] sm:%s119]
          %137 = vst [vmem:[%s127 + $0x20] sm:%s119] %v136
          %v138 = vld [vmem:[%s126 + $0x28] sm:%s119]
          %139 = vst [vmem:[%s127 + $0x28] sm:%s119] %v138
          %v140 = vld [vmem:[%s126 + $0x30] sm:%s119]
          %141 = vst [vmem:[%s127 + $0x30] sm:%s119] %v140
          %v142 = vld [vmem:[%s126 + $0x38] sm:%s119]
          %143 = vst [vmem:[%s127 + $0x38] sm:%s119] %v142
        $region52: #{reverse.0} parent=46 // loop_footer
          %s125 = sadd.s32 1, %s121
        $region53: #{reverse.0} parent=46 // loop_footer_branch
          %120 = sbr.rel target = $region49
        $region54: #{reverse.0} parent=46 // loop_exit
          _
      $region47: #{reverse.0} parent=38 // pred_fallthru
        _
    $region39: #{reverse.0} parent=1 // pred_fallthru
      _
    %172 = vnop

// kernel: avcloud_dir_forward.1
$region0: #{avcloud_dir_forward.1}
  #allocation0 [shape = 'u32[]', space=smem, size = 0x4, offset = 0x4, fixed_abs, tag = 'smem constant byte address 0x4 - core index']
  #allocation1 [shape = 'u32[144,128]{1,0:T(1,128)}', space=vmem, size = 0x12000, scoped, tag = 'internal scratch']
  #allocation2 [shape = 'f32[144,144]{1,0:T(8,128)}', space=vmem, size = 0x24000, scoped, tag = 'scratch operand']
  #allocation3 [shape = 'bf16[252,144]{1,0:T(8,128)(2,1)}', space=vmem, size = 0x20000, scoped, tag = 'scratch operand']
  #allocation4 [shape = 'bf16[432,144]{1,0:T(8,128)(2,1)}', space=vmem, size = 0x36000, scoped, tag = 'scratch operand']
  #allocation5 [shape = 'bf16[432,9]{1,0:T(8,128)(2,1)}', space=vmem, size = 0x1b000, scoped, tag = 'scratch operand']
  #allocation6 [shape = 's32[3]{0}', space=sflag, size = 0xc, scoped, tag = 'scratch operand']
  #allocation9 [shape = 's32[]', space=sflag, size = 0x4, offset = 0, fixed_abs, tag = 'sflag constant byte address 0x0 - dummy sync flag']
  #allocation10 [shape = 's32[]', space=sflag, size = 0x4, offset = 0, fixed_abs, tag = 'sflag constant byte address 0x0 - dummy sync flag']
  #allocation11 [shape = 's32[]', space=sflag, size = 0x4, offset = 0, fixed_abs, tag = 'sflag constant byte address 0x0 - dummy sync flag']
  %s0 = inlined_call_operand.vmem [shape: bf16[64,150], index: 0, kind: input, shape index: {}]
  %s1 = inlined_call_operand.vmem [shape: bf16[128,63], index: 1, kind: input, shape index: {}]
  %s2 = inlined_call_operand.vmem [shape: f32[128,3], index: 2, kind: input, shape index: {}]
  %s3 = inlined_call_operand.vmem [shape: f32[4,128,17], index: 3, kind: input, shape index: {}]
  %s4 = inlined_call_operand.vmem [shape: f32[2,17,9], index: 4, kind: input, shape index: {}]
  %s5 = inlined_call_operand.vmem [shape: bf16[150,32], index: 5, kind: input, shape index: {}]
  %s6 = inlined_call_operand.vmem [shape: bf16[32,32], index: 6, kind: input, shape index: {}]
  %s7 = inlined_call_operand.vmem [shape: bf16[63,32], index: 7, kind: input, shape index: {}]
  %s8 = inlined_call_operand.vmem [shape: bf16[32,32], index: 8, kind: input, shape index: {}]
  %s9 = inlined_call_operand.vmem [shape: f32[4,32], index: 9, kind: input, shape index: {}]
  %s10 = inlined_call_operand.vmem [shape: bf16[17,32], index: 10, kind: input, shape index: {}]
  %s11 = inlined_call_operand.vmem [shape: f32[64,1], index: 11, kind: input, shape index: {}]
  %s12 = inlined_call_operand.vmem [shape: bf16[17,9], index: 12, kind: input, shape index: {}]
  %s13 = inlined_call_operand.vmem [shape: bf16[64,18], index: 13, kind: input, shape index: {}]
  %s14 = inlined_call_operand.vmem [shape: bf16[32,1], index: 14, kind: input, shape index: {}]
  %s15 = inlined_call_operand.vmem [shape: f32[3,144], index: 15, kind: input, shape index: {}]
  %s16 = inlined_call_operand.vmem [shape: bf16[252,144], index: 16, kind: input, shape index: {}]
  %s17 = inlined_call_operand.vmem [shape: bf16[432,144], index: 17, kind: input, shape index: {}]
  %s18 = inlined_call_operand.vmem [shape: bf16[432,9], index: 18, kind: input, shape index: {}]
  %s19 = inlined_call_operand.vmem [shape: f32[4], index: 19, kind: input, shape index: {}]
  %s20 = inlined_call_operand.vmem [shape: f32[17,36], index: 20, kind: output, shape index: {}]
  %s21 = sld [smem:[#allocation0]]
  $region184: #{avcloud_dir_forward.1} parent=0
    _
  %s23 = ssub.s32 1, %s21
  %s24 = scalar_select 0, %s23, %s21
  $region1: #{avcloud_dir_forward.1} parent=0
    #allocation7 [shape = 'u8[512]{0}', space=smem, size = 0x200, scoped, tag = 'input window, operand 19, single buffered']
    #allocation8 [shape = 's32[1]{0}', space=sflag, size = 0x4, scoped, tag = 'scoped memory for avcloud_dir_forward.1']
    %25 = vsyncpa [#allocation8], 0
    // Predicated region
    $region2: #{avcloud_dir_forward.1} parent=1 // pred_check
      _
    $region3: #{avcloud_dir_forward.1} parent=1 // pred_check_branch
      %27 = sbr.rel (0) target = $region5
    $region4: #{avcloud_dir_forward.1} parent=1 // pred_region
      _
    $region5: #{avcloud_dir_forward.1} parent=1 // pred_fallthru
      _
    // Predicated region
    $region6: #{avcloud_dir_forward.1} parent=1 // pred_check
      _
    $region7: #{avcloud_dir_forward.1} parent=1 // pred_check_branch
      %29 = sbr.rel (0) target = $region9
    $region8: #{avcloud_dir_forward.1} parent=1 // pred_region
      _
    $region9: #{avcloud_dir_forward.1} parent=1 // pred_fallthru
      _
    // Predicated region
    $region10: #{avcloud_dir_forward.1} parent=1 // pred_check
      _
    $region11: #{avcloud_dir_forward.1} parent=1 // pred_check_branch
      %31 = sbr.rel (0) target = $region13
    $region12: #{avcloud_dir_forward.1} parent=1 // pred_region
      _
    $region13: #{avcloud_dir_forward.1} parent=1 // pred_fallthru
      _
    // Predicated region
    $region14: #{avcloud_dir_forward.1} parent=1 // pred_check
      _
    $region15: #{avcloud_dir_forward.1} parent=1 // pred_check_branch
      %33 = sbr.rel (0) target = $region17
    $region16: #{avcloud_dir_forward.1} parent=1 // pred_region
      _
    $region17: #{avcloud_dir_forward.1} parent=1 // pred_fallthru
      _
    // Predicated region
    $region18: #{avcloud_dir_forward.1} parent=1 // pred_check
      _
    $region19: #{avcloud_dir_forward.1} parent=1 // pred_check_branch
      %35 = sbr.rel (0) target = $region21
    $region20: #{avcloud_dir_forward.1} parent=1 // pred_region
      _
    $region21: #{avcloud_dir_forward.1} parent=1 // pred_fallthru
      _
    // Predicated region
    $region22: #{avcloud_dir_forward.1} parent=1 // pred_check
      _
    $region23: #{avcloud_dir_forward.1} parent=1 // pred_check_branch
      %37 = sbr.rel (0) target = $region25
    $region24: #{avcloud_dir_forward.1} parent=1 // pred_region
      _
    $region25: #{avcloud_dir_forward.1} parent=1 // pred_fallthru
      _
    // Predicated region
    $region26: #{avcloud_dir_forward.1} parent=1 // pred_check
      _
    $region27: #{avcloud_dir_forward.1} parent=1 // pred_check_branch
      %39 = sbr.rel (0) target = $region29
    $region28: #{avcloud_dir_forward.1} parent=1 // pred_region
      _
    $region29: #{avcloud_dir_forward.1} parent=1 // pred_fallthru
      _
    // Predicated region
    $region30: #{avcloud_dir_forward.1} parent=1 // pred_check
      _
    $region31: #{avcloud_dir_forward.1} parent=1 // pred_check_branch
      %41 = sbr.rel (0) target = $region33
    $region32: #{avcloud_dir_forward.1} parent=1 // pred_region
      _
    $region33: #{avcloud_dir_forward.1} parent=1 // pred_fallthru
      _
    // Predicated region
    $region34: #{avcloud_dir_forward.1} parent=1 // pred_check
      _
    $region35: #{avcloud_dir_forward.1} parent=1 // pred_check_branch
      %43 = sbr.rel (0) target = $region37
    $region36: #{avcloud_dir_forward.1} parent=1 // pred_region
      _
    $region37: #{avcloud_dir_forward.1} parent=1 // pred_fallthru
      _
    // Predicated region
    $region38: #{avcloud_dir_forward.1} parent=1 // pred_check
      _
    $region39: #{avcloud_dir_forward.1} parent=1 // pred_check_branch
      %45 = sbr.rel (0) target = $region41
    $region40: #{avcloud_dir_forward.1} parent=1 // pred_region
      _
    $region41: #{avcloud_dir_forward.1} parent=1 // pred_fallthru
      _
    // Predicated region
    $region42: #{avcloud_dir_forward.1} parent=1 // pred_check
      _
    $region43: #{avcloud_dir_forward.1} parent=1 // pred_check_branch
      %47 = sbr.rel (0) target = $region45
    $region44: #{avcloud_dir_forward.1} parent=1 // pred_region
      _
    $region45: #{avcloud_dir_forward.1} parent=1 // pred_fallthru
      _
    // Predicated region
    $region46: #{avcloud_dir_forward.1} parent=1 // pred_check
      _
    $region47: #{avcloud_dir_forward.1} parent=1 // pred_check_branch
      %49 = sbr.rel (0) target = $region49
    $region48: #{avcloud_dir_forward.1} parent=1 // pred_region
      _
    $region49: #{avcloud_dir_forward.1} parent=1 // pred_fallthru
      _
    // Predicated region
    $region50: #{avcloud_dir_forward.1} parent=1 // pred_check
      _
    $region51: #{avcloud_dir_forward.1} parent=1 // pred_check_branch
      %51 = sbr.rel (0) target = $region53
    $region52: #{avcloud_dir_forward.1} parent=1 // pred_region
      _
    $region53: #{avcloud_dir_forward.1} parent=1 // pred_fallthru
      _
    // Predicated region
    $region54: #{avcloud_dir_forward.1} parent=1 // pred_check
      _
    $region55: #{avcloud_dir_forward.1} parent=1 // pred_check_branch
      %53 = sbr.rel (0) target = $region57
    $region56: #{avcloud_dir_forward.1} parent=1 // pred_region
      _
    $region57: #{avcloud_dir_forward.1} parent=1 // pred_fallthru
      _
    // Predicated region
    $region58: #{avcloud_dir_forward.1} parent=1 // pred_check
      _
    $region59: #{avcloud_dir_forward.1} parent=1 // pred_check_branch
      %55 = sbr.rel (0) target = $region61
    $region60: #{avcloud_dir_forward.1} parent=1 // pred_region
      _
    $region61: #{avcloud_dir_forward.1} parent=1 // pred_fallthru
      _
    // Predicated region
    $region62: #{avcloud_dir_forward.1} parent=1 // pred_check
      _
    $region63: #{avcloud_dir_forward.1} parent=1 // pred_check_branch
      %57 = sbr.rel (0) target = $region65
    $region64: #{avcloud_dir_forward.1} parent=1 // pred_region
      _
    $region65: #{avcloud_dir_forward.1} parent=1 // pred_fallthru
      _
    // Predicated region
    $region66: #{avcloud_dir_forward.1} parent=1 // pred_check
      _
    $region67: #{avcloud_dir_forward.1} parent=1 // pred_check_branch
      %59 = sbr.rel (0) target = $region69
    $region68: #{avcloud_dir_forward.1} parent=1 // pred_region
      %s61 = ssub.s32 16, 16
      %62 = vsyncadd [#allocation8], %s61
      %s64 = sshll.u32 %s19, 4
      %s65 = int_to_ptr.vmem [resolvable:$true] %s64
      %67 = dma.vmem_to_smem %s65, 16, [#allocation7], [#allocation8]
    $region69: #{avcloud_dir_forward.1} parent=1 // pred_fallthru
      _
    // Predicated region
    $region70: #{avcloud_dir_forward.1} parent=1 // pred_check
      _
    $region71: #{avcloud_dir_forward.1} parent=1 // pred_check_branch
      %69 = sbr.rel (0) target = $region73
    $region72: #{avcloud_dir_forward.1} parent=1 // pred_region
      %70 = dma.done [#allocation8], 16
    $region73: #{avcloud_dir_forward.1} parent=1 // pred_fallthru
      _
    %71 = sfence
    %p74 = scmp.lt.u32.totalorder 256, 8
    %p75 = pneg %p74
    // Predicated region
    $region74: #{avcloud_dir_forward.1} parent=1 // pred_check
      _
    $region75: #{avcloud_dir_forward.1} parent=1 // pred_check_branch
      %77 = sbr.rel (%p74) target = $region77
    $region76: #{avcloud_dir_forward.1} parent=1 // pred_region
      %s93 = sand.u32 256, 7
      %p94 = scmp.eq.s32.totalorder %s93, 0
      // Predicated region
      $region89: #{avcloud_dir_forward.1} parent=76 // pred_check
        %p95 = pneg %p94
      $region90: #{avcloud_dir_forward.1} parent=76 // pred_check_branch
        %97 = sbr.rel (%p95) target = $region92
      $region91: #{avcloud_dir_forward.1} parent=76 // pred_region
        loop: start=0, step=1, limit=1
        $region93: #{avcloud_dir_forward.1} parent=91 // loop_pre_header
          _
        $region94: #{avcloud_dir_forward.1} parent=91 // loop_header
          %s99 = sphi 0, %s103
          %p100 = scmp.ge.s32.totalorder %s99, 1
          %s104 = sphi %s16, %s16
          %s105 = sphi [#allocation3], [#allocation3]
        $region95: #{avcloud_dir_forward.1} parent=91 // loop_header_branch
          %102 = sbr.rel (%p100) target = $region99
        $region96: #{avcloud_dir_forward.1} parent=91 // loop_body
          %v106 = vld [vmem:[%s104] sm:$0xff]
          %107 = vst [vmem:[%s105] sm:$0xff] %v106
          %v108 = vld [vmem:[%s104 + $0x8] sm:$0xff]
          %109 = vst [vmem:[%s105 + $0x8] sm:$0xff] %v108
          %v110 = vld [vmem:[%s104 + $0x10] sm:$0xff]
          %111 = vst [vmem:[%s105 + $0x10] sm:$0xff] %v110
          %v112 = vld [vmem:[%s104 + $0x18] sm:$0xff]
          %113 = vst [vmem:[%s105 + $0x18] sm:$0xff] %v112
          %v114 = vld [vmem:[%s104 + $0x20] sm:$0xff]
          %115 = vst [vmem:[%s105 + $0x20] sm:$0xff] %v114
          %v116 = vld [vmem:[%s104 + $0x28] sm:$0xff]
          %117 = vst [vmem:[%s105 + $0x28] sm:$0xff] %v116
          %v118 = vld [vmem:[%s104 + $0x30] sm:$0xff]
          %119 = vst [vmem:[%s105 + $0x30] sm:$0xff] %v118
          %v120 = vld [vmem:[%s104 + $0x38] sm:$0xff]
          %121 = vst [vmem:[%s105 + $0x38] sm:$0xff] %v120
          %v122 = vld [vmem:[%s104 + $0x40] sm:$0xff]
          %123 = vst [vmem:[%s105 + $0x40] sm:$0xff] %v122
          %v124 = vld [vmem:[%s104 + $0x48] sm:$0xff]
          %125 = vst [vmem:[%s105 + $0x48] sm:$0xff] %v124
          %v126 = vld [vmem:[%s104 + $0x50] sm:$0xff]
          %127 = vst [vmem:[%s105 + $0x50] sm:$0xff] %v126
          %v128 = vld [vmem:[%s104 + $0x58] sm:$0xff]
          %129 = vst [vmem:[%s105 + $0x58] sm:$0xff] %v128
          %v130 = vld [vmem:[%s104 + $0x60] sm:$0xff]
          %131 = vst [vmem:[%s105 + $0x60] sm:$0xff] %v130
          %v132 = vld [vmem:[%s104 + $0x68] sm:$0xff]
          %133 = vst [vmem:[%s105 + $0x68] sm:$0xff] %v132
          %v134 = vld [vmem:[%s104 + $0x70] sm:$0xff]
          %135 = vst [vmem:[%s105 + $0x70] sm:$0xff] %v134
          %v136 = vld [vmem:[%s104 + $0x78] sm:$0xff]
          %137 = vst [vmem:[%s105 + $0x78] sm:$0xff] %v136
          %v138 = vld [vmem:[%s104 + $0x80] sm:$0xff]
          %139 = vst [vmem:[%s105 + $0x80] sm:$0xff] %v138
          %v140 = vld [vmem:[%s104 + $0x88] sm:$0xff]
          %141 = vst [vmem:[%s105 + $0x88] sm:$0xff] %v140
          %v142 = vld [vmem:[%s104 + $0x90] sm:$0xff]
          %143 = vst [vmem:[%s105 + $0x90] sm:$0xff] %v142
          %v144 = vld [vmem:[%s104 + $0x98] sm:$0xff]
          %145 = vst [vmem:[%s105 + $0x98] sm:$0xff] %v144
          %v146 = vld [vmem:[%s104 + $0xa0] sm:$0xff]
          %147 = vst [vmem:[%s105 + $0xa0] sm:$0xff] %v146
          %v148 = vld [vmem:[%s104 + $0xa8] sm:$0xff]
          %149 = vst [vmem:[%s105 + $0xa8] sm:$0xff] %v148
          %v150 = vld [vmem:[%s104 + $0xb0] sm:$0xff]
          %151 = vst [vmem:[%s105 + $0xb0] sm:$0xff] %v150
          %v152 = vld [vmem:[%s104 + $0xb8] sm:$0xff]
          %153 = vst [vmem:[%s105 + $0xb8] sm:$0xff] %v152
          %v154 = vld [vmem:[%s104 + $0xc0] sm:$0xff]
          %155 = vst [vmem:[%s105 + $0xc0] sm:$0xff] %v154
          %v156 = vld [vmem:[%s104 + $0xc8] sm:$0xff]
          %157 = vst [vmem:[%s105 + $0xc8] sm:$0xff] %v156
          %v158 = vld [vmem:[%s104 + $0xd0] sm:$0xff]
          %159 = vst [vmem:[%s105 + $0xd0] sm:$0xff] %v158
          %v160 = vld [vmem:[%s104 + $0xd8] sm:$0xff]
          %161 = vst [vmem:[%s105 + $0xd8] sm:$0xff] %v160
          %v162 = vld [vmem:[%s104 + $0xe0] sm:$0xff]
          %163 = vst [vmem:[%s105 + $0xe0] sm:$0xff] %v162
          %v164 = vld [vmem:[%s104 + $0xe8] sm:$0xff]
          %165 = vst [vmem:[%s105 + $0xe8] sm:$0xff] %v164
          %v166 = vld [vmem:[%s104 + $0xf0] sm:$0xff]
          %167 = vst [vmem:[%s105 + $0xf0] sm:$0xff] %v166
          %v168 = vld [vmem:[%s104 + $0xf8] sm:$0xff]
          %169 = vst [vmem:[%s105 + $0xf8] sm:$0xff] %v168
        $region97: #{avcloud_dir_forward.1} parent=91 // loop_footer
          %s103 = sadd.s32 1, %s99
        $region98: #{avcloud_dir_forward.1} parent=91 // loop_footer_branch
          %98 = sbr.rel target = $region94
        $region99: #{avcloud_dir_forward.1} parent=91 // loop_exit
          _
      $region92: #{avcloud_dir_forward.1} parent=76 // pred_fallthru
        _
      %p170 = pneg %p94
      // Predicated region
      $region100: #{avcloud_dir_forward.1} parent=76 // pred_check
        _
      $region101: #{avcloud_dir_forward.1} parent=76 // pred_check_branch
        %172 = sbr.rel (%p94) target = $region103
      $region102: #{avcloud_dir_forward.1} parent=76 // pred_region
        %s173 = sand.u32 256, 7
      $region103: #{avcloud_dir_forward.1} parent=76 // pred_fallthru
        _
    $region77: #{avcloud_dir_forward.1} parent=1 // pred_fallthru
      _
    // Predicated region
    $region78: #{avcloud_dir_forward.1} parent=1 // pred_check
      %p78 = pneg %p74
    $region79: #{avcloud_dir_forward.1} parent=1 // pred_check_branch
      %80 = sbr.rel (%p78) target = $region81
    $region80: #{avcloud_dir_forward.1} parent=1 // pred_region
      %s81 = sshll.u32 1, 256
      %s82 = ssub.s32 %s81, 1
      loop: start=0, step=1, limit=1
      $region82: #{avcloud_dir_forward.1} parent=80 // loop_pre_header
        _
      $region83: #{avcloud_dir_forward.1} parent=80 // loop_header
        %s84 = sphi 0, %s88
        %p85 = scmp.ge.s32.totalorder %s84, 1
        %s89 = sphi %s16, %s16
        %s90 = sphi [#allocation3], [#allocation3]
      $region84: #{avcloud_dir_forward.1} parent=80 // loop_header_branch
        %87 = sbr.rel (%p85) target = $region88
      $region85: #{avcloud_dir_forward.1} parent=80 // loop_body
        %v91 = vld [vmem:[%s89] sm:%s82]
        %92 = vst [vmem:[%s90] sm:%s82] %v91
      $region86: #{avcloud_dir_forward.1} parent=80 // loop_footer
        %s88 = sadd.s32 1, %s84
      $region87: #{avcloud_dir_forward.1} parent=80 // loop_footer_branch
        %83 = sbr.rel target = $region83
      $region88: #{avcloud_dir_forward.1} parent=80 // loop_exit
        _
    $region81: #{avcloud_dir_forward.1} parent=1 // pred_fallthru
      _
    // Predicated region
    $region104: #{avcloud_dir_forward.1} parent=1 // pred_check
      _
    $region105: #{avcloud_dir_forward.1} parent=1 // pred_check_branch
      %176 = sbr.rel (0) target = $region107
    $region106: #{avcloud_dir_forward.1} parent=1 // pred_region
      %177 = vsyncadd [#allocation6], 4096
    $region107: #{avcloud_dir_forward.1} parent=1 // pred_fallthru
      _
    %s178 = scalar_lea.sflag [#allocation6], 1
    %p180 = scmp.lt.u32.totalorder 432, 8
    %p181 = pneg %p180
    // Predicated region
    $region108: #{avcloud_dir_forward.1} parent=1 // pred_check
      _
    $region109: #{avcloud_dir_forward.1} parent=1 // pred_check_branch
      %183 = sbr.rel (%p180) target = $region111
    $region110: #{avcloud_dir_forward.1} parent=1 // pred_region
      %s199 = sand.u32 432, 7
      %p200 = scmp.eq.s32.totalorder %s199, 0
      // Predicated region
      $region123: #{avcloud_dir_forward.1} parent=110 // pred_check
        %p201 = pneg %p200
      $region124: #{avcloud_dir_forward.1} parent=110 // pred_check_branch
        %203 = sbr.rel (%p201) target = $region126
      $region125: #{avcloud_dir_forward.1} parent=110 // pred_region
        loop: start=0, step=1, limit=1
        $region127: #{avcloud_dir_forward.1} parent=125 // loop_pre_header
          _
        $region128: #{avcloud_dir_forward.1} parent=125 // loop_header
          %s205 = sphi 0, %s209
          %p206 = scmp.ge.s32.totalorder %s205, 1
          %s210 = sphi %s17, %s17
          %s211 = sphi [#allocation4], [#allocation4]
        $region129: #{avcloud_dir_forward.1} parent=125 // loop_header_branch
          %208 = sbr.rel (%p206) target = $region133
        $region130: #{avcloud_dir_forward.1} parent=125 // loop_body
          %v212 = vld [vmem:[%s210] sm:$0xff]
          %213 = vst [vmem:[%s211] sm:$0xff] %v212
          %v214 = vld [vmem:[%s210 + $0x8] sm:$0xff]
          %215 = vst [vmem:[%s211 + $0x8] sm:$0xff] %v214
          %v216 = vld [vmem:[%s210 + $0x10] sm:$0xff]
          %217 = vst [vmem:[%s211 + $0x10] sm:$0xff] %v216
          %v218 = vld [vmem:[%s210 + $0x18] sm:$0xff]
          %219 = vst [vmem:[%s211 + $0x18] sm:$0xff] %v218
          %v220 = vld [vmem:[%s210 + $0x20] sm:$0xff]
          %221 = vst [vmem:[%s211 + $0x20] sm:$0xff] %v220
          %v222 = vld [vmem:[%s210 + $0x28] sm:$0xff]
          %223 = vst [vmem:[%s211 + $0x28] sm:$0xff] %v222
          %v224 = vld [vmem:[%s210 + $0x30] sm:$0xff]
          %225 = vst [vmem:[%s211 + $0x30] sm:$0xff] %v224
          %v226 = vld [vmem:[%s210 + $0x38] sm:$0xff]
          %227 = vst [vmem:[%s211 + $0x38] sm:$0xff] %v226
          %v228 = vld [vmem:[%s210 + $0x40] sm:$0xff]
          %229 = vst [vmem:[%s211 + $0x40] sm:$0xff] %v228
          %v230 = vld [vmem:[%s210 + $0x48] sm:$0xff]
          %231 = vst [vmem:[%s211 + $0x48] sm:$0xff] %v230
          %v232 = vld [vmem:[%s210 + $0x50] sm:$0xff]
          %233 = vst [vmem:[%s211 + $0x50] sm:$0xff] %v232
          %v234 = vld [vmem:[%s210 + $0x58] sm:$0xff]
          %235 = vst [vmem:[%s211 + $0x58] sm:$0xff] %v234
          %v236 = vld [vmem:[%s210 + $0x60] sm:$0xff]
          %237 = vst [vmem:[%s211 + $0x60] sm:$0xff] %v236
          %v238 = vld [vmem:[%s210 + $0x68] sm:$0xff]
          %239 = vst [vmem:[%s211 + $0x68] sm:$0xff] %v238
          %v240 = vld [vmem:[%s210 + $0x70] sm:$0xff]
          %241 = vst [vmem:[%s211 + $0x70] sm:$0xff] %v240
          %v242 = vld [vmem:[%s210 + $0x78] sm:$0xff]
          %243 = vst [vmem:[%s211 + $0x78] sm:$0xff] %v242
          %v244 = vld [vmem:[%s210 + $0x80] sm:$0xff]
          %245 = vst [vmem:[%s211 + $0x80] sm:$0xff] %v244
          %v246 = vld [vmem:[%s210 + $0x88] sm:$0xff]
          %247 = vst [vmem:[%s211 + $0x88] sm:$0xff] %v246
          %v248 = vld [vmem:[%s210 + $0x90] sm:$0xff]
          %249 = vst [vmem:[%s211 + $0x90] sm:$0xff] %v248
          %v250 = vld [vmem:[%s210 + $0x98] sm:$0xff]
          %251 = vst [vmem:[%s211 + $0x98] sm:$0xff] %v250
          %v252 = vld [vmem:[%s210 + $0xa0] sm:$0xff]
          %253 = vst [vmem:[%s211 + $0xa0] sm:$0xff] %v252
          %v254 = vld [vmem:[%s210 + $0xa8] sm:$0xff]
          %255 = vst [vmem:[%s211 + $0xa8] sm:$0xff] %v254
          %v256 = vld [vmem:[%s210 + $0xb0] sm:$0xff]
          %257 = vst [vmem:[%s211 + $0xb0] sm:$0xff] %v256
          %v258 = vld [vmem:[%s210 + $0xb8] sm:$0xff]
          %259 = vst [vmem:[%s211 + $0xb8] sm:$0xff] %v258
          %v260 = vld [vmem:[%s210 + $0xc0] sm:$0xff]
          %261 = vst [vmem:[%s211 + $0xc0] sm:$0xff] %v260
          %v262 = vld [vmem:[%s210 + $0xc8] sm:$0xff]
          %263 = vst [vmem:[%s211 + $0xc8] sm:$0xff] %v262
          %v264 = vld [vmem:[%s210 + $0xd0] sm:$0xff]
          %265 = vst [vmem:[%s211 + $0xd0] sm:$0xff] %v264
          %v266 = vld [vmem:[%s210 + $0xd8] sm:$0xff]
          %267 = vst [vmem:[%s211 + $0xd8] sm:$0xff] %v266
          %v268 = vld [vmem:[%s210 + $0xe0] sm:$0xff]
          %269 = vst [vmem:[%s211 + $0xe0] sm:$0xff] %v268
          %v270 = vld [vmem:[%s210 + $0xe8] sm:$0xff]
          %271 = vst [vmem:[%s211 + $0xe8] sm:$0xff] %v270
          %v272 = vld [vmem:[%s210 + $0xf0] sm:$0xff]
          %273 = vst [vmem:[%s211 + $0xf0] sm:$0xff] %v272
          %v274 = vld [vmem:[%s210 + $0xf8] sm:$0xff]
          %275 = vst [vmem:[%s211 + $0xf8] sm:$0xff] %v274
          %v276 = vld [vmem:[%s210 + $0x100] sm:$0xff]
          %277 = vst [vmem:[%s211 + $0x100] sm:$0xff] %v276
          %v278 = vld [vmem:[%s210 + $0x108] sm:$0xff]
          %279 = vst [vmem:[%s211 + $0x108] sm:$0xff] %v278
          %v280 = vld [vmem:[%s210 + $0x110] sm:$0xff]
          %281 = vst [vmem:[%s211 + $0x110] sm:$0xff] %v280
          %v282 = vld [vmem:[%s210 + $0x118] sm:$0xff]
          %283 = vst [vmem:[%s211 + $0x118] sm:$0xff] %v282
          %v284 = vld [vmem:[%s210 + $0x120] sm:$0xff]
          %285 = vst [vmem:[%s211 + $0x120] sm:$0xff] %v284
          %v286 = vld [vmem:[%s210 + $0x128] sm:$0xff]
          %287 = vst [vmem:[%s211 + $0x128] sm:$0xff] %v286
          %v288 = vld [vmem:[%s210 + $0x130] sm:$0xff]
          %289 = vst [vmem:[%s211 + $0x130] sm:$0xff] %v288
          %v290 = vld [vmem:[%s210 + $0x138] sm:$0xff]
          %291 = vst [vmem:[%s211 + $0x138] sm:$0xff] %v290
          %v292 = vld [vmem:[%s210 + $0x140] sm:$0xff]
          %293 = vst [vmem:[%s211 + $0x140] sm:$0xff] %v292
          %v294 = vld [vmem:[%s210 + $0x148] sm:$0xff]
          %295 = vst [vmem:[%s211 + $0x148] sm:$0xff] %v294
          %v296 = vld [vmem:[%s210 + $0x150] sm:$0xff]
          %297 = vst [vmem:[%s211 + $0x150] sm:$0xff] %v296
          %v298 = vld [vmem:[%s210 + $0x158] sm:$0xff]
          %299 = vst [vmem:[%s211 + $0x158] sm:$0xff] %v298
          %v300 = vld [vmem:[%s210 + $0x160] sm:$0xff]
          %301 = vst [vmem:[%s211 + $0x160] sm:$0xff] %v300
          %v302 = vld [vmem:[%s210 + $0x168] sm:$0xff]
          %303 = vst [vmem:[%s211 + $0x168] sm:$0xff] %v302
          %v304 = vld [vmem:[%s210 + $0x170] sm:$0xff]
          %305 = vst [vmem:[%s211 + $0x170] sm:$0xff] %v304
          %v306 = vld [vmem:[%s210 + $0x178] sm:$0xff]
          %307 = vst [vmem:[%s211 + $0x178] sm:$0xff] %v306
          %v308 = vld [vmem:[%s210 + $0x180] sm:$0xff]
          %309 = vst [vmem:[%s211 + $0x180] sm:$0xff] %v308
          %v310 = vld [vmem:[%s210 + $0x188] sm:$0xff]
          %311 = vst [vmem:[%s211 + $0x188] sm:$0xff] %v310
          %v312 = vld [vmem:[%s210 + $0x190] sm:$0xff]
          %313 = vst [vmem:[%s211 + $0x190] sm:$0xff] %v312
          %v314 = vld [vmem:[%s210 + $0x198] sm:$0xff]
          %315 = vst [vmem:[%s211 + $0x198] sm:$0xff] %v314
          %v316 = vld [vmem:[%s210 + $0x1a0] sm:$0xff]
          %317 = vst [vmem:[%s211 + $0x1a0] sm:$0xff] %v316
          %v318 = vld [vmem:[%s210 + $0x1a8] sm:$0xff]
          %319 = vst [vmem:[%s211 + $0x1a8] sm:$0xff] %v318
        $region131: #{avcloud_dir_forward.1} parent=125 // loop_footer
          %s209 = sadd.s32 1, %s205
        $region132: #{avcloud_dir_forward.1} parent=125 // loop_footer_branch
          %204 = sbr.rel target = $region128
        $region133: #{avcloud_dir_forward.1} parent=125 // loop_exit
          _
      $region126: #{avcloud_dir_forward.1} parent=110 // pred_fallthru
        _
      %p320 = pneg %p200
      // Predicated region
      $region134: #{avcloud_dir_forward.1} parent=110 // pred_check
        _
      $region135: #{avcloud_dir_forward.1} parent=110 // pred_check_branch
        %322 = sbr.rel (%p200) target = $region137
      $region136: #{avcloud_dir_forward.1} parent=110 // pred_region
        %s323 = sand.u32 432, 7
      $region137: #{avcloud_dir_forward.1} parent=110 // pred_fallthru
        _
    $region111: #{avcloud_dir_forward.1} parent=1 // pred_fallthru
      _
    // Predicated region
    $region112: #{avcloud_dir_forward.1} parent=1 // pred_check
      %p184 = pneg %p180
    $region113: #{avcloud_dir_forward.1} parent=1 // pred_check_branch
      %186 = sbr.rel (%p184) target = $region115
    $region114: #{avcloud_dir_forward.1} parent=1 // pred_region
      %s187 = sshll.u32 1, 432
      %s188 = ssub.s32 %s187, 1
      loop: start=0, step=1, limit=1
      $region116: #{avcloud_dir_forward.1} parent=114 // loop_pre_header
        _
      $region117: #{avcloud_dir_forward.1} parent=114 // loop_header
        %s190 = sphi 0, %s194
        %p191 = scmp.ge.s32.totalorder %s190, 1
        %s195 = sphi %s17, %s17
        %s196 = sphi [#allocation4], [#allocation4]
      $region118: #{avcloud_dir_forward.1} parent=114 // loop_header_branch
        %193 = sbr.rel (%p191) target = $region122
      $region119: #{avcloud_dir_forward.1} parent=114 // loop_body
        %v197 = vld [vmem:[%s195] sm:%s188]
        %198 = vst [vmem:[%s196] sm:%s188] %v197
      $region120: #{avcloud_dir_forward.1} parent=114 // loop_footer
        %s194 = sadd.s32 1, %s190
      $region121: #{avcloud_dir_forward.1} parent=114 // loop_footer_branch
        %189 = sbr.rel target = $region117
      $region122: #{avcloud_dir_forward.1} parent=114 // loop_exit
        _
    $region115: #{avcloud_dir_forward.1} parent=1 // pred_fallthru
      _
    // Predicated region
    $region138: #{avcloud_dir_forward.1} parent=1 // pred_check
      _
    $region139: #{avcloud_dir_forward.1} parent=1 // pred_check_branch
      %326 = sbr.rel (0) target = $region141
    $region140: #{avcloud_dir_forward.1} parent=1 // pred_region
      %327 = vsyncadd %s178, 6912
    $region141: #{avcloud_dir_forward.1} parent=1 // pred_fallthru
      _
    %s328 = scalar_lea.sflag [#allocation6], 2
    %p330 = scmp.lt.u32.totalorder 216, 8
    %p331 = pneg %p330
    // Predicated region
    $region142: #{avcloud_dir_forward.1} parent=1 // pred_check
      _
    $region143: #{avcloud_dir_forward.1} parent=1 // pred_check_branch
      %333 = sbr.rel (%p330) target = $region145
    $region144: #{avcloud_dir_forward.1} parent=1 // pred_region
      %s349 = sand.u32 216, 7
      %p350 = scmp.eq.s32.totalorder %s349, 0
      // Predicated region
      $region157: #{avcloud_dir_forward.1} parent=144 // pred_check
        %p351 = pneg %p350
      $region158: #{avcloud_dir_forward.1} parent=144 // pred_check_branch
        %353 = sbr.rel (%p351) target = $region160
      $region159: #{avcloud_dir_forward.1} parent=144 // pred_region
        loop: start=0, step=1, limit=1
        $region161: #{avcloud_dir_forward.1} parent=159 // loop_pre_header
          _
        $region162: #{avcloud_dir_forward.1} parent=159 // loop_header
          %s355 = sphi 0, %s359
          %p356 = scmp.ge.s32.totalorder %s355, 1
          %s360 = sphi %s18, %s18
          %s361 = sphi [#allocation5], [#allocation5]
        $region163: #{avcloud_dir_forward.1} parent=159 // loop_header_branch
          %358 = sbr.rel (%p356) target = $region167
        $region164: #{avcloud_dir_forward.1} parent=159 // loop_body
          %v362 = vld [vmem:[%s360] sm:$0xff]
          %363 = vst [vmem:[%s361] sm:$0xff] %v362
          %v364 = vld [vmem:[%s360 + $0x8] sm:$0xff]
          %365 = vst [vmem:[%s361 + $0x8] sm:$0xff] %v364
          %v366 = vld [vmem:[%s360 + $0x10] sm:$0xff]
          %367 = vst [vmem:[%s361 + $0x10] sm:$0xff] %v366
          %v368 = vld [vmem:[%s360 + $0x18] sm:$0xff]
          %369 = vst [vmem:[%s361 + $0x18] sm:$0xff] %v368
          %v370 = vld [vmem:[%s360 + $0x20] sm:$0xff]
          %371 = vst [vmem:[%s361 + $0x20] sm:$0xff] %v370
          %v372 = vld [vmem:[%s360 + $0x28] sm:$0xff]
          %373 = vst [vmem:[%s361 + $0x28] sm:$0xff] %v372
          %v374 = vld [vmem:[%s360 + $0x30] sm:$0xff]
          %375 = vst [vmem:[%s361 + $0x30] sm:$0xff] %v374
          %v376 = vld [vmem:[%s360 + $0x38] sm:$0xff]
          %377 = vst [vmem:[%s361 + $0x38] sm:$0xff] %v376
          %v378 = vld [vmem:[%s360 + $0x40] sm:$0xff]
          %379 = vst [vmem:[%s361 + $0x40] sm:$0xff] %v378
          %v380 = vld [vmem:[%s360 + $0x48] sm:$0xff]
          %381 = vst [vmem:[%s361 + $0x48] sm:$0xff] %v380
          %v382 = vld [vmem:[%s360 + $0x50] sm:$0xff]
          %383 = vst [vmem:[%s361 + $0x50] sm:$0xff] %v382
          %v384 = vld [vmem:[%s360 + $0x58] sm:$0xff]
          %385 = vst [vmem:[%s361 + $0x58] sm:$0xff] %v384
          %v386 = vld [vmem:[%s360 + $0x60] sm:$0xff]
          %387 = vst [vmem:[%s361 + $0x60] sm:$0xff] %v386
          %v388 = vld [vmem:[%s360 + $0x68] sm:$0xff]
          %389 = vst [vmem:[%s361 + $0x68] sm:$0xff] %v388
          %v390 = vld [vmem:[%s360 + $0x70] sm:$0xff]
          %391 = vst [vmem:[%s361 + $0x70] sm:$0xff] %v390
          %v392 = vld [vmem:[%s360 + $0x78] sm:$0xff]
          %393 = vst [vmem:[%s361 + $0x78] sm:$0xff] %v392
          %v394 = vld [vmem:[%s360 + $0x80] sm:$0xff]
          %395 = vst [vmem:[%s361 + $0x80] sm:$0xff] %v394
          %v396 = vld [vmem:[%s360 + $0x88] sm:$0xff]
          %397 = vst [vmem:[%s361 + $0x88] sm:$0xff] %v396
          %v398 = vld [vmem:[%s360 + $0x90] sm:$0xff]
          %399 = vst [vmem:[%s361 + $0x90] sm:$0xff] %v398
          %v400 = vld [vmem:[%s360 + $0x98] sm:$0xff]
          %401 = vst [vmem:[%s361 + $0x98] sm:$0xff] %v400
          %v402 = vld [vmem:[%s360 + $0xa0] sm:$0xff]
          %403 = vst [vmem:[%s361 + $0xa0] sm:$0xff] %v402
          %v404 = vld [vmem:[%s360 + $0xa8] sm:$0xff]
          %405 = vst [vmem:[%s361 + $0xa8] sm:$0xff] %v404
          %v406 = vld [vmem:[%s360 + $0xb0] sm:$0xff]
          %407 = vst [vmem:[%s361 + $0xb0] sm:$0xff] %v406
          %v408 = vld [vmem:[%s360 + $0xb8] sm:$0xff]
          %409 = vst [vmem:[%s361 + $0xb8] sm:$0xff] %v408
          %v410 = vld [vmem:[%s360 + $0xc0] sm:$0xff]
          %411 = vst [vmem:[%s361 + $0xc0] sm:$0xff] %v410
          %v412 = vld [vmem:[%s360 + $0xc8] sm:$0xff]
          %413 = vst [vmem:[%s361 + $0xc8] sm:$0xff] %v412
          %v414 = vld [vmem:[%s360 + $0xd0] sm:$0xff]
          %415 = vst [vmem:[%s361 + $0xd0] sm:$0xff] %v414
        $region165: #{avcloud_dir_forward.1} parent=159 // loop_footer
          %s359 = sadd.s32 1, %s355
        $region166: #{avcloud_dir_forward.1} parent=159 // loop_footer_branch
          %354 = sbr.rel target = $region162
        $region167: #{avcloud_dir_forward.1} parent=159 // loop_exit
          _
      $region160: #{avcloud_dir_forward.1} parent=144 // pred_fallthru
        _
      %p416 = pneg %p350
      // Predicated region
      $region168: #{avcloud_dir_forward.1} parent=144 // pred_check
        _
      $region169: #{avcloud_dir_forward.1} parent=144 // pred_check_branch
        %418 = sbr.rel (%p350) target = $region171
      $region170: #{avcloud_dir_forward.1} parent=144 // pred_region
        %s419 = sand.u32 216, 7
      $region171: #{avcloud_dir_forward.1} parent=144 // pred_fallthru
        _
    $region145: #{avcloud_dir_forward.1} parent=1 // pred_fallthru
      _
    // Predicated region
    $region146: #{avcloud_dir_forward.1} parent=1 // pred_check
      %p334 = pneg %p330
    $region147: #{avcloud_dir_forward.1} parent=1 // pred_check_branch
      %336 = sbr.rel (%p334) target = $region149
    $region148: #{avcloud_dir_forward.1} parent=1 // pred_region
      %s337 = sshll.u32 1, 216
      %s338 = ssub.s32 %s337, 1
      loop: start=0, step=1, limit=1
      $region150: #{avcloud_dir_forward.1} parent=148 // loop_pre_header
        _
      $region151: #{avcloud_dir_forward.1} parent=148 // loop_header
        %s340 = sphi 0, %s344
        %p341 = scmp.ge.s32.totalorder %s340, 1
        %s345 = sphi %s18, %s18
        %s346 = sphi [#allocation5], [#allocation5]
      $region152: #{avcloud_dir_forward.1} parent=148 // loop_header_branch
        %343 = sbr.rel (%p341) target = $region156
      $region153: #{avcloud_dir_forward.1} parent=148 // loop_body
        %v347 = vld [vmem:[%s345] sm:%s338]
        %348 = vst [vmem:[%s346] sm:%s338] %v347
      $region154: #{avcloud_dir_forward.1} parent=148 // loop_footer
        %s344 = sadd.s32 1, %s340
      $region155: #{avcloud_dir_forward.1} parent=148 // loop_footer_branch
        %339 = sbr.rel target = $region151
      $region156: #{avcloud_dir_forward.1} parent=148 // loop_exit
        _
    $region149: #{avcloud_dir_forward.1} parent=1 // pred_fallthru
      _
    // Predicated region
    $region172: #{avcloud_dir_forward.1} parent=1 // pred_check
      _
    $region173: #{avcloud_dir_forward.1} parent=1 // pred_check_branch
      %422 = sbr.rel (0) target = $region175
    $region174: #{avcloud_dir_forward.1} parent=1 // pred_region
      %423 = vsyncadd %s328, 3456
    $region175: #{avcloud_dir_forward.1} parent=1 // pred_fallthru
      _
    %424 = vst [vmem:[#allocation2] sm:$0xff] 0.0
    %vm425 = vcmask 130048
    %426 = vst.msk [vmem:[#allocation2 + $0x8] sm:$0xff] %vm425, 0.0
    %427 = vst [vmem:[#allocation2 + $0x10] sm:$0xff] 0.0
    %428 = vst.msk [vmem:[#allocation2 + $0x18] sm:$0xff] %vm425, 0.0
    %429 = vst [vmem:[#allocation2 + $0x20] sm:$0xff] 0.0
    %430 = vst.msk [vmem:[#allocation2 + $0x28] sm:$0xff] %vm425, 0.0
    %431 = vst [vmem:[#allocation2 + $0x30] sm:$0xff] 0.0
    %432 = vst.msk [vmem:[#allocation2 + $0x38] sm:$0xff] %vm425, 0.0
    %433 = vst [vmem:[#allocation2 + $0x40] sm:$0xff] 0.0
    %434 = vst.msk [vmem:[#allocation2 + $0x48] sm:$0xff] %vm425, 0.0
    %435 = vst [vmem:[#allocation2 + $0x50] sm:$0xff] 0.0
    %436 = vst.msk [vmem:[#allocation2 + $0x58] sm:$0xff] %vm425, 0.0
    %437 = vst [vmem:[#allocation2 + $0x60] sm:$0xff] 0.0
    %438 = vst.msk [vmem:[#allocation2 + $0x68] sm:$0xff] %vm425, 0.0
    %439 = vst [vmem:[#allocation2 + $0x70] sm:$0xff] 0.0
    %440 = vst.msk [vmem:[#allocation2 + $0x78] sm:$0xff] %vm425, 0.0
    %441 = vst [vmem:[#allocation2 + $0x80] sm:$0xff] 0.0
    %442 = vst.msk [vmem:[#allocation2 + $0x88] sm:$0xff] %vm425, 0.0
    %443 = vst [vmem:[#allocation2 + $0x90] sm:$0xff] 0.0
    %444 = vst.msk [vmem:[#allocation2 + $0x98] sm:$0xff] %vm425, 0.0
    %445 = vst [vmem:[#allocation2 + $0xa0] sm:$0xff] 0.0
    %446 = vst.msk [vmem:[#allocation2 + $0xa8] sm:$0xff] %vm425, 0.0
    %447 = vst [vmem:[#allocation2 + $0xb0] sm:$0xff] 0.0
    %448 = vst.msk [vmem:[#allocation2 + $0xb8] sm:$0xff] %vm425, 0.0
    %449 = vst [vmem:[#allocation2 + $0xc0] sm:$0xff] 0.0
    %450 = vst.msk [vmem:[#allocation2 + $0xc8] sm:$0xff] %vm425, 0.0
    %451 = vst [vmem:[#allocation2 + $0xd0] sm:$0xff] 0.0
    %452 = vst.msk [vmem:[#allocation2 + $0xd8] sm:$0xff] %vm425, 0.0
    %453 = vst [vmem:[#allocation2 + $0xe0] sm:$0xff] 0.0
    %454 = vst.msk [vmem:[#allocation2 + $0xe8] sm:$0xff] %vm425, 0.0
    %455 = vst [vmem:[#allocation2 + $0xf0] sm:$0xff] 0.0
    %456 = vst.msk [vmem:[#allocation2 + $0xf8] sm:$0xff] %vm425, 0.0
    %457 = vst [vmem:[#allocation2 + $0x100] sm:$0xff] 0.0
    %458 = vst.msk [vmem:[#allocation2 + $0x108] sm:$0xff] %vm425, 0.0
    %459 = vst [vmem:[#allocation2 + $0x110] sm:$0xff] 0.0
    %460 = vst.msk [vmem:[#allocation2 + $0x118] sm:$0xff] %vm425, 0.0
    %s461 = sld [smem:[#allocation7]]
    %s462 = sld [smem:[#allocation7 + $0x1]]
    %s463 = sld [smem:[#allocation7 + $0x2]]
    %s464 = sld [smem:[#allocation7 + $0x3]]
    %v465 = vld [vmem:[%s0] sm:$0xff]
    %v466 = vld [vmem:[%s0 + $0x8] sm:$0xff]
    %v467 = vld [vmem:[%s0 + $0x10] sm:$0xff]
    %v468 = vld [vmem:[%s0 + $0x18] sm:$0xff]
    %v469 = vld [vmem:[%s0 + $0x20] sm:$0xff]
    %v470 = vld [vmem:[%s0 + $0x28] sm:$0xff]
    %v471 = vld [vmem:[%s0 + $0x30] sm:$0xff]
    %v472 = vld [vmem:[%s0 + $0x38] sm:$0xff]
    %v473 = vld [vmem:[%s5] sm:$0xf]
    %v474 = vld [vmem:[%s5 + $0x4] sm:$0xf]
    %v475 = vld [vmem:[%s5 + $0x8] sm:$0xf]
    %v476 = vld [vmem:[%s5 + $0xc] sm:$0xf]
    %v477 = vld [vmem:[%s5 + $0x10] sm:$0xf]
    %v478 = vld [vmem:[%s5 + $0x14] sm:$0xf]
    %v479 = vld [vmem:[%s5 + $0x18] sm:$0xf]
    %v480 = vld [vmem:[%s5 + $0x1c] sm:$0xf]
    %v481 = vld [vmem:[%s5 + $0x20] sm:$0xf]
    %v482 = vld [vmem:[%s5 + $0x24] sm:$0xf]
    %v483 = vld [vmem:[%s5 + $0x28] sm:$0xf]
    %v484 = vld [vmem:[%s5 + $0x2c] sm:$0xf]
    %v485 = vld [vmem:[%s5 + $0x30] sm:$0xf]
    %v486 = vld [vmem:[%s5 + $0x34] sm:$0xf]
    %v487 = vld [vmem:[%s5 + $0x38] sm:$0xf]
    %v488 = vld [vmem:[%s5 + $0x3c] sm:$0xf]
    %v489 = vld [vmem:[%s5 + $0x40] sm:$0xf]
    %v490 = vld [vmem:[%s5 + $0x44] sm:$0xf]
    %v491 = vld [vmem:[%s5 + $0x48] sm:$0x7]
    %v492 = vld [vmem:[%s9] sm:$0x1]
    %v493 = vlaneseq
    %v494 = vshrl.u32 %v493, 7
    %v495 = vsub.s32 0, %v494
    %v496 = vrot.slane %v492, %v495
    %v505 = vunpack.c.l.b16 %v465
    %v506 = vunpack.c.h.b16 %v465
    %v507 = vunpack.c.l.b16 %v466
    %v508 = vunpack.c.h.b16 %v466
    %v509 = vunpack.c.l.b16 %v467
    %v510 = vunpack.c.h.b16 %v467
    %v511 = vunpack.c.l.b16 %v468
    %v512 = vunpack.c.h.b16 %v468
    %v513 = vunpack.c.l.b16 %v469
    %v514 = vunpack.c.h.b16 %v469
    %v515 = vunpack.c.l.b16 %v470
    %v516 = vunpack.c.h.b16 %v470
    %v517 = vunpack.c.l.b16 %v471
    %v518 = vunpack.c.h.b16 %v471
    %v519 = vunpack.c.l.b16 %v472
    %v520 = vunpack.c.h.b16 %v472
    %v521 = vpack.c.b16 %v507, %v505
    %v522 = vpack.c.b16 %v508, %v506
    %v523 = vpack.c.b16 %v511, %v509
    %v524 = vpack.c.b16 %v512, %v510
    %v525 = vpack.c.b16 %v515, %v513
    %v526 = vpack.c.b16 %v516, %v514
    %v527 = vpack.c.b16 %v519, %v517
    %v528 = vpack.c.b16 %v520, %v518
    %v552 = vunpack.c.l.b16 %v473
    %v553 = vunpack.c.l.b16 %v474
    %v554 = vunpack.c.l.b16 %v475
    %v555 = vunpack.c.l.b16 %v476
    %v556 = vunpack.c.l.b16 %v477
    %v557 = vunpack.c.l.b16 %v478
    %v558 = vunpack.c.l.b16 %v479
    %v559 = vunpack.c.l.b16 %v480
    %v560 = vunpack.c.l.b16 %v481
    %v561 = vunpack.c.l.b16 %v482
    %v562 = vunpack.c.l.b16 %v483
    %v563 = vunpack.c.l.b16 %v484
    %v564 = vunpack.c.l.b16 %v485
    %v565 = vunpack.c.l.b16 %v486
    %v566 = vunpack.c.l.b16 %v487
    %v567 = vunpack.c.l.b16 %v488
    %v568 = vunpack.c.l.b16 %v489
    %v569 = vunpack.c.l.b16 %v490
    %v570 = vunpack.c.l.b16 %v491
    %v571 = vpack.c.b16 %v553, %v552
    %v572 = vpack.c.b16 %v555, %v554
    %v573 = vpack.c.b16 %v557, %v556
    %v574 = vpack.c.b16 %v559, %v558
    %v575 = vpack.c.b16 %v561, %v560
    %v576 = vpack.c.b16 %v563, %v562
    %v577 = vpack.c.b16 %v565, %v564
    %v578 = vpack.c.b16 %v567, %v566
    %v579 = vpack.c.b16 %v569, %v568
    %v580 = vpack.c.b16 %v570, %v570
    %vm590 = vcmask 179200
    %v592 = vsel %vm590, %v522, 0
    %v595 = vsel %vm590, %v524, 0
    %v598 = vsel %vm590, %v526, 0
    %v601 = vsel %vm590, %v528, 0
    %vm603 = vcmask 1042432
    %v605 = vsel %vm603, %v580, 0
    %607 = vmatprep.subr.bf16.mxu0 0
    %608 = vmatpush1.bf16.msra.mxu0 %v578
    %609 = vmatprep.subr.bf16.mxu0 0
    %610 = vmatpush1.bf16.msra.mxu0 %v577
    %611 = vmatprep.subr.bf16.mxu0 0
    %612 = vmatpush1.bf16.msra.mxu0 %v576
    %613 = vmatprep.subr.bf16.mxu0 0
    %614 = vmatpush1.bf16.msra.mxu0 %v575
    %615 = vmatprep.subr.bf16.mxu0 0
    %616 = vmatpush1.bf16.msra.mxu0 %v574
    %617 = vmatprep.subr.bf16.mxu0 0
    %618 = vmatpush1.bf16.msra.mxu0 %v573
    %619 = vmatprep.subr.bf16.mxu0 0
    %620 = vmatpush1.bf16.msra.mxu0 %v572
    %621 = vmatprep.subr.bf16.mxu0 0
    %622 = vmatpush1.bf16.msra.mxu0 %v571
    %623 = vmatprep.subr.bf16.mxu0 0
    %624 = vmatpush2.bf16.msra.mxu0 0
    %625 = vmatprep.subr.bf16.mxu0 0
    %626 = vmatpush2.bf16.msra.mxu0 0
    %627 = vmatprep.subr.bf16.mxu0 0
    %628 = vmatpush2.bf16.msra.mxu0 0
    %629 = vmatprep.subr.bf16.mxu0 0
    %630 = vmatpush2.bf16.msra.mxu0 0
    %631 = vmatprep.subr.bf16.mxu0 0
    %632 = vmatpush2.bf16.msra.mxu0 0
    %633 = vmatprep.subr.bf16.mxu0 0
    %634 = vmatpush2.bf16.msra.mxu0 0
    %635 = vmatprep.subr.bf16.mxu0 0
    %636 = vmatpush2.bf16.msra.mxu0 %v605
    %637 = vmatprep.subr.bf16.mxu0 0
    %638 = vmatpush2.bf16.msra.mxu0 %v579
    %639 = vmatprep.mubr.bf16.mxu0 %v592
    %640 = vmatmul.mubr.bf16.gmra.mxu0 %v521
    %v641 = vpop.f32.mrf.mxu0
    %v642 = vadd.f32 %v496, %v641
    %v643 = vpop.f32.mrf.mxu0
    %v644 = vpop.f32.mrf.mxu0
    %v645 = vadd.f32 %v496, %v644
    %v646 = vpop.f32.mrf.mxu0
    %647 = vmatprep.mubr.bf16.mxu0 %v595
    %648 = vmatmul.mubr.bf16.gmra.mxu0 %v523
    %v649 = vpop.f32.mrf.mxu0
    %v650 = vadd.f32 %v496, %v649
    %v651 = vpop.f32.mrf.mxu0
    %v652 = vpop.f32.mrf.mxu0
    %v653 = vadd.f32 %v496, %v652
    %v654 = vpop.f32.mrf.mxu0
    %655 = vmatprep.mubr.bf16.mxu0 %v598
    %656 = vmatmul.mubr.bf16.gmra.mxu0 %v525
    %v657 = vpop.f32.mrf.mxu0
    %v658 = vadd.f32 %v496, %v657
    %v659 = vpop.f32.mrf.mxu0
    %v660 = vpop.f32.mrf.mxu0
    %v661 = vadd.f32 %v496, %v660
    %v662 = vpop.f32.mrf.mxu0
    %663 = vmatprep.mubr.bf16.mxu0 %v601
    %664 = vmatmul.mubr.bf16.gmra.mxu0 %v527
    %v665 = vpop.f32.mrf.mxu0
    %v666 = vadd.f32 %v496, %v665
    %v667 = vpop.f32.mrf.mxu0
    %v668 = vpop.f32.mrf.mxu0
    %v669 = vadd.f32 %v496, %v668
    %v670 = vpop.f32.mrf.mxu0
    %671 = vdwg.mxu0
    %v672 = vmax.f32 %v642, 0.0
    %v673 = vmax.f32 %v645, 0.0
    %v674 = vmax.f32 %v650, 0.0
    %v675 = vmax.f32 %v653, 0.0
    %v676 = vmax.f32 %v658, 0.0
    %v677 = vmax.f32 %v661, 0.0
    %v678 = vmax.f32 %v666, 0.0
    %v679 = vmax.f32 %v669, 0.0
    %v680 = vmin.f32 %v642, 0.0
    %v681 = vmin.f32 %v645, 0.0
    %v682 = vmin.f32 %v650, 0.0
    %v683 = vmin.f32 %v653, 0.0
    %v684 = vmin.f32 %v658, 0.0
    %v685 = vmin.f32 %v661, 0.0
    %v686 = vmin.f32 %v666, 0.0
    %v687 = vmin.f32 %v669, 0.0
    %v688 = vstv %s461
    %v689 = vmul.f32 %v688, %v680
    %v690 = vmul.f32 %v688, %v681
    %v691 = vmul.f32 %v688, %v682
    %v692 = vmul.f32 %v688, %v683
    %v693 = vmul.f32 %v688, %v684
    %v694 = vmul.f32 %v688, %v685
    %v695 = vmul.f32 %v688, %v686
    %v696 = vmul.f32 %v688, %v687
    %v697 = vadd.f32 %v672, %v689
    %v698 = vadd.f32 %v673, %v690
    %v699 = vadd.f32 %v674, %v691
    %v700 = vadd.f32 %v675, %v692
    %v701 = vadd.f32 %v676, %v693
    %v702 = vadd.f32 %v677, %v694
    %v703 = vadd.f32 %v678, %v695
    %v704 = vadd.f32 %v679, %v696
    %v705 = vpack.c.bf16 %v698, %v697
    %v706 = vpack.c.bf16 %v700, %v699
    %v707 = vpack.c.bf16 %v702, %v701
    %v708 = vpack.c.bf16 %v704, %v703
    %v709 = vld [vmem:[%s6] sm:$0xf]
    %v710 = vld [vmem:[%s6 + $0x4] sm:$0xf]
    %v711 = vld [vmem:[%s6 + $0x8] sm:$0xf]
    %v712 = vld [vmem:[%s6 + $0xc] sm:$0xf]
    %v713 = vld [vmem:[%s9 + $0x1] sm:$0x1]
    %v714 = vlaneseq
    %v715 = vshrl.u32 %v714, 7
    %v716 = vsub.s32 0, %v715
    %v717 = vrot.slane %v713, %v716
    %v722 = vunpack.c.l.b16 %v709
    %v723 = vunpack.c.l.b16 %v710
    %v724 = vunpack.c.l.b16 %v711
    %v725 = vunpack.c.l.b16 %v712
    %v726 = vpack.c.b16 %v723, %v722
    %v727 = vpack.c.b16 %v725, %v724
    %vm730 = vcmask 261120
    %v732 = vsel %vm730, %v705, 0
    %v735 = vsel %vm730, %v706, 0
    %v738 = vsel %vm730, %v707, 0
    %v741 = vsel %vm730, %v708, 0
    %743 = vmatprep.subr.bf16.mxu0 0
    %744 = vmatpush1.bf16.msra.mxu0 0
    %745 = vmatprep.subr.bf16.mxu0 0
    %746 = vmatpush1.bf16.msra.mxu0 0
    %747 = vmatprep.subr.bf16.mxu0 0
    %748 = vmatpush1.bf16.msra.mxu0 0
    %749 = vmatprep.subr.bf16.mxu0 0
    %750 = vmatpush1.bf16.msra.mxu0 0
    %751 = vmatprep.subr.bf16.mxu0 0
    %752 = vmatpush1.bf16.msra.mxu0 0
    %753 = vmatprep.subr.bf16.mxu0 0
    %754 = vmatpush1.bf16.msra.mxu0 0
    %755 = vmatprep.subr.bf16.mxu0 0
    %756 = vmatpush1.bf16.msra.mxu0 %v727
    %757 = vmatprep.subr.bf16.mxu0 0
    %758 = vmatpush1.bf16.msra.mxu0 %v726
    %759 = vmatprep.subr.bf16.mxu0 0
    %760 = vmatpush2.bf16.msra.mxu0 0
    %761 = vmatprep.subr.bf16.mxu0 0
    %762 = vmatpush2.bf16.msra.mxu0 0
    %763 = vmatprep.subr.bf16.mxu0 0
    %764 = vmatpush2.bf16.msra.mxu0 0
    %765 = vmatprep.subr.bf16.mxu0 0
    %766 = vmatpush2.bf16.msra.mxu0 0
    %767 = vmatprep.subr.bf16.mxu0 0
    %768 = vmatpush2.bf16.msra.mxu0 0
    %769 = vmatprep.subr.bf16.mxu0 0
    %770 = vmatpush2.bf16.msra.mxu0 0
    %771 = vmatprep.subr.bf16.mxu0 0
    %772 = vmatpush2.bf16.msra.mxu0 0
    %773 = vmatprep.subr.bf16.mxu0 0
    %774 = vmatpush2.bf16.msra.mxu0 0
    %775 = vmatprep.mubr.bf16.mxu0 0
    %776 = vmatmul.mubr.bf16.gmra.mxu0 %v732
    %v777 = vpop.f32.mrf.mxu0
    %v778 = vadd.f32 %v717, %v777
    %v779 = vpop.f32.mrf.mxu0
    %v780 = vpop.f32.mrf.mxu0
    %v781 = vadd.f32 %v717, %v780
    %v782 = vpop.f32.mrf.mxu0
    %783 = vmatprep.mubr.bf16.mxu0 0
    %784 = vmatmul.mubr.bf16.gmra.mxu0 %v735
    %v785 = vpop.f32.mrf.mxu0
    %v786 = vadd.f32 %v717, %v785
    %v787 = vpop.f32.mrf.mxu0
    %v788 = vpop.f32.mrf.mxu0
    %v789 = vadd.f32 %v717, %v788
    %v790 = vpop.f32.mrf.mxu0
    %791 = vmatprep.mubr.bf16.mxu0 0
    %792 = vmatmul.mubr.bf16.gmra.mxu0 %v738
    %v793 = vpop.f32.mrf.mxu0
    %v794 = vadd.f32 %v717, %v793
    %v795 = vpop.f32.mrf.mxu0
    %v796 = vpop.f32.mrf.mxu0
    %v797 = vadd.f32 %v717, %v796
    %v798 = vpop.f32.mrf.mxu0
    %799 = vmatprep.mubr.bf16.mxu0 0
    %800 = vmatmul.mubr.bf16.gmra.mxu0 %v741
    %v801 = vpop.f32.mrf.mxu0
    %v802 = vadd.f32 %v717, %v801
    %v803 = vpop.f32.mrf.mxu0
    %v804 = vpop.f32.mrf.mxu0
    %v805 = vadd.f32 %v717, %v804
    %v806 = vpop.f32.mrf.mxu0
    %807 = vdwg.mxu0
    %v808 = vld [vmem:[%s1] sm:$0xf]
    %v809 = vld [vmem:[%s1 + $0x4] sm:$0xf]
    %v810 = vld [vmem:[%s1 + $0x8] sm:$0xf]
    %v811 = vld [vmem:[%s1 + $0xc] sm:$0xf]
    %v812 = vld [vmem:[%s1 + $0x10] sm:$0xf]
    %v813 = vld [vmem:[%s1 + $0x14] sm:$0xf]
    %v814 = vld [vmem:[%s1 + $0x18] sm:$0xf]
    %v815 = vld [vmem:[%s1 + $0x1c] sm:$0xf]
    %v816 = vld [vmem:[%s1 + $0x20] sm:$0xf]
    %v817 = vld [vmem:[%s1 + $0x24] sm:$0xf]
    %v818 = vld [vmem:[%s1 + $0x28] sm:$0xf]
    %v819 = vld [vmem:[%s1 + $0x2c] sm:$0xf]
    %v820 = vld [vmem:[%s1 + $0x30] sm:$0xf]
    %v821 = vld [vmem:[%s1 + $0x34] sm:$0xf]
    %v822 = vld [vmem:[%s1 + $0x38] sm:$0xf]
    %v823 = vld [vmem:[%s1 + $0x3c] sm:$0xf]
    %v824 = vld [vmem:[%s7] sm:$0xf]
    %v825 = vld [vmem:[%s7 + $0x4] sm:$0xf]
    %v826 = vld [vmem:[%s7 + $0x8] sm:$0xf]
    %v827 = vld [vmem:[%s7 + $0xc] sm:$0xf]
    %v828 = vld [vmem:[%s7 + $0x10] sm:$0xf]
    %v829 = vld [vmem:[%s7 + $0x14] sm:$0xf]
    %v830 = vld [vmem:[%s7 + $0x18] sm:$0xf]
    %v831 = vld [vmem:[%s7 + $0x1c] sm:$0xf]
    %v832 = vld [vmem:[%s9 + $0x2] sm:$0x1]
    %v833 = vlaneseq
    %v834 = vshrl.u32 %v833, 7
    %v835 = vsub.s32 0, %v834
    %v836 = vrot.slane %v832, %v835
    %v853 = vunpack.c.l.b16 %v808
    %v854 = vunpack.c.l.b16 %v809
    %v855 = vunpack.c.l.b16 %v810
    %v856 = vunpack.c.l.b16 %v811
    %v857 = vunpack.c.l.b16 %v812
    %v858 = vunpack.c.l.b16 %v813
    %v859 = vunpack.c.l.b16 %v814
    %v860 = vunpack.c.l.b16 %v815
    %v861 = vunpack.c.l.b16 %v816
    %v862 = vunpack.c.l.b16 %v817
    %v863 = vunpack.c.l.b16 %v818
    %v864 = vunpack.c.l.b16 %v819
    %v865 = vunpack.c.l.b16 %v820
    %v866 = vunpack.c.l.b16 %v821
    %v867 = vunpack.c.l.b16 %v822
    %v868 = vunpack.c.l.b16 %v823
    %v869 = vpack.c.b16 %v854, %v853
    %v870 = vpack.c.b16 %v856, %v855
    %v871 = vpack.c.b16 %v858, %v857
    %v872 = vpack.c.b16 %v860, %v859
    %v873 = vpack.c.b16 %v862, %v861
    %v874 = vpack.c.b16 %v864, %v863
    %v875 = vpack.c.b16 %v866, %v865
    %v876 = vpack.c.b16 %v868, %v867
    %v885 = vunpack.c.l.b16 %v824
    %v886 = vunpack.c.l.b16 %v825
    %v887 = vunpack.c.l.b16 %v826
    %v888 = vunpack.c.l.b16 %v827
    %v889 = vunpack.c.l.b16 %v828
    %v890 = vunpack.c.l.b16 %v829
    %v891 = vunpack.c.l.b16 %v830
    %v892 = vunpack.c.l.b16 %v831
    %v893 = vpack.c.b16 %v886, %v885
    %v894 = vpack.c.b16 %v888, %v887
    %v895 = vpack.c.b16 %v890, %v889
    %v896 = vpack.c.b16 %v892, %v891
    %vm900 = vcmask 515072
    %v902 = vsel %vm900, %v869, 0
    %v905 = vsel %vm900, %v870, 0
    %v908 = vsel %vm900, %v871, 0
    %v911 = vsel %vm900, %v872, 0
    %v914 = vsel %vm900, %v873, 0
    %v917 = vsel %vm900, %v874, 0
    %v920 = vsel %vm900, %v875, 0
    %v923 = vsel %vm900, %v876, 0
    %vm925 = vcmask 1046528
    %vm926 = vcmask 1047552
    %v927 = vsel %vm925, 4294967295, 65535
    %v928 = vsel %vm926, %v927, 0
    %v930 = vand.u32 %v896, %v928
    %932 = vmatprep.subr.bf16.mxu0 0
    %933 = vmatpush1.bf16.msra.mxu0 0
    %934 = vmatprep.subr.bf16.mxu0 0
    %935 = vmatpush1.bf16.msra.mxu0 0
    %936 = vmatprep.subr.bf16.mxu0 0
    %937 = vmatpush1.bf16.msra.mxu0 0
    %938 = vmatprep.subr.bf16.mxu0 0
    %939 = vmatpush1.bf16.msra.mxu0 0
    %940 = vmatprep.subr.bf16.mxu0 0
    %941 = vmatpush1.bf16.msra.mxu0 %v930
    %942 = vmatprep.subr.bf16.mxu0 0
    %943 = vmatpush1.bf16.msra.mxu0 %v895
    %944 = vmatprep.subr.bf16.mxu0 0
    %945 = vmatpush1.bf16.msra.mxu0 %v894
    %946 = vmatprep.subr.bf16.mxu0 0
    %947 = vmatpush1.bf16.msra.mxu0 %v893
    %948 = vmatprep.subr.bf16.mxu0 0
    %949 = vmatpush2.bf16.msra.mxu0 0
    %950 = vmatprep.subr.bf16.mxu0 0
    %951 = vmatpush2.bf16.msra.mxu0 0
    %952 = vmatprep.subr.bf16.mxu0 0
    %953 = vmatpush2.bf16.msra.mxu0 0
    %954 = vmatprep.subr.bf16.mxu0 0
    %955 = vmatpush2.bf16.msra.mxu0 0
    %956 = vmatprep.subr.bf16.mxu0 0
    %957 = vmatpush2.bf16.msra.mxu0 0
    %958 = vmatprep.subr.bf16.mxu0 0
    %959 = vmatpush2.bf16.msra.mxu0 0
    %960 = vmatprep.subr.bf16.mxu0 0
    %961 = vmatpush2.bf16.msra.mxu0 0
    %962 = vmatprep.subr.bf16.mxu0 0
    %963 = vmatpush2.bf16.msra.mxu0 0
    %964 = vmatprep.mubr.bf16.mxu0 0
    %965 = vmatmul.mubr.bf16.gmra.mxu0 %v902
    %v966 = vpop.f32.mrf.mxu0
    %v967 = vadd.f32 %v836, %v966
    %v968 = vpop.f32.mrf.mxu0
    %v969 = vpop.f32.mrf.mxu0
    %v970 = vadd.f32 %v836, %v969
    %v971 = vpop.f32.mrf.mxu0
    %972 = vmatprep.mubr.bf16.mxu0 0
    %973 = vmatmul.mubr.bf16.gmra.mxu0 %v905
    %v974 = vpop.f32.mrf.mxu0
    %v975 = vadd.f32 %v836, %v974
    %v976 = vpop.f32.mrf.mxu0
    %v977 = vpop.f32.mrf.mxu0
    %v978 = vadd.f32 %v836, %v977
    %v979 = vpop.f32.mrf.mxu0
    %980 = vmatprep.mubr.bf16.mxu0 0
    %981 = vmatmul.mubr.bf16.gmra.mxu0 %v908
    %v982 = vpop.f32.mrf.mxu0
    %v983 = vadd.f32 %v836, %v982
    %v984 = vpop.f32.mrf.mxu0
    %v985 = vpop.f32.mrf.mxu0
    %v986 = vadd.f32 %v836, %v985
    %v987 = vpop.f32.mrf.mxu0
    %988 = vmatprep.mubr.bf16.mxu0 0
    %989 = vmatmul.mubr.bf16.gmra.mxu0 %v911
    %v990 = vpop.f32.mrf.mxu0
    %v991 = vadd.f32 %v836, %v990
    %v992 = vpop.f32.mrf.mxu0
    %v993 = vpop.f32.mrf.mxu0
    %v994 = vadd.f32 %v836, %v993
    %v995 = vpop.f32.mrf.mxu0
    %996 = vmatprep.mubr.bf16.mxu0 0
    %997 = vmatmul.mubr.bf16.gmra.mxu0 %v914
    %v998 = vpop.f32.mrf.mxu0
    %v999 = vadd.f32 %v836, %v998
    %v1000 = vpop.f32.mrf.mxu0
    %v1001 = vpop.f32.mrf.mxu0
    %v1002 = vadd.f32 %v836, %v1001
    %v1003 = vpop.f32.mrf.mxu0
    %1004 = vmatprep.mubr.bf16.mxu0 0
    %1005 = vmatmul.mubr.bf16.gmra.mxu0 %v917
    %v1006 = vpop.f32.mrf.mxu0
    %v1007 = vadd.f32 %v836, %v1006
    %v1008 = vpop.f32.mrf.mxu0
    %v1009 = vpop.f32.mrf.mxu0
    %v1010 = vadd.f32 %v836, %v1009
    %v1011 = vpop.f32.mrf.mxu0
    %1012 = vmatprep.mubr.bf16.mxu0 0
    %1013 = vmatmul.mubr.bf16.gmra.mxu0 %v920
    %v1014 = vpop.f32.mrf.mxu0
    %v1015 = vadd.f32 %v836, %v1014
    %v1016 = vpop.f32.mrf.mxu0
    %v1017 = vpop.f32.mrf.mxu0
    %v1018 = vadd.f32 %v836, %v1017
    %v1019 = vpop.f32.mrf.mxu0
    %1020 = vmatprep.mubr.bf16.mxu0 0
    %1021 = vmatmul.mubr.bf16.gmra.mxu0 %v923
    %v1022 = vpop.f32.mrf.mxu0
    %v1023 = vadd.f32 %v836, %v1022
    %v1024 = vpop.f32.mrf.mxu0
    %v1025 = vpop.f32.mrf.mxu0
    %v1026 = vadd.f32 %v836, %v1025
    %v1027 = vpop.f32.mrf.mxu0
    %1028 = vdwg.mxu0
    %v1029 = vmax.f32 %v967, 0.0
    %v1030 = vmax.f32 %v970, 0.0
    %v1031 = vmax.f32 %v975, 0.0
    %v1032 = vmax.f32 %v978, 0.0
    %v1033 = vmax.f32 %v983, 0.0
    %v1034 = vmax.f32 %v986, 0.0
    %v1035 = vmax.f32 %v991, 0.0
    %v1036 = vmax.f32 %v994, 0.0
    %v1037 = vmax.f32 %v999, 0.0
    %v1038 = vmax.f32 %v1002, 0.0
    %v1039 = vmax.f32 %v1007, 0.0
    %v1040 = vmax.f32 %v1010, 0.0
    %v1041 = vmax.f32 %v1015, 0.0
    %v1042 = vmax.f32 %v1018, 0.0
    %v1043 = vmax.f32 %v1023, 0.0
    %v1044 = vmax.f32 %v1026, 0.0
    %v1045 = vmin.f32 %v967, 0.0
    %v1046 = vmin.f32 %v970, 0.0
    %v1047 = vmin.f32 %v975, 0.0
    %v1048 = vmin.f32 %v978, 0.0
    %v1049 = vmin.f32 %v983, 0.0
    %v1050 = vmin.f32 %v986, 0.0
    %v1051 = vmin.f32 %v991, 0.0
    %v1052 = vmin.f32 %v994, 0.0
    %v1053 = vmin.f32 %v999, 0.0
    %v1054 = vmin.f32 %v1002, 0.0
    %v1055 = vmin.f32 %v1007, 0.0
    %v1056 = vmin.f32 %v1010, 0.0
    %v1057 = vmin.f32 %v1015, 0.0
    %v1058 = vmin.f32 %v1018, 0.0
    %v1059 = vmin.f32 %v1023, 0.0
    %v1060 = vmin.f32 %v1026, 0.0
    %v1061 = vstv %s462
    %v1062 = vmul.f32 %v1061, %v1045
    %v1063 = vmul.f32 %v1061, %v1046
    %v1064 = vmul.f32 %v1061, %v1047
    %v1065 = vmul.f32 %v1061, %v1048
    %v1066 = vmul.f32 %v1061, %v1049
    %v1067 = vmul.f32 %v1061, %v1050
    %v1068 = vmul.f32 %v1061, %v1051
    %v1069 = vmul.f32 %v1061, %v1052
    %v1070 = vmul.f32 %v1061, %v1053
    %v1071 = vmul.f32 %v1061, %v1054
    %v1072 = vmul.f32 %v1061, %v1055
    %v1073 = vmul.f32 %v1061, %v1056
    %v1074 = vmul.f32 %v1061, %v1057
    %v1075 = vmul.f32 %v1061, %v1058
    %v1076 = vmul.f32 %v1061, %v1059
    %v1077 = vmul.f32 %v1061, %v1060
    %v1078 = vadd.f32 %v1029, %v1062
    %v1079 = vadd.f32 %v1030, %v1063
    %v1080 = vadd.f32 %v1031, %v1064
    %v1081 = vadd.f32 %v1032, %v1065
    %v1082 = vadd.f32 %v1033, %v1066
    %v1083 = vadd.f32 %v1034, %v1067
    %v1084 = vadd.f32 %v1035, %v1068
    %v1085 = vadd.f32 %v1036, %v1069
    %v1086 = vadd.f32 %v1037, %v1070
    %v1087 = vadd.f32 %v1038, %v1071
    %v1088 = vadd.f32 %v1039, %v1072
    %v1089 = vadd.f32 %v1040, %v1073
    %v1090 = vadd.f32 %v1041, %v1074
    %v1091 = vadd.f32 %v1042, %v1075
    %v1092 = vadd.f32 %v1043, %v1076
    %v1093 = vadd.f32 %v1044, %v1077
    %v1094 = vpack.c.bf16 %v1079, %v1078
    %v1095 = vpack.c.bf16 %v1081, %v1080
    %v1096 = vpack.c.bf16 %v1083, %v1082
    %v1097 = vpack.c.bf16 %v1085, %v1084
    %v1098 = vpack.c.bf16 %v1087, %v1086
    %v1099 = vpack.c.bf16 %v1089, %v1088
    %v1100 = vpack.c.bf16 %v1091, %v1090
    %v1101 = vpack.c.bf16 %v1093, %v1092
    %v1102 = vld [vmem:[%s8] sm:$0xf]
    %v1103 = vld [vmem:[%s8 + $0x4] sm:$0xf]
    %v1104 = vld [vmem:[%s8 + $0x8] sm:$0xf]
    %v1105 = vld [vmem:[%s8 + $0xc] sm:$0xf]
    %v1106 = vld [vmem:[%s9 + $0x3] sm:$0x1]
    %v1107 = vlaneseq
    %v1108 = vshrl.u32 %v1107, 7
    %v1109 = vsub.s32 0, %v1108
    %v1110 = vrot.slane %v1106, %v1109
    %v1115 = vunpack.c.l.b16 %v1102
    %v1116 = vunpack.c.l.b16 %v1103
    %v1117 = vunpack.c.l.b16 %v1104
    %v1118 = vunpack.c.l.b16 %v1105
    %v1119 = vpack.c.b16 %v1116, %v1115
    %v1120 = vpack.c.b16 %v1118, %v1117
    %v1124 = vsel %vm730, %v1094, 0
    %v1127 = vsel %vm730, %v1095, 0
    %v1130 = vsel %vm730, %v1096, 0
    %v1133 = vsel %vm730, %v1097, 0
    %v1136 = vsel %vm730, %v1098, 0
    %v1139 = vsel %vm730, %v1099, 0
    %v1142 = vsel %vm730, %v1100, 0
    %v1145 = vsel %vm730, %v1101, 0
    %1147 = vmatprep.subr.bf16.mxu0 0
    %1148 = vmatpush1.bf16.msra.mxu0 0
    %1149 = vmatprep.subr.bf16.mxu0 0
    %1150 = vmatpush1.bf16.msra.mxu0 0
    %1151 = vmatprep.subr.bf16.mxu0 0
    %1152 = vmatpush1.bf16.msra.mxu0 0
    %1153 = vmatprep.subr.bf16.mxu0 0
    %1154 = vmatpush1.bf16.msra.mxu0 0
    %1155 = vmatprep.subr.bf16.mxu0 0
    %1156 = vmatpush1.bf16.msra.mxu0 0
    %1157 = vmatprep.subr.bf16.mxu0 0
    %1158 = vmatpush1.bf16.msra.mxu0 0
    %1159 = vmatprep.subr.bf16.mxu0 0
    %1160 = vmatpush1.bf16.msra.mxu0 %v1120
    %1161 = vmatprep.subr.bf16.mxu0 0
    %1162 = vmatpush1.bf16.msra.mxu0 %v1119
    %1163 = vmatprep.subr.bf16.mxu0 0
    %1164 = vmatpush2.bf16.msra.mxu0 0
    %1165 = vmatprep.subr.bf16.mxu0 0
    %1166 = vmatpush2.bf16.msra.mxu0 0
    %1167 = vmatprep.subr.bf16.mxu0 0
    %1168 = vmatpush2.bf16.msra.mxu0 0
    %1169 = vmatprep.subr.bf16.mxu0 0
    %1170 = vmatpush2.bf16.msra.mxu0 0
    %1171 = vmatprep.subr.bf16.mxu0 0
    %1172 = vmatpush2.bf16.msra.mxu0 0
    %1173 = vmatprep.subr.bf16.mxu0 0
    %1174 = vmatpush2.bf16.msra.mxu0 0
    %1175 = vmatprep.subr.bf16.mxu0 0
    %1176 = vmatpush2.bf16.msra.mxu0 0
    %1177 = vmatprep.subr.bf16.mxu0 0
    %1178 = vmatpush2.bf16.msra.mxu0 0
    %1179 = vmatprep.mubr.bf16.mxu0 0
    %1180 = vmatmul.mubr.bf16.gmra.mxu0 %v1124
    %v1181 = vpop.f32.mrf.mxu0
    %v1182 = vadd.f32 %v1110, %v1181
    %v1183 = vpop.f32.mrf.mxu0
    %v1184 = vpop.f32.mrf.mxu0
    %v1185 = vadd.f32 %v1110, %v1184
    %v1186 = vpop.f32.mrf.mxu0
    %1187 = vmatprep.mubr.bf16.mxu0 0
    %1188 = vmatmul.mubr.bf16.gmra.mxu0 %v1127
    %v1189 = vpop.f32.mrf.mxu0
    %v1190 = vadd.f32 %v1110, %v1189
    %v1191 = vpop.f32.mrf.mxu0
    %v1192 = vpop.f32.mrf.mxu0
    %v1193 = vadd.f32 %v1110, %v1192
    %v1194 = vpop.f32.mrf.mxu0
    %1195 = vmatprep.mubr.bf16.mxu0 0
    %1196 = vmatmul.mubr.bf16.gmra.mxu0 %v1130
    %v1197 = vpop.f32.mrf.mxu0
    %v1198 = vadd.f32 %v1110, %v1197
    %v1199 = vpop.f32.mrf.mxu0
    %v1200 = vpop.f32.mrf.mxu0
    %v1201 = vadd.f32 %v1110, %v1200
    %v1202 = vpop.f32.mrf.mxu0
    %1203 = vmatprep.mubr.bf16.mxu0 0
    %1204 = vmatmul.mubr.bf16.gmra.mxu0 %v1133
    %v1205 = vpop.f32.mrf.mxu0
    %v1206 = vadd.f32 %v1110, %v1205
    %v1207 = vpop.f32.mrf.mxu0
    %v1208 = vpop.f32.mrf.mxu0
    %v1209 = vadd.f32 %v1110, %v1208
    %v1210 = vpop.f32.mrf.mxu0
    %1211 = vmatprep.mubr.bf16.mxu0 0
    %1212 = vmatmul.mubr.bf16.gmra.mxu0 %v1136
    %v1213 = vpop.f32.mrf.mxu0
    %v1214 = vadd.f32 %v1110, %v1213
    %v1215 = vpop.f32.mrf.mxu0
    %v1216 = vpop.f32.mrf.mxu0
    %v1217 = vadd.f32 %v1110, %v1216
    %v1218 = vpop.f32.mrf.mxu0
    %1219 = vmatprep.mubr.bf16.mxu0 0
    %1220 = vmatmul.mubr.bf16.gmra.mxu0 %v1139
    %v1221 = vpop.f32.mrf.mxu0
    %v1222 = vadd.f32 %v1110, %v1221
    %v1223 = vpop.f32.mrf.mxu0
    %v1224 = vpop.f32.mrf.mxu0
    %v1225 = vadd.f32 %v1110, %v1224
    %v1226 = vpop.f32.mrf.mxu0
    %1227 = vmatprep.mubr.bf16.mxu0 0
    %1228 = vmatmul.mubr.bf16.gmra.mxu0 %v1142
    %v1229 = vpop.f32.mrf.mxu0
    %v1230 = vadd.f32 %v1110, %v1229
    %v1231 = vpop.f32.mrf.mxu0
    %v1232 = vpop.f32.mrf.mxu0
    %v1233 = vadd.f32 %v1110, %v1232
    %v1234 = vpop.f32.mrf.mxu0
    %1235 = vmatprep.mubr.bf16.mxu0 0
    %1236 = vmatmul.mubr.bf16.gmra.mxu0 %v1145
    %v1237 = vpop.f32.mrf.mxu0
    %v1238 = vadd.f32 %v1110, %v1237
    %v1239 = vpop.f32.mrf.mxu0
    %v1240 = vpop.f32.mrf.mxu0
    %v1241 = vadd.f32 %v1110, %v1240
    %v1242 = vpop.f32.mrf.mxu0
    %1243 = vdwg.mxu0
    %v1244 = vadd.f32 %v1182, %v778
    %v1245 = vadd.f32 %v1185, %v781
    %v1246 = vadd.f32 %v1190, %v786
    %v1247 = vadd.f32 %v1193, %v789
    %v1248 = vadd.f32 %v1198, %v794
    %v1249 = vadd.f32 %v1201, %v797
    %v1250 = vadd.f32 %v1206, %v802
    %v1251 = vadd.f32 %v1209, %v805
    %v1252 = vadd.f32 %v1214, %v778
    %v1253 = vadd.f32 %v1217, %v781
    %v1254 = vadd.f32 %v1222, %v786
    %v1255 = vadd.f32 %v1225, %v789
    %v1256 = vadd.f32 %v1230, %v794
    %v1257 = vadd.f32 %v1233, %v797
    %v1258 = vadd.f32 %v1238, %v802
    %v1259 = vadd.f32 %v1241, %v805
    %v1260 = vpack.c.bf16 %v1245, %v1244
    %v1261 = vpack.c.bf16 %v1247, %v1246
    %v1262 = vpack.c.bf16 %v1249, %v1248
    %v1263 = vpack.c.bf16 %v1251, %v1250
    %v1264 = vpack.c.bf16 %v1253, %v1252
    %v1265 = vpack.c.bf16 %v1255, %v1254
    %v1266 = vpack.c.bf16 %v1257, %v1256
    %v1267 = vpack.c.bf16 %v1259, %v1258
    %v1268 = vld [vmem:[%s10] sm:$0xf]
    %v1269 = vld [vmem:[%s10 + $0x4] sm:$0xf]
    %v1270 = vld [vmem:[%s10 + $0x8] sm:$0x1]
    %v1274 = vunpack.c.l.b16 %v1268
    %v1275 = vunpack.c.l.b16 %v1269
    %v1276 = vunpack.c.l.b16 %v1270
    %v1277 = vpack.c.b16 %v1275, %v1274
    %v1278 = vpack.c.b16 %v1276, %v1276
    %v1280 = vsel %vm730, %v1277, 0
    %v1283 = vsel %vm730, %v1278, 0
    %v1286 = vsel %vm730, %v1260, 0
    %v1289 = vsel %vm730, %v1261, 0
    %v1292 = vsel %vm730, %v1262, 0
    %v1295 = vsel %vm730, %v1263, 0
    %v1298 = vsel %vm730, %v1264, 0
    %v1301 = vsel %vm730, %v1265, 0
    %v1304 = vsel %vm730, %v1266, 0
    %v1307 = vsel %vm730, %v1267, 0
    %1309 = vmatprep.subr.bf16.mxu0 0
    %1310 = vmatpush1.bf16.xpose.msra.mxu0 %v1307
    %1311 = vmatprep.subr.bf16.mxu0 0
    %1312 = vmatpush1.bf16.xpose.msra.mxu0 %v1304
    %1313 = vmatprep.subr.bf16.mxu0 0
    %1314 = vmatpush1.bf16.xpose.msra.mxu0 %v1301
    %1315 = vmatprep.subr.bf16.mxu0 0
    %1316 = vmatpush1.bf16.xpose.msra.mxu0 %v1298
    %1317 = vmatprep.subr.bf16.mxu0 0
    %1318 = vmatpush1.bf16.xpose.msra.mxu0 %v1295
    %1319 = vmatprep.subr.bf16.mxu0 0
    %1320 = vmatpush1.bf16.xpose.msra.mxu0 %v1292
    %1321 = vmatprep.subr.bf16.mxu0 0
    %1322 = vmatpush1.bf16.xpose.msra.mxu0 %v1289
    %1323 = vmatprep.subr.bf16.mxu0 0
    %1324 = vmatpush1.bf16.xpose.msra.mxu0 %v1286
    %1325 = vmatprep.subr.bf16.mxu0 0
    %1326 = vmatpush2.bf16.xpose.msra.mxu0 0
    %1327 = vmatprep.subr.bf16.mxu0 0
    %1328 = vmatpush2.bf16.xpose.msra.mxu0 0
    %1329 = vmatprep.subr.bf16.mxu0 0
    %1330 = vmatpush2.bf16.xpose.msra.mxu0 0
    %1331 = vmatprep.subr.bf16.mxu0 0
    %1332 = vmatpush2.bf16.xpose.msra.mxu0 0
    %1333 = vmatprep.subr.bf16.mxu0 0
    %1334 = vmatpush2.bf16.xpose.msra.mxu0 0
    %1335 = vmatprep.subr.bf16.mxu0 0
    %1336 = vmatpush2.bf16.xpose.msra.mxu0 0
    %1337 = vmatprep.subr.bf16.mxu0 0
    %1338 = vmatpush2.bf16.xpose.msra.mxu0 0
    %1339 = vmatprep.subr.bf16.mxu0 0
    %1340 = vmatpush2.bf16.xpose.msra.mxu0 0
    %1341 = vmatprep.mubr.bf16.mxu0 0
    %1342 = vmatmul.mubr.bf16.gmra.mxu0 %v1280
    %v1343 = vpop.f32.mrf.mxu0
    %v1344 = vadd.f32 0.0, %v1343
    %v1345 = vpop.f32.mrf.mxu0
    %v1346 = vpop.f32.mrf.mxu0
    %v1347 = vadd.f32 0.0, %v1346
    %v1348 = vpop.f32.mrf.mxu0
    %1349 = vmatprep.mubr.bf16.mxu0 0
    %1350 = vmatmul.mubr.bf16.gmra.mxu0 %v1283
    %v1351 = vpop.f32.mrf.mxu0
    %v1352 = vadd.f32 0.0, %v1351
    %v1353 = vpop.f32.mrf.mxu0
    %v1354 = vpop.f32.mrf.mxu0
    %v1355 = vpop.f32.mrf.mxu0
    %1356 = vdwg.mxu0
    %v1357 = vmul.f32 %v1344, 0.17677669
    %v1358 = vmul.f32 %v1347, 0.17677669
    %v1359 = vmul.f32 %v1352, 0.17677669
    %v1360 = vpack.c.bf16 %v1185, %v1182
    %v1361 = vpack.c.bf16 %v1193, %v1190
    %v1362 = vpack.c.bf16 %v1201, %v1198
    %v1363 = vpack.c.bf16 %v1209, %v1206
    %v1364 = vpack.c.bf16 %v1217, %v1214
    %v1365 = vpack.c.bf16 %v1225, %v1222
    %v1366 = vpack.c.bf16 %v1233, %v1230
    %v1367 = vpack.c.bf16 %v1241, %v1238
    %v1368 = vld [vmem:[%s14] sm:$0xf]
    %v1369 = vld [vmem:[%s14 + $0x4] sm:$0xf]
    %v1370 = vld [vmem:[%s14 + $0x8] sm:$0xf]
    %v1371 = vld [vmem:[%s14 + $0xc] sm:$0xf]
    %v1376 = vunpack.c.l.b16 %v1368
    %v1377 = vunpack.c.l.b16 %v1369
    %v1378 = vunpack.c.l.b16 %v1370
    %v1379 = vunpack.c.l.b16 %v1371
    %v1380 = vpack.c.b16 %v1377, %v1376
    %v1381 = vpack.c.b16 %v1379, %v1378
    %v1385 = vsel %vm730, %v1360, 0
    %v1388 = vsel %vm730, %v1361, 0
    %v1391 = vsel %vm730, %v1362, 0
    %v1394 = vsel %vm730, %v1363, 0
    %v1397 = vsel %vm730, %v1364, 0
    %v1400 = vsel %vm730, %v1365, 0
    %v1403 = vsel %vm730, %v1366, 0
    %v1406 = vsel %vm730, %v1367, 0
    %1408 = vmatprep.subr.bf16.mxu0 0
    %1409 = vmatpush1.bf16.msra.mxu0 0
    %1410 = vmatprep.subr.bf16.mxu0 0
    %1411 = vmatpush1.bf16.msra.mxu0 0
    %1412 = vmatprep.subr.bf16.mxu0 0
    %1413 = vmatpush1.bf16.msra.mxu0 0
    %1414 = vmatprep.subr.bf16.mxu0 0
    %1415 = vmatpush1.bf16.msra.mxu0 0
    %1416 = vmatprep.subr.bf16.mxu0 0
    %1417 = vmatpush1.bf16.msra.mxu0 0
    %1418 = vmatprep.subr.bf16.mxu0 0
    %1419 = vmatpush1.bf16.msra.mxu0 0
    %1420 = vmatprep.subr.bf16.mxu0 0
    %1421 = vmatpush1.bf16.msra.mxu0 %v1381
    %1422 = vmatprep.subr.bf16.mxu0 0
    %1423 = vmatpush1.bf16.msra.mxu0 %v1380
    %1424 = vmatprep.subr.bf16.mxu0 0
    %1425 = vmatpush2.bf16.msra.mxu0 0
    %1426 = vmatprep.subr.bf16.mxu0 0
    %1427 = vmatpush2.bf16.msra.mxu0 0
    %1428 = vmatprep.subr.bf16.mxu0 0
    %1429 = vmatpush2.bf16.msra.mxu0 0
    %1430 = vmatprep.subr.bf16.mxu0 0
    %1431 = vmatpush2.bf16.msra.mxu0 0
    %1432 = vmatprep.subr.bf16.mxu0 0
    %1433 = vmatpush2.bf16.msra.mxu0 0
    %1434 = vmatprep.subr.bf16.mxu0 0
    %1435 = vmatpush2.bf16.msra.mxu0 0
    %1436 = vmatprep.subr.bf16.mxu0 0
    %1437 = vmatpush2.bf16.msra.mxu0 0
    %1438 = vmatprep.subr.bf16.mxu0 0
    %1439 = vmatpush2.bf16.msra.mxu0 0
    %1440 = vmatprep.mubr.bf16.mxu0 0
    %1441 = vmatmul.mubr.bf16.gmra.mxu0 %v1385
    %v1442 = vpop.f32.mrf.mxu0
    %v1443 = vadd.f32 0.0, %v1442
    %v1444 = vpop.f32.mrf.mxu0
    %v1445 = vpop.f32.mrf.mxu0
    %v1446 = vadd.f32 0.0, %v1445
    %v1447 = vpop.f32.mrf.mxu0
    %1448 = vmatprep.mubr.bf16.mxu0 0
    %1449 = vmatmul.mubr.bf16.gmra.mxu0 %v1388
    %v1450 = vpop.f32.mrf.mxu0
    %v1451 = vadd.f32 0.0, %v1450
    %v1452 = vpop.f32.mrf.mxu0
    %v1453 = vpop.f32.mrf.mxu0
    %v1454 = vadd.f32 0.0, %v1453
    %v1455 = vpop.f32.mrf.mxu0
    %1456 = vmatprep.mubr.bf16.mxu0 0
    %1457 = vmatmul.mubr.bf16.gmra.mxu0 %v1391
    %v1458 = vpop.f32.mrf.mxu0
    %v1459 = vadd.f32 0.0, %v1458
    %v1460 = vpop.f32.mrf.mxu0
    %v1461 = vpop.f32.mrf.mxu0
    %v1462 = vadd.f32 0.0, %v1461
    %v1463 = vpop.f32.mrf.mxu0
    %1464 = vmatprep.mubr.bf16.mxu0 0
    %1465 = vmatmul.mubr.bf16.gmra.mxu0 %v1394
    %v1466 = vpop.f32.mrf.mxu0
    %v1467 = vadd.f32 0.0, %v1466
    %v1468 = vpop.f32.mrf.mxu0
    %v1469 = vpop.f32.mrf.mxu0
    %v1470 = vadd.f32 0.0, %v1469
    %v1471 = vpop.f32.mrf.mxu0
    %1472 = vmatprep.mubr.bf16.mxu0 0
    %1473 = vmatmul.mubr.bf16.gmra.mxu0 %v1397
    %v1474 = vpop.f32.mrf.mxu0
    %v1475 = vadd.f32 0.0, %v1474
    %v1476 = vpop.f32.mrf.mxu0
    %v1477 = vpop.f32.mrf.mxu0
    %v1478 = vadd.f32 0.0, %v1477
    %v1479 = vpop.f32.mrf.mxu0
    %1480 = vmatprep.mubr.bf16.mxu0 0
    %1481 = vmatmul.mubr.bf16.gmra.mxu0 %v1400
    %v1482 = vpop.f32.mrf.mxu0
    %v1483 = vadd.f32 0.0, %v1482
    %v1484 = vpop.f32.mrf.mxu0
    %v1485 = vpop.f32.mrf.mxu0
    %v1486 = vadd.f32 0.0, %v1485
    %v1487 = vpop.f32.mrf.mxu0
    %1488 = vmatprep.mubr.bf16.mxu0 0
    %1489 = vmatmul.mubr.bf16.gmra.mxu0 %v1403
    %v1490 = vpop.f32.mrf.mxu0
    %v1491 = vadd.f32 0.0, %v1490
    %v1492 = vpop.f32.mrf.mxu0
    %v1493 = vpop.f32.mrf.mxu0
    %v1494 = vadd.f32 0.0, %v1493
    %v1495 = vpop.f32.mrf.mxu0
    %1496 = vmatprep.mubr.bf16.mxu0 0
    %1497 = vmatmul.mubr.bf16.gmra.mxu0 %v1406
    %v1498 = vpop.f32.mrf.mxu0
    %v1499 = vadd.f32 0.0, %v1498
    %v1500 = vpop.f32.mrf.mxu0
    %v1501 = vpop.f32.mrf.mxu0
    %v1502 = vadd.f32 0.0, %v1501
    %v1503 = vpop.f32.mrf.mxu0
    %1504 = vdwg.mxu0
    %v1505 = vld [vmem:[%s2] sm:$0xff]
    %v1506 = vld [vmem:[%s2 + $0x8] sm:$0xff]
    %v1507 = vld [vmem:[%s2 + $0x10] sm:$0xff]
    %v1508 = vld [vmem:[%s2 + $0x18] sm:$0xff]
    %v1509 = vld [vmem:[%s2 + $0x20] sm:$0xff]
    %v1510 = vld [vmem:[%s2 + $0x28] sm:$0xff]
    %v1511 = vld [vmem:[%s2 + $0x30] sm:$0xff]
    %v1512 = vld [vmem:[%s2 + $0x38] sm:$0xff]
    %v1513 = vld [vmem:[%s2 + $0x40] sm:$0xff]
    %v1514 = vld [vmem:[%s2 + $0x48] sm:$0xff]
    %v1515 = vld [vmem:[%s2 + $0x50] sm:$0xff]
    %v1516 = vld [vmem:[%s2 + $0x58] sm:$0xff]
    %v1517 = vld [vmem:[%s2 + $0x60] sm:$0xff]
    %v1518 = vld [vmem:[%s2 + $0x68] sm:$0xff]
    %v1519 = vld [vmem:[%s2 + $0x70] sm:$0xff]
    %v1520 = vld [vmem:[%s2 + $0x78] sm:$0xff]
    %v1521 = vld [vmem:[%s3] sm:$0xff]
    %v1522 = vld [vmem:[%s3 + $0x8] sm:$0xff]
    %v1523 = vld [vmem:[%s3 + $0x10] sm:$0xff]
    %v1524 = vld [vmem:[%s3 + $0x18] sm:$0xff]
    %v1525 = vld [vmem:[%s3 + $0x20] sm:$0xff]
    %v1526 = vld [vmem:[%s3 + $0x28] sm:$0xff]
    %v1527 = vld [vmem:[%s3 + $0x30] sm:$0xff]
    %v1528 = vld [vmem:[%s3 + $0x38] sm:$0xff]
    %v1529 = vld [vmem:[%s3 + $0x40] sm:$0xff]
    %v1530 = vld [vmem:[%s3 + $0x48] sm:$0xff]
    %v1531 = vld [vmem:[%s3 + $0x50] sm:$0xff]
    %v1532 = vld [vmem:[%s3 + $0x58] sm:$0xff]
    %v1533 = vld [vmem:[%s3 + $0x60] sm:$0xff]
    %v1534 = vld [vmem:[%s3 + $0x68] sm:$0xff]
    %v1535 = vld [vmem:[%s3 + $0x70] sm:$0xff]
    %v1536 = vld [vmem:[%s3 + $0x78] sm:$0xff]
    %v1537 = vmul.f32 %v1521, 0.2820948
    %v1538 = vmul.f32 %v1522, 0.2820948
    %v1539 = vmul.f32 %v1523, 0.2820948
    %v1540 = vmul.f32 %v1524, 0.2820948
    %v1541 = vmul.f32 %v1525, 0.2820948
    %v1542 = vmul.f32 %v1526, 0.2820948
    %v1543 = vmul.f32 %v1527, 0.2820948
    %v1544 = vmul.f32 %v1528, 0.2820948
    %v1545 = vmul.f32 %v1529, 0.2820948
    %v1546 = vmul.f32 %v1530, 0.2820948
    %v1547 = vmul.f32 %v1531, 0.2820948
    %v1548 = vmul.f32 %v1532, 0.2820948
    %v1549 = vmul.f32 %v1533, 0.2820948
    %v1550 = vmul.f32 %v1534, 0.2820948
    %v1551 = vmul.f32 %v1535, 0.2820948
    %v1552 = vmul.f32 %v1536, 0.2820948
    %v1553 = vmul.f32 %v1505, 0.48860252
    %v1554 = vmul.f32 %v1506, 0.48860252
    %v1555 = vmul.f32 %v1507, 0.48860252
    %v1556 = vmul.f32 %v1508, 0.48860252
    %v1557 = vmul.f32 %v1509, 0.48860252
    %v1558 = vmul.f32 %v1510, 0.48860252
    %v1559 = vmul.f32 %v1511, 0.48860252
    %v1560 = vmul.f32 %v1512, 0.48860252
    %v1561 = vmul.f32 %v1513, 0.48860252
    %v1562 = vmul.f32 %v1514, 0.48860252
    %v1563 = vmul.f32 %v1515, 0.48860252
    %v1564 = vmul.f32 %v1516, 0.48860252
    %v1565 = vmul.f32 %v1517, 0.48860252
    %v1566 = vmul.f32 %v1518, 0.48860252
    %v1567 = vmul.f32 %v1519, 0.48860252
    %v1568 = vmul.f32 %v1520, 0.48860252
    %s1569 = scalar_lea.vmem %s3, 128
    %v1570 = vld [vmem:[%s1569] sm:$0xff]
    %v1571 = vld [vmem:[%s1569 + $0x8] sm:$0xff]
    %v1572 = vld [vmem:[%s1569 + $0x10] sm:$0xff]
    %v1573 = vld [vmem:[%s1569 + $0x18] sm:$0xff]
    %v1574 = vld [vmem:[%s1569 + $0x20] sm:$0xff]
    %v1575 = vld [vmem:[%s1569 + $0x28] sm:$0xff]
    %v1576 = vld [vmem:[%s1569 + $0x30] sm:$0xff]
    %v1577 = vld [vmem:[%s1569 + $0x38] sm:$0xff]
    %v1578 = vld [vmem:[%s1569 + $0x40] sm:$0xff]
    %v1579 = vld [vmem:[%s1569 + $0x48] sm:$0xff]
    %v1580 = vld [vmem:[%s1569 + $0x50] sm:$0xff]
    %v1581 = vld [vmem:[%s1569 + $0x58] sm:$0xff]
    %v1582 = vld [vmem:[%s1569 + $0x60] sm:$0xff]
    %v1583 = vld [vmem:[%s1569 + $0x68] sm:$0xff]
    %v1584 = vld [vmem:[%s1569 + $0x70] sm:$0xff]
    %v1585 = vld [vmem:[%s1569 + $0x78] sm:$0xff]
    %1587 = vset.pattern.permute.xlu0 1
    %1588 = vperm.xlu0 %1587, %v1553
    %v1589 = vpop.permute.xlu0 %1588
    %1592 = vset.pattern.permute.xlu0 1
    %1593 = vperm.xlu0 %1592, %v1554
    %v1594 = vpop.permute.xlu0 %1593
    %1597 = vset.pattern.permute.xlu0 1
    %1598 = vperm.xlu0 %1597, %v1555
    %v1599 = vpop.permute.xlu0 %1598
    %1602 = vset.pattern.permute.xlu0 1
    %1603 = vperm.xlu0 %1602, %v1556
    %v1604 = vpop.permute.xlu0 %1603
    %1607 = vset.pattern.permute.xlu0 1
    %1608 = vperm.xlu0 %1607, %v1557
    %v1609 = vpop.permute.xlu0 %1608
    %1612 = vset.pattern.permute.xlu0 1
    %1613 = vperm.xlu0 %1612, %v1558
    %v1614 = vpop.permute.xlu0 %1613
    %1617 = vset.pattern.permute.xlu0 1
    %1618 = vperm.xlu0 %1617, %v1559
    %v1619 = vpop.permute.xlu0 %1618
    %1622 = vset.pattern.permute.xlu0 1
    %1623 = vperm.xlu0 %1622, %v1560
    %v1624 = vpop.permute.xlu0 %1623
    %1627 = vset.pattern.permute.xlu0 1
    %1628 = vperm.xlu0 %1627, %v1561
    %v1629 = vpop.permute.xlu0 %1628
    %1632 = vset.pattern.permute.xlu0 1
    %1633 = vperm.xlu0 %1632, %v1562
    %v1634 = vpop.permute.xlu0 %1633
    %1637 = vset.pattern.permute.xlu0 1
    %1638 = vperm.xlu0 %1637, %v1563
    %v1639 = vpop.permute.xlu0 %1638
    %1642 = vset.pattern.permute.xlu0 1
    %1643 = vperm.xlu0 %1642, %v1564
    %v1644 = vpop.permute.xlu0 %1643
    %1647 = vset.pattern.permute.xlu0 1
    %1648 = vperm.xlu0 %1647, %v1565
    %v1649 = vpop.permute.xlu0 %1648
    %1652 = vset.pattern.permute.xlu0 1
    %1653 = vperm.xlu0 %1652, %v1566
    %v1654 = vpop.permute.xlu0 %1653
    %1657 = vset.pattern.permute.xlu0 1
    %1658 = vperm.xlu0 %1657, %v1567
    %v1659 = vpop.permute.xlu0 %1658
    %1662 = vset.pattern.permute.xlu0 1
    %1663 = vperm.xlu0 %1662, %v1568
    %v1664 = vpop.permute.xlu0 %1663
    %v1666 = vmul.f32 %v1589, %v1570
    %v1667 = vmul.f32 %v1594, %v1571
    %v1668 = vmul.f32 %v1599, %v1572
    %v1669 = vmul.f32 %v1604, %v1573
    %v1670 = vmul.f32 %v1609, %v1574
    %v1671 = vmul.f32 %v1614, %v1575
    %v1672 = vmul.f32 %v1619, %v1576
    %v1673 = vmul.f32 %v1624, %v1577
    %v1674 = vmul.f32 %v1629, %v1578
    %v1675 = vmul.f32 %v1634, %v1579
    %v1676 = vmul.f32 %v1639, %v1580
    %v1677 = vmul.f32 %v1644, %v1581
    %v1678 = vmul.f32 %v1649, %v1582
    %v1679 = vmul.f32 %v1654, %v1583
    %v1680 = vmul.f32 %v1659, %v1584
    %v1681 = vmul.f32 %v1664, %v1585
    %v1682 = vsub.f32 %v1537, %v1666
    %v1683 = vsub.f32 %v1538, %v1667
    %v1684 = vsub.f32 %v1539, %v1668
    %v1685 = vsub.f32 %v1540, %v1669
    %v1686 = vsub.f32 %v1541, %v1670
    %v1687 = vsub.f32 %v1542, %v1671
    %v1688 = vsub.f32 %v1543, %v1672
    %v1689 = vsub.f32 %v1544, %v1673
    %v1690 = vsub.f32 %v1545, %v1674
    %v1691 = vsub.f32 %v1546, %v1675
    %v1692 = vsub.f32 %v1547, %v1676
    %v1693 = vsub.f32 %v1548, %v1677
    %v1694 = vsub.f32 %v1549, %v1678
    %v1695 = vsub.f32 %v1550, %v1679
    %v1696 = vsub.f32 %v1551, %v1680
    %v1697 = vsub.f32 %v1552, %v1681
    %s1698 = scalar_lea.vmem %s3, 256
    %v1699 = vld [vmem:[%s1698] sm:$0xff]
    %v1700 = vld [vmem:[%s1698 + $0x8] sm:$0xff]
    %v1701 = vld [vmem:[%s1698 + $0x10] sm:$0xff]
    %v1702 = vld [vmem:[%s1698 + $0x18] sm:$0xff]
    %v1703 = vld [vmem:[%s1698 + $0x20] sm:$0xff]
    %v1704 = vld [vmem:[%s1698 + $0x28] sm:$0xff]
    %v1705 = vld [vmem:[%s1698 + $0x30] sm:$0xff]
    %v1706 = vld [vmem:[%s1698 + $0x38] sm:$0xff]
    %v1707 = vld [vmem:[%s1698 + $0x40] sm:$0xff]
    %v1708 = vld [vmem:[%s1698 + $0x48] sm:$0xff]
    %v1709 = vld [vmem:[%s1698 + $0x50] sm:$0xff]
    %v1710 = vld [vmem:[%s1698 + $0x58] sm:$0xff]
    %v1711 = vld [vmem:[%s1698 + $0x60] sm:$0xff]
    %v1712 = vld [vmem:[%s1698 + $0x68] sm:$0xff]
    %v1713 = vld [vmem:[%s1698 + $0x70] sm:$0xff]
    %v1714 = vld [vmem:[%s1698 + $0x78] sm:$0xff]
    %1715 = vset.pattern.permute.xlu0 2
    %1716 = vperm.xlu0 %1715, %v1553
    %v1717 = vpop.permute.xlu0 %1716
    %1719 = vset.pattern.permute.xlu0 2
    %1720 = vperm.xlu0 %1719, %v1554
    %v1721 = vpop.permute.xlu0 %1720
    %1723 = vset.pattern.permute.xlu0 2
    %1724 = vperm.xlu0 %1723, %v1555
    %v1725 = vpop.permute.xlu0 %1724
    %1727 = vset.pattern.permute.xlu0 2
    %1728 = vperm.xlu0 %1727, %v1556
    %v1729 = vpop.permute.xlu0 %1728
    %1731 = vset.pattern.permute.xlu0 2
    %1732 = vperm.xlu0 %1731, %v1557
    %v1733 = vpop.permute.xlu0 %1732
    %1735 = vset.pattern.permute.xlu0 2
    %1736 = vperm.xlu0 %1735, %v1558
    %v1737 = vpop.permute.xlu0 %1736
    %1739 = vset.pattern.permute.xlu0 2
    %1740 = vperm.xlu0 %1739, %v1559
    %v1741 = vpop.permute.xlu0 %1740
    %1743 = vset.pattern.permute.xlu0 2
    %1744 = vperm.xlu0 %1743, %v1560
    %v1745 = vpop.permute.xlu0 %1744
    %1747 = vset.pattern.permute.xlu0 2
    %1748 = vperm.xlu0 %1747, %v1561
    %v1749 = vpop.permute.xlu0 %1748
    %1751 = vset.pattern.permute.xlu0 2
    %1752 = vperm.xlu0 %1751, %v1562
    %v1753 = vpop.permute.xlu0 %1752
    %1755 = vset.pattern.permute.xlu0 2
    %1756 = vperm.xlu0 %1755, %v1563
    %v1757 = vpop.permute.xlu0 %1756
    %1759 = vset.pattern.permute.xlu0 2
    %1760 = vperm.xlu0 %1759, %v1564
    %v1761 = vpop.permute.xlu0 %1760
    %1763 = vset.pattern.permute.xlu0 2
    %1764 = vperm.xlu0 %1763, %v1565
    %v1765 = vpop.permute.xlu0 %1764
    %1767 = vset.pattern.permute.xlu0 2
    %1768 = vperm.xlu0 %1767, %v1566
    %v1769 = vpop.permute.xlu0 %1768
    %1771 = vset.pattern.permute.xlu0 2
    %1772 = vperm.xlu0 %1771, %v1567
    %v1773 = vpop.permute.xlu0 %1772
    %1775 = vset.pattern.permute.xlu0 2
    %1776 = vperm.xlu0 %1775, %v1568
    %v1777 = vpop.permute.xlu0 %1776
    %v1779 = vmul.f32 %v1717, %v1699
    %v1780 = vmul.f32 %v1721, %v1700
    %v1781 = vmul.f32 %v1725, %v1701
    %v1782 = vmul.f32 %v1729, %v1702
    %v1783 = vmul.f32 %v1733, %v1703
    %v1784 = vmul.f32 %v1737, %v1704
    %v1785 = vmul.f32 %v1741, %v1705
    %v1786 = vmul.f32 %v1745, %v1706
    %v1787 = vmul.f32 %v1749, %v1707
    %v1788 = vmul.f32 %v1753, %v1708
    %v1789 = vmul.f32 %v1757, %v1709
    %v1790 = vmul.f32 %v1761, %v1710
    %v1791 = vmul.f32 %v1765, %v1711
    %v1792 = vmul.f32 %v1769, %v1712
    %v1793 = vmul.f32 %v1773, %v1713
    %v1794 = vmul.f32 %v1777, %v1714
    %v1795 = vadd.f32 %v1682, %v1779
    %v1796 = vadd.f32 %v1683, %v1780
    %v1797 = vadd.f32 %v1684, %v1781
    %v1798 = vadd.f32 %v1685, %v1782
    %v1799 = vadd.f32 %v1686, %v1783
    %v1800 = vadd.f32 %v1687, %v1784
    %v1801 = vadd.f32 %v1688, %v1785
    %v1802 = vadd.f32 %v1689, %v1786
    %v1803 = vadd.f32 %v1690, %v1787
    %v1804 = vadd.f32 %v1691, %v1788
    %v1805 = vadd.f32 %v1692, %v1789
    %v1806 = vadd.f32 %v1693, %v1790
    %v1807 = vadd.f32 %v1694, %v1791
    %v1808 = vadd.f32 %v1695, %v1792
    %v1809 = vadd.f32 %v1696, %v1793
    %v1810 = vadd.f32 %v1697, %v1794
    %s1811 = scalar_lea.vmem %s3, 384
    %v1812 = vld [vmem:[%s1811] sm:$0xff]
    %v1813 = vld [vmem:[%s1811 + $0x8] sm:$0xff]
    %v1814 = vld [vmem:[%s1811 + $0x10] sm:$0xff]
    %v1815 = vld [vmem:[%s1811 + $0x18] sm:$0xff]
    %v1816 = vld [vmem:[%s1811 + $0x20] sm:$0xff]
    %v1817 = vld [vmem:[%s1811 + $0x28] sm:$0xff]
    %v1818 = vld [vmem:[%s1811 + $0x30] sm:$0xff]
    %v1819 = vld [vmem:[%s1811 + $0x38] sm:$0xff]
    %v1820 = vld [vmem:[%s1811 + $0x40] sm:$0xff]
    %v1821 = vld [vmem:[%s1811 + $0x48] sm:$0xff]
    %v1822 = vld [vmem:[%s1811 + $0x50] sm:$0xff]
    %v1823 = vld [vmem:[%s1811 + $0x58] sm:$0xff]
    %v1824 = vld [vmem:[%s1811 + $0x60] sm:$0xff]
    %v1825 = vld [vmem:[%s1811 + $0x68] sm:$0xff]
    %v1826 = vld [vmem:[%s1811 + $0x70] sm:$0xff]
    %v1827 = vld [vmem:[%s1811 + $0x78] sm:$0xff]
    %1828 = vset.pattern.permute.xlu0 0
    %1829 = vperm.xlu0 %1828, %v1553
    %v1830 = vpop.permute.xlu0 %1829
    %1832 = vset.pattern.permute.xlu0 0
    %1833 = vperm.xlu0 %1832, %v1554
    %v1834 = vpop.permute.xlu0 %1833
    %1836 = vset.pattern.permute.xlu0 0
    %1837 = vperm.xlu0 %1836, %v1555
    %v1838 = vpop.permute.xlu0 %1837
    %1840 = vset.pattern.permute.xlu0 0
    %1841 = vperm.xlu0 %1840, %v1556
    %v1842 = vpop.permute.xlu0 %1841
    %1844 = vset.pattern.permute.xlu0 0
    %1845 = vperm.xlu0 %1844, %v1557
    %v1846 = vpop.permute.xlu0 %1845
    %1848 = vset.pattern.permute.xlu0 0
    %1849 = vperm.xlu0 %1848, %v1558
    %v1850 = vpop.permute.xlu0 %1849
    %1852 = vset.pattern.permute.xlu0 0
    %1853 = vperm.xlu0 %1852, %v1559
    %v1854 = vpop.permute.xlu0 %1853
    %1856 = vset.pattern.permute.xlu0 0
    %1857 = vperm.xlu0 %1856, %v1560
    %v1858 = vpop.permute.xlu0 %1857
    %1860 = vset.pattern.permute.xlu0 0
    %1861 = vperm.xlu0 %1860, %v1561
    %v1862 = vpop.permute.xlu0 %1861
    %1864 = vset.pattern.permute.xlu0 0
    %1865 = vperm.xlu0 %1864, %v1562
    %v1866 = vpop.permute.xlu0 %1865
    %1868 = vset.pattern.permute.xlu0 0
    %1869 = vperm.xlu0 %1868, %v1563
    %v1870 = vpop.permute.xlu0 %1869
    %1872 = vset.pattern.permute.xlu0 0
    %1873 = vperm.xlu0 %1872, %v1564
    %v1874 = vpop.permute.xlu0 %1873
    %1876 = vset.pattern.permute.xlu0 0
    %1877 = vperm.xlu0 %1876, %v1565
    %v1878 = vpop.permute.xlu0 %1877
    %1880 = vset.pattern.permute.xlu0 0
    %1881 = vperm.xlu0 %1880, %v1566
    %v1882 = vpop.permute.xlu0 %1881
    %1884 = vset.pattern.permute.xlu0 0
    %1885 = vperm.xlu0 %1884, %v1567
    %v1886 = vpop.permute.xlu0 %1885
    %1888 = vset.pattern.permute.xlu0 0
    %1889 = vperm.xlu0 %1888, %v1568
    %v1890 = vpop.permute.xlu0 %1889
    %v1892 = vmul.f32 %v1830, %v1812
    %v1893 = vmul.f32 %v1834, %v1813
    %v1894 = vmul.f32 %v1838, %v1814
    %v1895 = vmul.f32 %v1842, %v1815
    %v1896 = vmul.f32 %v1846, %v1816
    %v1897 = vmul.f32 %v1850, %v1817
    %v1898 = vmul.f32 %v1854, %v1818
    %v1899 = vmul.f32 %v1858, %v1819
    %v1900 = vmul.f32 %v1862, %v1820
    %v1901 = vmul.f32 %v1866, %v1821
    %v1902 = vmul.f32 %v1870, %v1822
    %v1903 = vmul.f32 %v1874, %v1823
    %v1904 = vmul.f32 %v1878, %v1824
    %v1905 = vmul.f32 %v1882, %v1825
    %v1906 = vmul.f32 %v1886, %v1826
    %v1907 = vmul.f32 %v1890, %v1827
    %v1908 = vsub.f32 %v1795, %v1892
    %v1909 = vsub.f32 %v1796, %v1893
    %v1910 = vsub.f32 %v1797, %v1894
    %v1911 = vsub.f32 %v1798, %v1895
    %v1912 = vsub.f32 %v1799, %v1896
    %v1913 = vsub.f32 %v1800, %v1897
    %v1914 = vsub.f32 %v1801, %v1898
    %v1915 = vsub.f32 %v1802, %v1899
    %v1916 = vsub.f32 %v1803, %v1900
    %v1917 = vsub.f32 %v1804, %v1901
    %v1918 = vsub.f32 %v1805, %v1902
    %v1919 = vsub.f32 %v1806, %v1903
    %v1920 = vsub.f32 %v1807, %v1904
    %v1921 = vsub.f32 %v1808, %v1905
    %v1922 = vsub.f32 %v1809, %v1906
    %v1923 = vsub.f32 %v1810, %v1907
    %v1924 = vpack.c.bf16 %v1909, %v1908
    %v1925 = vpack.c.bf16 %v1911, %v1910
    %v1926 = vpack.c.bf16 %v1913, %v1912
    %v1927 = vpack.c.bf16 %v1915, %v1914
    %v1928 = vpack.c.bf16 %v1917, %v1916
    %v1929 = vpack.c.bf16 %v1919, %v1918
    %v1930 = vpack.c.bf16 %v1921, %v1920
    %v1931 = vpack.c.bf16 %v1923, %v1922
    %v1932 = vld [vmem:[%s12] sm:$0xf]
    %v1933 = vld [vmem:[%s12 + $0x4] sm:$0xf]
    %v1934 = vld [vmem:[%s12 + $0x8] sm:$0x1]
    %v1938 = vunpack.c.l.b16 %v1932
    %v1939 = vunpack.c.l.b16 %v1933
    %v1940 = vunpack.c.l.b16 %v1934
    %v1941 = vpack.c.b16 %v1939, %v1938
    %v1942 = vpack.c.b16 %v1940, %v1940
    %vm1944 = vcmask 138240
    %v1946 = vsel %vm1944, %v1924, 0
    %v1949 = vsel %vm1944, %v1925, 0
    %v1952 = vsel %vm1944, %v1926, 0
    %v1955 = vsel %vm1944, %v1927, 0
    %v1958 = vsel %vm1944, %v1928, 0
    %v1961 = vsel %vm1944, %v1929, 0
    %v1964 = vsel %vm1944, %v1930, 0
    %v1967 = vsel %vm1944, %v1931, 0
    %vm1969 = vcmask 1040384
    %v1970 = vsel 0, 4294967295, 65535
    %v1971 = vsel %vm1969, %v1970, 0
    %v1973 = vand.u32 %v1942, %v1971
    %1975 = vmatprep.subr.bf16.mxu0 0
    %1976 = vmatpush1.bf16.msra.mxu0 0
    %1977 = vmatprep.subr.bf16.mxu0 0
    %1978 = vmatpush1.bf16.msra.mxu0 0
    %1979 = vmatprep.subr.bf16.mxu0 0
    %1980 = vmatpush1.bf16.msra.mxu0 0
    %1981 = vmatprep.subr.bf16.mxu0 0
    %1982 = vmatpush1.bf16.msra.mxu0 0
    %1983 = vmatprep.subr.bf16.mxu0 0
    %1984 = vmatpush1.bf16.msra.mxu0 0
    %1985 = vmatprep.subr.bf16.mxu0 0
    %1986 = vmatpush1.bf16.msra.mxu0 0
    %1987 = vmatprep.subr.bf16.mxu0 0
    %1988 = vmatpush1.bf16.msra.mxu0 %v1973
    %1989 = vmatprep.subr.bf16.mxu0 0
    %1990 = vmatpush1.bf16.msra.mxu0 %v1941
    %1991 = vmatprep.subr.bf16.mxu0 0
    %1992 = vmatpush2.bf16.msra.mxu0 0
    %1993 = vmatprep.subr.bf16.mxu0 0
    %1994 = vmatpush2.bf16.msra.mxu0 0
    %1995 = vmatprep.subr.bf16.mxu0 0
    %1996 = vmatpush2.bf16.msra.mxu0 0
    %1997 = vmatprep.subr.bf16.mxu0 0
    %1998 = vmatpush2.bf16.msra.mxu0 0
    %1999 = vmatprep.subr.bf16.mxu0 0
    %2000 = vmatpush2.bf16.msra.mxu0 0
    %2001 = vmatprep.subr.bf16.mxu0 0
    %2002 = vmatpush2.bf16.msra.mxu0 0
    %2003 = vmatprep.subr.bf16.mxu0 0
    %2004 = vmatpush2.bf16.msra.mxu0 0
    %2005 = vmatprep.subr.bf16.mxu0 0
    %2006 = vmatpush2.bf16.msra.mxu0 0
    %2007 = vmatprep.mubr.bf16.mxu0 0
    %2008 = vmatmul.mubr.bf16.gmra.mxu0 %v1946
    %v2009 = vpop.f32.mrf.mxu0
    %v2010 = vadd.f32 0.0, %v2009
    %v2011 = vpop.f32.mrf.mxu0
    %v2012 = vpop.f32.mrf.mxu0
    %v2013 = vadd.f32 0.0, %v2012
    %v2014 = vpop.f32.mrf.mxu0
    %2015 = vmatprep.mubr.bf16.mxu0 0
    %2016 = vmatmul.mubr.bf16.gmra.mxu0 %v1949
    %v2017 = vpop.f32.mrf.mxu0
    %v2018 = vadd.f32 0.0, %v2017
    %v2019 = vpop.f32.mrf.mxu0
    %v2020 = vpop.f32.mrf.mxu0
    %v2021 = vadd.f32 0.0, %v2020
    %v2022 = vpop.f32.mrf.mxu0
    %2023 = vmatprep.mubr.bf16.mxu0 0
    %2024 = vmatmul.mubr.bf16.gmra.mxu0 %v1952
    %v2025 = vpop.f32.mrf.mxu0
    %v2026 = vadd.f32 0.0, %v2025
    %v2027 = vpop.f32.mrf.mxu0
    %v2028 = vpop.f32.mrf.mxu0
    %v2029 = vadd.f32 0.0, %v2028
    %v2030 = vpop.f32.mrf.mxu0
    %2031 = vmatprep.mubr.bf16.mxu0 0
    %2032 = vmatmul.mubr.bf16.gmra.mxu0 %v1955
    %v2033 = vpop.f32.mrf.mxu0
    %v2034 = vadd.f32 0.0, %v2033
    %v2035 = vpop.f32.mrf.mxu0
    %v2036 = vpop.f32.mrf.mxu0
    %v2037 = vadd.f32 0.0, %v2036
    %v2038 = vpop.f32.mrf.mxu0
    %2039 = vmatprep.mubr.bf16.mxu0 0
    %2040 = vmatmul.mubr.bf16.gmra.mxu0 %v1958
    %v2041 = vpop.f32.mrf.mxu0
    %v2042 = vadd.f32 0.0, %v2041
    %v2043 = vpop.f32.mrf.mxu0
    %v2044 = vpop.f32.mrf.mxu0
    %v2045 = vadd.f32 0.0, %v2044
    %v2046 = vpop.f32.mrf.mxu0
    %2047 = vmatprep.mubr.bf16.mxu0 0
    %2048 = vmatmul.mubr.bf16.gmra.mxu0 %v1961
    %v2049 = vpop.f32.mrf.mxu0
    %v2050 = vadd.f32 0.0, %v2049
    %v2051 = vpop.f32.mrf.mxu0
    %v2052 = vpop.f32.mrf.mxu0
    %v2053 = vadd.f32 0.0, %v2052
    %v2054 = vpop.f32.mrf.mxu0
    %2055 = vmatprep.mubr.bf16.mxu0 0
    %2056 = vmatmul.mubr.bf16.gmra.mxu0 %v1964
    %v2057 = vpop.f32.mrf.mxu0
    %v2058 = vadd.f32 0.0, %v2057
    %v2059 = vpop.f32.mrf.mxu0
    %v2060 = vpop.f32.mrf.mxu0
    %v2061 = vadd.f32 0.0, %v2060
    %v2062 = vpop.f32.mrf.mxu0
    %2063 = vmatprep.mubr.bf16.mxu0 0
    %2064 = vmatmul.mubr.bf16.gmra.mxu0 %v1967
    %v2065 = vpop.f32.mrf.mxu0
    %v2066 = vadd.f32 0.0, %v2065
    %v2067 = vpop.f32.mrf.mxu0
    %v2068 = vpop.f32.mrf.mxu0
    %v2069 = vadd.f32 0.0, %v2068
    %v2070 = vpop.f32.mrf.mxu0
    %2071 = vdwg.mxu0
    %v2072 = vmul.f32 %v2010, 0.24253562
    %v2073 = vmul.f32 %v2013, 0.24253562
    %v2074 = vmul.f32 %v2018, 0.24253562
    %v2075 = vmul.f32 %v2021, 0.24253562
    %v2076 = vmul.f32 %v2026, 0.24253562
    %v2077 = vmul.f32 %v2029, 0.24253562
    %v2078 = vmul.f32 %v2034, 0.24253562
    %v2079 = vmul.f32 %v2037, 0.24253562
    %v2080 = vmul.f32 %v2042, 0.24253562
    %v2081 = vmul.f32 %v2045, 0.24253562
    %v2082 = vmul.f32 %v2050, 0.24253562
    %v2083 = vmul.f32 %v2053, 0.24253562
    %v2084 = vmul.f32 %v2058, 0.24253562
    %v2085 = vmul.f32 %v2061, 0.24253562
    %v2086 = vmul.f32 %v2066, 0.24253562
    %v2087 = vmul.f32 %v2069, 0.24253562
    %v2088 = vld [vmem:[%s13] sm:$0xf]
    %v2089 = vld [vmem:[%s13 + $0x4] sm:$0xf]
    %v2090 = vld [vmem:[%s13 + $0x8] sm:$0xf]
    %v2091 = vld [vmem:[%s13 + $0xc] sm:$0xf]
    %v2092 = vld [vmem:[%s13 + $0x10] sm:$0xf]
    %v2093 = vld [vmem:[%s13 + $0x14] sm:$0xf]
    %v2094 = vld [vmem:[%s13 + $0x18] sm:$0xf]
    %v2095 = vld [vmem:[%s13 + $0x1c] sm:$0xf]
    %v2096 = vld [vmem:[%s11] sm:$0xff]
    %v2097 = vld [vmem:[%s11 + $0x8] sm:$0xff]
    %v2098 = vld [vmem:[%s11 + $0x10] sm:$0xff]
    %v2099 = vld [vmem:[%s11 + $0x18] sm:$0xff]
    %v2100 = vld [vmem:[%s11 + $0x20] sm:$0xff]
    %v2101 = vld [vmem:[%s11 + $0x28] sm:$0xff]
    %v2102 = vld [vmem:[%s11 + $0x30] sm:$0xff]
    %v2103 = vld [vmem:[%s11 + $0x38] sm:$0xff]
    %v2104 = vpack.c.bf16 %v1358, %v1357
    %v2105 = vpack.c.bf16 %v1359, %v1359
    %2114 = vrot.lane.b32.xlu0 %v1443, 1
    %v2115 = vpop.permute.xlu0 %2114
    %2116 = vrot.lane.b32.xlu0 %v1446, 1
    %v2117 = vpop.permute.xlu0 %2116
    %2118 = vrot.lane.b32.xlu0 %v1451, 1
    %v2119 = vpop.permute.xlu0 %2118
    %2120 = vrot.lane.b32.xlu0 %v1454, 1
    %v2121 = vpop.permute.xlu0 %2120
    %2122 = vrot.lane.b32.xlu0 %v1459, 1
    %v2123 = vpop.permute.xlu0 %2122
    %2124 = vrot.lane.b32.xlu0 %v1462, 1
    %v2125 = vpop.permute.xlu0 %2124
    %2126 = vrot.lane.b32.xlu0 %v1467, 1
    %v2127 = vpop.permute.xlu0 %2126
    %2128 = vrot.lane.b32.xlu0 %v1470, 1
    %v2129 = vpop.permute.xlu0 %2128
    %vm2138 = vcmask 7168
    %v2139 = vsel %vm2138, %v2096, %v2115
    %v2140 = vsel %vm2138, %v2097, %v2117
    %v2141 = vsel %vm2138, %v2098, %v2119
    %v2142 = vsel %vm2138, %v2099, %v2121
    %v2143 = vsel %vm2138, %v2100, %v2123
    %v2144 = vsel %vm2138, %v2101, %v2125
    %v2145 = vsel %vm2138, %v2102, %v2127
    %v2146 = vsel %vm2138, %v2103, %v2129
    %v2147 = vpack.c.bf16 %v2140, %v2139
    %v2148 = vpack.c.bf16 %v2142, %v2141
    %v2149 = vpack.c.bf16 %v2144, %v2143
    %v2150 = vpack.c.bf16 %v2146, %v2145
    %vm2151 = vcmask 523264
    %v2153 = vsel %vm2151, %v2104, 0
    %v2156 = vsel %vm2151, %v2105, 0
    %2158 = vmatprep.subr.bf16.mxu0 0
    %2159 = vmatpush1.bf16.msra.mxu0 0
    %2160 = vmatprep.subr.bf16.mxu0 0
    %2161 = vmatpush1.bf16.msra.mxu0 0
    %2162 = vmatprep.subr.bf16.mxu0 0
    %2163 = vmatpush1.bf16.msra.mxu0 0
    %2164 = vmatprep.subr.bf16.mxu0 0
    %2165 = vmatpush1.bf16.msra.mxu0 0
    %2166 = vmatprep.subr.bf16.mxu0 0
    %2167 = vmatpush1.bf16.msra.mxu0 %v2150
    %2168 = vmatprep.subr.bf16.mxu0 0
    %2169 = vmatpush1.bf16.msra.mxu0 %v2149
    %2170 = vmatprep.subr.bf16.mxu0 0
    %2171 = vmatpush1.bf16.msra.mxu0 %v2148
    %2172 = vmatprep.subr.bf16.mxu0 0
    %2173 = vmatpush1.bf16.msra.mxu0 %v2147
    %2174 = vmatprep.subr.bf16.mxu0 0
    %2175 = vmatpush2.bf16.msra.mxu0 0
    %2176 = vmatprep.subr.bf16.mxu0 0
    %2177 = vmatpush2.bf16.msra.mxu0 0
    %2178 = vmatprep.subr.bf16.mxu0 0
    %2179 = vmatpush2.bf16.msra.mxu0 0
    %2180 = vmatprep.subr.bf16.mxu0 0
    %2181 = vmatpush2.bf16.msra.mxu0 0
    %2182 = vmatprep.subr.bf16.mxu0 0
    %2183 = vmatpush2.bf16.msra.mxu0 0
    %2184 = vmatprep.subr.bf16.mxu0 0
    %2185 = vmatpush2.bf16.msra.mxu0 0
    %2186 = vmatprep.subr.bf16.mxu0 0
    %2187 = vmatpush2.bf16.msra.mxu0 0
    %2188 = vmatprep.subr.bf16.mxu0 0
    %2189 = vmatpush2.bf16.msra.mxu0 0
    %2190 = vmatprep.mubr.bf16.mxu0 0
    %2191 = vmatmul.mubr.bf16.gmra.mxu0 %v2153
    %v2192 = vpop.f32.mrf.mxu0
    %v2193 = vadd.f32 0.0, %v2192
    %v2194 = vpop.f32.mrf.mxu0
    %v2195 = vpop.f32.mrf.mxu0
    %v2196 = vadd.f32 0.0, %v2195
    %v2197 = vpop.f32.mrf.mxu0
    %2198 = vmatprep.mubr.bf16.mxu0 0
    %2199 = vmatmul.mubr.bf16.gmra.mxu0 %v2156
    %v2200 = vpop.f32.mrf.mxu0
    %v2201 = vadd.f32 0.0, %v2200
    %v2202 = vpop.f32.mrf.mxu0
    %v2203 = vpop.f32.mrf.mxu0
    %v2204 = vpop.f32.mrf.mxu0
    %2205 = vdwg.mxu0
    %v2206 = vmul.f32 %v2193, 0.125
    %v2207 = vmul.f32 %v2196, 0.125
    %v2208 = vmul.f32 %v2201, 0.125
    %v2209 = vstv %s463
    %v2210 = vadd.f32 %v2206, %v2209
    %v2211 = vadd.f32 %v2207, %v2209
    %v2212 = vadd.f32 %v2208, %v2209
    %v2213 = vstv %s464
    %v2214 = vadd.f32 %v2206, %v2213
    %v2215 = vadd.f32 %v2207, %v2213
    %v2216 = vadd.f32 %v2208, %v2213
    %v2217 = vxor.u32 %v2214, 2147483648
    %v2218 = vxor.u32 %v2215, 2147483648
    %v2219 = vxor.u32 %v2216, 2147483648
    %v2220 = vmul.f32 %v2217, 1.442695
    %v2221 = vpow.pop %v2220
    %v2222 = vmul.f32 %v2218, 1.442695
    %v2223 = vpow.pop %v2222
    %v2224 = vmul.f32 %v2219, 1.442695
    %v2225 = vpow.pop %v2224
    %v2226 = vadd.f32 %v2221, 1.0
    %v2227 = vadd.f32 %v2223, 1.0
    %v2228 = vadd.f32 %v2225, 1.0
    %v2229 = vrcp.pop %v2226
    %v2230 = vmul.f32 1.0, %v2229
    %v2231 = vrcp.pop %v2227
    %v2232 = vmul.f32 1.0, %v2231
    %v2233 = vrcp.pop %v2228
    %v2234 = vmul.f32 1.0, %v2233
    %v2235 = vmul.f32 %v2230, 2.0
    %v2236 = vmul.f32 %v2232, 2.0
    %v2237 = vmul.f32 %v2234, 2.0
    %v2238 = vsub.f32 %v2235, 1.0
    %v2239 = vsub.f32 %v2236, 1.0
    %v2240 = vsub.f32 %v2237, 1.0
    %2249 = vrot.lane.b32.xlu0 %v1908, 9
    %v2250 = vpop.permute.xlu0 %2249
    %2251 = vrot.lane.b32.xlu0 %v1909, 9
    %v2252 = vpop.permute.xlu0 %2251
    %2253 = vrot.lane.b32.xlu0 %v1910, 9
    %v2254 = vpop.permute.xlu0 %2253
    %2255 = vrot.lane.b32.xlu0 %v1911, 9
    %v2256 = vpop.permute.xlu0 %2255
    %2257 = vrot.lane.b32.xlu0 %v1912, 9
    %v2258 = vpop.permute.xlu0 %2257
    %2259 = vrot.lane.b32.xlu0 %v1913, 9
    %v2260 = vpop.permute.xlu0 %2259
    %2261 = vrot.lane.b32.xlu0 %v1914, 9
    %v2262 = vpop.permute.xlu0 %2261
    %2263 = vrot.lane.b32.xlu0 %v1915, 9
    %v2264 = vpop.permute.xlu0 %2263
    %vm2273 = vcmask 72704
    %v2274 = vsel %vm2273, %v2072, %v2250
    %v2275 = vsel %vm2273, %v2073, %v2252
    %v2276 = vsel %vm2273, %v2074, %v2254
    %v2277 = vsel %vm2273, %v2075, %v2256
    %v2278 = vsel %vm2273, %v2076, %v2258
    %v2279 = vsel %vm2273, %v2077, %v2260
    %v2280 = vsel %vm2273, %v2078, %v2262
    %v2281 = vsel %vm2273, %v2079, %v2264
    %v2282 = vpack.c.bf16 %v2275, %v2274
    %v2283 = vpack.c.bf16 %v2277, %v2276
    %v2284 = vpack.c.bf16 %v2279, %v2278
    %v2285 = vpack.c.bf16 %v2281, %v2280
    %2286 = vxpose.xlu0.c.b16.start [1/8] %v2282, 128
    %2287 = vxpose.xlu0.c.b16.cont [2/8] %v2283, 128
    %2288 = vxpose.xlu0.c.b16.cont [3/8] %v2284, 128
    %2289 = vxpose.xlu0.c.b16.cont [4/8] %v2285, 128
    %2290 = vxpose.xlu0.c.b16.cont [5/8] 0, 128
    %2291 = vxpose.xlu0.c.b16.cont [6/8] 0, 128
    %2292 = vxpose.xlu0.c.b16.cont [7/8] 0, 128
    %2293 = vxpose.xlu0.c.b16.end [8/8] 0, 128
    %v2294 = vpop.trf.xlu0
    %v2295 = vpop.trf.xlu0
    %v2296 = vpop.trf.xlu0
    %v2297 = vpop.trf.xlu0
    %v2298 = vpop.trf.xlu0
    %v2299 = vpop.trf.xlu0
    %v2300 = vpop.trf.xlu0
    %v2301 = vpop.trf.xlu0
    %v2310 = vunpack.c.l.b16 %v2088
    %v2311 = vunpack.c.l.b16 %v2089
    %v2312 = vunpack.c.l.b16 %v2090
    %v2313 = vunpack.c.l.b16 %v2091
    %v2314 = vunpack.c.l.b16 %v2092
    %v2315 = vunpack.c.l.b16 %v2093
    %v2316 = vunpack.c.l.b16 %v2094
    %v2317 = vunpack.c.l.b16 %v2095
    %v2318 = vpack.c.b16 %v2311, %v2310
    %v2319 = vpack.c.b16 %v2313, %v2312
    %v2320 = vpack.c.b16 %v2315, %v2314
    %v2321 = vpack.c.b16 %v2317, %v2316
    %v2327 = vsel %vm2151, %v2294, 0
    %v2330 = vsel %vm2151, %v2295, 0
    %2332 = vmatprep.subr.bf16.mxu0 0
    %2333 = vmatpush1.bf16.msra.mxu0 0
    %2334 = vmatprep.subr.bf16.mxu0 0
    %2335 = vmatpush1.bf16.msra.mxu0 0
    %2336 = vmatprep.subr.bf16.mxu0 0
    %2337 = vmatpush1.bf16.msra.mxu0 0
    %2338 = vmatprep.subr.bf16.mxu0 0
    %2339 = vmatpush1.bf16.msra.mxu0 0
    %2340 = vmatprep.subr.bf16.mxu0 0
    %2341 = vmatpush1.bf16.msra.mxu0 %v2321
    %2342 = vmatprep.subr.bf16.mxu0 0
    %2343 = vmatpush1.bf16.msra.mxu0 %v2320
    %2344 = vmatprep.subr.bf16.mxu0 0
    %2345 = vmatpush1.bf16.msra.mxu0 %v2319
    %2346 = vmatprep.subr.bf16.mxu0 0
    %2347 = vmatpush1.bf16.msra.mxu0 %v2318
    %2348 = vmatprep.subr.bf16.mxu0 0
    %2349 = vmatpush2.bf16.msra.mxu0 0
    %2350 = vmatprep.subr.bf16.mxu0 0
    %2351 = vmatpush2.bf16.msra.mxu0 0
    %2352 = vmatprep.subr.bf16.mxu0 0
    %2353 = vmatpush2.bf16.msra.mxu0 0
    %2354 = vmatprep.subr.bf16.mxu0 0
    %2355 = vmatpush2.bf16.msra.mxu0 0
    %2356 = vmatprep.subr.bf16.mxu0 0
    %2357 = vmatpush2.bf16.msra.mxu0 0
    %2358 = vmatprep.subr.bf16.mxu0 0
    %2359 = vmatpush2.bf16.msra.mxu0 0
    %2360 = vmatprep.subr.bf16.mxu0 0
    %2361 = vmatpush2.bf16.msra.mxu0 0
    %2362 = vmatprep.subr.bf16.mxu0 0
    %2363 = vmatpush2.bf16.msra.mxu0 0
    %2364 = vmatprep.mubr.bf16.mxu0 0
    %2365 = vmatmul.mubr.bf16.gmra.mxu0 %v2327
    %v2366 = vpop.f32.mrf.mxu0
    %v2367 = vadd.f32 0.0, %v2366
    %v2368 = vpop.f32.mrf.mxu0
    %v2369 = vpop.f32.mrf.mxu0
    %v2370 = vadd.f32 0.0, %v2369
    %v2371 = vpop.f32.mrf.mxu0
    %2372 = vmatprep.mubr.bf16.mxu0 0
    %2373 = vmatmul.mubr.bf16.gmra.mxu0 %v2330
    %v2374 = vpop.f32.mrf.mxu0
    %v2375 = vadd.f32 0.0, %v2374
    %v2376 = vpop.f32.mrf.mxu0
    %v2377 = vpop.f32.mrf.mxu0
    %v2378 = vadd.f32 0.0, %v2377
    %v2379 = vpop.f32.mrf.mxu0
    %2380 = vdwg.mxu0
    %v2381 = vmul.f32 %v2367, 0.125
    %v2382 = vmul.f32 %v2370, 0.125
    %v2383 = vmul.f32 %v2375, 0.125
    %v2384 = vmul.f32 %v2378, 0.125
    %v2385 = vld [vmem:[%s4] sm:$0xff]
    %v2386 = vld [vmem:[%s4 + $0x8] sm:$0xff]
    %v2387 = vld [vmem:[%s4 + $0x10] sm:$0x1]
    %2389 = vset.pattern.permute.xlu0 0
    %2390 = vperm.xlu0 %2389, %v2210
    %v2391 = vpop.permute.xlu0 %2390
    %2394 = vset.pattern.permute.xlu0 0
    %2395 = vperm.xlu0 %2394, %v2211
    %v2396 = vpop.permute.xlu0 %2395
    %2399 = vset.pattern.permute.xlu0 0
    %2400 = vperm.xlu0 %2399, %v2212
    %v2401 = vpop.permute.xlu0 %2400
    %v2403 = vmul.f32 %v2391, %v2385
    %v2404 = vmul.f32 %v2396, %v2386
    %v2405 = vmul.f32 %v2401, %v2387
    %v2406 = vpack.c.bf16 %v2404, %v2403
    %v2407 = vpack.c.bf16 %v2405, %v2405
    %v2408 = vpack.c.bf16 %v2382, %v2381
    %v2412 = vrot.slane %v2382, 1
    %v2413 = vrot.slane %v2383, 1
    %v2414 = vsel %vm925, %v2412, %v2413
    %v2415 = vrot.slane %v2384, 1
    %v2416 = vsel %vm925, %v2413, %v2415
    %2417 = vrot.lane.b32.xlu0 %v2414, 119
    %v2418 = vpop.permute.xlu0 %2417
    %2419 = vrot.lane.b32.xlu0 %v2416, 119
    %v2420 = vpop.permute.xlu0 %2419
    %2421 = vrot.lane.b32.xlu0 %v2415, 119
    %v2422 = vpop.permute.xlu0 %2421
    %v2427 = vsel %vm2273, %v2406, 0
    %v2430 = vsel %vm2273, %v2407, 0
    %v2433 = vsel %vm2273, %v2408, 0
    %2435 = vmatprep.subr.bf16.mxu0 0
    %2436 = vmatpush1.bf16.xpose.msra.mxu0 0
    %2437 = vmatprep.subr.bf16.mxu0 0
    %2438 = vmatpush1.bf16.xpose.msra.mxu0 0
    %2439 = vmatprep.subr.bf16.mxu0 0
    %2440 = vmatpush1.bf16.xpose.msra.mxu0 0
    %2441 = vmatprep.subr.bf16.mxu0 0
    %2442 = vmatpush1.bf16.xpose.msra.mxu0 0
    %2443 = vmatprep.subr.bf16.mxu0 0
    %2444 = vmatpush1.bf16.xpose.msra.mxu0 0
    %2445 = vmatprep.subr.bf16.mxu0 0
    %2446 = vmatpush1.bf16.xpose.msra.mxu0 0
    %2447 = vmatprep.subr.bf16.mxu0 0
    %2448 = vmatpush1.bf16.xpose.msra.mxu0 0
    %2449 = vmatprep.subr.bf16.mxu0 0
    %2450 = vmatpush1.bf16.xpose.msra.mxu0 %v2433
    %2451 = vmatprep.subr.bf16.mxu0 0
    %2452 = vmatpush2.bf16.xpose.msra.mxu0 0
    %2453 = vmatprep.subr.bf16.mxu0 0
    %2454 = vmatpush2.bf16.xpose.msra.mxu0 0
    %2455 = vmatprep.subr.bf16.mxu0 0
    %2456 = vmatpush2.bf16.xpose.msra.mxu0 0
    %2457 = vmatprep.subr.bf16.mxu0 0
    %2458 = vmatpush2.bf16.xpose.msra.mxu0 0
    %2459 = vmatprep.subr.bf16.mxu0 0
    %2460 = vmatpush2.bf16.xpose.msra.mxu0 0
    %2461 = vmatprep.subr.bf16.mxu0 0
    %2462 = vmatpush2.bf16.xpose.msra.mxu0 0
    %2463 = vmatprep.subr.bf16.mxu0 0
    %2464 = vmatpush2.bf16.xpose.msra.mxu0 0
    %2465 = vmatprep.subr.bf16.mxu0 0
    %2466 = vmatpush2.bf16.xpose.msra.mxu0 0
    %2467 = vmatprep.mubr.bf16.mxu0 0
    %2468 = vmatmul.mubr.bf16.gmra.mxu0 %v2427
    %v2469 = vpop.f32.mrf.mxu0
    %v2470 = vadd.f32 %v2418, %v2469
    %v2471 = vpop.f32.mrf.mxu0
    %v2472 = vpop.f32.mrf.mxu0
    %v2473 = vadd.f32 %v2420, %v2472
    %v2474 = vpop.f32.mrf.mxu0
    %2475 = vmatprep.mubr.bf16.mxu0 0
    %2476 = vmatmul.mubr.bf16.gmra.mxu0 %v2430
    %v2477 = vpop.f32.mrf.mxu0
    %v2478 = vadd.f32 %v2422, %v2477
    %v2479 = vpop.f32.mrf.mxu0
    %v2480 = vpop.f32.mrf.mxu0
    %v2481 = vpop.f32.mrf.mxu0
    %2482 = vdwg.mxu0
    %v2483 = vmul.f32 %v2238, -1.0
    %v2484 = vmul.f32 %v2239, -1.0
    %v2485 = vmul.f32 %v2240, -1.0
    %v2486 = vadd.f32 %v2483, 1.0
    %v2487 = vadd.f32 %v2484, 1.0
    %v2488 = vadd.f32 %v2485, 1.0
    %2490 = vset.pattern.permute.xlu0 1
    %2491 = vperm.xlu0 %2490, %v2486
    %v2492 = vpop.permute.xlu0 %2491
    %2495 = vset.pattern.permute.xlu0 1
    %2496 = vperm.xlu0 %2495, %v2487
    %v2497 = vpop.permute.xlu0 %2496
    %2500 = vset.pattern.permute.xlu0 1
    %2501 = vperm.xlu0 %2500, %v2488
    %v2502 = vpop.permute.xlu0 %2501
    %v2504 = vmul.f32 %v2492, %v2403
    %v2505 = vmul.f32 %v2497, %v2404
    %v2506 = vmul.f32 %v2502, %v2405
    %2507 = vst.msk [vmem:[#allocation2 + $0x20] sm:$0xff] %vm2273, %v2470
    %2508 = vst.msk [vmem:[#allocation2 + $0x30] sm:$0xff] %vm2273, %v2473
    %vm2509 = vcmask 65536
    %2510 = vst.msk [vmem:[#allocation2 + $0x40] sm:$0x1] %vm2509, %v2478
    %2514 = vrot.lane.b32.xlu0 %v2504, 9
    %v2515 = vpop.permute.xlu0 %2514
    %2516 = vrot.lane.b32.xlu0 %v2505, 9
    %v2517 = vpop.permute.xlu0 %2516
    %2518 = vrot.lane.b32.xlu0 %v2506, 9
    %v2519 = vpop.permute.xlu0 %2518
    %vm2523 = vcmask 146504
    %2524 = vst.msk [vmem:[#allocation2 + $0x20] sm:$0xff] %vm2523, %v2515
    %2525 = vst.msk [vmem:[#allocation2 + $0x30] sm:$0xff] %vm2523, %v2517
    %vm2526 = vcmask 139336
    %2527 = vst.msk [vmem:[#allocation2 + $0x40] sm:$0x1] %vm2526, %v2519
    %vm2528 = vcmask 220304
    %2529 = vst.msk [vmem:[#allocation2 + $0x20] sm:$0xff] %vm2528, %v2391
    %2530 = vst.msk [vmem:[#allocation2 + $0x30] sm:$0xff] %vm2528, %v2396
    %vm2531 = vcmask 213136
    %2532 = vst.msk [vmem:[#allocation2 + $0x40] sm:$0x1] %vm2531, %v2401
    %2534 = vset.pattern.permute.xlu0 1
    %2535 = vperm.xlu0 %2534, %v2483
    %v2536 = vpop.permute.xlu0 %2535
    %2539 = vset.pattern.permute.xlu0 1
    %2540 = vperm.xlu0 %2539, %v2484
    %v2541 = vpop.permute.xlu0 %2540
    %2544 = vset.pattern.permute.xlu0 1
    %2545 = vperm.xlu0 %2544, %v2485
    %v2546 = vpop.permute.xlu0 %2545
    %vm2548 = vcmask 294104
    %2549 = vst.msk [vmem:[#allocation2 + $0x20] sm:$0xff] %vm2548, %v2536
    %2550 = vst.msk [vmem:[#allocation2 + $0x30] sm:$0xff] %vm2548, %v2541
    %vm2551 = vcmask 286936
    %2552 = vst.msk [vmem:[#allocation2 + $0x40] sm:$0x1] %vm2551, %v2546
    %2553 = vst.msk [vmem:[%s20] sm:$0xff] %vm2273, %v2504
    %2554 = vst.msk [vmem:[%s20 + $0x8] sm:$0xff] %vm2273, %v2505
    %2555 = vst.msk [vmem:[%s20 + $0x10] sm:$0x1] %vm2509, %v2506
    %v2556 = vadd.f32 %v2238, 1.0
    %v2557 = vadd.f32 %v2239, 1.0
    %v2558 = vadd.f32 %v2240, 1.0
    %2560 = vset.pattern.permute.xlu0 1
    %2561 = vperm.xlu0 %2560, %v2556
    %v2562 = vpop.permute.xlu0 %2561
    %2565 = vset.pattern.permute.xlu0 1
    %2566 = vperm.xlu0 %2565, %v2557
    %v2567 = vpop.permute.xlu0 %2566
    %2570 = vset.pattern.permute.xlu0 1
    %2571 = vperm.xlu0 %2570, %v2558
    %v2572 = vpop.permute.xlu0 %2571
    %v2574 = vmul.f32 %v2562, %v2403
    %v2575 = vmul.f32 %v2567, %v2404
    %v2576 = vmul.f32 %v2572, %v2405
    %2577 = vst.msk [vmem:[#allocation2 + $0x60] sm:$0xff] %vm2273, %v2470
    %2578 = vst.msk [vmem:[#allocation2 + $0x70] sm:$0xff] %vm2273, %v2473
    %2579 = vst.msk [vmem:[#allocation2 + $0x80] sm:$0x1] %vm2509, %v2478
    %2583 = vrot.lane.b32.xlu0 %v2574, 9
    %v2584 = vpop.permute.xlu0 %2583
    %2585 = vrot.lane.b32.xlu0 %v2575, 9
    %v2586 = vpop.permute.xlu0 %2585
    %2587 = vrot.lane.b32.xlu0 %v2576, 9
    %v2588 = vpop.permute.xlu0 %2587
    %2592 = vst.msk [vmem:[#allocation2 + $0x60] sm:$0xff] %vm2523, %v2584
    %2593 = vst.msk [vmem:[#allocation2 + $0x70] sm:$0xff] %vm2523, %v2586
    %2594 = vst.msk [vmem:[#allocation2 + $0x80] sm:$0x1] %vm2526, %v2588
    %2595 = vst.msk [vmem:[#allocation2 + $0x60] sm:$0xff] %vm2528, %v2391
    %2596 = vst.msk [vmem:[#allocation2 + $0x70] sm:$0xff] %vm2528, %v2396
    %2597 = vst.msk [vmem:[#allocation2 + $0x80] sm:$0x1] %vm2531, %v2401
    %2599 = vset.pattern.permute.xlu0 1
    %2600 = vperm.xlu0 %2599, %v2238
    %v2601 = vpop.permute.xlu0 %2600
    %2604 = vset.pattern.permute.xlu0 1
    %2605 = vperm.xlu0 %2604, %v2239
    %v2606 = vpop.permute.xlu0 %2605
    %2609 = vset.pattern.permute.xlu0 1
    %2610 = vperm.xlu0 %2609, %v2240
    %v2611 = vpop.permute.xlu0 %2610
    %2613 = vst.msk [vmem:[#allocation2 + $0x60] sm:$0xff] %vm2548, %v2601
    %2614 = vst.msk [vmem:[#allocation2 + $0x70] sm:$0xff] %vm2548, %v2606
    %2615 = vst.msk [vmem:[#allocation2 + $0x80] sm:$0x1] %vm2551, %v2611
    %2616 = vst.msk [vmem:[%s20] sm:$0xff] %vm2523, %v2584
    %2617 = vst.msk [vmem:[%s20 + $0x8] sm:$0xff] %vm2523, %v2586
    %2618 = vst.msk [vmem:[%s20 + $0x10] sm:$0x1] %vm2526, %v2588
    %2627 = vrot.lane.b32.xlu0 %v1475, 1
    %v2628 = vpop.permute.xlu0 %2627
    %2629 = vrot.lane.b32.xlu0 %v1478, 1
    %v2630 = vpop.permute.xlu0 %2629
    %2631 = vrot.lane.b32.xlu0 %v1483, 1
    %v2632 = vpop.permute.xlu0 %2631
    %2633 = vrot.lane.b32.xlu0 %v1486, 1
    %v2634 = vpop.permute.xlu0 %2633
    %2635 = vrot.lane.b32.xlu0 %v1491, 1
    %v2636 = vpop.permute.xlu0 %2635
    %2637 = vrot.lane.b32.xlu0 %v1494, 1
    %v2638 = vpop.permute.xlu0 %2637
    %2639 = vrot.lane.b32.xlu0 %v1499, 1
    %v2640 = vpop.permute.xlu0 %2639
    %2641 = vrot.lane.b32.xlu0 %v1502, 1
    %v2642 = vpop.permute.xlu0 %2641
    %v2651 = vsel %vm2138, %v2096, %v2628
    %v2652 = vsel %vm2138, %v2097, %v2630
    %v2653 = vsel %vm2138, %v2098, %v2632
    %v2654 = vsel %vm2138, %v2099, %v2634
    %v2655 = vsel %vm2138, %v2100, %v2636
    %v2656 = vsel %vm2138, %v2101, %v2638
    %v2657 = vsel %vm2138, %v2102, %v2640
    %v2658 = vsel %vm2138, %v2103, %v2642
    %v2659 = vpack.c.bf16 %v2652, %v2651
    %v2660 = vpack.c.bf16 %v2654, %v2653
    %v2661 = vpack.c.bf16 %v2656, %v2655
    %v2662 = vpack.c.bf16 %v2658, %v2657
    %2665 = vrot.lane.b32.xlu0 %v2104, 64
    %v2666 = vpop.permute.xlu0 %2665
    %2667 = vrot.lane.b32.xlu0 %v2105, 64
    %v2668 = vpop.permute.xlu0 %2667
    %v2670 = vsel %vm2151, %v2666, 0
    %v2673 = vsel %vm2151, %v2668, 0
    %2675 = vmatprep.subr.bf16.mxu0 0
    %2676 = vmatpush1.bf16.msra.mxu0 0
    %2677 = vmatprep.subr.bf16.mxu0 0
    %2678 = vmatpush1.bf16.msra.mxu0 0
    %2679 = vmatprep.subr.bf16.mxu0 0
    %2680 = vmatpush1.bf16.msra.mxu0 0
    %2681 = vmatprep.subr.bf16.mxu0 0
    %2682 = vmatpush1.bf16.msra.mxu0 0
    %2683 = vmatprep.subr.bf16.mxu0 0
    %2684 = vmatpush1.bf16.msra.mxu0 %v2662
    %2685 = vmatprep.subr.bf16.mxu0 0
    %2686 = vmatpush1.bf16.msra.mxu0 %v2661
    %2687 = vmatprep.subr.bf16.mxu0 0
    %2688 = vmatpush1.bf16.msra.mxu0 %v2660
    %2689 = vmatprep.subr.bf16.mxu0 0
    %2690 = vmatpush1.bf16.msra.mxu0 %v2659
    %2691 = vmatprep.subr.bf16.mxu0 0
    %2692 = vmatpush2.bf16.msra.mxu0 0
    %2693 = vmatprep.subr.bf16.mxu0 0
    %2694 = vmatpush2.bf16.msra.mxu0 0
    %2695 = vmatprep.subr.bf16.mxu0 0
    %2696 = vmatpush2.bf16.msra.mxu0 0
    %2697 = vmatprep.subr.bf16.mxu0 0
    %2698 = vmatpush2.bf16.msra.mxu0 0
    %2699 = vmatprep.subr.bf16.mxu0 0
    %2700 = vmatpush2.bf16.msra.mxu0 0
    %2701 = vmatprep.subr.bf16.mxu0 0
    %2702 = vmatpush2.bf16.msra.mxu0 0
    %2703 = vmatprep.subr.bf16.mxu0 0
    %2704 = vmatpush2.bf16.msra.mxu0 0
    %2705 = vmatprep.subr.bf16.mxu0 0
    %2706 = vmatpush2.bf16.msra.mxu0 0
    %2707 = vmatprep.mubr.bf16.mxu0 0
    %2708 = vmatmul.mubr.bf16.gmra.mxu0 %v2670
    %v2709 = vpop.f32.mrf.mxu0
    %v2710 = vadd.f32 0.0, %v2709
    %v2711 = vpop.f32.mrf.mxu0
    %v2712 = vpop.f32.mrf.mxu0
    %v2713 = vadd.f32 0.0, %v2712
    %v2714 = vpop.f32.mrf.mxu0
    %2715 = vmatprep.mubr.bf16.mxu0 0
    %2716 = vmatmul.mubr.bf16.gmra.mxu0 %v2673
    %v2717 = vpop.f32.mrf.mxu0
    %v2718 = vadd.f32 0.0, %v2717
    %v2719 = vpop.f32.mrf.mxu0
    %v2720 = vpop.f32.mrf.mxu0
    %v2721 = vpop.f32.mrf.mxu0
    %2722 = vdwg.mxu0
    %v2723 = vmul.f32 %v2710, 0.125
    %v2724 = vmul.f32 %v2713, 0.125
    %v2725 = vmul.f32 %v2718, 0.125
    %v2726 = vadd.f32 %v2723, %v2209
    %v2727 = vadd.f32 %v2724, %v2209
    %v2728 = vadd.f32 %v2725, %v2209
    %v2729 = vadd.f32 %v2723, %v2213
    %v2730 = vadd.f32 %v2724, %v2213
    %v2731 = vadd.f32 %v2725, %v2213
    %v2732 = vxor.u32 %v2729, 2147483648
    %v2733 = vxor.u32 %v2730, 2147483648
    %v2734 = vxor.u32 %v2731, 2147483648
    %v2735 = vmul.f32 %v2732, 1.442695
    %v2736 = vpow.pop %v2735
    %v2737 = vmul.f32 %v2733, 1.442695
    %v2738 = vpow.pop %v2737
    %v2739 = vmul.f32 %v2734, 1.442695
    %v2740 = vpow.pop %v2739
    %v2741 = vadd.f32 %v2736, 1.0
    %v2742 = vadd.f32 %v2738, 1.0
    %v2743 = vadd.f32 %v2740, 1.0
    %v2744 = vrcp.pop %v2741
    %v2745 = vmul.f32 1.0, %v2744
    %v2746 = vrcp.pop %v2742
    %v2747 = vmul.f32 1.0, %v2746
    %v2748 = vrcp.pop %v2743
    %v2749 = vmul.f32 1.0, %v2748
    %v2750 = vmul.f32 %v2745, 2.0
    %v2751 = vmul.f32 %v2747, 2.0
    %v2752 = vmul.f32 %v2749, 2.0
    %v2753 = vsub.f32 %v2750, 1.0
    %v2754 = vsub.f32 %v2751, 1.0
    %v2755 = vsub.f32 %v2752, 1.0
    %2764 = vrot.lane.b32.xlu0 %v1916, 9
    %v2765 = vpop.permute.xlu0 %2764
    %2766 = vrot.lane.b32.xlu0 %v1917, 9
    %v2767 = vpop.permute.xlu0 %2766
    %2768 = vrot.lane.b32.xlu0 %v1918, 9
    %v2769 = vpop.permute.xlu0 %2768
    %2770 = vrot.lane.b32.xlu0 %v1919, 9
    %v2771 = vpop.permute.xlu0 %2770
    %2772 = vrot.lane.b32.xlu0 %v1920, 9
    %v2773 = vpop.permute.xlu0 %2772
    %2774 = vrot.lane.b32.xlu0 %v1921, 9
    %v2775 = vpop.permute.xlu0 %2774
    %2776 = vrot.lane.b32.xlu0 %v1922, 9
    %v2777 = vpop.permute.xlu0 %2776
    %2778 = vrot.lane.b32.xlu0 %v1923, 9
    %v2779 = vpop.permute.xlu0 %2778
    %v2788 = vsel %vm2273, %v2080, %v2765
    %v2789 = vsel %vm2273, %v2081, %v2767
    %v2790 = vsel %vm2273, %v2082, %v2769
    %v2791 = vsel %vm2273, %v2083, %v2771
    %v2792 = vsel %vm2273, %v2084, %v2773
    %v2793 = vsel %vm2273, %v2085, %v2775
    %v2794 = vsel %vm2273, %v2086, %v2777
    %v2795 = vsel %vm2273, %v2087, %v2779
    %v2796 = vpack.c.bf16 %v2789, %v2788
    %v2797 = vpack.c.bf16 %v2791, %v2790
    %v2798 = vpack.c.bf16 %v2793, %v2792
    %v2799 = vpack.c.bf16 %v2795, %v2794
    %2800 = vxpose.xlu0.c.b16.start [1/8] %v2796, 128
    %2801 = vxpose.xlu0.c.b16.cont [2/8] %v2797, 128
    %2802 = vxpose.xlu0.c.b16.cont [3/8] %v2798, 128
    %2803 = vxpose.xlu0.c.b16.cont [4/8] %v2799, 128
    %2804 = vxpose.xlu0.c.b16.cont [5/8] 0, 128
    %2805 = vxpose.xlu0.c.b16.cont [6/8] 0, 128
    %2806 = vxpose.xlu0.c.b16.cont [7/8] 0, 128
    %2807 = vxpose.xlu0.c.b16.end [8/8] 0, 128
    %v2808 = vpop.trf.xlu0
    %v2809 = vpop.trf.xlu0
    %v2810 = vpop.trf.xlu0
    %v2811 = vpop.trf.xlu0
    %v2812 = vpop.trf.xlu0
    %v2813 = vpop.trf.xlu0
    %v2814 = vpop.trf.xlu0
    %v2815 = vpop.trf.xlu0
    %v2817 = vsel %vm2151, %v2808, 0
    %v2820 = vsel %vm2151, %v2809, 0
    %2822 = vmatprep.subr.bf16.mxu0 0
    %2823 = vmatpush1.bf16.msra.mxu0 0
    %2824 = vmatprep.subr.bf16.mxu0 0
    %2825 = vmatpush1.bf16.msra.mxu0 0
    %2826 = vmatprep.subr.bf16.mxu0 0
    %2827 = vmatpush1.bf16.msra.mxu0 0
    %2828 = vmatprep.subr.bf16.mxu0 0
    %2829 = vmatpush1.bf16.msra.mxu0 0
    %2830 = vmatprep.subr.bf16.mxu0 0
    %2831 = vmatpush1.bf16.msra.mxu0 %v2321
    %2832 = vmatprep.subr.bf16.mxu0 0
    %2833 = vmatpush1.bf16.msra.mxu0 %v2320
    %2834 = vmatprep.subr.bf16.mxu0 0
    %2835 = vmatpush1.bf16.msra.mxu0 %v2319
    %2836 = vmatprep.subr.bf16.mxu0 0
    %2837 = vmatpush1.bf16.msra.mxu0 %v2318
    %2838 = vmatprep.subr.bf16.mxu0 0
    %2839 = vmatpush2.bf16.msra.mxu0 0
    %2840 = vmatprep.subr.bf16.mxu0 0
    %2841 = vmatpush2.bf16.msra.mxu0 0
    %2842 = vmatprep.subr.bf16.mxu0 0
    %2843 = vmatpush2.bf16.msra.mxu0 0
    %2844 = vmatprep.subr.bf16.mxu0 0
    %2845 = vmatpush2.bf16.msra.mxu0 0
    %2846 = vmatprep.subr.bf16.mxu0 0
    %2847 = vmatpush2.bf16.msra.mxu0 0
    %2848 = vmatprep.subr.bf16.mxu0 0
    %2849 = vmatpush2.bf16.msra.mxu0 0
    %2850 = vmatprep.subr.bf16.mxu0 0
    %2851 = vmatpush2.bf16.msra.mxu0 0
    %2852 = vmatprep.subr.bf16.mxu0 0
    %2853 = vmatpush2.bf16.msra.mxu0 0
    %2854 = vmatprep.mubr.bf16.mxu0 0
    %2855 = vmatmul.mubr.bf16.gmra.mxu0 %v2817
    %v2856 = vpop.f32.mrf.mxu0
    %v2857 = vadd.f32 0.0, %v2856
    %v2858 = vpop.f32.mrf.mxu0
    %v2859 = vpop.f32.mrf.mxu0
    %v2860 = vadd.f32 0.0, %v2859
    %v2861 = vpop.f32.mrf.mxu0
    %2862 = vmatprep.mubr.bf16.mxu0 0
    %2863 = vmatmul.mubr.bf16.gmra.mxu0 %v2820
    %v2864 = vpop.f32.mrf.mxu0
    %v2865 = vadd.f32 0.0, %v2864
    %v2866 = vpop.f32.mrf.mxu0
    %v2867 = vpop.f32.mrf.mxu0
    %v2868 = vadd.f32 0.0, %v2867
    %v2869 = vpop.f32.mrf.mxu0
    %2870 = vdwg.mxu0
    %v2871 = vmul.f32 %v2857, 0.125
    %v2872 = vmul.f32 %v2860, 0.125
    %v2873 = vmul.f32 %v2865, 0.125
    %v2874 = vmul.f32 %v2868, 0.125
    %s2875 = scalar_lea.vmem %s4, 24
    %v2876 = vld [vmem:[%s2875] sm:$0xff]
    %v2877 = vld [vmem:[%s2875 + $0x8] sm:$0xff]
    %v2878 = vld [vmem:[%s2875 + $0x10] sm:$0x1]
    %2880 = vset.pattern.permute.xlu0 0
    %2881 = vperm.xlu0 %2880, %v2726
    %v2882 = vpop.permute.xlu0 %2881
    %2885 = vset.pattern.permute.xlu0 0
    %2886 = vperm.xlu0 %2885, %v2727
    %v2887 = vpop.permute.xlu0 %2886
    %2890 = vset.pattern.permute.xlu0 0
    %2891 = vperm.xlu0 %2890, %v2728
    %v2892 = vpop.permute.xlu0 %2891
    %v2894 = vmul.f32 %v2882, %v2876
    %v2895 = vmul.f32 %v2887, %v2877
    %v2896 = vmul.f32 %v2892, %v2878
    %v2897 = vpack.c.bf16 %v2895, %v2894
    %v2898 = vpack.c.bf16 %v2896, %v2896
    %v2899 = vpack.c.bf16 %v2872, %v2871
    %v2903 = vrot.slane %v2872, 1
    %v2904 = vrot.slane %v2873, 1
    %v2905 = vsel %vm925, %v2903, %v2904
    %v2906 = vrot.slane %v2874, 1
    %v2907 = vsel %vm925, %v2904, %v2906
    %2908 = vrot.lane.b32.xlu0 %v2905, 119
    %v2909 = vpop.permute.xlu0 %2908
    %2910 = vrot.lane.b32.xlu0 %v2907, 119
    %v2911 = vpop.permute.xlu0 %2910
    %2912 = vrot.lane.b32.xlu0 %v2906, 119
    %v2913 = vpop.permute.xlu0 %2912
    %v2918 = vsel %vm2273, %v2897, 0
    %v2921 = vsel %vm2273, %v2898, 0
    %v2924 = vsel %vm2273, %v2899, 0
    %2926 = vmatprep.subr.bf16.mxu0 0
    %2927 = vmatpush1.bf16.xpose.msra.mxu0 0
    %2928 = vmatprep.subr.bf16.mxu0 0
    %2929 = vmatpush1.bf16.xpose.msra.mxu0 0
    %2930 = vmatprep.subr.bf16.mxu0 0
    %2931 = vmatpush1.bf16.xpose.msra.mxu0 0
    %2932 = vmatprep.subr.bf16.mxu0 0
    %2933 = vmatpush1.bf16.xpose.msra.mxu0 0
    %2934 = vmatprep.subr.bf16.mxu0 0
    %2935 = vmatpush1.bf16.xpose.msra.mxu0 0
    %2936 = vmatprep.subr.bf16.mxu0 0
    %2937 = vmatpush1.bf16.xpose.msra.mxu0 0
    %2938 = vmatprep.subr.bf16.mxu0 0
    %2939 = vmatpush1.bf16.xpose.msra.mxu0 0
    %2940 = vmatprep.subr.bf16.mxu0 0
    %2941 = vmatpush1.bf16.xpose.msra.mxu0 %v2924
    %2942 = vmatprep.subr.bf16.mxu0 0
    %2943 = vmatpush2.bf16.xpose.msra.mxu0 0
    %2944 = vmatprep.subr.bf16.mxu0 0
    %2945 = vmatpush2.bf16.xpose.msra.mxu0 0
    %2946 = vmatprep.subr.bf16.mxu0 0
    %2947 = vmatpush2.bf16.xpose.msra.mxu0 0
    %2948 = vmatprep.subr.bf16.mxu0 0
    %2949 = vmatpush2.bf16.xpose.msra.mxu0 0
    %2950 = vmatprep.subr.bf16.mxu0 0
    %2951 = vmatpush2.bf16.xpose.msra.mxu0 0
    %2952 = vmatprep.subr.bf16.mxu0 0
    %2953 = vmatpush2.bf16.xpose.msra.mxu0 0
    %2954 = vmatprep.subr.bf16.mxu0 0
    %2955 = vmatpush2.bf16.xpose.msra.mxu0 0
    %2956 = vmatprep.subr.bf16.mxu0 0
    %2957 = vmatpush2.bf16.xpose.msra.mxu0 0
    %2958 = vmatprep.mubr.bf16.mxu0 0
    %2959 = vmatmul.mubr.bf16.gmra.mxu0 %v2918
    %v2960 = vpop.f32.mrf.mxu0
    %v2961 = vadd.f32 %v2909, %v2960
    %v2962 = vpop.f32.mrf.mxu0
    %v2963 = vpop.f32.mrf.mxu0
    %v2964 = vadd.f32 %v2911, %v2963
    %v2965 = vpop.f32.mrf.mxu0
    %2966 = vmatprep.mubr.bf16.mxu0 0
    %2967 = vmatmul.mubr.bf16.gmra.mxu0 %v2921
    %v2968 = vpop.f32.mrf.mxu0
    %v2969 = vadd.f32 %v2913, %v2968
    %v2970 = vpop.f32.mrf.mxu0
    %v2971 = vpop.f32.mrf.mxu0
    %v2972 = vpop.f32.mrf.mxu0
    %2973 = vdwg.mxu0
    %v2974 = vmul.f32 %v2753, -1.0
    %v2975 = vmul.f32 %v2754, -1.0
    %v2976 = vmul.f32 %v2755, -1.0
    %v2977 = vadd.f32 %v2974, 1.0
    %v2978 = vadd.f32 %v2975, 1.0
    %v2979 = vadd.f32 %v2976, 1.0
    %2981 = vset.pattern.permute.xlu0 1
    %2982 = vperm.xlu0 %2981, %v2977
    %v2983 = vpop.permute.xlu0 %2982
    %2986 = vset.pattern.permute.xlu0 1
    %2987 = vperm.xlu0 %2986, %v2978
    %v2988 = vpop.permute.xlu0 %2987
    %2991 = vset.pattern.permute.xlu0 1
    %2992 = vperm.xlu0 %2991, %v2979
    %v2993 = vpop.permute.xlu0 %2992
    %v2995 = vmul.f32 %v2983, %v2894
    %v2996 = vmul.f32 %v2988, %v2895
    %v2997 = vmul.f32 %v2993, %v2896
    %2998 = vst.msk [vmem:[#allocation2 + $0xa0] sm:$0xff] %vm2273, %v2961
    %2999 = vst.msk [vmem:[#allocation2 + $0xb0] sm:$0xff] %vm2273, %v2964
    %3000 = vst.msk [vmem:[#allocation2 + $0xc0] sm:$0x1] %vm2509, %v2969
    %3004 = vrot.lane.b32.xlu0 %v2995, 9
    %v3005 = vpop.permute.xlu0 %3004
    %3006 = vrot.lane.b32.xlu0 %v2996, 9
    %v3007 = vpop.permute.xlu0 %3006
    %3008 = vrot.lane.b32.xlu0 %v2997, 9
    %v3009 = vpop.permute.xlu0 %3008
    %3013 = vst.msk [vmem:[#allocation2 + $0xa0] sm:$0xff] %vm2523, %v3005
    %3014 = vst.msk [vmem:[#allocation2 + $0xb0] sm:$0xff] %vm2523, %v3007
    %3015 = vst.msk [vmem:[#allocation2 + $0xc0] sm:$0x1] %vm2526, %v3009
    %3016 = vst.msk [vmem:[#allocation2 + $0xa0] sm:$0xff] %vm2528, %v2882
    %3017 = vst.msk [vmem:[#allocation2 + $0xb0] sm:$0xff] %vm2528, %v2887
    %3018 = vst.msk [vmem:[#allocation2 + $0xc0] sm:$0x1] %vm2531, %v2892
    %3020 = vset.pattern.permute.xlu0 1
    %3021 = vperm.xlu0 %3020, %v2974
    %v3022 = vpop.permute.xlu0 %3021
    %3025 = vset.pattern.permute.xlu0 1
    %3026 = vperm.xlu0 %3025, %v2975
    %v3027 = vpop.permute.xlu0 %3026
    %3030 = vset.pattern.permute.xlu0 1
    %3031 = vperm.xlu0 %3030, %v2976
    %v3032 = vpop.permute.xlu0 %3031
    %3034 = vst.msk [vmem:[#allocation2 + $0xa0] sm:$0xff] %vm2548, %v3022
    %3035 = vst.msk [vmem:[#allocation2 + $0xb0] sm:$0xff] %vm2548, %v3027
    %3036 = vst.msk [vmem:[#allocation2 + $0xc0] sm:$0x1] %vm2551, %v3032
    %3037 = vrot.lane.b32.xlu0 %v2995, 18
    %v3038 = vpop.permute.xlu0 %3037
    %3039 = vrot.lane.b32.xlu0 %v2996, 18
    %v3040 = vpop.permute.xlu0 %3039
    %3041 = vrot.lane.b32.xlu0 %v2997, 18
    %v3042 = vpop.permute.xlu0 %3041
    %3046 = vst.msk [vmem:[%s20] sm:$0xff] %vm2528, %v3038
    %3047 = vst.msk [vmem:[%s20 + $0x8] sm:$0xff] %vm2528, %v3040
    %3048 = vst.msk [vmem:[%s20 + $0x10] sm:$0x1] %vm2531, %v3042
    %v3049 = vadd.f32 %v2753, 1.0
    %v3050 = vadd.f32 %v2754, 1.0
    %v3051 = vadd.f32 %v2755, 1.0
    %3053 = vset.pattern.permute.xlu0 1
    %3054 = vperm.xlu0 %3053, %v3049
    %v3055 = vpop.permute.xlu0 %3054
    %3058 = vset.pattern.permute.xlu0 1
    %3059 = vperm.xlu0 %3058, %v3050
    %v3060 = vpop.permute.xlu0 %3059
    %3063 = vset.pattern.permute.xlu0 1
    %3064 = vperm.xlu0 %3063, %v3051
    %v3065 = vpop.permute.xlu0 %3064
    %v3067 = vmul.f32 %v3055, %v2894
    %v3068 = vmul.f32 %v3060, %v2895
    %v3069 = vmul.f32 %v3065, %v2896
    %3070 = vst.msk [vmem:[#allocation2 + $0xe0] sm:$0xff] %vm2273, %v2961
    %3071 = vst.msk [vmem:[#allocation2 + $0xf0] sm:$0xff] %vm2273, %v2964
    %3072 = vst.msk [vmem:[#allocation2 + $0x100] sm:$0x1] %vm2509, %v2969
    %3076 = vrot.lane.b32.xlu0 %v3067, 9
    %v3077 = vpop.permute.xlu0 %3076
    %3078 = vrot.lane.b32.xlu0 %v3068, 9
    %v3079 = vpop.permute.xlu0 %3078
    %3080 = vrot.lane.b32.xlu0 %v3069, 9
    %v3081 = vpop.permute.xlu0 %3080
    %3085 = vst.msk [vmem:[#allocation2 + $0xe0] sm:$0xff] %vm2523, %v3077
    %3086 = vst.msk [vmem:[#allocation2 + $0xf0] sm:$0xff] %vm2523, %v3079
    %3087 = vst.msk [vmem:[#allocation2 + $0x100] sm:$0x1] %vm2526, %v3081
    %3088 = vst.msk [vmem:[#allocation2 + $0xe0] sm:$0xff] %vm2528, %v2882
    %3089 = vst.msk [vmem:[#allocation2 + $0xf0] sm:$0xff] %vm2528, %v2887
    %3090 = vst.msk [vmem:[#allocation2 + $0x100] sm:$0x1] %vm2531, %v2892
    %3092 = vset.pattern.permute.xlu0 1
    %3093 = vperm.xlu0 %3092, %v2753
    %v3094 = vpop.permute.xlu0 %3093
    %3097 = vset.pattern.permute.xlu0 1
    %3098 = vperm.xlu0 %3097, %v2754
    %v3099 = vpop.permute.xlu0 %3098
    %3102 = vset.pattern.permute.xlu0 1
    %3103 = vperm.xlu0 %3102, %v2755
    %v3104 = vpop.permute.xlu0 %3103
    %3106 = vst.msk [vmem:[#allocation2 + $0xe0] sm:$0xff] %vm2548, %v3094
    %3107 = vst.msk [vmem:[#allocation2 + $0xf0] sm:$0xff] %vm2548, %v3099
    %3108 = vst.msk [vmem:[#allocation2 + $0x100] sm:$0x1] %vm2551, %v3104
    %3109 = vrot.lane.b32.xlu0 %v3067, 27
    %v3110 = vpop.permute.xlu0 %3109
    %3111 = vrot.lane.b32.xlu0 %v3068, 27
    %v3112 = vpop.permute.xlu0 %3111
    %3113 = vrot.lane.b32.xlu0 %v3069, 27
    %v3114 = vpop.permute.xlu0 %3113
    %3118 = vst.msk [vmem:[%s20] sm:$0xff] %vm2548, %v3110
    %3119 = vst.msk [vmem:[%s20 + $0x8] sm:$0xff] %vm2548, %v3112
    %3120 = vst.msk [vmem:[%s20 + $0x10] sm:$0x1] %vm2551, %v3114
    %s3121 = smul.u32 4, 32
    %s3122 = smul.u32 %s3121, 2
    %s3123 = sshll.u32 %s3122, 4
    %3124 = dma.done [#allocation6], %s3123
    %s3125 = smul.u32 4, 54
    %s3126 = smul.u32 %s3125, 2
    %s3127 = sshll.u32 %s3126, 4
    %3128 = dma.done %s178, %s3127
    %s3129 = smul.u32 %s3125, 1
    %s3130 = sshll.u32 %s3129, 4
    %3131 = dma.done %s328, %s3130
    %v3132 = vld [vmem:[#allocation2] sm:$0xe0]
    %v3133 = vld [vmem:[#allocation2 + $0x10] sm:$0xff]
    %v3134 = vld [vmem:[#allocation2 + $0x20] sm:$0xff]
    %v3135 = vld [vmem:[#allocation2 + $0x30] sm:$0xff]
    %v3136 = vld [vmem:[#allocation2 + $0x40] sm:$0xff]
    %v3137 = vld [vmem:[#allocation2 + $0x50] sm:$0xff]
    %v3138 = vld [vmem:[#allocation2 + $0x60] sm:$0xff]
    %v3139 = vld [vmem:[#allocation2 + $0x70] sm:$0xff]
    %v3140 = vld [vmem:[#allocation2 + $0x80] sm:$0xff]
    %v3141 = vld [vmem:[#allocation2 + $0x90] sm:$0xff]
    %v3142 = vld [vmem:[#allocation2 + $0xa0] sm:$0xff]
    %v3143 = vld [vmem:[#allocation2 + $0xb0] sm:$0xff]
    %v3144 = vld [vmem:[#allocation2 + $0xc0] sm:$0xff]
    %v3145 = vld [vmem:[#allocation2 + $0xd0] sm:$0xff]
    %v3146 = vld [vmem:[#allocation2 + $0xe0] sm:$0xff]
    %v3147 = vld [vmem:[#allocation2 + $0xf0] sm:$0xff]
    %v3148 = vld [vmem:[#allocation2 + $0x100] sm:$0x1f]
    %v3149 = vpack.c.bf16 %v3133, %v3132
    %v3150 = vpack.c.bf16 %v3135, %v3134
    %v3151 = vpack.c.bf16 %v3137, %v3136
    %v3152 = vpack.c.bf16 %v3139, %v3138
    %v3153 = vpack.c.bf16 %v3141, %v3140
    %v3154 = vpack.c.bf16 %v3143, %v3142
    %v3155 = vpack.c.bf16 %v3145, %v3144
    %v3156 = vpack.c.bf16 %v3147, %v3146
    %v3157 = vpack.c.bf16 %v3148, %v3148
    %v3158 = vld [vmem:[#allocation2] sm:$0xc0]
    %v3159 = vld [vmem:[#allocation2 + $0x100] sm:$0x3f]
    %v3160 = vpack.c.bf16 %v3133, %v3158
    %v3161 = vpack.c.bf16 %v3159, %v3159
    %v3162 = vld [vmem:[#allocation2] sm:$0x80]
    %v3163 = vld [vmem:[#allocation2 + $0x100] sm:$0x7f]
    %v3164 = vpack.c.bf16 %v3133, %v3162
    %v3165 = vpack.c.bf16 %v3163, %v3163
    %v3166 = vld [vmem:[#allocation2 + $0x100] sm:$0xff]
    %v3167 = vpack.c.bf16 %v3134, %v3133
    %v3168 = vpack.c.bf16 %v3136, %v3135
    %v3169 = vpack.c.bf16 %v3138, %v3137
    %v3170 = vpack.c.bf16 %v3140, %v3139
    %v3171 = vpack.c.bf16 %v3142, %v3141
    %v3172 = vpack.c.bf16 %v3144, %v3143
    %v3173 = vpack.c.bf16 %v3146, %v3145
    %v3174 = vpack.c.bf16 %v3166, %v3147
    %v3175 = vld [vmem:[#allocation2 + $0x10] sm:$0xfe]
    %v3176 = vld [vmem:[#allocation2 + $0x110] sm:$0x1]
    %v3177 = vpack.c.bf16 %v3134, %v3175
    %v3178 = vpack.c.bf16 %v3176, %v3176
    %v3179 = vld [vmem:[#allocation2 + $0x10] sm:$0xfc]
    %v3180 = vld [vmem:[#allocation2 + $0x110] sm:$0x3]
    %v3181 = vpack.c.bf16 %v3134, %v3179
    %v3182 = vpack.c.bf16 %v3180, %v3180
    %v3183 = vld [vmem:[#allocation2 + $0x10] sm:$0xf8]
    %v3184 = vld [vmem:[#allocation2 + $0x110] sm:$0x7]
    %v3185 = vpack.c.bf16 %v3134, %v3183
    %v3186 = vpack.c.bf16 %v3184, %v3184
    %vm3187 = vsmask.f32 7424
    %v3189 = vshrl.u32 %v3160, 16
    %v3191 = vshll.u32 %v3160, 16
    %v3193 = vrot.slane %v3191, 1
    %v3194 = vor.u32 %v3189, %v3193
    %v3196 = vshll.u32 %v3150, 16
    %v3198 = vrot.slane %v3196, 1
    %v3199 = vsel %vm3187, %v3194, %v3198
    %v3200 = vshrl.u32 %v3150, 16
    %v3202 = vor.u32 %v3200, %v3198
    %v3204 = vshll.u32 %v3151, 16
    %v3206 = vrot.slane %v3204, 1
    %v3207 = vsel %vm3187, %v3202, %v3206
    %v3208 = vshrl.u32 %v3151, 16
    %v3210 = vor.u32 %v3208, %v3206
    %v3212 = vshll.u32 %v3152, 16
    %v3214 = vrot.slane %v3212, 1
    %v3215 = vsel %vm3187, %v3210, %v3214
    %v3216 = vshrl.u32 %v3152, 16
    %v3218 = vor.u32 %v3216, %v3214
    %v3220 = vshll.u32 %v3153, 16
    %v3222 = vrot.slane %v3220, 1
    %v3223 = vsel %vm3187, %v3218, %v3222
    %v3224 = vshrl.u32 %v3153, 16
    %v3226 = vor.u32 %v3224, %v3222
    %v3228 = vshll.u32 %v3154, 16
    %v3230 = vrot.slane %v3228, 1
    %v3231 = vsel %vm3187, %v3226, %v3230
    %v3232 = vshrl.u32 %v3154, 16
    %v3234 = vor.u32 %v3232, %v3230
    %v3236 = vshll.u32 %v3155, 16
    %v3238 = vrot.slane %v3236, 1
    %v3239 = vsel %vm3187, %v3234, %v3238
    %v3240 = vshrl.u32 %v3155, 16
    %v3242 = vor.u32 %v3240, %v3238
    %v3244 = vshll.u32 %v3156, 16
    %v3246 = vrot.slane %v3244, 1
    %v3247 = vsel %vm3187, %v3242, %v3246
    %v3248 = vshrl.u32 %v3156, 16
    %v3250 = vor.u32 %v3248, %v3246
    %v3252 = vshll.u32 %v3161, 16
    %v3254 = vrot.slane %v3252, 1
    %v3255 = vsel %vm3187, %v3250, %v3254
    %v3256 = vshrl.u32 %v3161, 16
    %v3258 = vor.u32 %v3256, %v3254
    %3259 = vrot.lane.b32.xlu0 %v3199, 36
    %v3260 = vpop.permute.xlu0 %3259
    %3261 = vrot.lane.b32.xlu0 %v3207, 36
    %v3262 = vpop.permute.xlu0 %3261
    %3263 = vrot.lane.b32.xlu0 %v3215, 36
    %v3264 = vpop.permute.xlu0 %3263
    %3265 = vrot.lane.b32.xlu0 %v3223, 36
    %v3266 = vpop.permute.xlu0 %3265
    %3267 = vrot.lane.b32.xlu0 %v3231, 36
    %v3268 = vpop.permute.xlu0 %3267
    %3269 = vrot.lane.b32.xlu0 %v3239, 36
    %v3270 = vpop.permute.xlu0 %3269
    %3271 = vrot.lane.b32.xlu0 %v3247, 36
    %v3272 = vpop.permute.xlu0 %3271
    %3273 = vrot.lane.b32.xlu0 %v3255, 36
    %v3274 = vpop.permute.xlu0 %3273
    %3275 = vrot.lane.b32.xlu0 %v3258, 36
    %v3276 = vpop.permute.xlu0 %3275
    %vm3286 = vcmask 1046528
    %v3287 = vrot.slane %v3164, 1
    %v3288 = vrot.slane %v3150, 1
    %v3289 = vsel %vm3286, %v3287, %v3288
    %v3290 = vrot.slane %v3151, 1
    %v3291 = vsel %vm3286, %v3288, %v3290
    %v3292 = vrot.slane %v3152, 1
    %v3293 = vsel %vm3286, %v3290, %v3292
    %v3294 = vrot.slane %v3153, 1
    %v3295 = vsel %vm3286, %v3292, %v3294
    %v3296 = vrot.slane %v3154, 1
    %v3297 = vsel %vm3286, %v3294, %v3296
    %v3298 = vrot.slane %v3155, 1
    %v3299 = vsel %vm3286, %v3296, %v3298
    %v3300 = vrot.slane %v3156, 1
    %v3301 = vsel %vm3286, %v3298, %v3300
    %v3302 = vrot.slane %v3165, 1
    %v3303 = vsel %vm3286, %v3300, %v3302
    %3304 = vrot.lane.b32.xlu0 %v3289, 72
    %v3305 = vpop.permute.xlu0 %3304
    %3306 = vrot.lane.b32.xlu0 %v3291, 72
    %v3307 = vpop.permute.xlu0 %3306
    %3308 = vrot.lane.b32.xlu0 %v3293, 72
    %v3309 = vpop.permute.xlu0 %3308
    %3310 = vrot.lane.b32.xlu0 %v3295, 72
    %v3311 = vpop.permute.xlu0 %3310
    %3312 = vrot.lane.b32.xlu0 %v3297, 72
    %v3313 = vpop.permute.xlu0 %3312
    %3314 = vrot.lane.b32.xlu0 %v3299, 72
    %v3315 = vpop.permute.xlu0 %3314
    %3316 = vrot.lane.b32.xlu0 %v3301, 72
    %v3317 = vpop.permute.xlu0 %3316
    %3318 = vrot.lane.b32.xlu0 %v3303, 72
    %v3319 = vpop.permute.xlu0 %3318
    %3320 = vrot.lane.b32.xlu0 %v3302, 72
    %v3321 = vpop.permute.xlu0 %3320
    %vm3322 = vsmask.f32 2304
    %v3324 = vshrl.u32 %v3167, 16
    %v3326 = vrot.slane %v3324, 5
    %v3327 = vshll.u32 %v3167, 16
    %v3329 = vrot.slane %v3327, 6
    %v3330 = vor.u32 %v3326, %v3329
    %v3332 = vshrl.u32 %v3168, 16
    %v3334 = vrot.slane %v3332, 5
    %v3335 = vshll.u32 %v3168, 16
    %v3337 = vrot.slane %v3335, 6
    %v3338 = vor.u32 %v3334, %v3337
    %v3339 = vsel %vm3322, %v3330, %v3338
    %v3341 = vshrl.u32 %v3169, 16
    %v3343 = vrot.slane %v3341, 5
    %v3344 = vshll.u32 %v3169, 16
    %v3346 = vrot.slane %v3344, 6
    %v3347 = vor.u32 %v3343, %v3346
    %v3348 = vsel %vm3322, %v3338, %v3347
    %v3350 = vshrl.u32 %v3170, 16
    %v3352 = vrot.slane %v3350, 5
    %v3353 = vshll.u32 %v3170, 16
    %v3355 = vrot.slane %v3353, 6
    %v3356 = vor.u32 %v3352, %v3355
    %v3357 = vsel %vm3322, %v3347, %v3356
    %v3359 = vshrl.u32 %v3171, 16
    %v3361 = vrot.slane %v3359, 5
    %v3362 = vshll.u32 %v3171, 16
    %v3364 = vrot.slane %v3362, 6
    %v3365 = vor.u32 %v3361, %v3364
    %v3366 = vsel %vm3322, %v3356, %v3365
    %v3368 = vshrl.u32 %v3172, 16
    %v3370 = vrot.slane %v3368, 5
    %v3371 = vshll.u32 %v3172, 16
    %v3373 = vrot.slane %v3371, 6
    %v3374 = vor.u32 %v3370, %v3373
    %v3375 = vsel %vm3322, %v3365, %v3374
    %v3377 = vshrl.u32 %v3173, 16
    %v3379 = vrot.slane %v3377, 5
    %v3380 = vshll.u32 %v3173, 16
    %v3382 = vrot.slane %v3380, 6
    %v3383 = vor.u32 %v3379, %v3382
    %v3384 = vsel %vm3322, %v3374, %v3383
    %v3386 = vshrl.u32 %v3174, 16
    %v3388 = vrot.slane %v3386, 5
    %v3389 = vshll.u32 %v3174, 16
    %v3391 = vrot.slane %v3389, 6
    %v3392 = vor.u32 %v3388, %v3391
    %v3393 = vsel %vm3322, %v3383, %v3392
    %3394 = vrot.lane.b32.xlu0 %v3330, 108
    %v3395 = vpop.permute.xlu0 %3394
    %3396 = vrot.lane.b32.xlu0 %v3339, 108
    %v3397 = vpop.permute.xlu0 %3396
    %3398 = vrot.lane.b32.xlu0 %v3348, 108
    %v3399 = vpop.permute.xlu0 %3398
    %3400 = vrot.lane.b32.xlu0 %v3357, 108
    %v3401 = vpop.permute.xlu0 %3400
    %3402 = vrot.lane.b32.xlu0 %v3366, 108
    %v3403 = vpop.permute.xlu0 %3402
    %3404 = vrot.lane.b32.xlu0 %v3375, 108
    %v3405 = vpop.permute.xlu0 %3404
    %3406 = vrot.lane.b32.xlu0 %v3384, 108
    %v3407 = vpop.permute.xlu0 %3406
    %3408 = vrot.lane.b32.xlu0 %v3393, 108
    %v3409 = vpop.permute.xlu0 %3408
    %3410 = vrot.lane.b32.xlu0 %v3392, 108
    %v3411 = vpop.permute.xlu0 %3410
    %vm3421 = vcmask 1041408
    %v3422 = vrot.slane %v3177, 6
    %v3423 = vrot.slane %v3168, 6
    %v3424 = vsel %vm3421, %v3422, %v3423
    %v3425 = vrot.slane %v3169, 6
    %v3426 = vsel %vm3421, %v3423, %v3425
    %v3427 = vrot.slane %v3170, 6
    %v3428 = vsel %vm3421, %v3425, %v3427
    %v3429 = vrot.slane %v3171, 6
    %v3430 = vsel %vm3421, %v3427, %v3429
    %v3431 = vrot.slane %v3172, 6
    %v3432 = vsel %vm3421, %v3429, %v3431
    %v3433 = vrot.slane %v3173, 6
    %v3434 = vsel %vm3421, %v3431, %v3433
    %v3435 = vrot.slane %v3174, 6
    %v3436 = vsel %vm3421, %v3433, %v3435
    %v3437 = vrot.slane %v3178, 6
    %v3438 = vsel %vm3421, %v3435, %v3437
    %3439 = vrot.lane.b32.xlu0 %v3422, 16
    %v3440 = vpop.permute.xlu0 %3439
    %3441 = vrot.lane.b32.xlu0 %v3424, 16
    %v3442 = vpop.permute.xlu0 %3441
    %3443 = vrot.lane.b32.xlu0 %v3426, 16
    %v3444 = vpop.permute.xlu0 %3443
    %3445 = vrot.lane.b32.xlu0 %v3428, 16
    %v3446 = vpop.permute.xlu0 %3445
    %3447 = vrot.lane.b32.xlu0 %v3430, 16
    %v3448 = vpop.permute.xlu0 %3447
    %3449 = vrot.lane.b32.xlu0 %v3432, 16
    %v3450 = vpop.permute.xlu0 %3449
    %3451 = vrot.lane.b32.xlu0 %v3434, 16
    %v3452 = vpop.permute.xlu0 %3451
    %3453 = vrot.lane.b32.xlu0 %v3436, 16
    %v3454 = vpop.permute.xlu0 %3453
    %3455 = vrot.lane.b32.xlu0 %v3438, 16
    %v3456 = vpop.permute.xlu0 %3455
    %vm3457 = vsmask.f32 1280
    %v3459 = vshrl.u32 %v3181, 16
    %v3461 = vrot.slane %v3459, 6
    %v3462 = vshll.u32 %v3181, 16
    %v3464 = vrot.slane %v3462, 7
    %v3465 = vor.u32 %v3461, %v3464
    %v3466 = vrot.slane %v3332, 6
    %v3467 = vrot.slane %v3335, 7
    %v3468 = vor.u32 %v3466, %v3467
    %v3469 = vsel %vm3457, %v3465, %v3468
    %v3470 = vrot.slane %v3341, 6
    %v3471 = vrot.slane %v3344, 7
    %v3472 = vor.u32 %v3470, %v3471
    %v3473 = vsel %vm3457, %v3468, %v3472
    %v3474 = vrot.slane %v3350, 6
    %v3475 = vrot.slane %v3353, 7
    %v3476 = vor.u32 %v3474, %v3475
    %v3477 = vsel %vm3457, %v3472, %v3476
    %v3478 = vrot.slane %v3359, 6
    %v3479 = vrot.slane %v3362, 7
    %v3480 = vor.u32 %v3478, %v3479
    %v3481 = vsel %vm3457, %v3476, %v3480
    %v3482 = vrot.slane %v3368, 6
    %v3483 = vrot.slane %v3371, 7
    %v3484 = vor.u32 %v3482, %v3483
    %v3485 = vsel %vm3457, %v3480, %v3484
    %v3486 = vrot.slane %v3377, 6
    %v3487 = vrot.slane %v3380, 7
    %v3488 = vor.u32 %v3486, %v3487
    %v3489 = vsel %vm3457, %v3484, %v3488
    %v3490 = vrot.slane %v3386, 6
    %v3491 = vrot.slane %v3389, 7
    %v3492 = vor.u32 %v3490, %v3491
    %v3493 = vsel %vm3457, %v3488, %v3492
    %v3495 = vshrl.u32 %v3182, 16
    %v3497 = vrot.slane %v3495, 6
    %v3498 = vshll.u32 %v3182, 16
    %v3500 = vrot.slane %v3498, 7
    %v3501 = vor.u32 %v3497, %v3500
    %v3502 = vsel %vm3457, %v3492, %v3501
    %3503 = vrot.lane.b32.xlu0 %v3465, 52
    %v3504 = vpop.permute.xlu0 %3503
    %3505 = vrot.lane.b32.xlu0 %v3469, 52
    %v3506 = vpop.permute.xlu0 %3505
    %3507 = vrot.lane.b32.xlu0 %v3473, 52
    %v3508 = vpop.permute.xlu0 %3507
    %3509 = vrot.lane.b32.xlu0 %v3477, 52
    %v3510 = vpop.permute.xlu0 %3509
    %3511 = vrot.lane.b32.xlu0 %v3481, 52
    %v3512 = vpop.permute.xlu0 %3511
    %3513 = vrot.lane.b32.xlu0 %v3485, 52
    %v3514 = vpop.permute.xlu0 %3513
    %3515 = vrot.lane.b32.xlu0 %v3489, 52
    %v3516 = vpop.permute.xlu0 %3515
    %3517 = vrot.lane.b32.xlu0 %v3493, 52
    %v3518 = vpop.permute.xlu0 %3517
    %3519 = vrot.lane.b32.xlu0 %v3502, 52
    %v3520 = vpop.permute.xlu0 %3519
    %vm3523 = vcmask 1040384
    %v3524 = vrot.slane %v3185, 7
    %v3525 = vrot.slane %v3168, 7
    %v3526 = vsel %vm3523, %v3524, %v3525
    %v3527 = vrot.slane %v3169, 7
    %v3528 = vsel %vm3523, %v3525, %v3527
    %v3529 = vrot.slane %v3170, 7
    %v3530 = vsel %vm3523, %v3527, %v3529
    %v3531 = vrot.slane %v3171, 7
    %v3532 = vsel %vm3523, %v3529, %v3531
    %v3533 = vrot.slane %v3172, 7
    %v3534 = vsel %vm3523, %v3531, %v3533
    %v3535 = vrot.slane %v3173, 7
    %v3536 = vsel %vm3523, %v3533, %v3535
    %v3537 = vrot.slane %v3174, 7
    %v3538 = vsel %vm3523, %v3535, %v3537
    %v3539 = vrot.slane %v3186, 7
    %v3540 = vsel %vm3523, %v3537, %v3539
    %3541 = vrot.lane.b32.xlu0 %v3524, 88
    %v3542 = vpop.permute.xlu0 %3541
    %3543 = vrot.lane.b32.xlu0 %v3526, 88
    %v3544 = vpop.permute.xlu0 %3543
    %3545 = vrot.lane.b32.xlu0 %v3528, 88
    %v3546 = vpop.permute.xlu0 %3545
    %3547 = vrot.lane.b32.xlu0 %v3530, 88
    %v3548 = vpop.permute.xlu0 %3547
    %3549 = vrot.lane.b32.xlu0 %v3532, 88
    %v3550 = vpop.permute.xlu0 %3549
    %3551 = vrot.lane.b32.xlu0 %v3534, 88
    %v3552 = vpop.permute.xlu0 %3551
    %3553 = vrot.lane.b32.xlu0 %v3536, 88
    %v3554 = vpop.permute.xlu0 %3553
    %3555 = vrot.lane.b32.xlu0 %v3538, 88
    %v3556 = vpop.permute.xlu0 %3555
    %3557 = vrot.lane.b32.xlu0 %v3540, 88
    %v3558 = vpop.permute.xlu0 %3557
    %vm3559 = vcmask 293888
    %v3562 = vsel %vm3559, %v3149, %v3260
    %v3564 = vsel %vm3559, %v3150, %v3262
    %v3566 = vsel %vm3559, %v3151, %v3264
    %v3568 = vsel %vm3559, %v3152, %v3266
    %v3570 = vsel %vm3559, %v3153, %v3268
    %v3572 = vsel %vm3559, %v3154, %v3270
    %v3574 = vsel %vm3559, %v3155, %v3272
    %v3576 = vsel %vm3559, %v3156, %v3274
    %v3579 = vsel %vm3559, %v3157, %v3276
    %vm3580 = vcmask 588800
    %v3582 = vsel %vm3580, %v3562, %v3305
    %v3584 = vsel %vm3580, %v3564, %v3307
    %v3586 = vsel %vm3580, %v3566, %v3309
    %v3588 = vsel %vm3580, %v3568, %v3311
    %v3590 = vsel %vm3580, %v3570, %v3313
    %v3592 = vsel %vm3580, %v3572, %v3315
    %v3594 = vsel %vm3580, %v3574, %v3317
    %v3596 = vsel %vm3580, %v3576, %v3319
    %v3598 = vsel %vm3580, %v3579, %v3321
    %vm3599 = vcmask 883712
    %v3601 = vsel %vm3599, %v3582, %v3395
    %v3603 = vsel %vm3599, %v3584, %v3397
    %v3605 = vsel %vm3599, %v3586, %v3399
    %v3607 = vsel %vm3599, %v3588, %v3401
    %v3609 = vsel %vm3599, %v3590, %v3403
    %v3611 = vsel %vm3599, %v3592, %v3405
    %v3613 = vsel %vm3599, %v3594, %v3407
    %v3615 = vsel %vm3599, %v3596, %v3409
    %v3617 = vsel %vm3599, %v3598, %v3411
    %v3619 = vsel %vm425, %v3395, %v3440
    %v3621 = vsel %vm425, %v3397, %v3442
    %v3623 = vsel %vm425, %v3399, %v3444
    %v3625 = vsel %vm425, %v3401, %v3446
    %v3627 = vsel %vm425, %v3403, %v3448
    %v3629 = vsel %vm425, %v3405, %v3450
    %v3631 = vsel %vm425, %v3407, %v3452
    %v3633 = vsel %vm425, %v3409, %v3454
    %v3635 = vsel %vm425, %v3411, %v3456
    %vm3636 = vcmask 424960
    %v3638 = vsel %vm3636, %v3619, %v3504
    %v3640 = vsel %vm3636, %v3621, %v3506
    %v3642 = vsel %vm3636, %v3623, %v3508
    %v3644 = vsel %vm3636, %v3625, %v3510
    %v3646 = vsel %vm3636, %v3627, %v3512
    %v3648 = vsel %vm3636, %v3629, %v3514
    %v3650 = vsel %vm3636, %v3631, %v3516
    %v3652 = vsel %vm3636, %v3633, %v3518
    %v3654 = vsel %vm3636, %v3635, %v3520
    %vm3655 = vcmask 719872
    %v3657 = vsel %vm3655, %v3638, %v3542
    %v3659 = vsel %vm3655, %v3640, %v3544
    %v3661 = vsel %vm3655, %v3642, %v3546
    %v3663 = vsel %vm3655, %v3644, %v3548
    %v3665 = vsel %vm3655, %v3646, %v3550
    %v3667 = vsel %vm3655, %v3648, %v3552
    %v3669 = vsel %vm3655, %v3650, %v3554
    %v3671 = vsel %vm3655, %v3652, %v3556
    %v3673 = vsel %vm3655, %v3654, %v3558
    %v3674 = vld [vmem:[#allocation3] sm:$0xff]
    %v3675 = vld [vmem:[#allocation3 + $0x8] sm:$0xff]
    %v3676 = vld [vmem:[#allocation3 + $0x10] sm:$0xff]
    %v3677 = vld [vmem:[#allocation3 + $0x18] sm:$0xff]
    %v3678 = vld [vmem:[#allocation3 + $0x20] sm:$0xff]
    %v3679 = vld [vmem:[#allocation3 + $0x28] sm:$0xff]
    %v3680 = vld [vmem:[#allocation3 + $0x30] sm:$0xff]
    %v3681 = vld [vmem:[#allocation3 + $0x38] sm:$0xff]
    %v3682 = vld [vmem:[#allocation3 + $0x40] sm:$0xff]
    %v3683 = vld [vmem:[#allocation3 + $0x48] sm:$0xff]
    %v3684 = vld [vmem:[#allocation3 + $0x50] sm:$0xff]
    %v3685 = vld [vmem:[#allocation3 + $0x58] sm:$0xff]
    %v3686 = vld [vmem:[#allocation3 + $0x60] sm:$0xff]
    %v3687 = vld [vmem:[#allocation3 + $0x68] sm:$0xff]
    %v3688 = vld [vmem:[#allocation3 + $0x70] sm:$0xff]
    %v3689 = vld [vmem:[#allocation3 + $0x78] sm:$0xff]
    %v3690 = vld [vmem:[#allocation3 + $0x80] sm:$0xff]
    %v3691 = vld [vmem:[#allocation3 + $0x88] sm:$0xff]
    %v3692 = vld [vmem:[#allocation3 + $0x90] sm:$0xff]
    %v3693 = vld [vmem:[#allocation3 + $0x98] sm:$0xff]
    %v3694 = vld [vmem:[#allocation3 + $0xa0] sm:$0xff]
    %v3695 = vld [vmem:[#allocation3 + $0xa8] sm:$0xff]
    %v3696 = vld [vmem:[#allocation3 + $0xb0] sm:$0xff]
    %v3697 = vld [vmem:[#allocation3 + $0xb8] sm:$0xff]
    %v3698 = vld [vmem:[#allocation3 + $0xc0] sm:$0xff]
    %v3699 = vld [vmem:[#allocation3 + $0xc8] sm:$0xff]
    %v3700 = vld [vmem:[#allocation3 + $0xd0] sm:$0xff]
    %v3701 = vld [vmem:[#allocation3 + $0xd8] sm:$0xff]
    %v3702 = vld [vmem:[#allocation3 + $0xe0] sm:$0xff]
    %v3703 = vld [vmem:[#allocation3 + $0xe8] sm:$0xff]
    %v3704 = vld [vmem:[#allocation3 + $0xf0] sm:$0xff]
    %v3705 = vld [vmem:[#allocation3 + $0xf8] sm:$0x33]
    %v3706 = vld [vmem:[%s15] ss:$4 sm:$0x3]
    %v3708 = vlaneseq
    %v3709 = vshrl.u32 %v3708, 7
    %v3710 = vsub.s32 0, %v3709
    %v3711 = vrot.slane %v3706, %v3710
    %v3712 = vlaneseq
    %v3713 = vshrl.u32 %v3712, 7
    %v3714 = vsub.s32 1, %v3713
    %v3715 = vrot.slane %v3706, %v3714
    %vm3718 = vsmask.f32 5376
    %v3719 = vshrl.u32 %v3601, 16
    %v3721 = vrot.slane %v3719, 2
    %v3722 = vshll.u32 %v3601, 16
    %v3724 = vrot.slane %v3722, 3
    %v3725 = vor.u32 %v3721, %v3724
    %v3726 = vshrl.u32 %v3603, 16
    %v3728 = vrot.slane %v3726, 2
    %v3729 = vshll.u32 %v3603, 16
    %v3731 = vrot.slane %v3729, 3
    %v3732 = vor.u32 %v3728, %v3731
    %v3733 = vsel %vm3718, %v3725, %v3732
    %v3734 = vshrl.u32 %v3657, 16
    %v3736 = vrot.slane %v3734, 2
    %v3737 = vshll.u32 %v3657, 16
    %v3739 = vrot.slane %v3737, 3
    %v3740 = vor.u32 %v3736, %v3739
    %v3741 = vshrl.u32 %v3659, 16
    %v3743 = vrot.slane %v3741, 2
    %v3744 = vshll.u32 %v3659, 16
    %v3746 = vrot.slane %v3744, 3
    %v3747 = vor.u32 %v3743, %v3746
    %v3748 = vsel %vm3718, %v3740, %v3747
    %v3749 = vshrl.u32 %v3605, 16
    %v3751 = vrot.slane %v3749, 2
    %v3752 = vshll.u32 %v3605, 16
    %v3754 = vrot.slane %v3752, 3
    %v3755 = vor.u32 %v3751, %v3754
    %v3756 = vsel %vm3718, %v3732, %v3755
    %v3757 = vshrl.u32 %v3661, 16
    %v3759 = vrot.slane %v3757, 2
    %v3760 = vshll.u32 %v3661, 16
    %v3762 = vrot.slane %v3760, 3
    %v3763 = vor.u32 %v3759, %v3762
    %v3764 = vsel %vm3718, %v3747, %v3763
    %v3765 = vshrl.u32 %v3607, 16
    %v3767 = vrot.slane %v3765, 2
    %v3768 = vshll.u32 %v3607, 16
    %v3770 = vrot.slane %v3768, 3
    %v3771 = vor.u32 %v3767, %v3770
    %v3772 = vsel %vm3718, %v3755, %v3771
    %v3773 = vshrl.u32 %v3663, 16
    %v3775 = vrot.slane %v3773, 2
    %v3776 = vshll.u32 %v3663, 16
    %v3778 = vrot.slane %v3776, 3
    %v3779 = vor.u32 %v3775, %v3778
    %v3780 = vsel %vm3718, %v3763, %v3779
    %v3781 = vshrl.u32 %v3609, 16
    %v3783 = vrot.slane %v3781, 2
    %v3784 = vshll.u32 %v3609, 16
    %v3786 = vrot.slane %v3784, 3
    %v3787 = vor.u32 %v3783, %v3786
    %v3788 = vsel %vm3718, %v3771, %v3787
    %v3789 = vshrl.u32 %v3665, 16
    %v3791 = vrot.slane %v3789, 2
    %v3792 = vshll.u32 %v3665, 16
    %v3794 = vrot.slane %v3792, 3
    %v3795 = vor.u32 %v3791, %v3794
    %v3796 = vsel %vm3718, %v3779, %v3795
    %v3797 = vshrl.u32 %v3611, 16
    %v3799 = vrot.slane %v3797, 2
    %v3800 = vshll.u32 %v3611, 16
    %v3802 = vrot.slane %v3800, 3
    %v3803 = vor.u32 %v3799, %v3802
    %v3804 = vsel %vm3718, %v3787, %v3803
    %v3805 = vshrl.u32 %v3667, 16
    %v3807 = vrot.slane %v3805, 2
    %v3808 = vshll.u32 %v3667, 16
    %v3810 = vrot.slane %v3808, 3
    %v3811 = vor.u32 %v3807, %v3810
    %v3812 = vsel %vm3718, %v3795, %v3811
    %v3813 = vshrl.u32 %v3613, 16
    %v3815 = vrot.slane %v3813, 2
    %v3816 = vshll.u32 %v3613, 16
    %v3818 = vrot.slane %v3816, 3
    %v3819 = vor.u32 %v3815, %v3818
    %v3820 = vsel %vm3718, %v3803, %v3819
    %v3821 = vshrl.u32 %v3669, 16
    %v3823 = vrot.slane %v3821, 2
    %v3824 = vshll.u32 %v3669, 16
    %v3826 = vrot.slane %v3824, 3
    %v3827 = vor.u32 %v3823, %v3826
    %v3828 = vsel %vm3718, %v3811, %v3827
    %v3829 = vshrl.u32 %v3615, 16
    %v3831 = vrot.slane %v3829, 2
    %v3832 = vshll.u32 %v3615, 16
    %v3834 = vrot.slane %v3832, 3
    %v3835 = vor.u32 %v3831, %v3834
    %v3836 = vsel %vm3718, %v3819, %v3835
    %v3837 = vshrl.u32 %v3671, 16
    %v3839 = vrot.slane %v3837, 2
    %v3840 = vshll.u32 %v3671, 16
    %v3842 = vrot.slane %v3840, 3
    %v3843 = vor.u32 %v3839, %v3842
    %v3844 = vsel %vm3718, %v3827, %v3843
    %v3845 = vshrl.u32 %v3617, 16
    %v3847 = vrot.slane %v3845, 2
    %v3848 = vshll.u32 %v3617, 16
    %v3850 = vrot.slane %v3848, 3
    %v3851 = vor.u32 %v3847, %v3850
    %v3852 = vsel %vm3718, %v3835, %v3851
    %v3853 = vshrl.u32 %v3673, 16
    %v3855 = vrot.slane %v3853, 2
    %v3856 = vshll.u32 %v3673, 16
    %v3858 = vrot.slane %v3856, 3
    %v3859 = vor.u32 %v3855, %v3858
    %v3860 = vsel %vm3718, %v3843, %v3859
    %v3901 = vunpack.c.l.b16 %v3674
    %v3902 = vunpack.c.h.b16 %v3674
    %v3903 = vunpack.c.l.b16 %v3675
    %v3904 = vunpack.c.h.b16 %v3675
    %v3905 = vunpack.c.l.b16 %v3676
    %v3906 = vunpack.c.h.b16 %v3676
    %v3907 = vunpack.c.l.b16 %v3677
    %v3908 = vunpack.c.h.b16 %v3677
    %v3909 = vunpack.c.l.b16 %v3678
    %v3910 = vunpack.c.h.b16 %v3678
    %v3911 = vunpack.c.l.b16 %v3679
    %v3912 = vunpack.c.h.b16 %v3679
    %v3913 = vunpack.c.l.b16 %v3680
    %v3914 = vunpack.c.h.b16 %v3680
    %v3915 = vunpack.c.l.b16 %v3681
    %v3916 = vunpack.c.h.b16 %v3681
    %v3917 = vunpack.c.l.b16 %v3682
    %v3918 = vunpack.c.h.b16 %v3682
    %v3919 = vunpack.c.l.b16 %v3683
    %v3920 = vunpack.c.h.b16 %v3683
    %v3921 = vunpack.c.l.b16 %v3684
    %v3922 = vunpack.c.h.b16 %v3684
    %v3923 = vunpack.c.l.b16 %v3685
    %v3924 = vunpack.c.h.b16 %v3685
    %v3925 = vunpack.c.l.b16 %v3686
    %v3926 = vunpack.c.h.b16 %v3686
    %v3927 = vunpack.c.l.b16 %v3687
    %v3928 = vunpack.c.h.b16 %v3687
    %v3929 = vunpack.c.l.b16 %v3688
    %v3930 = vunpack.c.h.b16 %v3688
    %v3931 = vunpack.c.l.b16 %v3689
    %v3932 = vunpack.c.h.b16 %v3689
    %v3933 = vunpack.c.l.b16 %v3690
    %v3934 = vunpack.c.h.b16 %v3690
    %v3935 = vunpack.c.l.b16 %v3691
    %v3936 = vunpack.c.h.b16 %v3691
    %v3937 = vunpack.c.l.b16 %v3692
    %v3938 = vunpack.c.h.b16 %v3692
    %v3939 = vunpack.c.l.b16 %v3693
    %v3940 = vunpack.c.h.b16 %v3693
    %v3941 = vunpack.c.l.b16 %v3694
    %v3942 = vunpack.c.h.b16 %v3694
    %v3943 = vunpack.c.l.b16 %v3695
    %v3944 = vunpack.c.h.b16 %v3695
    %v3945 = vunpack.c.l.b16 %v3696
    %v3946 = vunpack.c.h.b16 %v3696
    %v3947 = vunpack.c.l.b16 %v3697
    %v3948 = vunpack.c.h.b16 %v3697
    %v3949 = vunpack.c.l.b16 %v3698
    %v3950 = vunpack.c.h.b16 %v3698
    %v3951 = vunpack.c.l.b16 %v3699
    %v3952 = vunpack.c.h.b16 %v3699
    %v3953 = vunpack.c.l.b16 %v3700
    %v3954 = vunpack.c.h.b16 %v3700
    %v3955 = vunpack.c.l.b16 %v3701
    %v3956 = vunpack.c.h.b16 %v3701
    %v3957 = vunpack.c.l.b16 %v3702
    %v3958 = vunpack.c.h.b16 %v3702
    %v3959 = vunpack.c.l.b16 %v3703
    %v3960 = vunpack.c.h.b16 %v3703
    %v3961 = vunpack.c.l.b16 %v3704
    %v3962 = vunpack.c.h.b16 %v3704
    %v3963 = vunpack.c.l.b16 %v3705
    %v3964 = vunpack.c.h.b16 %v3705
    %v3965 = vpack.c.b16 %v3903, %v3901
    %v3966 = vpack.c.b16 %v3904, %v3902
    %v3967 = vpack.c.b16 %v3907, %v3905
    %v3968 = vpack.c.b16 %v3908, %v3906
    %v3969 = vpack.c.b16 %v3911, %v3909
    %v3970 = vpack.c.b16 %v3912, %v3910
    %v3971 = vpack.c.b16 %v3915, %v3913
    %v3972 = vpack.c.b16 %v3916, %v3914
    %v3973 = vpack.c.b16 %v3919, %v3917
    %v3974 = vpack.c.b16 %v3920, %v3918
    %v3975 = vpack.c.b16 %v3923, %v3921
    %v3976 = vpack.c.b16 %v3924, %v3922
    %v3977 = vpack.c.b16 %v3927, %v3925
    %v3978 = vpack.c.b16 %v3928, %v3926
    %v3979 = vpack.c.b16 %v3931, %v3929
    %v3980 = vpack.c.b16 %v3932, %v3930
    %v3981 = vpack.c.b16 %v3935, %v3933
    %v3982 = vpack.c.b16 %v3936, %v3934
    %v3983 = vpack.c.b16 %v3939, %v3937
    %v3984 = vpack.c.b16 %v3940, %v3938
    %v3985 = vpack.c.b16 %v3943, %v3941
    %v3986 = vpack.c.b16 %v3944, %v3942
    %v3987 = vpack.c.b16 %v3947, %v3945
    %v3988 = vpack.c.b16 %v3948, %v3946
    %v3989 = vpack.c.b16 %v3951, %v3949
    %v3990 = vpack.c.b16 %v3952, %v3950
    %v3991 = vpack.c.b16 %v3955, %v3953
    %v3992 = vpack.c.b16 %v3956, %v3954
    %v3993 = vpack.c.b16 %v3959, %v3957
    %v3994 = vpack.c.b16 %v3960, %v3958
    %v3995 = vpack.c.b16 %v3963, %v3961
    %v3996 = vpack.c.b16 %v3964, %v3962
    %vm4027 = vcmask 1014784
    %v4029 = vsel %vm4027, %v3748, 0
    %v4032 = vsel %vm4027, %v3764, 0
    %v4035 = vsel %vm4027, %v3780, 0
    %v4038 = vsel %vm4027, %v3796, 0
    %v4041 = vsel %vm4027, %v3812, 0
    %v4044 = vsel %vm4027, %v3828, 0
    %v4047 = vsel %vm4027, %v3844, 0
    %v4050 = vsel %vm4027, %v3860, 0
    %vm4052 = vcmask 1045504
    %v4054 = vsel %vm4052, %v3995, 0
    %v4057 = vsel %vm4052, %v3996, 0
    %4059 = vmatprep.subr.bf16.mxu0 %v3980
    %4060 = vmatpush1.bf16.msra.mxu0 %v3979
    %4061 = vmatprep.subr.bf16.mxu0 %v3978
    %4062 = vmatpush1.bf16.msra.mxu0 %v3977
    %4063 = vmatprep.subr.bf16.mxu0 %v3976
    %4064 = vmatpush1.bf16.msra.mxu0 %v3975
    %4065 = vmatprep.subr.bf16.mxu0 %v3974
    %4066 = vmatpush1.bf16.msra.mxu0 %v3973
    %4067 = vmatprep.subr.bf16.mxu0 %v3972
    %4068 = vmatpush1.bf16.msra.mxu0 %v3971
    %4069 = vmatprep.subr.bf16.mxu0 %v3970
    %4070 = vmatpush1.bf16.msra.mxu0 %v3969
    %4071 = vmatprep.subr.bf16.mxu0 %v3968
    %4072 = vmatpush1.bf16.msra.mxu0 %v3967
    %4073 = vmatprep.subr.bf16.mxu0 %v3966
    %4074 = vmatpush1.bf16.msra.mxu0 %v3965
    %4075 = vmatprep.subr.bf16.mxu0 %v4057
    %4076 = vmatpush2.bf16.msra.mxu0 %v4054
    %4077 = vmatprep.subr.bf16.mxu0 %v3994
    %4078 = vmatpush2.bf16.msra.mxu0 %v3993
    %4079 = vmatprep.subr.bf16.mxu0 %v3992
    %4080 = vmatpush2.bf16.msra.mxu0 %v3991
    %4081 = vmatprep.subr.bf16.mxu0 %v3990
    %4082 = vmatpush2.bf16.msra.mxu0 %v3989
    %4083 = vmatprep.subr.bf16.mxu0 %v3988
    %4084 = vmatpush2.bf16.msra.mxu0 %v3987
    %4085 = vmatprep.subr.bf16.mxu0 %v3986
    %4086 = vmatpush2.bf16.msra.mxu0 %v3985
    %4087 = vmatprep.subr.bf16.mxu0 %v3984
    %4088 = vmatpush2.bf16.msra.mxu0 %v3983
    %4089 = vmatprep.subr.bf16.mxu0 %v3982
    %4090 = vmatpush2.bf16.msra.mxu0 %v3981
    %4091 = vmatprep.mubr.bf16.mxu0 %v4029
    %4092 = vmatmul.mubr.bf16.gmra.mxu0 %v3733
    %v4093 = vpop.f32.mrf.mxu0
    %v4094 = vpop.f32.mrf.mxu0
    %v4095 = vpop.f32.mrf.mxu0
    %v4096 = vadd.f32 %v3711, %v4095
    %v4097 = vpop.f32.mrf.mxu0
    %v4098 = vadd.f32 %v3715, %v4097
    %4099 = vmatprep.mubr.bf16.mxu0 %v4032
    %4100 = vmatmul.mubr.bf16.gmra.mxu0 %v3756
    %v4101 = vpop.f32.mrf.mxu0
    %v4102 = vadd.f32 %v3711, %v4101
    %v4103 = vpop.f32.mrf.mxu0
    %v4104 = vadd.f32 %v3715, %v4103
    %v4105 = vpop.f32.mrf.mxu0
    %v4106 = vadd.f32 %v3711, %v4105
    %v4107 = vpop.f32.mrf.mxu0
    %v4108 = vadd.f32 %v3715, %v4107
    %4109 = vmatprep.mubr.bf16.mxu0 %v4035
    %4110 = vmatmul.mubr.bf16.gmra.mxu0 %v3772
    %v4111 = vpop.f32.mrf.mxu0
    %v4112 = vpop.f32.mrf.mxu0
    %v4113 = vpop.f32.mrf.mxu0
    %v4114 = vadd.f32 %v3711, %v4113
    %v4115 = vpop.f32.mrf.mxu0
    %v4116 = vadd.f32 %v3715, %v4115
    %4117 = vmatprep.mubr.bf16.mxu0 %v4038
    %4118 = vmatmul.mubr.bf16.gmra.mxu0 %v3788
    %v4119 = vpop.f32.mrf.mxu0
    %v4120 = vadd.f32 %v3711, %v4119
    %v4121 = vpop.f32.mrf.mxu0
    %v4122 = vadd.f32 %v3715, %v4121
    %v4123 = vpop.f32.mrf.mxu0
    %v4124 = vadd.f32 %v3711, %v4123
    %v4125 = vpop.f32.mrf.mxu0
    %v4126 = vadd.f32 %v3715, %v4125
    %4127 = vmatprep.mubr.bf16.mxu0 %v4041
    %4128 = vmatmul.mubr.bf16.gmra.mxu0 %v3804
    %v4129 = vpop.f32.mrf.mxu0
    %v4130 = vpop.f32.mrf.mxu0
    %v4131 = vpop.f32.mrf.mxu0
    %v4132 = vadd.f32 %v3711, %v4131
    %v4133 = vpop.f32.mrf.mxu0
    %v4134 = vadd.f32 %v3715, %v4133
    %4135 = vmatprep.mubr.bf16.mxu0 %v4044
    %4136 = vmatmul.mubr.bf16.gmra.mxu0 %v3820
    %v4137 = vpop.f32.mrf.mxu0
    %v4138 = vadd.f32 %v3711, %v4137
    %v4139 = vpop.f32.mrf.mxu0
    %v4140 = vadd.f32 %v3715, %v4139
    %v4141 = vpop.f32.mrf.mxu0
    %v4142 = vadd.f32 %v3711, %v4141
    %v4143 = vpop.f32.mrf.mxu0
    %v4144 = vadd.f32 %v3715, %v4143
    %4145 = vmatprep.mubr.bf16.mxu0 %v4047
    %4146 = vmatmul.mubr.bf16.gmra.mxu0 %v3836
    %v4147 = vpop.f32.mrf.mxu0
    %v4148 = vpop.f32.mrf.mxu0
    %v4149 = vpop.f32.mrf.mxu0
    %v4150 = vadd.f32 %v3711, %v4149
    %v4151 = vpop.f32.mrf.mxu0
    %v4152 = vadd.f32 %v3715, %v4151
    %4153 = vmatprep.mubr.bf16.mxu0 %v4050
    %4154 = vmatmul.mubr.bf16.gmra.mxu0 %v3852
    %v4155 = vpop.f32.mrf.mxu0
    %v4156 = vadd.f32 %v3711, %v4155
    %v4157 = vpop.f32.mrf.mxu0
    %v4158 = vadd.f32 %v3715, %v4157
    %v4159 = vpop.f32.mrf.mxu0
    %v4160 = vadd.f32 %v3711, %v4159
    %v4161 = vpop.f32.mrf.mxu0
    %v4162 = vadd.f32 %v3715, %v4161
    %4163 = vdwg.mxu0
    %v4164 = vmax.f32 %v4096, 0.0
    %v4165 = vmax.f32 %v4098, 0.0
    %v4166 = vmax.f32 %v4102, 0.0
    %v4167 = vmax.f32 %v4104, 0.0
    %v4168 = vmax.f32 %v4106, 0.0
    %v4169 = vmax.f32 %v4108, 0.0
    %v4170 = vmax.f32 %v4114, 0.0
    %v4171 = vmax.f32 %v4116, 0.0
    %v4172 = vmax.f32 %v4120, 0.0
    %v4173 = vmax.f32 %v4122, 0.0
    %v4174 = vmax.f32 %v4124, 0.0
    %v4175 = vmax.f32 %v4126, 0.0
    %v4176 = vmax.f32 %v4132, 0.0
    %v4177 = vmax.f32 %v4134, 0.0
    %v4178 = vmax.f32 %v4138, 0.0
    %v4179 = vmax.f32 %v4140, 0.0
    %v4180 = vmax.f32 %v4142, 0.0
    %v4181 = vmax.f32 %v4144, 0.0
    %v4182 = vmax.f32 %v4150, 0.0
    %v4183 = vmax.f32 %v4152, 0.0
    %v4184 = vmax.f32 %v4156, 0.0
    %v4185 = vmax.f32 %v4158, 0.0
    %v4186 = vmax.f32 %v4160, 0.0
    %v4187 = vmax.f32 %v4162, 0.0
    %4188 = vst [vmem:[#allocation2 + $0x20] sm:$0xff] %v4164
    %4189 = vst.msk [vmem:[#allocation2 + $0x28] sm:$0xff] %vm425, %v4165
    %4190 = vst [vmem:[#allocation2 + $0x30] sm:$0xff] %v4166
    %4191 = vst.msk [vmem:[#allocation2 + $0x38] sm:$0xff] %vm425, %v4167
    %4192 = vst [vmem:[#allocation2 + $0x40] sm:$0x1] %v4168
    %vm4193 = vcmask 122880
    %4194 = vst.msk [vmem:[#allocation2 + $0x48] sm:$0x1] %vm4193, %v4169
    %4195 = vst [vmem:[#allocation2 + $0x60] sm:$0xff] %v4170
    %4196 = vst.msk [vmem:[#allocation2 + $0x68] sm:$0xff] %vm425, %v4171
    %4197 = vst [vmem:[#allocation2 + $0x70] sm:$0xff] %v4172
    %4198 = vst.msk [vmem:[#allocation2 + $0x78] sm:$0xff] %vm425, %v4173
    %4199 = vst [vmem:[#allocation2 + $0x80] sm:$0x1] %v4174
    %4200 = vst.msk [vmem:[#allocation2 + $0x88] sm:$0x1] %vm4193, %v4175
    %4201 = vst [vmem:[#allocation2 + $0xa0] sm:$0xff] %v4176
    %4202 = vst.msk [vmem:[#allocation2 + $0xa8] sm:$0xff] %vm425, %v4177
    %4203 = vst [vmem:[#allocation2 + $0xb0] sm:$0xff] %v4178
    %4204 = vst.msk [vmem:[#allocation2 + $0xb8] sm:$0xff] %vm425, %v4179
    %4205 = vst [vmem:[#allocation2 + $0xc0] sm:$0x1] %v4180
    %4206 = vst.msk [vmem:[#allocation2 + $0xc8] sm:$0x1] %vm4193, %v4181
    %4207 = vst [vmem:[#allocation2 + $0xe0] sm:$0xff] %v4182
    %4208 = vst.msk [vmem:[#allocation2 + $0xe8] sm:$0xff] %vm425, %v4183
    %4209 = vst [vmem:[#allocation2 + $0xf0] sm:$0xff] %v4184
    %4210 = vst.msk [vmem:[#allocation2 + $0xf8] sm:$0xff] %vm425, %v4185
    %4211 = vst [vmem:[#allocation2 + $0x100] sm:$0x1] %v4186
    %4212 = vst.msk [vmem:[#allocation2 + $0x108] sm:$0x1] %vm4193, %v4187
    %v4213 = vld [vmem:[#allocation2] sm:$0x80]
    %v4214 = vld [vmem:[#allocation2 + $0x8] sm:$0x80]
    %v4215 = vld [vmem:[#allocation2 + $0x10] sm:$0xff]
    %v4216 = vld [vmem:[#allocation2 + $0x18] sm:$0xff]
    %v4217 = vld [vmem:[#allocation2 + $0x20] sm:$0xff]
    %v4218 = vld [vmem:[#allocation2 + $0x28] sm:$0xff]
    %v4219 = vld [vmem:[#allocation2 + $0x30] sm:$0xff]
    %v4220 = vld [vmem:[#allocation2 + $0x38] sm:$0xff]
    %v4221 = vld [vmem:[#allocation2 + $0x40] sm:$0xff]
    %v4222 = vld [vmem:[#allocation2 + $0x48] sm:$0xff]
    %v4223 = vld [vmem:[#allocation2 + $0x50] sm:$0xff]
    %v4224 = vld [vmem:[#allocation2 + $0x58] sm:$0xff]
    %v4225 = vld [vmem:[#allocation2 + $0x60] sm:$0xff]
    %v4226 = vld [vmem:[#allocation2 + $0x68] sm:$0xff]
    %v4227 = vld [vmem:[#allocation2 + $0x70] sm:$0xff]
    %v4228 = vld [vmem:[#allocation2 + $0x78] sm:$0xff]
    %v4229 = vld [vmem:[#allocation2 + $0x80] sm:$0xff]
    %v4230 = vld [vmem:[#allocation2 + $0x88] sm:$0xff]
    %v4231 = vld [vmem:[#allocation2 + $0x90] sm:$0xff]
    %v4232 = vld [vmem:[#allocation2 + $0x98] sm:$0xff]
    %v4233 = vld [vmem:[#allocation2 + $0xa0] sm:$0xff]
    %v4234 = vld [vmem:[#allocation2 + $0xa8] sm:$0xff]
    %v4235 = vld [vmem:[#allocation2 + $0xb0] sm:$0xff]
    %v4236 = vld [vmem:[#allocation2 + $0xb8] sm:$0xff]
    %v4237 = vld [vmem:[#allocation2 + $0xc0] sm:$0xff]
    %v4238 = vld [vmem:[#allocation2 + $0xc8] sm:$0xff]
    %v4239 = vld [vmem:[#allocation2 + $0xd0] sm:$0xff]
    %v4240 = vld [vmem:[#allocation2 + $0xd8] sm:$0xff]
    %v4241 = vld [vmem:[#allocation2 + $0xe0] sm:$0xff]
    %v4242 = vld [vmem:[#allocation2 + $0xe8] sm:$0xff]
    %v4243 = vld [vmem:[#allocation2 + $0xf0] sm:$0xff]
    %v4244 = vld [vmem:[#allocation2 + $0xf8] sm:$0xff]
    %v4245 = vld [vmem:[#allocation2 + $0x100] sm:$0x7f]
    %v4246 = vld [vmem:[#allocation2 + $0x108] sm:$0x7f]
    %v4247 = vpack.c.bf16 %v4215, %v4213
    %v4248 = vpack.c.bf16 %v4216, %v4214
    %v4249 = vpack.c.bf16 %v4219, %v4217
    %v4250 = vpack.c.bf16 %v4220, %v4218
    %v4251 = vpack.c.bf16 %v4223, %v4221
    %v4252 = vpack.c.bf16 %v4224, %v4222
    %v4253 = vpack.c.bf16 %v4227, %v4225
    %v4254 = vpack.c.bf16 %v4228, %v4226
    %v4255 = vpack.c.bf16 %v4231, %v4229
    %v4256 = vpack.c.bf16 %v4232, %v4230
    %v4257 = vpack.c.bf16 %v4235, %v4233
    %v4258 = vpack.c.bf16 %v4236, %v4234
    %v4259 = vpack.c.bf16 %v4239, %v4237
    %v4260 = vpack.c.bf16 %v4240, %v4238
    %v4261 = vpack.c.bf16 %v4243, %v4241
    %v4262 = vpack.c.bf16 %v4244, %v4242
    %v4263 = vpack.c.bf16 %v4245, %v4245
    %v4264 = vpack.c.bf16 %v4246, %v4246
    %v4265 = vld [vmem:[#allocation2 + $0x100] sm:$0xff]
    %v4266 = vld [vmem:[#allocation2 + $0x108] sm:$0xff]
    %v4267 = vpack.c.bf16 %v4217, %v4215
    %v4268 = vpack.c.bf16 %v4218, %v4216
    %v4269 = vpack.c.bf16 %v4221, %v4219
    %v4270 = vpack.c.bf16 %v4222, %v4220
    %v4271 = vpack.c.bf16 %v4225, %v4223
    %v4272 = vpack.c.bf16 %v4226, %v4224
    %v4273 = vpack.c.bf16 %v4229, %v4227
    %v4274 = vpack.c.bf16 %v4230, %v4228
    %v4275 = vpack.c.bf16 %v4233, %v4231
    %v4276 = vpack.c.bf16 %v4234, %v4232
    %v4277 = vpack.c.bf16 %v4237, %v4235
    %v4278 = vpack.c.bf16 %v4238, %v4236
    %v4279 = vpack.c.bf16 %v4241, %v4239
    %v4280 = vpack.c.bf16 %v4242, %v4240
    %v4281 = vpack.c.bf16 %v4265, %v4243
    %v4282 = vpack.c.bf16 %v4266, %v4244
    %v4283 = vld [vmem:[#allocation2 + $0x10] sm:$0xfe]
    %v4284 = vld [vmem:[#allocation2 + $0x18] sm:$0xfe]
    %v4285 = vld [vmem:[#allocation2 + $0x110] sm:$0x1]
    %v4286 = vld [vmem:[#allocation2 + $0x118] sm:$0x1]
    %v4287 = vpack.c.bf16 %v4217, %v4283
    %v4288 = vpack.c.bf16 %v4218, %v4284
    %v4289 = vpack.c.bf16 %v4285, %v4285
    %v4290 = vpack.c.bf16 %v4286, %v4286
    %vm4291 = vsmask.f32 3328
    %v4293 = vshrl.u32 %v4267, 16
    %v4295 = vrot.slane %v4293, 4
    %v4296 = vshll.u32 %v4267, 16
    %v4298 = vrot.slane %v4296, 5
    %v4299 = vor.u32 %v4295, %v4298
    %v4301 = vshrl.u32 %v4268, 16
    %v4303 = vrot.slane %v4301, 4
    %v4304 = vshll.u32 %v4268, 16
    %v4306 = vrot.slane %v4304, 5
    %v4307 = vor.u32 %v4303, %v4306
    %v4309 = vshrl.u32 %v4269, 16
    %v4311 = vrot.slane %v4309, 4
    %v4312 = vshll.u32 %v4269, 16
    %v4314 = vrot.slane %v4312, 5
    %v4315 = vor.u32 %v4311, %v4314
    %v4316 = vsel %vm4291, %v4299, %v4315
    %v4318 = vshrl.u32 %v4270, 16
    %v4320 = vrot.slane %v4318, 4
    %v4321 = vshll.u32 %v4270, 16
    %v4323 = vrot.slane %v4321, 5
    %v4324 = vor.u32 %v4320, %v4323
    %v4325 = vsel %vm4291, %v4307, %v4324
    %v4327 = vshrl.u32 %v4271, 16
    %v4329 = vrot.slane %v4327, 4
    %v4330 = vshll.u32 %v4271, 16
    %v4332 = vrot.slane %v4330, 5
    %v4333 = vor.u32 %v4329, %v4332
    %v4334 = vsel %vm4291, %v4315, %v4333
    %v4336 = vshrl.u32 %v4272, 16
    %v4338 = vrot.slane %v4336, 4
    %v4339 = vshll.u32 %v4272, 16
    %v4341 = vrot.slane %v4339, 5
    %v4342 = vor.u32 %v4338, %v4341
    %v4343 = vsel %vm4291, %v4324, %v4342
    %v4345 = vshrl.u32 %v4273, 16
    %v4347 = vrot.slane %v4345, 4
    %v4348 = vshll.u32 %v4273, 16
    %v4350 = vrot.slane %v4348, 5
    %v4351 = vor.u32 %v4347, %v4350
    %v4352 = vsel %vm4291, %v4333, %v4351
    %v4354 = vshrl.u32 %v4274, 16
    %v4356 = vrot.slane %v4354, 4
    %v4357 = vshll.u32 %v4274, 16
    %v4359 = vrot.slane %v4357, 5
    %v4360 = vor.u32 %v4356, %v4359
    %v4361 = vsel %vm4291, %v4342, %v4360
    %v4363 = vshrl.u32 %v4275, 16
    %v4365 = vrot.slane %v4363, 4
    %v4366 = vshll.u32 %v4275, 16
    %v4368 = vrot.slane %v4366, 5
    %v4369 = vor.u32 %v4365, %v4368
    %v4370 = vsel %vm4291, %v4351, %v4369
    %v4372 = vshrl.u32 %v4276, 16
    %v4374 = vrot.slane %v4372, 4
    %v4375 = vshll.u32 %v4276, 16
    %v4377 = vrot.slane %v4375, 5
    %v4378 = vor.u32 %v4374, %v4377
    %v4379 = vsel %vm4291, %v4360, %v4378
    %v4381 = vshrl.u32 %v4277, 16
    %v4383 = vrot.slane %v4381, 4
    %v4384 = vshll.u32 %v4277, 16
    %v4386 = vrot.slane %v4384, 5
    %v4387 = vor.u32 %v4383, %v4386
    %v4388 = vsel %vm4291, %v4369, %v4387
    %v4390 = vshrl.u32 %v4278, 16
    %v4392 = vrot.slane %v4390, 4
    %v4393 = vshll.u32 %v4278, 16
    %v4395 = vrot.slane %v4393, 5
    %v4396 = vor.u32 %v4392, %v4395
    %v4397 = vsel %vm4291, %v4378, %v4396
    %v4399 = vshrl.u32 %v4279, 16
    %v4401 = vrot.slane %v4399, 4
    %v4402 = vshll.u32 %v4279, 16
    %v4404 = vrot.slane %v4402, 5
    %v4405 = vor.u32 %v4401, %v4404
    %v4406 = vsel %vm4291, %v4387, %v4405
    %v4408 = vshrl.u32 %v4280, 16
    %v4410 = vrot.slane %v4408, 4
    %v4411 = vshll.u32 %v4280, 16
    %v4413 = vrot.slane %v4411, 5
    %v4414 = vor.u32 %v4410, %v4413
    %v4415 = vsel %vm4291, %v4396, %v4414
    %v4417 = vshrl.u32 %v4281, 16
    %v4419 = vrot.slane %v4417, 4
    %v4420 = vshll.u32 %v4281, 16
    %v4422 = vrot.slane %v4420, 5
    %v4423 = vor.u32 %v4419, %v4422
    %v4424 = vsel %vm4291, %v4405, %v4423
    %v4426 = vshrl.u32 %v4282, 16
    %v4428 = vrot.slane %v4426, 4
    %v4429 = vshll.u32 %v4282, 16
    %v4431 = vrot.slane %v4429, 5
    %v4432 = vor.u32 %v4428, %v4431
    %v4433 = vsel %vm4291, %v4414, %v4432
    %4434 = vrot.lane.b32.xlu0 %v4299, 16
    %v4435 = vpop.permute.xlu0 %4434
    %4436 = vrot.lane.b32.xlu0 %v4307, 16
    %v4437 = vpop.permute.xlu0 %4436
    %4438 = vrot.lane.b32.xlu0 %v4316, 16
    %v4439 = vpop.permute.xlu0 %4438
    %4440 = vrot.lane.b32.xlu0 %v4325, 16
    %v4441 = vpop.permute.xlu0 %4440
    %4442 = vrot.lane.b32.xlu0 %v4334, 16
    %v4443 = vpop.permute.xlu0 %4442
    %4444 = vrot.lane.b32.xlu0 %v4343, 16
    %v4445 = vpop.permute.xlu0 %4444
    %4446 = vrot.lane.b32.xlu0 %v4352, 16
    %v4447 = vpop.permute.xlu0 %4446
    %4448 = vrot.lane.b32.xlu0 %v4361, 16
    %v4449 = vpop.permute.xlu0 %4448
    %4450 = vrot.lane.b32.xlu0 %v4370, 16
    %v4451 = vpop.permute.xlu0 %4450
    %4452 = vrot.lane.b32.xlu0 %v4379, 16
    %v4453 = vpop.permute.xlu0 %4452
    %4454 = vrot.lane.b32.xlu0 %v4388, 16
    %v4455 = vpop.permute.xlu0 %4454
    %4456 = vrot.lane.b32.xlu0 %v4397, 16
    %v4457 = vpop.permute.xlu0 %4456
    %4458 = vrot.lane.b32.xlu0 %v4406, 16
    %v4459 = vpop.permute.xlu0 %4458
    %4460 = vrot.lane.b32.xlu0 %v4415, 16
    %v4461 = vpop.permute.xlu0 %4460
    %4462 = vrot.lane.b32.xlu0 %v4424, 16
    %v4463 = vpop.permute.xlu0 %4462
    %4464 = vrot.lane.b32.xlu0 %v4433, 16
    %v4465 = vpop.permute.xlu0 %4464
    %4466 = vrot.lane.b32.xlu0 %v4423, 16
    %v4467 = vpop.permute.xlu0 %4466
    %4468 = vrot.lane.b32.xlu0 %v4432, 16
    %v4469 = vpop.permute.xlu0 %4468
    %vm4470 = vcmask 130048
    %v4471 = vsel %vm4470, %v4435, %v4437
    %v4472 = vsel %vm4470, %v4439, %v4441
    %v4473 = vsel %vm4470, %v4443, %v4445
    %v4474 = vsel %vm4470, %v4447, %v4449
    %v4475 = vsel %vm4470, %v4451, %v4453
    %v4476 = vsel %vm4470, %v4455, %v4457
    %v4477 = vsel %vm4470, %v4459, %v4461
    %v4478 = vsel %vm4470, %v4463, %v4465
    %v4479 = vsel %vm4470, %v4467, %v4469
    %vm4498 = vcmask 1042432
    %v4499 = vrot.slane %v4287, 5
    %v4500 = vrot.slane %v4288, 5
    %v4501 = vrot.slane %v4269, 5
    %v4502 = vsel %vm4498, %v4499, %v4501
    %v4503 = vrot.slane %v4270, 5
    %v4504 = vsel %vm4498, %v4500, %v4503
    %v4505 = vrot.slane %v4271, 5
    %v4506 = vsel %vm4498, %v4501, %v4505
    %v4507 = vrot.slane %v4272, 5
    %v4508 = vsel %vm4498, %v4503, %v4507
    %v4509 = vrot.slane %v4273, 5
    %v4510 = vsel %vm4498, %v4505, %v4509
    %v4511 = vrot.slane %v4274, 5
    %v4512 = vsel %vm4498, %v4507, %v4511
    %v4513 = vrot.slane %v4275, 5
    %v4514 = vsel %vm4498, %v4509, %v4513
    %v4515 = vrot.slane %v4276, 5
    %v4516 = vsel %vm4498, %v4511, %v4515
    %v4517 = vrot.slane %v4277, 5
    %v4518 = vsel %vm4498, %v4513, %v4517
    %v4519 = vrot.slane %v4278, 5
    %v4520 = vsel %vm4498, %v4515, %v4519
    %v4521 = vrot.slane %v4279, 5
    %v4522 = vsel %vm4498, %v4517, %v4521
    %v4523 = vrot.slane %v4280, 5
    %v4524 = vsel %vm4498, %v4519, %v4523
    %v4525 = vrot.slane %v4281, 5
    %v4526 = vsel %vm4498, %v4521, %v4525
    %v4527 = vrot.slane %v4282, 5
    %v4528 = vsel %vm4498, %v4523, %v4527
    %v4529 = vrot.slane %v4289, 5
    %v4530 = vsel %vm4498, %v4525, %v4529
    %v4531 = vrot.slane %v4290, 5
    %v4532 = vsel %vm4498, %v4527, %v4531
    %4533 = vrot.lane.b32.xlu0 %v4499, 32
    %v4534 = vpop.permute.xlu0 %4533
    %4535 = vrot.lane.b32.xlu0 %v4500, 32
    %v4536 = vpop.permute.xlu0 %4535
    %4537 = vrot.lane.b32.xlu0 %v4502, 32
    %v4538 = vpop.permute.xlu0 %4537
    %4539 = vrot.lane.b32.xlu0 %v4504, 32
    %v4540 = vpop.permute.xlu0 %4539
    %4541 = vrot.lane.b32.xlu0 %v4506, 32
    %v4542 = vpop.permute.xlu0 %4541
    %4543 = vrot.lane.b32.xlu0 %v4508, 32
    %v4544 = vpop.permute.xlu0 %4543
    %4545 = vrot.lane.b32.xlu0 %v4510, 32
    %v4546 = vpop.permute.xlu0 %4545
    %4547 = vrot.lane.b32.xlu0 %v4512, 32
    %v4548 = vpop.permute.xlu0 %4547
    %4549 = vrot.lane.b32.xlu0 %v4514, 32
    %v4550 = vpop.permute.xlu0 %4549
    %4551 = vrot.lane.b32.xlu0 %v4516, 32
    %v4552 = vpop.permute.xlu0 %4551
    %4553 = vrot.lane.b32.xlu0 %v4518, 32
    %v4554 = vpop.permute.xlu0 %4553
    %4555 = vrot.lane.b32.xlu0 %v4520, 32
    %v4556 = vpop.permute.xlu0 %4555
    %4557 = vrot.lane.b32.xlu0 %v4522, 32
    %v4558 = vpop.permute.xlu0 %4557
    %4559 = vrot.lane.b32.xlu0 %v4524, 32
    %v4560 = vpop.permute.xlu0 %4559
    %4561 = vrot.lane.b32.xlu0 %v4526, 32
    %v4562 = vpop.permute.xlu0 %4561
    %4563 = vrot.lane.b32.xlu0 %v4528, 32
    %v4564 = vpop.permute.xlu0 %4563
    %4565 = vrot.lane.b32.xlu0 %v4530, 32
    %v4566 = vpop.permute.xlu0 %4565
    %4567 = vrot.lane.b32.xlu0 %v4532, 32
    %v4568 = vpop.permute.xlu0 %4567
    %vm4569 = vcmask 261120
    %v4570 = vsel %vm4569, %v4534, %v4536
    %v4571 = vsel %vm4569, %v4538, %v4540
    %v4572 = vsel %vm4569, %v4542, %v4544
    %v4573 = vsel %vm4569, %v4546, %v4548
    %v4574 = vsel %vm4569, %v4550, %v4552
    %v4575 = vsel %vm4569, %v4554, %v4556
    %v4576 = vsel %vm4569, %v4558, %v4560
    %v4577 = vsel %vm4569, %v4562, %v4564
    %v4578 = vsel %vm4569, %v4566, %v4568
    %v4581 = vsel %vm425, %v4248, %v4435
    %v4584 = vsel %vm425, %v4250, %v4439
    %v4587 = vsel %vm425, %v4252, %v4443
    %v4590 = vsel %vm425, %v4254, %v4447
    %v4593 = vsel %vm425, %v4256, %v4451
    %v4596 = vsel %vm425, %v4258, %v4455
    %v4599 = vsel %vm425, %v4260, %v4459
    %v4602 = vsel %vm425, %v4262, %v4463
    %v4605 = vsel %vm425, %v4264, %v4467
    %v4608 = vsel %vm730, %v4471, %v4534
    %v4611 = vsel %vm730, %v4472, %v4538
    %v4614 = vsel %vm730, %v4473, %v4542
    %v4617 = vsel %vm730, %v4474, %v4546
    %v4620 = vsel %vm730, %v4475, %v4550
    %v4623 = vsel %vm730, %v4476, %v4554
    %v4626 = vsel %vm730, %v4477, %v4558
    %v4629 = vsel %vm730, %v4478, %v4562
    %v4632 = vsel %vm730, %v4479, %v4566
    %v4633 = vld [vmem:[#allocation4] sm:$0xff]
    %v4634 = vld [vmem:[#allocation4 + $0x8] sm:$0xff]
    %v4635 = vld [vmem:[#allocation4 + $0x10] sm:$0xff]
    %v4636 = vld [vmem:[#allocation4 + $0x18] sm:$0xff]
    %v4637 = vld [vmem:[#allocation4 + $0x20] sm:$0xff]
    %v4638 = vld [vmem:[#allocation4 + $0x28] sm:$0xff]
    %v4639 = vld [vmem:[#allocation4 + $0x30] sm:$0xff]
    %v4640 = vld [vmem:[#allocation4 + $0x38] sm:$0xff]
    %v4641 = vld [vmem:[#allocation4 + $0x40] sm:$0xff]
    %v4642 = vld [vmem:[#allocation4 + $0x48] sm:$0xff]
    %v4643 = vld [vmem:[#allocation4 + $0x50] sm:$0xff]
    %v4644 = vld [vmem:[#allocation4 + $0x58] sm:$0xff]
    %v4645 = vld [vmem:[#allocation4 + $0x60] sm:$0xff]
    %v4646 = vld [vmem:[#allocation4 + $0x68] sm:$0xff]
    %v4647 = vld [vmem:[#allocation4 + $0x70] sm:$0xff]
    %v4648 = vld [vmem:[#allocation4 + $0x78] sm:$0xff]
    %v4649 = vld [vmem:[#allocation4 + $0x80] sm:$0xff]
    %v4650 = vld [vmem:[#allocation4 + $0x88] sm:$0xff]
    %v4651 = vld [vmem:[#allocation4 + $0x90] sm:$0xff]
    %v4652 = vld [vmem:[#allocation4 + $0x98] sm:$0xff]
    %v4653 = vld [vmem:[#allocation4 + $0xa0] sm:$0xff]
    %v4654 = vld [vmem:[#allocation4 + $0xa8] sm:$0xff]
    %v4655 = vld [vmem:[#allocation4 + $0xb0] sm:$0xff]
    %v4656 = vld [vmem:[#allocation4 + $0xb8] sm:$0xff]
    %v4657 = vld [vmem:[#allocation4 + $0xc0] sm:$0xff]
    %v4658 = vld [vmem:[#allocation4 + $0xc8] sm:$0xff]
    %v4659 = vld [vmem:[#allocation4 + $0xd0] sm:$0xff]
    %v4660 = vld [vmem:[#allocation4 + $0xd8] sm:$0xff]
    %v4661 = vld [vmem:[#allocation4 + $0xe0] sm:$0xff]
    %v4662 = vld [vmem:[#allocation4 + $0xe8] sm:$0xff]
    %v4663 = vld [vmem:[#allocation4 + $0xf0] sm:$0xff]
    %v4664 = vld [vmem:[#allocation4 + $0xf8] sm:$0xff]
    %v4665 = vld [vmem:[#allocation4 + $0x100] sm:$0xff]
    %v4666 = vld [vmem:[#allocation4 + $0x108] sm:$0xff]
    %v4667 = vld [vmem:[#allocation4 + $0x110] sm:$0xff]
    %v4668 = vld [vmem:[#allocation4 + $0x118] sm:$0xff]
    %v4669 = vld [vmem:[#allocation4 + $0x120] sm:$0xff]
    %v4670 = vld [vmem:[#allocation4 + $0x128] sm:$0xff]
    %v4671 = vld [vmem:[#allocation4 + $0x130] sm:$0xff]
    %v4672 = vld [vmem:[#allocation4 + $0x138] sm:$0xff]
    %v4673 = vld [vmem:[#allocation4 + $0x140] sm:$0xff]
    %v4674 = vld [vmem:[#allocation4 + $0x148] sm:$0xff]
    %v4675 = vld [vmem:[#allocation4 + $0x150] sm:$0xff]
    %v4676 = vld [vmem:[#allocation4 + $0x158] sm:$0xff]
    %v4677 = vld [vmem:[#allocation4 + $0x160] sm:$0xff]
    %v4678 = vld [vmem:[#allocation4 + $0x168] sm:$0xff]
    %v4679 = vld [vmem:[#allocation4 + $0x170] sm:$0xff]
    %v4680 = vld [vmem:[#allocation4 + $0x178] sm:$0xff]
    %v4681 = vld [vmem:[#allocation4 + $0x180] sm:$0xff]
    %v4682 = vld [vmem:[#allocation4 + $0x188] sm:$0xff]
    %v4683 = vld [vmem:[#allocation4 + $0x190] sm:$0xff]
    %v4684 = vld [vmem:[#allocation4 + $0x198] sm:$0xff]
    %v4685 = vld [vmem:[#allocation4 + $0x1a0] sm:$0xff]
    %v4686 = vld [vmem:[#allocation4 + $0x1a8] sm:$0xff]
    %s4687 = scalar_lea.vmem %s15, 1
    %v4688 = vld [vmem:[%s4687] ss:$4 sm:$0x3]
    %v4690 = vlaneseq
    %v4691 = vshrl.u32 %v4690, 7
    %v4692 = vsub.s32 0, %v4691
    %v4693 = vrot.slane %v4688, %v4692
    %v4694 = vlaneseq
    %v4695 = vshrl.u32 %v4694, 7
    %v4696 = vsub.s32 1, %v4695
    %v4697 = vrot.slane %v4688, %v4696
    %vm4700 = vsmask.f32 4352
    %v4702 = vshrl.u32 %v4247, 16
    %v4704 = vrot.slane %v4702, 3
    %v4705 = vshll.u32 %v4247, 16
    %v4707 = vrot.slane %v4705, 4
    %v4708 = vor.u32 %v4704, %v4707
    %v4710 = vshrl.u32 %v4249, 16
    %v4712 = vrot.slane %v4710, 3
    %v4713 = vshll.u32 %v4249, 16
    %v4715 = vrot.slane %v4713, 4
    %v4716 = vor.u32 %v4712, %v4715
    %v4717 = vsel %vm4700, %v4708, %v4716
    %v4718 = vshrl.u32 %v4581, 16
    %v4720 = vrot.slane %v4718, 3
    %v4721 = vshll.u32 %v4581, 16
    %v4723 = vrot.slane %v4721, 4
    %v4724 = vor.u32 %v4720, %v4723
    %v4725 = vshrl.u32 %v4584, 16
    %v4727 = vrot.slane %v4725, 3
    %v4728 = vshll.u32 %v4584, 16
    %v4730 = vrot.slane %v4728, 4
    %v4731 = vor.u32 %v4727, %v4730
    %v4732 = vsel %vm4700, %v4724, %v4731
    %v4733 = vshrl.u32 %v4608, 16
    %v4735 = vrot.slane %v4733, 3
    %v4736 = vshll.u32 %v4608, 16
    %v4738 = vrot.slane %v4736, 4
    %v4739 = vor.u32 %v4735, %v4738
    %v4740 = vshrl.u32 %v4611, 16
    %v4742 = vrot.slane %v4740, 3
    %v4743 = vshll.u32 %v4611, 16
    %v4745 = vrot.slane %v4743, 4
    %v4746 = vor.u32 %v4742, %v4745
    %v4747 = vsel %vm4700, %v4739, %v4746
    %v4749 = vshrl.u32 %v4570, 16
    %v4751 = vrot.slane %v4749, 3
    %v4752 = vshll.u32 %v4570, 16
    %v4754 = vrot.slane %v4752, 4
    %v4755 = vor.u32 %v4751, %v4754
    %v4757 = vshrl.u32 %v4571, 16
    %v4759 = vrot.slane %v4757, 3
    %v4760 = vshll.u32 %v4571, 16
    %v4762 = vrot.slane %v4760, 4
    %v4763 = vor.u32 %v4759, %v4762
    %v4764 = vsel %vm4700, %v4755, %v4763
    %v4766 = vshrl.u32 %v4251, 16
    %v4768 = vrot.slane %v4766, 3
    %v4769 = vshll.u32 %v4251, 16
    %v4771 = vrot.slane %v4769, 4
    %v4772 = vor.u32 %v4768, %v4771
    %v4773 = vsel %vm4700, %v4716, %v4772
    %v4774 = vshrl.u32 %v4587, 16
    %v4776 = vrot.slane %v4774, 3
    %v4777 = vshll.u32 %v4587, 16
    %v4779 = vrot.slane %v4777, 4
    %v4780 = vor.u32 %v4776, %v4779
    %v4781 = vsel %vm4700, %v4731, %v4780
    %v4782 = vshrl.u32 %v4614, 16
    %v4784 = vrot.slane %v4782, 3
    %v4785 = vshll.u32 %v4614, 16
    %v4787 = vrot.slane %v4785, 4
    %v4788 = vor.u32 %v4784, %v4787
    %v4789 = vsel %vm4700, %v4746, %v4788
    %v4791 = vshrl.u32 %v4572, 16
    %v4793 = vrot.slane %v4791, 3
    %v4794 = vshll.u32 %v4572, 16
    %v4796 = vrot.slane %v4794, 4
    %v4797 = vor.u32 %v4793, %v4796
    %v4798 = vsel %vm4700, %v4763, %v4797
    %v4800 = vshrl.u32 %v4253, 16
    %v4802 = vrot.slane %v4800, 3
    %v4803 = vshll.u32 %v4253, 16
    %v4805 = vrot.slane %v4803, 4
    %v4806 = vor.u32 %v4802, %v4805
    %v4807 = vsel %vm4700, %v4772, %v4806
    %v4808 = vshrl.u32 %v4590, 16
    %v4810 = vrot.slane %v4808, 3
    %v4811 = vshll.u32 %v4590, 16
    %v4813 = vrot.slane %v4811, 4
    %v4814 = vor.u32 %v4810, %v4813
    %v4815 = vsel %vm4700, %v4780, %v4814
    %v4816 = vshrl.u32 %v4617, 16
    %v4818 = vrot.slane %v4816, 3
    %v4819 = vshll.u32 %v4617, 16
    %v4821 = vrot.slane %v4819, 4
    %v4822 = vor.u32 %v4818, %v4821
    %v4823 = vsel %vm4700, %v4788, %v4822
    %v4825 = vshrl.u32 %v4573, 16
    %v4827 = vrot.slane %v4825, 3
    %v4828 = vshll.u32 %v4573, 16
    %v4830 = vrot.slane %v4828, 4
    %v4831 = vor.u32 %v4827, %v4830
    %v4832 = vsel %vm4700, %v4797, %v4831
    %v4834 = vshrl.u32 %v4255, 16
    %v4836 = vrot.slane %v4834, 3
    %v4837 = vshll.u32 %v4255, 16
    %v4839 = vrot.slane %v4837, 4
    %v4840 = vor.u32 %v4836, %v4839
    %v4841 = vsel %vm4700, %v4806, %v4840
    %v4842 = vshrl.u32 %v4593, 16
    %v4844 = vrot.slane %v4842, 3
    %v4845 = vshll.u32 %v4593, 16
    %v4847 = vrot.slane %v4845, 4
    %v4848 = vor.u32 %v4844, %v4847
    %v4849 = vsel %vm4700, %v4814, %v4848
    %v4850 = vshrl.u32 %v4620, 16
    %v4852 = vrot.slane %v4850, 3
    %v4853 = vshll.u32 %v4620, 16
    %v4855 = vrot.slane %v4853, 4
    %v4856 = vor.u32 %v4852, %v4855
    %v4857 = vsel %vm4700, %v4822, %v4856
    %v4859 = vshrl.u32 %v4574, 16
    %v4861 = vrot.slane %v4859, 3
    %v4862 = vshll.u32 %v4574, 16
    %v4864 = vrot.slane %v4862, 4
    %v4865 = vor.u32 %v4861, %v4864
    %v4866 = vsel %vm4700, %v4831, %v4865
    %v4868 = vshrl.u32 %v4257, 16
    %v4870 = vrot.slane %v4868, 3
    %v4871 = vshll.u32 %v4257, 16
    %v4873 = vrot.slane %v4871, 4
    %v4874 = vor.u32 %v4870, %v4873
    %v4875 = vsel %vm4700, %v4840, %v4874
    %v4876 = vshrl.u32 %v4596, 16
    %v4878 = vrot.slane %v4876, 3
    %v4879 = vshll.u32 %v4596, 16
    %v4881 = vrot.slane %v4879, 4
    %v4882 = vor.u32 %v4878, %v4881
    %v4883 = vsel %vm4700, %v4848, %v4882
    %v4884 = vshrl.u32 %v4623, 16
    %v4886 = vrot.slane %v4884, 3
    %v4887 = vshll.u32 %v4623, 16
    %v4889 = vrot.slane %v4887, 4
    %v4890 = vor.u32 %v4886, %v4889
    %v4891 = vsel %vm4700, %v4856, %v4890
    %v4893 = vshrl.u32 %v4575, 16
    %v4895 = vrot.slane %v4893, 3
    %v4896 = vshll.u32 %v4575, 16
    %v4898 = vrot.slane %v4896, 4
    %v4899 = vor.u32 %v4895, %v4898
    %v4900 = vsel %vm4700, %v4865, %v4899
    %v4902 = vshrl.u32 %v4259, 16
    %v4904 = vrot.slane %v4902, 3
    %v4905 = vshll.u32 %v4259, 16
    %v4907 = vrot.slane %v4905, 4
    %v4908 = vor.u32 %v4904, %v4907
    %v4909 = vsel %vm4700, %v4874, %v4908
    %v4910 = vshrl.u32 %v4599, 16
    %v4912 = vrot.slane %v4910, 3
    %v4913 = vshll.u32 %v4599, 16
    %v4915 = vrot.slane %v4913, 4
    %v4916 = vor.u32 %v4912, %v4915
    %v4917 = vsel %vm4700, %v4882, %v4916
    %v4918 = vshrl.u32 %v4626, 16
    %v4920 = vrot.slane %v4918, 3
    %v4921 = vshll.u32 %v4626, 16
    %v4923 = vrot.slane %v4921, 4
    %v4924 = vor.u32 %v4920, %v4923
    %v4925 = vsel %vm4700, %v4890, %v4924
    %v4927 = vshrl.u32 %v4576, 16
    %v4929 = vrot.slane %v4927, 3
    %v4930 = vshll.u32 %v4576, 16
    %v4932 = vrot.slane %v4930, 4
    %v4933 = vor.u32 %v4929, %v4932
    %v4934 = vsel %vm4700, %v4899, %v4933
    %v4936 = vshrl.u32 %v4261, 16
    %v4938 = vrot.slane %v4936, 3
    %v4939 = vshll.u32 %v4261, 16
    %v4941 = vrot.slane %v4939, 4
    %v4942 = vor.u32 %v4938, %v4941
    %v4943 = vsel %vm4700, %v4908, %v4942
    %v4944 = vshrl.u32 %v4602, 16
    %v4946 = vrot.slane %v4944, 3
    %v4947 = vshll.u32 %v4602, 16
    %v4949 = vrot.slane %v4947, 4
    %v4950 = vor.u32 %v4946, %v4949
    %v4951 = vsel %vm4700, %v4916, %v4950
    %v4952 = vshrl.u32 %v4629, 16
    %v4954 = vrot.slane %v4952, 3
    %v4955 = vshll.u32 %v4629, 16
    %v4957 = vrot.slane %v4955, 4
    %v4958 = vor.u32 %v4954, %v4957
    %v4959 = vsel %vm4700, %v4924, %v4958
    %v4961 = vshrl.u32 %v4577, 16
    %v4963 = vrot.slane %v4961, 3
    %v4964 = vshll.u32 %v4577, 16
    %v4966 = vrot.slane %v4964, 4
    %v4967 = vor.u32 %v4963, %v4966
    %v4968 = vsel %vm4700, %v4933, %v4967
    %v4970 = vshrl.u32 %v4263, 16
    %v4972 = vrot.slane %v4970, 3
    %v4973 = vshll.u32 %v4263, 16
    %v4975 = vrot.slane %v4973, 4
    %v4976 = vor.u32 %v4972, %v4975
    %v4977 = vsel %vm4700, %v4942, %v4976
    %v4978 = vshrl.u32 %v4605, 16
    %v4980 = vrot.slane %v4978, 3
    %v4981 = vshll.u32 %v4605, 16
    %v4983 = vrot.slane %v4981, 4
    %v4984 = vor.u32 %v4980, %v4983
    %v4985 = vsel %vm4700, %v4950, %v4984
    %v4986 = vshrl.u32 %v4632, 16
    %v4988 = vrot.slane %v4986, 3
    %v4989 = vshll.u32 %v4632, 16
    %v4991 = vrot.slane %v4989, 4
    %v4992 = vor.u32 %v4988, %v4991
    %v4993 = vsel %vm4700, %v4958, %v4992
    %v4995 = vshrl.u32 %v4578, 16
    %v4997 = vrot.slane %v4995, 3
    %v4998 = vshll.u32 %v4578, 16
    %v5000 = vrot.slane %v4998, 4
    %v5001 = vor.u32 %v4997, %v5000
    %v5002 = vsel %vm4700, %v4967, %v5001
    %v5081 = vunpack.c.l.b16 %v4633
    %v5082 = vunpack.c.h.b16 %v4633
    %v5083 = vunpack.c.l.b16 %v4634
    %v5084 = vunpack.c.h.b16 %v4634
    %v5085 = vunpack.c.l.b16 %v4635
    %v5086 = vunpack.c.h.b16 %v4635
    %v5087 = vunpack.c.l.b16 %v4636
    %v5088 = vunpack.c.h.b16 %v4636
    %v5089 = vunpack.c.l.b16 %v4637
    %v5090 = vunpack.c.h.b16 %v4637
    %v5091 = vunpack.c.l.b16 %v4638
    %v5092 = vunpack.c.h.b16 %v4638
    %v5093 = vunpack.c.l.b16 %v4639
    %v5094 = vunpack.c.h.b16 %v4639
    %v5095 = vunpack.c.l.b16 %v4640
    %v5096 = vunpack.c.h.b16 %v4640
    %v5097 = vunpack.c.l.b16 %v4641
    %v5098 = vunpack.c.h.b16 %v4641
    %v5099 = vunpack.c.l.b16 %v4642
    %v5100 = vunpack.c.h.b16 %v4642
    %v5101 = vunpack.c.l.b16 %v4643
    %v5102 = vunpack.c.h.b16 %v4643
    %v5103 = vunpack.c.l.b16 %v4644
    %v5104 = vunpack.c.h.b16 %v4644
    %v5105 = vunpack.c.l.b16 %v4645
    %v5106 = vunpack.c.h.b16 %v4645
    %v5107 = vunpack.c.l.b16 %v4646
    %v5108 = vunpack.c.h.b16 %v4646
    %v5109 = vunpack.c.l.b16 %v4647
    %v5110 = vunpack.c.h.b16 %v4647
    %v5111 = vunpack.c.l.b16 %v4648
    %v5112 = vunpack.c.h.b16 %v4648
    %v5113 = vunpack.c.l.b16 %v4649
    %v5114 = vunpack.c.h.b16 %v4649
    %v5115 = vunpack.c.l.b16 %v4650
    %v5116 = vunpack.c.h.b16 %v4650
    %v5117 = vunpack.c.l.b16 %v4651
    %v5118 = vunpack.c.h.b16 %v4651
    %v5119 = vunpack.c.l.b16 %v4652
    %v5120 = vunpack.c.h.b16 %v4652
    %v5121 = vunpack.c.l.b16 %v4653
    %v5122 = vunpack.c.h.b16 %v4653
    %v5123 = vunpack.c.l.b16 %v4654
    %v5124 = vunpack.c.h.b16 %v4654
    %v5125 = vunpack.c.l.b16 %v4655
    %v5126 = vunpack.c.h.b16 %v4655
    %v5127 = vunpack.c.l.b16 %v4656
    %v5128 = vunpack.c.h.b16 %v4656
    %v5129 = vunpack.c.l.b16 %v4657
    %v5130 = vunpack.c.h.b16 %v4657
    %v5131 = vunpack.c.l.b16 %v4658
    %v5132 = vunpack.c.h.b16 %v4658
    %v5133 = vunpack.c.l.b16 %v4659
    %v5134 = vunpack.c.h.b16 %v4659
    %v5135 = vunpack.c.l.b16 %v4660
    %v5136 = vunpack.c.h.b16 %v4660
    %v5137 = vunpack.c.l.b16 %v4661
    %v5138 = vunpack.c.h.b16 %v4661
    %v5139 = vunpack.c.l.b16 %v4662
    %v5140 = vunpack.c.h.b16 %v4662
    %v5141 = vunpack.c.l.b16 %v4663
    %v5142 = vunpack.c.h.b16 %v4663
    %v5143 = vunpack.c.l.b16 %v4664
    %v5144 = vunpack.c.h.b16 %v4664
    %v5145 = vunpack.c.l.b16 %v4665
    %v5146 = vunpack.c.h.b16 %v4665
    %v5147 = vunpack.c.l.b16 %v4666
    %v5148 = vunpack.c.h.b16 %v4666
    %v5149 = vunpack.c.l.b16 %v4667
    %v5150 = vunpack.c.h.b16 %v4667
    %v5151 = vunpack.c.l.b16 %v4668
    %v5152 = vunpack.c.h.b16 %v4668
    %v5153 = vunpack.c.l.b16 %v4669
    %v5154 = vunpack.c.h.b16 %v4669
    %v5155 = vunpack.c.l.b16 %v4670
    %v5156 = vunpack.c.h.b16 %v4670
    %v5157 = vunpack.c.l.b16 %v4671
    %v5158 = vunpack.c.h.b16 %v4671
    %v5159 = vunpack.c.l.b16 %v4672
    %v5160 = vunpack.c.h.b16 %v4672
    %v5161 = vunpack.c.l.b16 %v4673
    %v5162 = vunpack.c.h.b16 %v4673
    %v5163 = vunpack.c.l.b16 %v4674
    %v5164 = vunpack.c.h.b16 %v4674
    %v5165 = vunpack.c.l.b16 %v4675
    %v5166 = vunpack.c.h.b16 %v4675
    %v5167 = vunpack.c.l.b16 %v4676
    %v5168 = vunpack.c.h.b16 %v4676
    %v5169 = vunpack.c.l.b16 %v4677
    %v5170 = vunpack.c.h.b16 %v4677
    %v5171 = vunpack.c.l.b16 %v4678
    %v5172 = vunpack.c.h.b16 %v4678
    %v5173 = vunpack.c.l.b16 %v4679
    %v5174 = vunpack.c.h.b16 %v4679
    %v5175 = vunpack.c.l.b16 %v4680
    %v5176 = vunpack.c.h.b16 %v4680
    %v5177 = vunpack.c.l.b16 %v4681
    %v5178 = vunpack.c.h.b16 %v4681
    %v5179 = vunpack.c.l.b16 %v4682
    %v5180 = vunpack.c.h.b16 %v4682
    %v5181 = vunpack.c.l.b16 %v4683
    %v5182 = vunpack.c.h.b16 %v4683
    %v5183 = vunpack.c.l.b16 %v4684
    %v5184 = vunpack.c.h.b16 %v4684
    %v5185 = vunpack.c.l.b16 %v4685
    %v5186 = vunpack.c.h.b16 %v4685
    %v5187 = vunpack.c.l.b16 %v4686
    %v5188 = vunpack.c.h.b16 %v4686
    %v5189 = vpack.c.b16 %v5083, %v5081
    %v5190 = vpack.c.b16 %v5084, %v5082
    %v5191 = vpack.c.b16 %v5087, %v5085
    %v5192 = vpack.c.b16 %v5088, %v5086
    %v5193 = vpack.c.b16 %v5091, %v5089
    %v5194 = vpack.c.b16 %v5092, %v5090
    %v5195 = vpack.c.b16 %v5095, %v5093
    %v5196 = vpack.c.b16 %v5096, %v5094
    %v5197 = vpack.c.b16 %v5099, %v5097
    %v5198 = vpack.c.b16 %v5100, %v5098
    %v5199 = vpack.c.b16 %v5103, %v5101
    %v5200 = vpack.c.b16 %v5104, %v5102
    %v5201 = vpack.c.b16 %v5107, %v5105
    %v5202 = vpack.c.b16 %v5108, %v5106
    %v5203 = vpack.c.b16 %v5111, %v5109
    %v5204 = vpack.c.b16 %v5112, %v5110
    %v5205 = vpack.c.b16 %v5115, %v5113
    %v5206 = vpack.c.b16 %v5116, %v5114
    %v5207 = vpack.c.b16 %v5119, %v5117
    %v5208 = vpack.c.b16 %v5120, %v5118
    %v5209 = vpack.c.b16 %v5123, %v5121
    %v5210 = vpack.c.b16 %v5124, %v5122
    %v5211 = vpack.c.b16 %v5127, %v5125
    %v5212 = vpack.c.b16 %v5128, %v5126
    %v5213 = vpack.c.b16 %v5131, %v5129
    %v5214 = vpack.c.b16 %v5132, %v5130
    %v5215 = vpack.c.b16 %v5135, %v5133
    %v5216 = vpack.c.b16 %v5136, %v5134
    %v5217 = vpack.c.b16 %v5139, %v5137
    %v5218 = vpack.c.b16 %v5140, %v5138
    %v5219 = vpack.c.b16 %v5143, %v5141
    %v5220 = vpack.c.b16 %v5144, %v5142
    %v5221 = vpack.c.b16 %v5147, %v5145
    %v5222 = vpack.c.b16 %v5148, %v5146
    %v5223 = vpack.c.b16 %v5151, %v5149
    %v5224 = vpack.c.b16 %v5152, %v5150
    %v5225 = vpack.c.b16 %v5155, %v5153
    %v5226 = vpack.c.b16 %v5156, %v5154
    %v5227 = vpack.c.b16 %v5159, %v5157
    %v5228 = vpack.c.b16 %v5160, %v5158
    %v5229 = vpack.c.b16 %v5163, %v5161
    %v5230 = vpack.c.b16 %v5164, %v5162
    %v5231 = vpack.c.b16 %v5167, %v5165
    %v5232 = vpack.c.b16 %v5168, %v5166
    %v5233 = vpack.c.b16 %v5171, %v5169
    %v5234 = vpack.c.b16 %v5172, %v5170
    %v5235 = vpack.c.b16 %v5175, %v5173
    %v5236 = vpack.c.b16 %v5176, %v5174
    %v5237 = vpack.c.b16 %v5179, %v5177
    %v5238 = vpack.c.b16 %v5180, %v5178
    %v5239 = vpack.c.b16 %v5183, %v5181
    %v5240 = vpack.c.b16 %v5184, %v5182
    %v5241 = vpack.c.b16 %v5187, %v5185
    %v5242 = vpack.c.b16 %v5188, %v5186
    %vm5297 = vcmask 392192
    %v5299 = vsel %vm5297, %v4764, 0
    %v5302 = vsel %vm5297, %v4798, 0
    %v5305 = vsel %vm5297, %v4832, 0
    %v5308 = vsel %vm5297, %v4866, 0
    %v5311 = vsel %vm5297, %v4900, 0
    %v5314 = vsel %vm5297, %v4934, 0
    %v5317 = vsel %vm5297, %v4968, 0
    %v5320 = vsel %vm5297, %v5002, 0
    %5322 = vmatprep.subr.bf16.mxu0 %v5204
    %5323 = vmatpush1.bf16.msra.mxu0 %v5203
    %5324 = vmatprep.subr.bf16.mxu0 %v5202
    %5325 = vmatpush1.bf16.msra.mxu0 %v5201
    %5326 = vmatprep.subr.bf16.mxu0 %v5200
    %5327 = vmatpush1.bf16.msra.mxu0 %v5199
    %5328 = vmatprep.subr.bf16.mxu0 %v5198
    %5329 = vmatpush1.bf16.msra.mxu0 %v5197
    %5330 = vmatprep.subr.bf16.mxu0 %v5196
    %5331 = vmatpush1.bf16.msra.mxu0 %v5195
    %5332 = vmatprep.subr.bf16.mxu0 %v5194
    %5333 = vmatpush1.bf16.msra.mxu0 %v5193
    %5334 = vmatprep.subr.bf16.mxu0 %v5192
    %5335 = vmatpush1.bf16.msra.mxu0 %v5191
    %5336 = vmatprep.subr.bf16.mxu0 %v5190
    %5337 = vmatpush1.bf16.msra.mxu0 %v5189
    %5338 = vmatprep.subr.bf16.mxu0 %v5220
    %5339 = vmatpush2.bf16.msra.mxu0 %v5219
    %5340 = vmatprep.subr.bf16.mxu0 %v5218
    %5341 = vmatpush2.bf16.msra.mxu0 %v5217
    %5342 = vmatprep.subr.bf16.mxu0 %v5216
    %5343 = vmatpush2.bf16.msra.mxu0 %v5215
    %5344 = vmatprep.subr.bf16.mxu0 %v5214
    %5345 = vmatpush2.bf16.msra.mxu0 %v5213
    %5346 = vmatprep.subr.bf16.mxu0 %v5212
    %5347 = vmatpush2.bf16.msra.mxu0 %v5211
    %5348 = vmatprep.subr.bf16.mxu0 %v5210
    %5349 = vmatpush2.bf16.msra.mxu0 %v5209
    %5350 = vmatprep.subr.bf16.mxu0 %v5208
    %5351 = vmatpush2.bf16.msra.mxu0 %v5207
    %5352 = vmatprep.subr.bf16.mxu0 %v5206
    %5353 = vmatpush2.bf16.msra.mxu0 %v5205
    %5354 = vmatprep.mubr.bf16.mxu0 %v4732
    %5355 = vmatmul.mubr.bf16.gmra.mxu0 %v4717
    %v5356 = vpop.f32.mrf.mxu0
    %v5357 = vpop.f32.mrf.mxu0
    %v5358 = vpop.f32.mrf.mxu0
    %v5359 = vadd.f32 %v4693, %v5358
    %v5360 = vpop.f32.mrf.mxu0
    %v5361 = vadd.f32 %v4697, %v5360
    %5362 = vmatprep.mubr.bf16.mxu0 %v4781
    %5363 = vmatmul.mubr.bf16.gmra.mxu0 %v4773
    %v5364 = vpop.f32.mrf.mxu0
    %v5365 = vadd.f32 %v4693, %v5364
    %v5366 = vpop.f32.mrf.mxu0
    %v5367 = vadd.f32 %v4697, %v5366
    %v5368 = vpop.f32.mrf.mxu0
    %v5369 = vadd.f32 %v4693, %v5368
    %v5370 = vpop.f32.mrf.mxu0
    %v5371 = vadd.f32 %v4697, %v5370
    %5372 = vmatprep.mubr.bf16.mxu0 %v4815
    %5373 = vmatmul.mubr.bf16.gmra.mxu0 %v4807
    %v5374 = vpop.f32.mrf.mxu0
    %v5375 = vpop.f32.mrf.mxu0
    %v5376 = vpop.f32.mrf.mxu0
    %v5377 = vadd.f32 %v4693, %v5376
    %v5378 = vpop.f32.mrf.mxu0
    %v5379 = vadd.f32 %v4697, %v5378
    %5380 = vmatprep.mubr.bf16.mxu0 %v4849
    %5381 = vmatmul.mubr.bf16.gmra.mxu0 %v4841
    %v5382 = vpop.f32.mrf.mxu0
    %v5383 = vadd.f32 %v4693, %v5382
    %v5384 = vpop.f32.mrf.mxu0
    %v5385 = vadd.f32 %v4697, %v5384
    %v5386 = vpop.f32.mrf.mxu0
    %v5387 = vadd.f32 %v4693, %v5386
    %v5388 = vpop.f32.mrf.mxu0
    %v5389 = vadd.f32 %v4697, %v5388
    %5390 = vmatprep.mubr.bf16.mxu0 %v4883
    %5391 = vmatmul.mubr.bf16.gmra.mxu0 %v4875
    %v5392 = vpop.f32.mrf.mxu0
    %v5393 = vpop.f32.mrf.mxu0
    %v5394 = vpop.f32.mrf.mxu0
    %v5395 = vadd.f32 %v4693, %v5394
    %v5396 = vpop.f32.mrf.mxu0
    %v5397 = vadd.f32 %v4697, %v5396
    %5398 = vmatprep.mubr.bf16.mxu0 %v4917
    %5399 = vmatmul.mubr.bf16.gmra.mxu0 %v4909
    %v5400 = vpop.f32.mrf.mxu0
    %v5401 = vadd.f32 %v4693, %v5400
    %v5402 = vpop.f32.mrf.mxu0
    %v5403 = vadd.f32 %v4697, %v5402
    %v5404 = vpop.f32.mrf.mxu0
    %v5405 = vadd.f32 %v4693, %v5404
    %v5406 = vpop.f32.mrf.mxu0
    %v5407 = vadd.f32 %v4697, %v5406
    %5408 = vmatprep.mubr.bf16.mxu0 %v4951
    %5409 = vmatmul.mubr.bf16.gmra.mxu0 %v4943
    %v5410 = vpop.f32.mrf.mxu0
    %v5411 = vpop.f32.mrf.mxu0
    %v5412 = vpop.f32.mrf.mxu0
    %v5413 = vadd.f32 %v4693, %v5412
    %v5414 = vpop.f32.mrf.mxu0
    %v5415 = vadd.f32 %v4697, %v5414
    %5416 = vmatprep.mubr.bf16.mxu0 %v4985
    %5417 = vmatmul.mubr.bf16.gmra.mxu0 %v4977
    %v5418 = vpop.f32.mrf.mxu0
    %v5419 = vadd.f32 %v4693, %v5418
    %v5420 = vpop.f32.mrf.mxu0
    %v5421 = vadd.f32 %v4697, %v5420
    %v5422 = vpop.f32.mrf.mxu0
    %v5423 = vadd.f32 %v4693, %v5422
    %v5424 = vpop.f32.mrf.mxu0
    %v5425 = vadd.f32 %v4697, %v5424
    %5426 = vdwg.mxu0
    %5427 = vmatprep.subr.bf16.mxu0 %v5236
    %5428 = vmatpush1.bf16.msra.mxu0 %v5235
    %5429 = vmatprep.subr.bf16.mxu0 %v5234
    %5430 = vmatpush1.bf16.msra.mxu0 %v5233
    %5431 = vmatprep.subr.bf16.mxu0 %v5232
    %5432 = vmatpush1.bf16.msra.mxu0 %v5231
    %5433 = vmatprep.subr.bf16.mxu0 %v5230
    %5434 = vmatpush1.bf16.msra.mxu0 %v5229
    %5435 = vmatprep.subr.bf16.mxu0 %v5228
    %5436 = vmatpush1.bf16.msra.mxu0 %v5227
    %5437 = vmatprep.subr.bf16.mxu0 %v5226
    %5438 = vmatpush1.bf16.msra.mxu0 %v5225
    %5439 = vmatprep.subr.bf16.mxu0 %v5224
    %5440 = vmatpush1.bf16.msra.mxu0 %v5223
    %5441 = vmatprep.subr.bf16.mxu0 %v5222
    %5442 = vmatpush1.bf16.msra.mxu0 %v5221
    %5443 = vmatprep.subr.bf16.mxu0 0
    %5444 = vmatpush2.bf16.msra.mxu0 0
    %5445 = vmatprep.subr.bf16.mxu0 0
    %5446 = vmatpush2.bf16.msra.mxu0 0
    %5447 = vmatprep.subr.bf16.mxu0 0
    %5448 = vmatpush2.bf16.msra.mxu0 0
    %5449 = vmatprep.subr.bf16.mxu0 0
    %5450 = vmatpush2.bf16.msra.mxu0 0
    %5451 = vmatprep.subr.bf16.mxu0 0
    %5452 = vmatpush2.bf16.msra.mxu0 0
    %5453 = vmatprep.subr.bf16.mxu0 %v5242
    %5454 = vmatpush2.bf16.msra.mxu0 %v5241
    %5455 = vmatprep.subr.bf16.mxu0 %v5240
    %5456 = vmatpush2.bf16.msra.mxu0 %v5239
    %5457 = vmatprep.subr.bf16.mxu0 %v5238
    %5458 = vmatpush2.bf16.msra.mxu0 %v5237
    %5459 = vmatprep.mubr.bf16.mxu0 %v5299
    %5460 = vmatmul.mubr.bf16.gmra.mxu0 %v4747
    %v5461 = vpop.f32.mrf.mxu0
    %v5462 = vpop.f32.mrf.mxu0
    %v5463 = vpop.f32.mrf.mxu0
    %v5464 = vadd.f32 %v5359, %v5463
    %v5465 = vpop.f32.mrf.mxu0
    %v5466 = vadd.f32 %v5361, %v5465
    %5467 = vmatprep.mubr.bf16.mxu0 %v5302
    %5468 = vmatmul.mubr.bf16.gmra.mxu0 %v4789
    %v5469 = vpop.f32.mrf.mxu0
    %v5470 = vadd.f32 %v5365, %v5469
    %v5471 = vpop.f32.mrf.mxu0
    %v5472 = vadd.f32 %v5367, %v5471
    %v5473 = vpop.f32.mrf.mxu0
    %v5474 = vadd.f32 %v5369, %v5473
    %v5475 = vpop.f32.mrf.mxu0
    %v5476 = vadd.f32 %v5371, %v5475
    %5477 = vmatprep.mubr.bf16.mxu0 %v5305
    %5478 = vmatmul.mubr.bf16.gmra.mxu0 %v4823
    %v5479 = vpop.f32.mrf.mxu0
    %v5480 = vpop.f32.mrf.mxu0
    %v5481 = vpop.f32.mrf.mxu0
    %v5482 = vadd.f32 %v5377, %v5481
    %v5483 = vpop.f32.mrf.mxu0
    %v5484 = vadd.f32 %v5379, %v5483
    %5485 = vmatprep.mubr.bf16.mxu0 %v5308
    %5486 = vmatmul.mubr.bf16.gmra.mxu0 %v4857
    %v5487 = vpop.f32.mrf.mxu0
    %v5488 = vadd.f32 %v5383, %v5487
    %v5489 = vpop.f32.mrf.mxu0
    %v5490 = vadd.f32 %v5385, %v5489
    %v5491 = vpop.f32.mrf.mxu0
    %v5492 = vadd.f32 %v5387, %v5491
    %v5493 = vpop.f32.mrf.mxu0
    %v5494 = vadd.f32 %v5389, %v5493
    %5495 = vmatprep.mubr.bf16.mxu0 %v5311
    %5496 = vmatmul.mubr.bf16.gmra.mxu0 %v4891
    %v5497 = vpop.f32.mrf.mxu0
    %v5498 = vpop.f32.mrf.mxu0
    %v5499 = vpop.f32.mrf.mxu0
    %v5500 = vadd.f32 %v5395, %v5499
    %v5501 = vpop.f32.mrf.mxu0
    %v5502 = vadd.f32 %v5397, %v5501
    %5503 = vmatprep.mubr.bf16.mxu0 %v5314
    %5504 = vmatmul.mubr.bf16.gmra.mxu0 %v4925
    %v5505 = vpop.f32.mrf.mxu0
    %v5506 = vadd.f32 %v5401, %v5505
    %v5507 = vpop.f32.mrf.mxu0
    %v5508 = vadd.f32 %v5403, %v5507
    %v5509 = vpop.f32.mrf.mxu0
    %v5510 = vadd.f32 %v5405, %v5509
    %v5511 = vpop.f32.mrf.mxu0
    %v5512 = vadd.f32 %v5407, %v5511
    %5513 = vmatprep.mubr.bf16.mxu0 %v5317
    %5514 = vmatmul.mubr.bf16.gmra.mxu0 %v4959
    %v5515 = vpop.f32.mrf.mxu0
    %v5516 = vpop.f32.mrf.mxu0
    %v5517 = vpop.f32.mrf.mxu0
    %v5518 = vadd.f32 %v5413, %v5517
    %v5519 = vpop.f32.mrf.mxu0
    %v5520 = vadd.f32 %v5415, %v5519
    %5521 = vmatprep.mubr.bf16.mxu0 %v5320
    %5522 = vmatmul.mubr.bf16.gmra.mxu0 %v4993
    %v5523 = vpop.f32.mrf.mxu0
    %v5524 = vadd.f32 %v5419, %v5523
    %v5525 = vpop.f32.mrf.mxu0
    %v5526 = vadd.f32 %v5421, %v5525
    %v5527 = vpop.f32.mrf.mxu0
    %v5528 = vadd.f32 %v5423, %v5527
    %v5529 = vpop.f32.mrf.mxu0
    %v5530 = vadd.f32 %v5425, %v5529
    %5531 = vdwg.mxu0
    %v5532 = vmax.f32 %v5464, 0.0
    %v5533 = vmax.f32 %v5466, 0.0
    %v5534 = vmax.f32 %v5470, 0.0
    %v5535 = vmax.f32 %v5472, 0.0
    %v5536 = vmax.f32 %v5474, 0.0
    %v5537 = vmax.f32 %v5476, 0.0
    %v5538 = vmax.f32 %v5482, 0.0
    %v5539 = vmax.f32 %v5484, 0.0
    %v5540 = vmax.f32 %v5488, 0.0
    %v5541 = vmax.f32 %v5490, 0.0
    %v5542 = vmax.f32 %v5492, 0.0
    %v5543 = vmax.f32 %v5494, 0.0
    %v5544 = vmax.f32 %v5500, 0.0
    %v5545 = vmax.f32 %v5502, 0.0
    %v5546 = vmax.f32 %v5506, 0.0
    %v5547 = vmax.f32 %v5508, 0.0
    %v5548 = vmax.f32 %v5510, 0.0
    %v5549 = vmax.f32 %v5512, 0.0
    %v5550 = vmax.f32 %v5518, 0.0
    %v5551 = vmax.f32 %v5520, 0.0
    %v5552 = vmax.f32 %v5524, 0.0
    %v5553 = vmax.f32 %v5526, 0.0
    %v5554 = vmax.f32 %v5528, 0.0
    %v5555 = vmax.f32 %v5530, 0.0
    %5556 = vst [vmem:[#allocation2 + $0x20] sm:$0xff] %v5532
    %5557 = vst.msk [vmem:[#allocation2 + $0x28] sm:$0xff] %vm425, %v5533
    %5558 = vst [vmem:[#allocation2 + $0x30] sm:$0xff] %v5534
    %5559 = vst.msk [vmem:[#allocation2 + $0x38] sm:$0xff] %vm425, %v5535
    %5560 = vst [vmem:[#allocation2 + $0x40] sm:$0x1] %v5536
    %5561 = vst.msk [vmem:[#allocation2 + $0x48] sm:$0x1] %vm4193, %v5537
    %5562 = vst [vmem:[#allocation2 + $0x60] sm:$0xff] %v5538
    %5563 = vst.msk [vmem:[#allocation2 + $0x68] sm:$0xff] %vm425, %v5539
    %5564 = vst [vmem:[#allocation2 + $0x70] sm:$0xff] %v5540
    %5565 = vst.msk [vmem:[#allocation2 + $0x78] sm:$0xff] %vm425, %v5541
    %5566 = vst [vmem:[#allocation2 + $0x80] sm:$0x1] %v5542
    %5567 = vst.msk [vmem:[#allocation2 + $0x88] sm:$0x1] %vm4193, %v5543
    %5568 = vst [vmem:[#allocation2 + $0xa0] sm:$0xff] %v5544
    %5569 = vst.msk [vmem:[#allocation2 + $0xa8] sm:$0xff] %vm425, %v5545
    %5570 = vst [vmem:[#allocation2 + $0xb0] sm:$0xff] %v5546
    %5571 = vst.msk [vmem:[#allocation2 + $0xb8] sm:$0xff] %vm425, %v5547
    %5572 = vst [vmem:[#allocation2 + $0xc0] sm:$0x1] %v5548
    %5573 = vst.msk [vmem:[#allocation2 + $0xc8] sm:$0x1] %vm4193, %v5549
    %5574 = vst [vmem:[#allocation2 + $0xe0] sm:$0xff] %v5550
    %5575 = vst.msk [vmem:[#allocation2 + $0xe8] sm:$0xff] %vm425, %v5551
    %5576 = vst [vmem:[#allocation2 + $0xf0] sm:$0xff] %v5552
    %5577 = vst.msk [vmem:[#allocation2 + $0xf8] sm:$0xff] %vm425, %v5553
    %5578 = vst [vmem:[#allocation2 + $0x100] sm:$0x1] %v5554
    %5579 = vst.msk [vmem:[#allocation2 + $0x108] sm:$0x1] %vm4193, %v5555
    %v5580 = vld [vmem:[#allocation2] sm:$0x80]
    %v5581 = vld [vmem:[#allocation2 + $0x8] sm:$0x80]
    %v5582 = vld [vmem:[#allocation2 + $0x10] sm:$0xff]
    %v5583 = vld [vmem:[#allocation2 + $0x18] sm:$0xff]
    %v5584 = vld [vmem:[#allocation2 + $0x20] sm:$0xff]
    %v5585 = vld [vmem:[#allocation2 + $0x28] sm:$0xff]
    %v5586 = vld [vmem:[#allocation2 + $0x30] sm:$0xff]
    %v5587 = vld [vmem:[#allocation2 + $0x38] sm:$0xff]
    %v5588 = vld [vmem:[#allocation2 + $0x40] sm:$0xff]
    %v5589 = vld [vmem:[#allocation2 + $0x48] sm:$0xff]
    %v5590 = vld [vmem:[#allocation2 + $0x50] sm:$0xff]
    %v5591 = vld [vmem:[#allocation2 + $0x58] sm:$0xff]
    %v5592 = vld [vmem:[#allocation2 + $0x60] sm:$0xff]
    %v5593 = vld [vmem:[#allocation2 + $0x68] sm:$0xff]
    %v5594 = vld [vmem:[#allocation2 + $0x70] sm:$0xff]
    %v5595 = vld [vmem:[#allocation2 + $0x78] sm:$0xff]
    %v5596 = vld [vmem:[#allocation2 + $0x80] sm:$0xff]
    %v5597 = vld [vmem:[#allocation2 + $0x88] sm:$0xff]
    %v5598 = vld [vmem:[#allocation2 + $0x90] sm:$0xff]
    %v5599 = vld [vmem:[#allocation2 + $0x98] sm:$0xff]
    %v5600 = vld [vmem:[#allocation2 + $0xa0] sm:$0xff]
    %v5601 = vld [vmem:[#allocation2 + $0xa8] sm:$0xff]
    %v5602 = vld [vmem:[#allocation2 + $0xb0] sm:$0xff]
    %v5603 = vld [vmem:[#allocation2 + $0xb8] sm:$0xff]
    %v5604 = vld [vmem:[#allocation2 + $0xc0] sm:$0xff]
    %v5605 = vld [vmem:[#allocation2 + $0xc8] sm:$0xff]
    %v5606 = vld [vmem:[#allocation2 + $0xd0] sm:$0xff]
    %v5607 = vld [vmem:[#allocation2 + $0xd8] sm:$0xff]
    %v5608 = vld [vmem:[#allocation2 + $0xe0] sm:$0xff]
    %v5609 = vld [vmem:[#allocation2 + $0xe8] sm:$0xff]
    %v5610 = vld [vmem:[#allocation2 + $0xf0] sm:$0xff]
    %v5611 = vld [vmem:[#allocation2 + $0xf8] sm:$0xff]
    %v5612 = vld [vmem:[#allocation2 + $0x100] sm:$0x7f]
    %v5613 = vld [vmem:[#allocation2 + $0x108] sm:$0x7f]
    %v5614 = vpack.c.bf16 %v5582, %v5580
    %v5615 = vpack.c.bf16 %v5583, %v5581
    %v5616 = vpack.c.bf16 %v5586, %v5584
    %v5617 = vpack.c.bf16 %v5587, %v5585
    %v5618 = vpack.c.bf16 %v5590, %v5588
    %v5619 = vpack.c.bf16 %v5591, %v5589
    %v5620 = vpack.c.bf16 %v5594, %v5592
    %v5621 = vpack.c.bf16 %v5595, %v5593
    %v5622 = vpack.c.bf16 %v5598, %v5596
    %v5623 = vpack.c.bf16 %v5599, %v5597
    %v5624 = vpack.c.bf16 %v5602, %v5600
    %v5625 = vpack.c.bf16 %v5603, %v5601
    %v5626 = vpack.c.bf16 %v5606, %v5604
    %v5627 = vpack.c.bf16 %v5607, %v5605
    %v5628 = vpack.c.bf16 %v5610, %v5608
    %v5629 = vpack.c.bf16 %v5611, %v5609
    %v5630 = vpack.c.bf16 %v5612, %v5612
    %v5631 = vpack.c.bf16 %v5613, %v5613
    %v5632 = vld [vmem:[#allocation2 + $0x100] sm:$0xff]
    %v5633 = vld [vmem:[#allocation2 + $0x108] sm:$0xff]
    %v5634 = vpack.c.bf16 %v5584, %v5582
    %v5635 = vpack.c.bf16 %v5585, %v5583
    %v5636 = vpack.c.bf16 %v5588, %v5586
    %v5637 = vpack.c.bf16 %v5589, %v5587
    %v5638 = vpack.c.bf16 %v5592, %v5590
    %v5639 = vpack.c.bf16 %v5593, %v5591
    %v5640 = vpack.c.bf16 %v5596, %v5594
    %v5641 = vpack.c.bf16 %v5597, %v5595
    %v5642 = vpack.c.bf16 %v5600, %v5598
    %v5643 = vpack.c.bf16 %v5601, %v5599
    %v5644 = vpack.c.bf16 %v5604, %v5602
    %v5645 = vpack.c.bf16 %v5605, %v5603
    %v5646 = vpack.c.bf16 %v5608, %v5606
    %v5647 = vpack.c.bf16 %v5609, %v5607
    %v5648 = vpack.c.bf16 %v5632, %v5610
    %v5649 = vpack.c.bf16 %v5633, %v5611
    %v5650 = vld [vmem:[#allocation2 + $0x10] sm:$0xfe]
    %v5651 = vld [vmem:[#allocation2 + $0x18] sm:$0xfe]
    %v5652 = vld [vmem:[#allocation2 + $0x110] sm:$0x1]
    %v5653 = vld [vmem:[#allocation2 + $0x118] sm:$0x1]
    %v5654 = vpack.c.bf16 %v5584, %v5650
    %v5655 = vpack.c.bf16 %v5585, %v5651
    %v5656 = vpack.c.bf16 %v5652, %v5652
    %v5657 = vpack.c.bf16 %v5653, %v5653
    %v5659 = vshrl.u32 %v5634, 16
    %v5661 = vrot.slane %v5659, 4
    %v5662 = vshll.u32 %v5634, 16
    %v5664 = vrot.slane %v5662, 5
    %v5665 = vor.u32 %v5661, %v5664
    %v5667 = vshrl.u32 %v5635, 16
    %v5669 = vrot.slane %v5667, 4
    %v5670 = vshll.u32 %v5635, 16
    %v5672 = vrot.slane %v5670, 5
    %v5673 = vor.u32 %v5669, %v5672
    %v5675 = vshrl.u32 %v5636, 16
    %v5677 = vrot.slane %v5675, 4
    %v5678 = vshll.u32 %v5636, 16
    %v5680 = vrot.slane %v5678, 5
    %v5681 = vor.u32 %v5677, %v5680
    %v5682 = vsel %vm4291, %v5665, %v5681
    %v5684 = vshrl.u32 %v5637, 16
    %v5686 = vrot.slane %v5684, 4
    %v5687 = vshll.u32 %v5637, 16
    %v5689 = vrot.slane %v5687, 5
    %v5690 = vor.u32 %v5686, %v5689
    %v5691 = vsel %vm4291, %v5673, %v5690
    %v5693 = vshrl.u32 %v5638, 16
    %v5695 = vrot.slane %v5693, 4
    %v5696 = vshll.u32 %v5638, 16
    %v5698 = vrot.slane %v5696, 5
    %v5699 = vor.u32 %v5695, %v5698
    %v5700 = vsel %vm4291, %v5681, %v5699
    %v5702 = vshrl.u32 %v5639, 16
    %v5704 = vrot.slane %v5702, 4
    %v5705 = vshll.u32 %v5639, 16
    %v5707 = vrot.slane %v5705, 5
    %v5708 = vor.u32 %v5704, %v5707
    %v5709 = vsel %vm4291, %v5690, %v5708
    %v5711 = vshrl.u32 %v5640, 16
    %v5713 = vrot.slane %v5711, 4
    %v5714 = vshll.u32 %v5640, 16
    %v5716 = vrot.slane %v5714, 5
    %v5717 = vor.u32 %v5713, %v5716
    %v5718 = vsel %vm4291, %v5699, %v5717
    %v5720 = vshrl.u32 %v5641, 16
    %v5722 = vrot.slane %v5720, 4
    %v5723 = vshll.u32 %v5641, 16
    %v5725 = vrot.slane %v5723, 5
    %v5726 = vor.u32 %v5722, %v5725
    %v5727 = vsel %vm4291, %v5708, %v5726
    %v5729 = vshrl.u32 %v5642, 16
    %v5731 = vrot.slane %v5729, 4
    %v5732 = vshll.u32 %v5642, 16
    %v5734 = vrot.slane %v5732, 5
    %v5735 = vor.u32 %v5731, %v5734
    %v5736 = vsel %vm4291, %v5717, %v5735
    %v5738 = vshrl.u32 %v5643, 16
    %v5740 = vrot.slane %v5738, 4
    %v5741 = vshll.u32 %v5643, 16
    %v5743 = vrot.slane %v5741, 5
    %v5744 = vor.u32 %v5740, %v5743
    %v5745 = vsel %vm4291, %v5726, %v5744
    %v5747 = vshrl.u32 %v5644, 16
    %v5749 = vrot.slane %v5747, 4
    %v5750 = vshll.u32 %v5644, 16
    %v5752 = vrot.slane %v5750, 5
    %v5753 = vor.u32 %v5749, %v5752
    %v5754 = vsel %vm4291, %v5735, %v5753
    %v5756 = vshrl.u32 %v5645, 16
    %v5758 = vrot.slane %v5756, 4
    %v5759 = vshll.u32 %v5645, 16
    %v5761 = vrot.slane %v5759, 5
    %v5762 = vor.u32 %v5758, %v5761
    %v5763 = vsel %vm4291, %v5744, %v5762
    %v5765 = vshrl.u32 %v5646, 16
    %v5767 = vrot.slane %v5765, 4
    %v5768 = vshll.u32 %v5646, 16
    %v5770 = vrot.slane %v5768, 5
    %v5771 = vor.u32 %v5767, %v5770
    %v5772 = vsel %vm4291, %v5753, %v5771
    %v5774 = vshrl.u32 %v5647, 16
    %v5776 = vrot.slane %v5774, 4
    %v5777 = vshll.u32 %v5647, 16
    %v5779 = vrot.slane %v5777, 5
    %v5780 = vor.u32 %v5776, %v5779
    %v5781 = vsel %vm4291, %v5762, %v5780
    %v5783 = vshrl.u32 %v5648, 16
    %v5785 = vrot.slane %v5783, 4
    %v5786 = vshll.u32 %v5648, 16
    %v5788 = vrot.slane %v5786, 5
    %v5789 = vor.u32 %v5785, %v5788
    %v5790 = vsel %vm4291, %v5771, %v5789
    %v5792 = vshrl.u32 %v5649, 16
    %v5794 = vrot.slane %v5792, 4
    %v5795 = vshll.u32 %v5649, 16
    %v5797 = vrot.slane %v5795, 5
    %v5798 = vor.u32 %v5794, %v5797
    %v5799 = vsel %vm4291, %v5780, %v5798
    %5800 = vrot.lane.b32.xlu0 %v5665, 16
    %v5801 = vpop.permute.xlu0 %5800
    %5802 = vrot.lane.b32.xlu0 %v5673, 16
    %v5803 = vpop.permute.xlu0 %5802
    %5804 = vrot.lane.b32.xlu0 %v5682, 16
    %v5805 = vpop.permute.xlu0 %5804
    %5806 = vrot.lane.b32.xlu0 %v5691, 16
    %v5807 = vpop.permute.xlu0 %5806
    %5808 = vrot.lane.b32.xlu0 %v5700, 16
    %v5809 = vpop.permute.xlu0 %5808
    %5810 = vrot.lane.b32.xlu0 %v5709, 16
    %v5811 = vpop.permute.xlu0 %5810
    %5812 = vrot.lane.b32.xlu0 %v5718, 16
    %v5813 = vpop.permute.xlu0 %5812
    %5814 = vrot.lane.b32.xlu0 %v5727, 16
    %v5815 = vpop.permute.xlu0 %5814
    %5816 = vrot.lane.b32.xlu0 %v5736, 16
    %v5817 = vpop.permute.xlu0 %5816
    %5818 = vrot.lane.b32.xlu0 %v5745, 16
    %v5819 = vpop.permute.xlu0 %5818
    %5820 = vrot.lane.b32.xlu0 %v5754, 16
    %v5821 = vpop.permute.xlu0 %5820
    %5822 = vrot.lane.b32.xlu0 %v5763, 16
    %v5823 = vpop.permute.xlu0 %5822
    %5824 = vrot.lane.b32.xlu0 %v5772, 16
    %v5825 = vpop.permute.xlu0 %5824
    %5826 = vrot.lane.b32.xlu0 %v5781, 16
    %v5827 = vpop.permute.xlu0 %5826
    %5828 = vrot.lane.b32.xlu0 %v5790, 16
    %v5829 = vpop.permute.xlu0 %5828
    %5830 = vrot.lane.b32.xlu0 %v5799, 16
    %v5831 = vpop.permute.xlu0 %5830
    %5832 = vrot.lane.b32.xlu0 %v5789, 16
    %v5833 = vpop.permute.xlu0 %5832
    %5834 = vrot.lane.b32.xlu0 %v5798, 16
    %v5835 = vpop.permute.xlu0 %5834
    %v5836 = vsel %vm4470, %v5801, %v5803
    %v5837 = vsel %vm4470, %v5805, %v5807
    %v5838 = vsel %vm4470, %v5809, %v5811
    %v5839 = vsel %vm4470, %v5813, %v5815
    %v5840 = vsel %vm4470, %v5817, %v5819
    %v5841 = vsel %vm4470, %v5821, %v5823
    %v5842 = vsel %vm4470, %v5825, %v5827
    %v5843 = vsel %vm4470, %v5829, %v5831
    %v5844 = vsel %vm4470, %v5833, %v5835
    %v5863 = vrot.slane %v5654, 5
    %v5864 = vrot.slane %v5655, 5
    %v5865 = vrot.slane %v5636, 5
    %v5866 = vsel %vm4498, %v5863, %v5865
    %v5867 = vrot.slane %v5637, 5
    %v5868 = vsel %vm4498, %v5864, %v5867
    %v5869 = vrot.slane %v5638, 5
    %v5870 = vsel %vm4498, %v5865, %v5869
    %v5871 = vrot.slane %v5639, 5
    %v5872 = vsel %vm4498, %v5867, %v5871
    %v5873 = vrot.slane %v5640, 5
    %v5874 = vsel %vm4498, %v5869, %v5873
    %v5875 = vrot.slane %v5641, 5
    %v5876 = vsel %vm4498, %v5871, %v5875
    %v5877 = vrot.slane %v5642, 5
    %v5878 = vsel %vm4498, %v5873, %v5877
    %v5879 = vrot.slane %v5643, 5
    %v5880 = vsel %vm4498, %v5875, %v5879
    %v5881 = vrot.slane %v5644, 5
    %v5882 = vsel %vm4498, %v5877, %v5881
    %v5883 = vrot.slane %v5645, 5
    %v5884 = vsel %vm4498, %v5879, %v5883
    %v5885 = vrot.slane %v5646, 5
    %v5886 = vsel %vm4498, %v5881, %v5885
    %v5887 = vrot.slane %v5647, 5
    %v5888 = vsel %vm4498, %v5883, %v5887
    %v5889 = vrot.slane %v5648, 5
    %v5890 = vsel %vm4498, %v5885, %v5889
    %v5891 = vrot.slane %v5649, 5
    %v5892 = vsel %vm4498, %v5887, %v5891
    %v5893 = vrot.slane %v5656, 5
    %v5894 = vsel %vm4498, %v5889, %v5893
    %v5895 = vrot.slane %v5657, 5
    %v5896 = vsel %vm4498, %v5891, %v5895
    %5897 = vrot.lane.b32.xlu0 %v5863, 32
    %v5898 = vpop.permute.xlu0 %5897
    %5899 = vrot.lane.b32.xlu0 %v5864, 32
    %v5900 = vpop.permute.xlu0 %5899
    %5901 = vrot.lane.b32.xlu0 %v5866, 32
    %v5902 = vpop.permute.xlu0 %5901
    %5903 = vrot.lane.b32.xlu0 %v5868, 32
    %v5904 = vpop.permute.xlu0 %5903
    %5905 = vrot.lane.b32.xlu0 %v5870, 32
    %v5906 = vpop.permute.xlu0 %5905
    %5907 = vrot.lane.b32.xlu0 %v5872, 32
    %v5908 = vpop.permute.xlu0 %5907
    %5909 = vrot.lane.b32.xlu0 %v5874, 32
    %v5910 = vpop.permute.xlu0 %5909
    %5911 = vrot.lane.b32.xlu0 %v5876, 32
    %v5912 = vpop.permute.xlu0 %5911
    %5913 = vrot.lane.b32.xlu0 %v5878, 32
    %v5914 = vpop.permute.xlu0 %5913
    %5915 = vrot.lane.b32.xlu0 %v5880, 32
    %v5916 = vpop.permute.xlu0 %5915
    %5917 = vrot.lane.b32.xlu0 %v5882, 32
    %v5918 = vpop.permute.xlu0 %5917
    %5919 = vrot.lane.b32.xlu0 %v5884, 32
    %v5920 = vpop.permute.xlu0 %5919
    %5921 = vrot.lane.b32.xlu0 %v5886, 32
    %v5922 = vpop.permute.xlu0 %5921
    %5923 = vrot.lane.b32.xlu0 %v5888, 32
    %v5924 = vpop.permute.xlu0 %5923
    %5925 = vrot.lane.b32.xlu0 %v5890, 32
    %v5926 = vpop.permute.xlu0 %5925
    %5927 = vrot.lane.b32.xlu0 %v5892, 32
    %v5928 = vpop.permute.xlu0 %5927
    %5929 = vrot.lane.b32.xlu0 %v5894, 32
    %v5930 = vpop.permute.xlu0 %5929
    %5931 = vrot.lane.b32.xlu0 %v5896, 32
    %v5932 = vpop.permute.xlu0 %5931
    %v5933 = vsel %vm4569, %v5898, %v5900
    %v5934 = vsel %vm4569, %v5902, %v5904
    %v5935 = vsel %vm4569, %v5906, %v5908
    %v5936 = vsel %vm4569, %v5910, %v5912
    %v5937 = vsel %vm4569, %v5914, %v5916
    %v5938 = vsel %vm4569, %v5918, %v5920
    %v5939 = vsel %vm4569, %v5922, %v5924
    %v5940 = vsel %vm4569, %v5926, %v5928
    %v5941 = vsel %vm4569, %v5930, %v5932
    %v5944 = vsel %vm425, %v5615, %v5801
    %v5947 = vsel %vm425, %v5617, %v5805
    %v5950 = vsel %vm425, %v5619, %v5809
    %v5953 = vsel %vm425, %v5621, %v5813
    %v5956 = vsel %vm425, %v5623, %v5817
    %v5959 = vsel %vm425, %v5625, %v5821
    %v5962 = vsel %vm425, %v5627, %v5825
    %v5965 = vsel %vm425, %v5629, %v5829
    %v5968 = vsel %vm425, %v5631, %v5833
    %v5971 = vsel %vm730, %v5836, %v5898
    %v5974 = vsel %vm730, %v5837, %v5902
    %v5977 = vsel %vm730, %v5838, %v5906
    %v5980 = vsel %vm730, %v5839, %v5910
    %v5983 = vsel %vm730, %v5840, %v5914
    %v5986 = vsel %vm730, %v5841, %v5918
    %v5989 = vsel %vm730, %v5842, %v5922
    %v5992 = vsel %vm730, %v5843, %v5926
    %v5995 = vsel %vm730, %v5844, %v5930
    %v5996 = vld [vmem:[#allocation5] sm:$0xf]
    %v5997 = vld [vmem:[#allocation5 + $0x4] sm:$0xf]
    %v5998 = vld [vmem:[#allocation5 + $0x8] sm:$0xf]
    %v5999 = vld [vmem:[#allocation5 + $0xc] sm:$0xf]
    %v6000 = vld [vmem:[#allocation5 + $0x10] sm:$0xf]
    %v6001 = vld [vmem:[#allocation5 + $0x14] sm:$0xf]
    %v6002 = vld [vmem:[#allocation5 + $0x18] sm:$0xf]
    %v6003 = vld [vmem:[#allocation5 + $0x1c] sm:$0xf]
    %v6004 = vld [vmem:[#allocation5 + $0x20] sm:$0xf]
    %v6005 = vld [vmem:[#allocation5 + $0x24] sm:$0xf]
    %v6006 = vld [vmem:[#allocation5 + $0x28] sm:$0xf]
    %v6007 = vld [vmem:[#allocation5 + $0x2c] sm:$0xf]
    %v6008 = vld [vmem:[#allocation5 + $0x30] sm:$0xf]
    %v6009 = vld [vmem:[#allocation5 + $0x34] sm:$0xf]
    %v6010 = vld [vmem:[#allocation5 + $0x38] sm:$0xf]
    %v6011 = vld [vmem:[#allocation5 + $0x3c] sm:$0xf]
    %v6012 = vld [vmem:[#allocation5 + $0x40] sm:$0xf]
    %v6013 = vld [vmem:[#allocation5 + $0x44] sm:$0xf]
    %v6014 = vld [vmem:[#allocation5 + $0x48] sm:$0xf]
    %v6015 = vld [vmem:[#allocation5 + $0x4c] sm:$0xf]
    %v6016 = vld [vmem:[#allocation5 + $0x50] sm:$0xf]
    %v6017 = vld [vmem:[#allocation5 + $0x54] sm:$0xf]
    %v6018 = vld [vmem:[#allocation5 + $0x58] sm:$0xf]
    %v6019 = vld [vmem:[#allocation5 + $0x5c] sm:$0xf]
    %v6020 = vld [vmem:[#allocation5 + $0x60] sm:$0xf]
    %v6021 = vld [vmem:[#allocation5 + $0x64] sm:$0xf]
    %v6022 = vld [vmem:[#allocation5 + $0x68] sm:$0xf]
    %v6023 = vld [vmem:[#allocation5 + $0x6c] sm:$0xf]
    %v6024 = vld [vmem:[#allocation5 + $0x70] sm:$0xf]
    %v6025 = vld [vmem:[#allocation5 + $0x74] sm:$0xf]
    %v6026 = vld [vmem:[#allocation5 + $0x78] sm:$0xf]
    %v6027 = vld [vmem:[#allocation5 + $0x7c] sm:$0xf]
    %v6028 = vld [vmem:[#allocation5 + $0x80] sm:$0xf]
    %v6029 = vld [vmem:[#allocation5 + $0x84] sm:$0xf]
    %v6030 = vld [vmem:[#allocation5 + $0x88] sm:$0xf]
    %v6031 = vld [vmem:[#allocation5 + $0x8c] sm:$0xf]
    %v6032 = vld [vmem:[#allocation5 + $0x90] sm:$0xf]
    %v6033 = vld [vmem:[#allocation5 + $0x94] sm:$0xf]
    %v6034 = vld [vmem:[#allocation5 + $0x98] sm:$0xf]
    %v6035 = vld [vmem:[#allocation5 + $0x9c] sm:$0xf]
    %v6036 = vld [vmem:[#allocation5 + $0xa0] sm:$0xf]
    %v6037 = vld [vmem:[#allocation5 + $0xa4] sm:$0xf]
    %v6038 = vld [vmem:[#allocation5 + $0xa8] sm:$0xf]
    %v6039 = vld [vmem:[#allocation5 + $0xac] sm:$0xf]
    %v6040 = vld [vmem:[#allocation5 + $0xb0] sm:$0xf]
    %v6041 = vld [vmem:[#allocation5 + $0xb4] sm:$0xf]
    %v6042 = vld [vmem:[#allocation5 + $0xb8] sm:$0xf]
    %v6043 = vld [vmem:[#allocation5 + $0xbc] sm:$0xf]
    %v6044 = vld [vmem:[#allocation5 + $0xc0] sm:$0xf]
    %v6045 = vld [vmem:[#allocation5 + $0xc4] sm:$0xf]
    %v6046 = vld [vmem:[#allocation5 + $0xc8] sm:$0xf]
    %v6047 = vld [vmem:[#allocation5 + $0xcc] sm:$0xf]
    %v6048 = vld [vmem:[#allocation5 + $0xd0] sm:$0xf]
    %v6049 = vld [vmem:[#allocation5 + $0xd4] sm:$0xf]
    %v6050 = vld [vmem:[%s15 + $0x2] sm:$0x1]
    %v6051 = vlaneseq
    %v6052 = vshrl.u32 %v6051, 7
    %v6053 = vsub.s32 0, %v6052
    %v6054 = vrot.slane %v6050, %v6053
    %v6056 = vshrl.u32 %v5614, 16
    %v6058 = vrot.slane %v6056, 3
    %v6059 = vshll.u32 %v5614, 16
    %v6061 = vrot.slane %v6059, 4
    %v6062 = vor.u32 %v6058, %v6061
    %v6064 = vshrl.u32 %v5616, 16
    %v6066 = vrot.slane %v6064, 3
    %v6067 = vshll.u32 %v5616, 16
    %v6069 = vrot.slane %v6067, 4
    %v6070 = vor.u32 %v6066, %v6069
    %v6071 = vsel %vm4700, %v6062, %v6070
    %v6072 = vshrl.u32 %v5944, 16
    %v6074 = vrot.slane %v6072, 3
    %v6075 = vshll.u32 %v5944, 16
    %v6077 = vrot.slane %v6075, 4
    %v6078 = vor.u32 %v6074, %v6077
    %v6079 = vshrl.u32 %v5947, 16
    %v6081 = vrot.slane %v6079, 3
    %v6082 = vshll.u32 %v5947, 16
    %v6084 = vrot.slane %v6082, 4
    %v6085 = vor.u32 %v6081, %v6084
    %v6086 = vsel %vm4700, %v6078, %v6085
    %v6087 = vshrl.u32 %v5971, 16
    %v6089 = vrot.slane %v6087, 3
    %v6090 = vshll.u32 %v5971, 16
    %v6092 = vrot.slane %v6090, 4
    %v6093 = vor.u32 %v6089, %v6092
    %v6094 = vshrl.u32 %v5974, 16
    %v6096 = vrot.slane %v6094, 3
    %v6097 = vshll.u32 %v5974, 16
    %v6099 = vrot.slane %v6097, 4
    %v6100 = vor.u32 %v6096, %v6099
    %v6101 = vsel %vm4700, %v6093, %v6100
    %v6103 = vshrl.u32 %v5933, 16
    %v6105 = vrot.slane %v6103, 3
    %v6106 = vshll.u32 %v5933, 16
    %v6108 = vrot.slane %v6106, 4
    %v6109 = vor.u32 %v6105, %v6108
    %v6111 = vshrl.u32 %v5934, 16
    %v6113 = vrot.slane %v6111, 3
    %v6114 = vshll.u32 %v5934, 16
    %v6116 = vrot.slane %v6114, 4
    %v6117 = vor.u32 %v6113, %v6116
    %v6118 = vsel %vm4700, %v6109, %v6117
    %v6120 = vshrl.u32 %v5618, 16
    %v6122 = vrot.slane %v6120, 3
    %v6123 = vshll.u32 %v5618, 16
    %v6125 = vrot.slane %v6123, 4
    %v6126 = vor.u32 %v6122, %v6125
    %v6127 = vsel %vm4700, %v6070, %v6126
    %v6128 = vshrl.u32 %v5950, 16
    %v6130 = vrot.slane %v6128, 3
    %v6131 = vshll.u32 %v5950, 16
    %v6133 = vrot.slane %v6131, 4
    %v6134 = vor.u32 %v6130, %v6133
    %v6135 = vsel %vm4700, %v6085, %v6134
    %v6136 = vshrl.u32 %v5977, 16
    %v6138 = vrot.slane %v6136, 3
    %v6139 = vshll.u32 %v5977, 16
    %v6141 = vrot.slane %v6139, 4
    %v6142 = vor.u32 %v6138, %v6141
    %v6143 = vsel %vm4700, %v6100, %v6142
    %v6145 = vshrl.u32 %v5935, 16
    %v6147 = vrot.slane %v6145, 3
    %v6148 = vshll.u32 %v5935, 16
    %v6150 = vrot.slane %v6148, 4
    %v6151 = vor.u32 %v6147, %v6150
    %v6152 = vsel %vm4700, %v6117, %v6151
    %v6154 = vshrl.u32 %v5620, 16
    %v6156 = vrot.slane %v6154, 3
    %v6157 = vshll.u32 %v5620, 16
    %v6159 = vrot.slane %v6157, 4
    %v6160 = vor.u32 %v6156, %v6159
    %v6161 = vsel %vm4700, %v6126, %v6160
    %v6162 = vshrl.u32 %v5953, 16
    %v6164 = vrot.slane %v6162, 3
    %v6165 = vshll.u32 %v5953, 16
    %v6167 = vrot.slane %v6165, 4
    %v6168 = vor.u32 %v6164, %v6167
    %v6169 = vsel %vm4700, %v6134, %v6168
    %v6170 = vshrl.u32 %v5980, 16
    %v6172 = vrot.slane %v6170, 3
    %v6173 = vshll.u32 %v5980, 16
    %v6175 = vrot.slane %v6173, 4
    %v6176 = vor.u32 %v6172, %v6175
    %v6177 = vsel %vm4700, %v6142, %v6176
    %v6179 = vshrl.u32 %v5936, 16
    %v6181 = vrot.slane %v6179, 3
    %v6182 = vshll.u32 %v5936, 16
    %v6184 = vrot.slane %v6182, 4
    %v6185 = vor.u32 %v6181, %v6184
    %v6186 = vsel %vm4700, %v6151, %v6185
    %v6188 = vshrl.u32 %v5622, 16
    %v6190 = vrot.slane %v6188, 3
    %v6191 = vshll.u32 %v5622, 16
    %v6193 = vrot.slane %v6191, 4
    %v6194 = vor.u32 %v6190, %v6193
    %v6195 = vsel %vm4700, %v6160, %v6194
    %v6196 = vshrl.u32 %v5956, 16
    %v6198 = vrot.slane %v6196, 3
    %v6199 = vshll.u32 %v5956, 16
    %v6201 = vrot.slane %v6199, 4
    %v6202 = vor.u32 %v6198, %v6201
    %v6203 = vsel %vm4700, %v6168, %v6202
    %v6204 = vshrl.u32 %v5983, 16
    %v6206 = vrot.slane %v6204, 3
    %v6207 = vshll.u32 %v5983, 16
    %v6209 = vrot.slane %v6207, 4
    %v6210 = vor.u32 %v6206, %v6209
    %v6211 = vsel %vm4700, %v6176, %v6210
    %v6213 = vshrl.u32 %v5937, 16
    %v6215 = vrot.slane %v6213, 3
    %v6216 = vshll.u32 %v5937, 16
    %v6218 = vrot.slane %v6216, 4
    %v6219 = vor.u32 %v6215, %v6218
    %v6220 = vsel %vm4700, %v6185, %v6219
    %v6222 = vshrl.u32 %v5624, 16
    %v6224 = vrot.slane %v6222, 3
    %v6225 = vshll.u32 %v5624, 16
    %v6227 = vrot.slane %v6225, 4
    %v6228 = vor.u32 %v6224, %v6227
    %v6229 = vsel %vm4700, %v6194, %v6228
    %v6230 = vshrl.u32 %v5959, 16
    %v6232 = vrot.slane %v6230, 3
    %v6233 = vshll.u32 %v5959, 16
    %v6235 = vrot.slane %v6233, 4
    %v6236 = vor.u32 %v6232, %v6235
    %v6237 = vsel %vm4700, %v6202, %v6236
    %v6238 = vshrl.u32 %v5986, 16
    %v6240 = vrot.slane %v6238, 3
    %v6241 = vshll.u32 %v5986, 16
    %v6243 = vrot.slane %v6241, 4
    %v6244 = vor.u32 %v6240, %v6243
    %v6245 = vsel %vm4700, %v6210, %v6244
    %v6247 = vshrl.u32 %v5938, 16
    %v6249 = vrot.slane %v6247, 3
    %v6250 = vshll.u32 %v5938, 16
    %v6252 = vrot.slane %v6250, 4
    %v6253 = vor.u32 %v6249, %v6252
    %v6254 = vsel %vm4700, %v6219, %v6253
    %v6256 = vshrl.u32 %v5626, 16
    %v6258 = vrot.slane %v6256, 3
    %v6259 = vshll.u32 %v5626, 16
    %v6261 = vrot.slane %v6259, 4
    %v6262 = vor.u32 %v6258, %v6261
    %v6263 = vsel %vm4700, %v6228, %v6262
    %v6264 = vshrl.u32 %v5962, 16
    %v6266 = vrot.slane %v6264, 3
    %v6267 = vshll.u32 %v5962, 16
    %v6269 = vrot.slane %v6267, 4
    %v6270 = vor.u32 %v6266, %v6269
    %v6271 = vsel %vm4700, %v6236, %v6270
    %v6272 = vshrl.u32 %v5989, 16
    %v6274 = vrot.slane %v6272, 3
    %v6275 = vshll.u32 %v5989, 16
    %v6277 = vrot.slane %v6275, 4
    %v6278 = vor.u32 %v6274, %v6277
    %v6279 = vsel %vm4700, %v6244, %v6278
    %v6281 = vshrl.u32 %v5939, 16
    %v6283 = vrot.slane %v6281, 3
    %v6284 = vshll.u32 %v5939, 16
    %v6286 = vrot.slane %v6284, 4
    %v6287 = vor.u32 %v6283, %v6286
    %v6288 = vsel %vm4700, %v6253, %v6287
    %v6290 = vshrl.u32 %v5628, 16
    %v6292 = vrot.slane %v6290, 3
    %v6293 = vshll.u32 %v5628, 16
    %v6295 = vrot.slane %v6293, 4
    %v6296 = vor.u32 %v6292, %v6295
    %v6297 = vsel %vm4700, %v6262, %v6296
    %v6298 = vshrl.u32 %v5965, 16
    %v6300 = vrot.slane %v6298, 3
    %v6301 = vshll.u32 %v5965, 16
    %v6303 = vrot.slane %v6301, 4
    %v6304 = vor.u32 %v6300, %v6303
    %v6305 = vsel %vm4700, %v6270, %v6304
    %v6306 = vshrl.u32 %v5992, 16
    %v6308 = vrot.slane %v6306, 3
    %v6309 = vshll.u32 %v5992, 16
    %v6311 = vrot.slane %v6309, 4
    %v6312 = vor.u32 %v6308, %v6311
    %v6313 = vsel %vm4700, %v6278, %v6312
    %v6315 = vshrl.u32 %v5940, 16
    %v6317 = vrot.slane %v6315, 3
    %v6318 = vshll.u32 %v5940, 16
    %v6320 = vrot.slane %v6318, 4
    %v6321 = vor.u32 %v6317, %v6320
    %v6322 = vsel %vm4700, %v6287, %v6321
    %v6324 = vshrl.u32 %v5630, 16
    %v6326 = vrot.slane %v6324, 3
    %v6327 = vshll.u32 %v5630, 16
    %v6329 = vrot.slane %v6327, 4
    %v6330 = vor.u32 %v6326, %v6329
    %v6331 = vsel %vm4700, %v6296, %v6330
    %v6332 = vshrl.u32 %v5968, 16
    %v6334 = vrot.slane %v6332, 3
    %v6335 = vshll.u32 %v5968, 16
    %v6337 = vrot.slane %v6335, 4
    %v6338 = vor.u32 %v6334, %v6337
    %v6339 = vsel %vm4700, %v6304, %v6338
    %v6340 = vshrl.u32 %v5995, 16
    %v6342 = vrot.slane %v6340, 3
    %v6343 = vshll.u32 %v5995, 16
    %v6345 = vrot.slane %v6343, 4
    %v6346 = vor.u32 %v6342, %v6345
    %v6347 = vsel %vm4700, %v6312, %v6346
    %v6349 = vshrl.u32 %v5941, 16
    %v6351 = vrot.slane %v6349, 3
    %v6352 = vshll.u32 %v5941, 16
    %v6354 = vrot.slane %v6352, 4
    %v6355 = vor.u32 %v6351, %v6354
    %v6356 = vsel %vm4700, %v6321, %v6355
    %v6435 = vunpack.c.l.b16 %v5996
    %v6436 = vunpack.c.l.b16 %v5997
    %v6437 = vunpack.c.l.b16 %v5998
    %v6438 = vunpack.c.l.b16 %v5999
    %v6439 = vunpack.c.l.b16 %v6000
    %v6440 = vunpack.c.l.b16 %v6001
    %v6441 = vunpack.c.l.b16 %v6002
    %v6442 = vunpack.c.l.b16 %v6003
    %v6443 = vunpack.c.l.b16 %v6004
    %v6444 = vunpack.c.l.b16 %v6005
    %v6445 = vunpack.c.l.b16 %v6006
    %v6446 = vunpack.c.l.b16 %v6007
    %v6447 = vunpack.c.l.b16 %v6008
    %v6448 = vunpack.c.l.b16 %v6009
    %v6449 = vunpack.c.l.b16 %v6010
    %v6450 = vunpack.c.l.b16 %v6011
    %v6451 = vunpack.c.l.b16 %v6012
    %v6452 = vunpack.c.l.b16 %v6013
    %v6453 = vunpack.c.l.b16 %v6014
    %v6454 = vunpack.c.l.b16 %v6015
    %v6455 = vunpack.c.l.b16 %v6016
    %v6456 = vunpack.c.l.b16 %v6017
    %v6457 = vunpack.c.l.b16 %v6018
    %v6458 = vunpack.c.l.b16 %v6019
    %v6459 = vunpack.c.l.b16 %v6020
    %v6460 = vunpack.c.l.b16 %v6021
    %v6461 = vunpack.c.l.b16 %v6022
    %v6462 = vunpack.c.l.b16 %v6023
    %v6463 = vunpack.c.l.b16 %v6024
    %v6464 = vunpack.c.l.b16 %v6025
    %v6465 = vunpack.c.l.b16 %v6026
    %v6466 = vunpack.c.l.b16 %v6027
    %v6467 = vunpack.c.l.b16 %v6028
    %v6468 = vunpack.c.l.b16 %v6029
    %v6469 = vunpack.c.l.b16 %v6030
    %v6470 = vunpack.c.l.b16 %v6031
    %v6471 = vunpack.c.l.b16 %v6032
    %v6472 = vunpack.c.l.b16 %v6033
    %v6473 = vunpack.c.l.b16 %v6034
    %v6474 = vunpack.c.l.b16 %v6035
    %v6475 = vunpack.c.l.b16 %v6036
    %v6476 = vunpack.c.l.b16 %v6037
    %v6477 = vunpack.c.l.b16 %v6038
    %v6478 = vunpack.c.l.b16 %v6039
    %v6479 = vunpack.c.l.b16 %v6040
    %v6480 = vunpack.c.l.b16 %v6041
    %v6481 = vunpack.c.l.b16 %v6042
    %v6482 = vunpack.c.l.b16 %v6043
    %v6483 = vunpack.c.l.b16 %v6044
    %v6484 = vunpack.c.l.b16 %v6045
    %v6485 = vunpack.c.l.b16 %v6046
    %v6486 = vunpack.c.l.b16 %v6047
    %v6487 = vunpack.c.l.b16 %v6048
    %v6488 = vunpack.c.l.b16 %v6049
    %v6489 = vpack.c.b16 %v6436, %v6435
    %v6490 = vpack.c.b16 %v6438, %v6437
    %v6491 = vpack.c.b16 %v6440, %v6439
    %v6492 = vpack.c.b16 %v6442, %v6441
    %v6493 = vpack.c.b16 %v6444, %v6443
    %v6494 = vpack.c.b16 %v6446, %v6445
    %v6495 = vpack.c.b16 %v6448, %v6447
    %v6496 = vpack.c.b16 %v6450, %v6449
    %v6497 = vpack.c.b16 %v6452, %v6451
    %v6498 = vpack.c.b16 %v6454, %v6453
    %v6499 = vpack.c.b16 %v6456, %v6455
    %v6500 = vpack.c.b16 %v6458, %v6457
    %v6501 = vpack.c.b16 %v6460, %v6459
    %v6502 = vpack.c.b16 %v6462, %v6461
    %v6503 = vpack.c.b16 %v6464, %v6463
    %v6504 = vpack.c.b16 %v6466, %v6465
    %v6505 = vpack.c.b16 %v6468, %v6467
    %v6506 = vpack.c.b16 %v6470, %v6469
    %v6507 = vpack.c.b16 %v6472, %v6471
    %v6508 = vpack.c.b16 %v6474, %v6473
    %v6509 = vpack.c.b16 %v6476, %v6475
    %v6510 = vpack.c.b16 %v6478, %v6477
    %v6511 = vpack.c.b16 %v6480, %v6479
    %v6512 = vpack.c.b16 %v6482, %v6481
    %v6513 = vpack.c.b16 %v6484, %v6483
    %v6514 = vpack.c.b16 %v6486, %v6485
    %v6515 = vpack.c.b16 %v6488, %v6487
    %v6544 = vsel %vm5297, %v6118, 0
    %v6547 = vsel %vm5297, %v6152, 0
    %v6550 = vsel %vm5297, %v6186, 0
    %v6553 = vsel %vm5297, %v6220, 0
    %v6556 = vsel %vm5297, %v6254, 0
    %v6559 = vsel %vm5297, %v6288, 0
    %v6562 = vsel %vm5297, %v6322, 0
    %v6565 = vsel %vm5297, %v6356, 0
    %6567 = vmatprep.subr.bf16.mxu0 0
    %6568 = vmatpush1.bf16.msra.mxu0 %v6496
    %6569 = vmatprep.subr.bf16.mxu0 0
    %6570 = vmatpush1.bf16.msra.mxu0 %v6495
    %6571 = vmatprep.subr.bf16.mxu0 0
    %6572 = vmatpush1.bf16.msra.mxu0 %v6494
    %6573 = vmatprep.subr.bf16.mxu0 0
    %6574 = vmatpush1.bf16.msra.mxu0 %v6493
    %6575 = vmatprep.subr.bf16.mxu0 0
    %6576 = vmatpush1.bf16.msra.mxu0 %v6492
    %6577 = vmatprep.subr.bf16.mxu0 0
    %6578 = vmatpush1.bf16.msra.mxu0 %v6491
    %6579 = vmatprep.subr.bf16.mxu0 0
    %6580 = vmatpush1.bf16.msra.mxu0 %v6490
    %6581 = vmatprep.subr.bf16.mxu0 0
    %6582 = vmatpush1.bf16.msra.mxu0 %v6489
    %6583 = vmatprep.subr.bf16.mxu0 0
    %6584 = vmatpush2.bf16.msra.mxu0 %v6504
    %6585 = vmatprep.subr.bf16.mxu0 0
    %6586 = vmatpush2.bf16.msra.mxu0 %v6503
    %6587 = vmatprep.subr.bf16.mxu0 0
    %6588 = vmatpush2.bf16.msra.mxu0 %v6502
    %6589 = vmatprep.subr.bf16.mxu0 0
    %6590 = vmatpush2.bf16.msra.mxu0 %v6501
    %6591 = vmatprep.subr.bf16.mxu0 0
    %6592 = vmatpush2.bf16.msra.mxu0 %v6500
    %6593 = vmatprep.subr.bf16.mxu0 0
    %6594 = vmatpush2.bf16.msra.mxu0 %v6499
    %6595 = vmatprep.subr.bf16.mxu0 0
    %6596 = vmatpush2.bf16.msra.mxu0 %v6498
    %6597 = vmatprep.subr.bf16.mxu0 0
    %6598 = vmatpush2.bf16.msra.mxu0 %v6497
    %6599 = vmatprep.mubr.bf16.mxu0 %v6086
    %6600 = vmatmul.mubr.bf16.gmra.mxu0 %v6071
    %v6601 = vpop.f32.mrf.mxu0
    %v6602 = vpop.f32.mrf.mxu0
    %v6603 = vpop.f32.mrf.mxu0
    %v6604 = vadd.f32 %v6054, %v6603
    %v6605 = vpop.f32.mrf.mxu0
    %6606 = vmatprep.mubr.bf16.mxu0 %v6135
    %6607 = vmatmul.mubr.bf16.gmra.mxu0 %v6127
    %v6608 = vpop.f32.mrf.mxu0
    %v6609 = vadd.f32 %v6054, %v6608
    %v6610 = vpop.f32.mrf.mxu0
    %v6611 = vpop.f32.mrf.mxu0
    %v6612 = vadd.f32 %v6054, %v6611
    %v6613 = vpop.f32.mrf.mxu0
    %6614 = vmatprep.mubr.bf16.mxu0 %v6169
    %6615 = vmatmul.mubr.bf16.gmra.mxu0 %v6161
    %v6616 = vpop.f32.mrf.mxu0
    %v6617 = vpop.f32.mrf.mxu0
    %v6618 = vpop.f32.mrf.mxu0
    %v6619 = vadd.f32 %v6054, %v6618
    %v6620 = vpop.f32.mrf.mxu0
    %6621 = vmatprep.mubr.bf16.mxu0 %v6203
    %6622 = vmatmul.mubr.bf16.gmra.mxu0 %v6195
    %v6623 = vpop.f32.mrf.mxu0
    %v6624 = vadd.f32 %v6054, %v6623
    %v6625 = vpop.f32.mrf.mxu0
    %v6626 = vpop.f32.mrf.mxu0
    %v6627 = vadd.f32 %v6054, %v6626
    %v6628 = vpop.f32.mrf.mxu0
    %6629 = vmatprep.mubr.bf16.mxu0 %v6237
    %6630 = vmatmul.mubr.bf16.gmra.mxu0 %v6229
    %v6631 = vpop.f32.mrf.mxu0
    %v6632 = vpop.f32.mrf.mxu0
    %v6633 = vpop.f32.mrf.mxu0
    %v6634 = vadd.f32 %v6054, %v6633
    %v6635 = vpop.f32.mrf.mxu0
    %6636 = vmatprep.mubr.bf16.mxu0 %v6271
    %6637 = vmatmul.mubr.bf16.gmra.mxu0 %v6263
    %v6638 = vpop.f32.mrf.mxu0
    %v6639 = vadd.f32 %v6054, %v6638
    %v6640 = vpop.f32.mrf.mxu0
    %v6641 = vpop.f32.mrf.mxu0
    %v6642 = vadd.f32 %v6054, %v6641
    %v6643 = vpop.f32.mrf.mxu0
    %6644 = vmatprep.mubr.bf16.mxu0 %v6305
    %6645 = vmatmul.mubr.bf16.gmra.mxu0 %v6297
    %v6646 = vpop.f32.mrf.mxu0
    %v6647 = vpop.f32.mrf.mxu0
    %v6648 = vpop.f32.mrf.mxu0
    %v6649 = vadd.f32 %v6054, %v6648
    %v6650 = vpop.f32.mrf.mxu0
    %6651 = vmatprep.mubr.bf16.mxu0 %v6339
    %6652 = vmatmul.mubr.bf16.gmra.mxu0 %v6331
    %v6653 = vpop.f32.mrf.mxu0
    %v6654 = vadd.f32 %v6054, %v6653
    %v6655 = vpop.f32.mrf.mxu0
    %v6656 = vpop.f32.mrf.mxu0
    %v6657 = vadd.f32 %v6054, %v6656
    %v6658 = vpop.f32.mrf.mxu0
    %6659 = vdwg.mxu0
    %6660 = vmatprep.subr.bf16.mxu0 0
    %6661 = vmatpush1.bf16.msra.mxu0 %v6512
    %6662 = vmatprep.subr.bf16.mxu0 0
    %6663 = vmatpush1.bf16.msra.mxu0 %v6511
    %6664 = vmatprep.subr.bf16.mxu0 0
    %6665 = vmatpush1.bf16.msra.mxu0 %v6510
    %6666 = vmatprep.subr.bf16.mxu0 0
    %6667 = vmatpush1.bf16.msra.mxu0 %v6509
    %6668 = vmatprep.subr.bf16.mxu0 0
    %6669 = vmatpush1.bf16.msra.mxu0 %v6508
    %6670 = vmatprep.subr.bf16.mxu0 0
    %6671 = vmatpush1.bf16.msra.mxu0 %v6507
    %6672 = vmatprep.subr.bf16.mxu0 0
    %6673 = vmatpush1.bf16.msra.mxu0 %v6506
    %6674 = vmatprep.subr.bf16.mxu0 0
    %6675 = vmatpush1.bf16.msra.mxu0 %v6505
    %6676 = vmatprep.subr.bf16.mxu0 0
    %6677 = vmatpush2.bf16.msra.mxu0 0
    %6678 = vmatprep.subr.bf16.mxu0 0
    %6679 = vmatpush2.bf16.msra.mxu0 0
    %6680 = vmatprep.subr.bf16.mxu0 0
    %6681 = vmatpush2.bf16.msra.mxu0 0
    %6682 = vmatprep.subr.bf16.mxu0 0
    %6683 = vmatpush2.bf16.msra.mxu0 0
    %6684 = vmatprep.subr.bf16.mxu0 0
    %6685 = vmatpush2.bf16.msra.mxu0 0
    %6686 = vmatprep.subr.bf16.mxu0 0
    %6687 = vmatpush2.bf16.msra.mxu0 %v6515
    %6688 = vmatprep.subr.bf16.mxu0 0
    %6689 = vmatpush2.bf16.msra.mxu0 %v6514
    %6690 = vmatprep.subr.bf16.mxu0 0
    %6691 = vmatpush2.bf16.msra.mxu0 %v6513
    %6692 = vmatprep.mubr.bf16.mxu0 %v6544
    %6693 = vmatmul.mubr.bf16.gmra.mxu0 %v6101
    %v6694 = vpop.f32.mrf.mxu0
    %v6695 = vpop.f32.mrf.mxu0
    %v6696 = vpop.f32.mrf.mxu0
    %v6697 = vadd.f32 %v6604, %v6696
    %v6698 = vpop.f32.mrf.mxu0
    %6699 = vmatprep.mubr.bf16.mxu0 %v6547
    %6700 = vmatmul.mubr.bf16.gmra.mxu0 %v6143
    %v6701 = vpop.f32.mrf.mxu0
    %v6702 = vadd.f32 %v6609, %v6701
    %v6703 = vpop.f32.mrf.mxu0
    %v6704 = vpop.f32.mrf.mxu0
    %v6705 = vadd.f32 %v6612, %v6704
    %v6706 = vpop.f32.mrf.mxu0
    %6707 = vmatprep.mubr.bf16.mxu0 %v6550
    %6708 = vmatmul.mubr.bf16.gmra.mxu0 %v6177
    %v6709 = vpop.f32.mrf.mxu0
    %v6710 = vpop.f32.mrf.mxu0
    %v6711 = vpop.f32.mrf.mxu0
    %v6712 = vadd.f32 %v6619, %v6711
    %v6713 = vpop.f32.mrf.mxu0
    %6714 = vmatprep.mubr.bf16.mxu0 %v6553
    %6715 = vmatmul.mubr.bf16.gmra.mxu0 %v6211
    %v6716 = vpop.f32.mrf.mxu0
    %v6717 = vadd.f32 %v6624, %v6716
    %v6718 = vpop.f32.mrf.mxu0
    %v6719 = vpop.f32.mrf.mxu0
    %v6720 = vadd.f32 %v6627, %v6719
    %v6721 = vpop.f32.mrf.mxu0
    %6722 = vmatprep.mubr.bf16.mxu0 %v6556
    %6723 = vmatmul.mubr.bf16.gmra.mxu0 %v6245
    %v6724 = vpop.f32.mrf.mxu0
    %v6725 = vpop.f32.mrf.mxu0
    %v6726 = vpop.f32.mrf.mxu0
    %v6727 = vadd.f32 %v6634, %v6726
    %v6728 = vpop.f32.mrf.mxu0
    %6729 = vmatprep.mubr.bf16.mxu0 %v6559
    %6730 = vmatmul.mubr.bf16.gmra.mxu0 %v6279
    %v6731 = vpop.f32.mrf.mxu0
    %v6732 = vadd.f32 %v6639, %v6731
    %v6733 = vpop.f32.mrf.mxu0
    %v6734 = vpop.f32.mrf.mxu0
    %v6735 = vadd.f32 %v6642, %v6734
    %v6736 = vpop.f32.mrf.mxu0
    %6737 = vmatprep.mubr.bf16.mxu0 %v6562
    %6738 = vmatmul.mubr.bf16.gmra.mxu0 %v6313
    %v6739 = vpop.f32.mrf.mxu0
    %v6740 = vpop.f32.mrf.mxu0
    %v6741 = vpop.f32.mrf.mxu0
    %v6742 = vadd.f32 %v6649, %v6741
    %v6743 = vpop.f32.mrf.mxu0
    %6744 = vmatprep.mubr.bf16.mxu0 %v6565
    %6745 = vmatmul.mubr.bf16.gmra.mxu0 %v6347
    %v6746 = vpop.f32.mrf.mxu0
    %v6747 = vadd.f32 %v6654, %v6746
    %v6748 = vpop.f32.mrf.mxu0
    %v6749 = vpop.f32.mrf.mxu0
    %v6750 = vadd.f32 %v6657, %v6749
    %v6751 = vpop.f32.mrf.mxu0
    %6752 = vdwg.mxu0
    %v6753 = vld [vmem:[%s20] sm:$0xff]
    %v6754 = vld [vmem:[%s20 + $0x8] sm:$0xff]
    %v6755 = vld [vmem:[%s20 + $0x10] sm:$0x1]
    %v6756 = vadd.f32 %v6753, %v6697
    %v6757 = vadd.f32 %v6754, %v6702
    %v6758 = vadd.f32 %v6755, %v6705
    %v6759 = vmax.f32 %v6756, 0.0
    %v6760 = vmax.f32 %v6757, 0.0
    %v6761 = vmax.f32 %v6758, 0.0
    %6762 = vst.msk [vmem:[%s20] sm:$0xff] %vm2273, %v6759
    %6763 = vst.msk [vmem:[%s20 + $0x8] sm:$0xff] %vm2273, %v6760
    %6764 = vst.msk [vmem:[%s20 + $0x10] sm:$0x1] %vm2509, %v6761
    %v6765 = vld [vmem:[%s20] sm:$0xff]
    %v6766 = vld [vmem:[%s20 + $0x8] sm:$0xff]
    %v6767 = vld [vmem:[%s20 + $0x10] sm:$0x1]
    %6771 = vrot.lane.b32.xlu0 %v6712, 9
    %v6772 = vpop.permute.xlu0 %6771
    %6773 = vrot.lane.b32.xlu0 %v6717, 9
    %v6774 = vpop.permute.xlu0 %6773
    %6775 = vrot.lane.b32.xlu0 %v6720, 9
    %v6776 = vpop.permute.xlu0 %6775
    %v6780 = vadd.f32 %v6765, %v6772
    %v6781 = vadd.f32 %v6766, %v6774
    %v6782 = vadd.f32 %v6767, %v6776
    %v6783 = vmax.f32 %v6780, 0.0
    %v6784 = vmax.f32 %v6781, 0.0
    %v6785 = vmax.f32 %v6782, 0.0
    %6786 = vst.msk [vmem:[%s20] sm:$0xff] %vm2523, %v6783
    %6787 = vst.msk [vmem:[%s20 + $0x8] sm:$0xff] %vm2523, %v6784
    %6788 = vst.msk [vmem:[%s20 + $0x10] sm:$0x1] %vm2526, %v6785
    %v6789 = vld [vmem:[%s20] sm:$0xff]
    %v6790 = vld [vmem:[%s20 + $0x8] sm:$0xff]
    %v6791 = vld [vmem:[%s20 + $0x10] sm:$0x1]
    %6795 = vrot.lane.b32.xlu0 %v6727, 18
    %v6796 = vpop.permute.xlu0 %6795
    %6797 = vrot.lane.b32.xlu0 %v6732, 18
    %v6798 = vpop.permute.xlu0 %6797
    %6799 = vrot.lane.b32.xlu0 %v6735, 18
    %v6800 = vpop.permute.xlu0 %6799
    %v6804 = vadd.f32 %v6789, %v6796
    %v6805 = vadd.f32 %v6790, %v6798
    %v6806 = vadd.f32 %v6791, %v6800
    %v6807 = vmax.f32 %v6804, 0.0
    %v6808 = vmax.f32 %v6805, 0.0
    %v6809 = vmax.f32 %v6806, 0.0
    %6810 = vst.msk [vmem:[%s20] sm:$0xff] %vm2528, %v6807
    %6811 = vst.msk [vmem:[%s20 + $0x8] sm:$0xff] %vm2528, %v6808
    %6812 = vst.msk [vmem:[%s20 + $0x10] sm:$0x1] %vm2531, %v6809
    %v6813 = vld [vmem:[%s20] sm:$0xff]
    %v6814 = vld [vmem:[%s20 + $0x8] sm:$0xff]
    %v6815 = vld [vmem:[%s20 + $0x10] sm:$0x1]
    %6819 = vrot.lane.b32.xlu0 %v6742, 27
    %v6820 = vpop.permute.xlu0 %6819
    %6821 = vrot.lane.b32.xlu0 %v6747, 27
    %v6822 = vpop.permute.xlu0 %6821
    %6823 = vrot.lane.b32.xlu0 %v6750, 27
    %v6824 = vpop.permute.xlu0 %6823
    %v6828 = vadd.f32 %v6813, %v6820
    %v6829 = vadd.f32 %v6814, %v6822
    %v6830 = vadd.f32 %v6815, %v6824
    %v6831 = vmax.f32 %v6828, 0.0
    %v6832 = vmax.f32 %v6829, 0.0
    %v6833 = vmax.f32 %v6830, 0.0
    %6834 = vst.msk [vmem:[%s20] sm:$0xff] %vm2548, %v6831
    %6835 = vst.msk [vmem:[%s20 + $0x8] sm:$0xff] %vm2548, %v6832
    %6836 = vst.msk [vmem:[%s20 + $0x10] sm:$0x1] %vm2551, %v6833
    // Predicated region
    $region176: #{avcloud_dir_forward.1} parent=1 // pred_check
      _
    $region177: #{avcloud_dir_forward.1} parent=1 // pred_check_branch
      %6838 = sbr.rel (0) target = $region179
    $region178: #{avcloud_dir_forward.1} parent=1 // pred_region
      _
    $region179: #{avcloud_dir_forward.1} parent=1 // pred_fallthru
      _
    // Predicated region
    $region180: #{avcloud_dir_forward.1} parent=1 // pred_check
      _
    $region181: #{avcloud_dir_forward.1} parent=1 // pred_check_branch
      %6840 = sbr.rel (0) target = $region183
    $region182: #{avcloud_dir_forward.1} parent=1 // pred_region
      _
    $region183: #{avcloud_dir_forward.1} parent=1 // pred_fallthru
      _
    %6841 = vsyncpa [#allocation8], 1
  %6842 = vsyncmov [#allocation6]
  %s6843 = vpop.sfrf %6842
  %p6844 = scmp.eq.s32.totalorder %s6843, 0
  %p6845 = pneg %p6844
  %6847 = shalt.err (%p6845)
  %s6848 = scalar_lea.sflag [#allocation6], 1
  %6849 = vsyncmov %s6848
  %s6850 = vpop.sfrf %6849
  %p6851 = scmp.eq.s32.totalorder %s6850, 0
  %p6852 = pneg %p6851
  %6854 = shalt.err (%p6852)
  %s6855 = scalar_lea.sflag [#allocation6], 2
  %6856 = vsyncmov %s6855
  %s6857 = vpop.sfrf %6856
  %p6858 = scmp.eq.s32.totalorder %s6857, 0
  %p6859 = pneg %p6858
  %6861 = shalt.err (%p6859)

</llo_original>
